<compile_context>
chip_gen: v6e
topology: v6e:2x2x1
jax: 0.10.0
libtpu: 0.0.40
codegen_flags: <defaults>
</compile_context>

<pallas_src>
import functools

import jax
import jax.numpy as jnp
from jax.experimental import pallas as pl
from jax.experimental.pallas import tpu as pltpu

INPUT = 40
HIDDEN = 256
FC1 = 128
NCLASS = 3
# HIGHEST kept only for the (cheap, hoisted) wrapper-side f32 matmuls; the
# recurrent matmuls inside the kernel run bf16 x bf16 -> f32 on the MXU.
PREC_HI = jax.lax.Precision.HIGHEST


def _sigmoid(x):
    # logistic via tanh: one EUP transcendental per gate instead of exp+divide.
    return 0.5 * jnp.tanh(0.5 * x) + 0.5


def _gates_to_hc(gates, c_prev):
    # PyTorch gate order: i, f, g, o
    i = _sigmoid(gates[:, 0 * HIDDEN:1 * HIDDEN])
    f = _sigmoid(gates[:, 1 * HIDDEN:2 * HIDDEN])
    g = jnp.tanh(gates[:, 2 * HIDDEN:3 * HIDDEN])
    o = _sigmoid(gates[:, 3 * HIDDEN:4 * HIDDEN])
    c_new = f * c_prev + i * g
    h_new = o * jnp.tanh(c_new)
    return h_new, c_new


def _bdot(a_f32, w_bf16):
    """bf16 x bf16 MXU matmul with f32 accumulation."""
    return jnp.dot(a_f32.astype(jnp.bfloat16), w_bf16,
                   preferred_element_type=jnp.float32)


def _lstm_seq_kernel(gx_ref, whh1_ref, wih2_ref, whh2_ref, b2_ref,
                     h2seq_ref, hn_ref, cn_ref,
                     *, t_actual, tt, need_mask, unroll):
    """One grid step = tt timesteps of the 2-layer LSTM recurrence.

    gx_ref:   (tt, Bp, 4H) f32  precomputed x_t @ Wih1^T + (b_ih1 + b_hh1)
    whh1_ref: (H, 4H)  bf16     layer-1 recurrent weights (transposed)
    wih2_ref: (H, 4H)  bf16     layer-2 input weights (transposed)
    whh2_ref: (H, 4H)  bf16     layer-2 recurrent weights (transposed)
    b2_ref:   (1, 4H)  f32      layer-2 combined bias
    h2seq_ref:(tt, Bp, H) f32   layer-2 hidden sequence (lane-dense output)
    hn_ref / cn_ref: (2, Bp, H) constant-index output blocks used directly as
                     the VMEM-resident recurrent state across grid steps.
    """
    c = pl.program_id(0)

    # hidden=None -> zero initial state (PyTorch default)
    @pl.when(c == 0)
    def _():
        hn_ref[...] = jnp.zeros_like(hn_ref)
        cn_ref[...] = jnp.zeros_like(cn_ref)

    # Load state once per chunk (not per step).
    h1 = hn_ref[0]
    c1 = cn_ref[0]
    h2 = hn_ref[1]
    c2 = cn_ref[1]

    whh1 = whh1_ref[...]
    wih2 = wih2_ref[...]
    whh2 = whh2_ref[...]
    # Hoist the (1,4H)->(Bp,4H) broadcast out of the unrolled loop
    # (JAX does not CSE broadcast_in_dim).
    b2b = jnp.broadcast_to(b2_ref[...], (h1.shape[0], b2_ref.shape[1]))

    t_base = c * tt

    def step(t, carry):
        h1, c1, h2, c2 = carry
        # layer 1: input projection hoisted -> single K=256 bf16 dot
        g1 = gx_ref[t] + _bdot(h1, whh1)
        h1n, c1n = _gates_to_hc(g1, c1)
        # layer 2: un-fused; the h2-dot has no dep on h1n -> overlaps layer-1
        # EUP/VPU work; no per-step lane-concat.
        g2 = _bdot(h2, whh2) + _bdot(h1n, wih2) + b2b
        h2n, c2n = _gates_to_hc(g2, c2)
        h2seq_ref[t] = h2n
        if need_mask:
            # Padded-tail guard: don't advance state past the true sequence end.
            valid = (t_base + t) < t_actual
            h1n = jnp.where(valid, h1n, h1)
            c1n = jnp.where(valid, c1n, c1)
            h2n = jnp.where(valid, h2n, h2)
            c2n = jnp.where(valid, c2n, c2)
        return h1n, c1n, h2n, c2n

    h1, c1, h2, c2 = jax.lax.fori_loop(0, tt, step, (h1, c1, h2, c2),
                                       unroll=unroll)

    # Write state back once per chunk; last chunk's write is h_n / c_n.
    hn_ref[0] = h1
    hn_ref[1] = h2
    cn_ref[0] = c1
    cn_ref[1] = c2


def audio_classifier_lstm_forward(x, params, max_chunk=32, unroll=8):
    """x: (B, T, 40) f32 -> (outputs (B,T,3), (h_n (2,B,256), c_n (2,B,256))).

    TODO(synk): user-provided initial `hidden` (non-None) is not plumbed through;
    PyTorch default hidden=None (zeros) is implemented.
    TODO(synk): on v7x, split the padded batch across the 2 TensorCores with a
    leading 'parallel' grid axis once Bp >= 16 (or layer-pipeline via core_map).
    TODO(synk): on v5e, optionally fuse FC1+ReLU into the kernel epilogue to
    halve the h2seq writeback, and mark the constant weight specs Buffered(1).
    """
    B, T, F = x.shape
    assert F == INPUT
    (wih1_T, whh1_T, b1, wih2_T, whh2_T, b2,
     fc1_T, bfc1, fc2_T, bfc2) = params

    # Pad batch to the f32 sublane multiple (8).
    Bp = ((B + 7) // 8) * 8
    x_p = jnp.pad(x, ((0, Bp - B), (0, 0), (0, 0)))

    # Balanced time chunking: pad T up to n_chunks * tt and mask the tail in
    # the kernel (no more "largest divisor of T" -> tt=1 fallback).
    n_chunks = -(-T // max_chunk)
    tt = -(-T // n_chunks)
    Tp = tt * n_chunks

    # Transpose the small (Bp,T,40) input, then do the hoisted layer-1 input
    # projection directly in (T,Bp,4H) — avoids transposing the 25x larger gx.
    x_tm = jnp.transpose(x_p, (1, 0, 2))                               # (T,Bp,40)
    gx_tm = jnp.einsum('tbf,fg->tbg', x_tm, wih1_T,
                       precision=PREC_HI) + b1                        # (T,Bp,4H)
    if Tp != T:
        gx_tm = jnp.pad(gx_tm, ((0, Tp - T), (0, 0), (0, 0)))

    # bf16 weights for single-pass MXU matmuls (f32 accumulation in-kernel).
    whh1_b = whh1_T.astype(jnp.bfloat16)
    wih2_b = wih2_T.astype(jnp.bfloat16)
    whh2_b = whh2_T.astype(jnp.bfloat16)

    kernel = functools.partial(
        _lstm_seq_kernel, t_actual=T, tt=tt, need_mask=(Tp != T),
        unroll=max(1, min(unroll, tt)))

    def const_spec(shape):
        return pl.BlockSpec(shape, lambda c: (0,) * len(shape))

    grid_spec = pltpu.PrefetchScalarGridSpec(
        num_scalar_prefetch=0,
        grid=(n_chunks,),
        in_specs=[
            pl.BlockSpec((tt, Bp, 4 * HIDDEN), lambda c: (c, 0, 0)),  # gate stream
            const_spec(whh1_b.shape),
            const_spec(wih2_b.shape),
            const_spec(whh2_b.shape),
            const_spec(b2.shape),
        ],
        out_specs=[
            pl.BlockSpec((tt, Bp, HIDDEN), lambda c: (c, 0, 0)),      # h2 sequence
            pl.BlockSpec((2, Bp, HIDDEN), lambda c: (0, 0, 0)),       # h_n (state)
            pl.BlockSpec((2, Bp, HIDDEN), lambda c: (0, 0, 0)),       # c_n (state)
        ],
    )

    h2_tm, h_n, c_n = pl.pallas_call(
        kernel,
        out_shape=(
            jax.ShapeDtypeStruct((Tp, Bp, HIDDEN), jnp.float32),
            jax.ShapeDtypeStruct((2, Bp, HIDDEN), jnp.float32),
            jax.ShapeDtypeStruct((2, Bp, HIDDEN), jnp.float32),
        ),
        grid_spec=grid_spec,
        compiler_params=pltpu.CompilerParams(
            dimension_semantics=("arbitrary",)),  # time recurrence is sequential
    )(gx_tm, whh1_b, wih2_b, whh2_b, b2)

    # FC head hoisted out of the recurrence: one batched matmul chain.
    h2_tm = h2_tm[:T]
    y = jnp.maximum(
        jnp.einsum('tbh,hf->tbf', h2_tm, fc1_T, precision=PREC_HI) + bfc1, 0.0)
    y = jnp.einsum('tbf,fc->tbc', y, fc2_T, precision=PREC_HI) + bfc2  # (T,Bp,3)

    outputs = jnp.transpose(y, (1, 0, 2))[:B]                          # (B,T,3)
    return outputs, (h_n[:, :B, :], c_n[:, :B, :])


def init_params(key):
    """Deterministic init mimicking PyTorch defaults (uniform(-k, k)).

    Weights stored transposed for `x @ W^T`:
      wihL_T: (in_L, 4H), whhL_T: (H, 4H), bL = b_ih + b_hh shape (1, 4H),
      fc1_T: (H, FC1), fc2_T: (FC1, NCLASS), fc biases (1, out).
    """
    ks = jax.random.split(key, 14)
    k_lstm = 1.0 / jnp.sqrt(HIDDEN)

    def u(k, shape, bound):
        return jax.random.uniform(k, shape, jnp.float32, -bound, bound)

    wih1_T = u(ks[0], (INPUT, 4 * HIDDEN), k_lstm)
    whh1_T = u(ks[1], (HIDDEN, 4 * HIDDEN), k_lstm)
    b1 = u(ks[2], (1, 4 * HIDDEN), k_lstm) + u(ks[3], (1, 4 * HIDDEN), k_lstm)
    wih2_T = u(ks[4], (HIDDEN, 4 * HIDDEN), k_lstm)
    whh2_T = u(ks[5], (HIDDEN, 4 * HIDDEN), k_lstm)
    b2 = u(ks[6], (1, 4 * HIDDEN), k_lstm) + u(ks[7], (1, 4 * HIDDEN), k_lstm)

    k_fc1 = 1.0 / jnp.sqrt(HIDDEN)
    k_fc2 = 1.0 / jnp.sqrt(FC1)
    fc1_T = u(ks[8], (HIDDEN, FC1), k_fc1)
    bfc1 = u(ks[9], (1, FC1), k_fc1)
    fc2_T = u(ks[10], (FC1, NCLASS), k_fc2)
    bfc2 = u(ks[11], (1, NCLASS), k_fc2)

    return (wih1_T, whh1_T, b1, wih2_T, whh2_T, b2, fc1_T, bfc1, fc2_T, bfc2)


def reference_forward(x, params, bf16_matmul=False):
    """Pure-JAX, per-step reference of the PyTorch semantics.

    bf16_matmul=False -> f32 HIGHEST ground truth (PyTorch math).
    bf16_matmul=True  -> same recurrent-dot quantization as the kernel
                         (bf16 operands, f32 accumulation) for a tight check.
    """
    (wih1_T, whh1_T, b1, wih2_T, whh2_T, b2, fc1_T, bfc1, fc2_T, bfc2) = params
    B, T, _ = x.shape

    if bf16_matmul:
        whh1m = whh1_T.astype(jnp.bfloat16)
        wih2m = wih2_T.astype(jnp.bfloat16)
        whh2m = whh2_T.astype(jnp.bfloat16)
        rdot = _bdot
    else:
        whh1m, wih2m, whh2m = whh1_T, wih2_T, whh2_T

        def rdot(a, w):
            return jnp.dot(a, w, precision=PREC_HI)

    h1 = jnp.zeros((B, HIDDEN), jnp.float32)
    c1 = jnp.zeros((B, HIDDEN), jnp.float32)
    h2 = jnp.zeros((B, HIDDEN), jnp.float32)
    c2 = jnp.zeros((B, HIDDEN), jnp.float32)
    outs = []
    for t in range(T):
        xt = x[:, t, :]
        g1 = (jnp.dot(xt, wih1_T, precision=PREC_HI) + b1) + rdot(h1, whh1m)
        h1, c1 = _gates_to_hc(g1, c1)
        g2 = (rdot(h2, whh2m) + rdot(h1, wih2m)) + b2
        h2, c2 = _gates_to_hc(g2, c2)
        y = jnp.maximum(jnp.dot(h2, fc1_T, precision=PREC_HI) + bfc1, 0.0)
        y = jnp.dot(y, fc2_T, precision=PREC_HI) + bfc2
        outs.append(y)
    outputs = jnp.stack(outs, axis=1)  # (B, T, 3)
    return outputs, (jnp.stack([h1, h2], 0), jnp.stack([c1, c2], 0))


def _check(out, hc, x, params, tight_tol, loose_tol):
    h_n, c_n = hc
    B, T, _ = x.shape
    assert out.shape == (B, T, NCLASS)
    assert h_n.shape == (2, B, HIDDEN) and c_n.shape == (2, B, HIDDEN)

    # Tight check vs a reference that quantizes the recurrent dots like the kernel.
    rb_out, (rb_h, rb_c) = reference_forward(x, params, bf16_matmul=True)
    assert jnp.allclose(out, rb_out, atol=tight_tol, rtol=tight_tol)
    assert jnp.allclose(h_n, rb_h, atol=tight_tol, rtol=tight_tol)
    assert jnp.allclose(c_n, rb_c, atol=tight_tol, rtol=tight_tol)

    # Loose check vs the f32 HIGHEST ground truth (PyTorch semantics).
    rf_out, (rf_h, rf_c) = reference_forward(x, params, bf16_matmul=False)
    assert jnp.allclose(out, rf_out, atol=loose_tol, rtol=loose_tol)
    assert jnp.allclose(h_n, rf_h, atol=loose_tol, rtol=loose_tol)
    assert jnp.allclose(c_n, rf_c, atol=loose_tol, rtol=loose_tol)


if __name__ == "__main__":
    key = jax.random.PRNGKey(0)
    pkey, xkey = jax.random.split(key)
    params = init_params(pkey)

    B = 2
    fwd = jax.jit(functools.partial(audio_classifier_lstm_forward,
                                    max_chunk=8, unroll=8))

    # Case 1: T divisible by the chunk (no tail masking).
    T = 16
    x = jax.random.normal(xkey, (B, T, INPUT), jnp.float32)
    outputs, hc = fwd(x, params)
    jax.block_until_ready((outputs, hc))
    _check(outputs, hc, x, params, tight_tol=2e-3, loose_tol=5e-2)

    # Case 2: awkward T (prime) -> exercises the padded-tail mask path.
    T2 = 13
    x2 = jax.random.normal(jax.random.PRNGKey(1), (B, T2, INPUT), jnp.float32)
    outputs2, hc2 = fwd(x2, params)
    jax.block_until_ready((outputs2, hc2))
    _check(outputs2, hc2, x2, params, tight_tol=2e-3, loose_tol=5e-2)

    print("KERNEL_OK")
</pallas_src>

<mosaic_0001>
module attributes {stable_mosaic.version = 11 : i64} {
  func.func @_lstm_seq_kernel(%arg0: i32, %arg1: memref<8x8x1024xf32, #tpu.memory_space<vmem>>, %arg2: memref<256x1024xbf16, #tpu.memory_space<vmem>>, %arg3: memref<256x1024xbf16, #tpu.memory_space<vmem>>, %arg4: memref<256x1024xbf16, #tpu.memory_space<vmem>>, %arg5: memref<1x1024xf32, #tpu.memory_space<vmem>>, %arg6: memref<8x8x256xf32, #tpu.memory_space<vmem>>, %arg7: memref<2x8x256xf32, #tpu.memory_space<vmem>>, %arg8: memref<2x8x256xf32, #tpu.memory_space<vmem>>) attributes {dimension_semantics = [#tpu.dimension_semantics<arbitrary>], iteration_bounds = array<i64: 2>, scalar_prefetch = 0 : i64, scratch_operands = 0 : i64, tpu.core_type = #tpu.core_type<tc>, window_params = [{transform_indices = @transform_0, window_bounds = array<i64: 8, 8, 1024>}, {pipeline_mode = #tpu.pipeline_mode<synchronous>, transform_indices = @transform_1, window_bounds = array<i64: 256, 1024>}, {pipeline_mode = #tpu.pipeline_mode<synchronous>, transform_indices = @transform_2, window_bounds = array<i64: 256, 1024>}, {pipeline_mode = #tpu.pipeline_mode<synchronous>, transform_indices = @transform_3, window_bounds = array<i64: 256, 1024>}, {pipeline_mode = #tpu.pipeline_mode<synchronous>, transform_indices = @transform_4, window_bounds = array<i64: 1, 1024>}, {transform_indices = @transform_5, window_bounds = array<i64: 8, 8, 256>}, {pipeline_mode = #tpu.pipeline_mode<synchronous>, transform_indices = @transform_6, window_bounds = array<i64: 2, 8, 256>}, {pipeline_mode = #tpu.pipeline_mode<synchronous>, transform_indices = @transform_7, window_bounds = array<i64: 2, 8, 256>}]} {
    %c0_i32 = arith.constant 0 : i32
    %0 = arith.cmpi eq, %arg0, %c0_i32 : i32
    %1 = arith.extui %0 : i1 to i32
    %c0_i32_0 = arith.constant 0 : i32
    %2 = arith.cmpi ne, %1, %c0_i32_0 : i32
    scf.if %2 {
      %cst_231 = arith.constant 0.000000e+00 : f32
      %653 = vector.broadcast %cst_231 : f32 to vector<2x8x256xf32>
      %c0_232 = arith.constant 0 : index
      %c0_233 = arith.constant 0 : index
      %c0_234 = arith.constant 0 : index
      %654 = vector.load %arg7[%c0_232, %c0_233, %c0_234] : memref<2x8x256xf32, #tpu.memory_space<vmem>>, vector<2x8x256xf32>
      tpu.vector_store %arg7[%c0_232, %c0_233, %c0_234], %653 {strides = array<i32>} : memref<2x8x256xf32, #tpu.memory_space<vmem>>, vector<2x8x256xf32>,
      %cst_235 = arith.constant 0.000000e+00 : f32
      %655 = vector.broadcast %cst_235 : f32 to vector<2x8x256xf32>
      %c0_236 = arith.constant 0 : index
      %c0_237 = arith.constant 0 : index
      %c0_238 = arith.constant 0 : index
      %656 = vector.load %arg8[%c0_236, %c0_237, %c0_238] : memref<2x8x256xf32, #tpu.memory_space<vmem>>, vector<2x8x256xf32>
      tpu.vector_store %arg8[%c0_236, %c0_237, %c0_238], %655 {strides = array<i32>} : memref<2x8x256xf32, #tpu.memory_space<vmem>>, vector<2x8x256xf32>,
    } else {
    }
    %c0 = arith.constant 0 : index
    %c0_1 = arith.constant 0 : index
    %c0_2 = arith.constant 0 : index
    %3 = vector.load %arg7[%c0, %c0_1, %c0_2] : memref<2x8x256xf32, #tpu.memory_space<vmem>>, vector<1x8x256xf32>
    %4 = vector.shape_cast %3 : vector<1x8x256xf32> to vector<8x256xf32>
    %c0_3 = arith.constant 0 : index
    %c0_4 = arith.constant 0 : index
    %c0_5 = arith.constant 0 : index
    %5 = vector.load %arg8[%c0_3, %c0_4, %c0_5] : memref<2x8x256xf32, #tpu.memory_space<vmem>>, vector<1x8x256xf32>
    %6 = vector.shape_cast %5 : vector<1x8x256xf32> to vector<8x256xf32>
    %c1 = arith.constant 1 : index
    %c0_6 = arith.constant 0 : index
    %c0_7 = arith.constant 0 : index
    %7 = vector.load %arg7[%c1, %c0_6, %c0_7] : memref<2x8x256xf32, #tpu.memory_space<vmem>>, vector<1x8x256xf32>
    %8 = vector.shape_cast %7 : vector<1x8x256xf32> to vector<8x256xf32>
    %c1_8 = arith.constant 1 : index
    %c0_9 = arith.constant 0 : index
    %c0_10 = arith.constant 0 : index
    %9 = vector.load %arg8[%c1_8, %c0_9, %c0_10] : memref<2x8x256xf32, #tpu.memory_space<vmem>>, vector<1x8x256xf32>
    %10 = vector.shape_cast %9 : vector<1x8x256xf32> to vector<8x256xf32>
    %c0_11 = arith.constant 0 : index
    %c0_12 = arith.constant 0 : index
    %11 = vector.load %arg2[%c0_11, %c0_12] : memref<256x1024xbf16, #tpu.memory_space<vmem>>, vector<256x1024xbf16>
    %c0_13 = arith.constant 0 : index
    %c0_14 = arith.constant 0 : index
    %12 = vector.load %arg3[%c0_13, %c0_14] : memref<256x1024xbf16, #tpu.memory_space<vmem>>, vector<256x1024xbf16>
    %c0_15 = arith.constant 0 : index
    %c0_16 = arith.constant 0 : index
    %13 = vector.load %arg4[%c0_15, %c0_16] : memref<256x1024xbf16, #tpu.memory_space<vmem>>, vector<256x1024xbf16>
    %c0_17 = arith.constant 0 : index
    %c0_18 = arith.constant 0 : index
    %14 = vector.load %arg5[%c0_17, %c0_18] : memref<1x1024xf32, #tpu.memory_space<vmem>>, vector<1x1024xf32>
    %15 = vector.shape_cast %14 : vector<1x1024xf32> to vector<1x1024xf32>
    %16 = vector.broadcast %15 : vector<1x1024xf32> to vector<8x1024xf32>
    %c0_i32_19 = arith.constant 0 : i32
    %17 = arith.index_cast %c0_i32_19 : i32 to index
    %c0_20 = arith.constant 0 : index
    %c0_21 = arith.constant 0 : index
    %18 = vector.load %arg1[%17, %c0_20, %c0_21] : memref<8x8x1024xf32, #tpu.memory_space<vmem>>, vector<1x8x1024xf32>
    %19 = vector.shape_cast %18 : vector<1x8x1024xf32> to vector<8x1024xf32>
    %20 = arith.truncf %4 : vector<8x256xf32> to vector<8x256xbf16>
    %cst = arith.constant dense<0.000000e+00> : vector<8x1024xf32>
    %21 = tpu.matmul %20, %11, %cst {dimension_numbers = #tpu.dot_dimension_numbers<[1], [0], [0], [1], [0, 0, 1, 1], [], []>} : vector<8x256xbf16>, vector<256x1024xbf16>, vector<8x1024xf32> -> vector<8x1024xf32>
    %22 = arith.addf %19, %21 : vector<8x1024xf32>
    %23 = vector.extract_strided_slice %22 {offsets = [0, 0], sizes = [8, 256], strides = [1, 1]} : vector<8x1024xf32> to vector<8x256xf32>
    %cst_22 = arith.constant 5.000000e-01 : f32
    %24 = vector.broadcast %cst_22 : f32 to vector<8x256xf32>
    %25 = arith.mulf %24, %23 : vector<8x256xf32>
    %26 = math.tanh %25 : vector<8x256xf32>
    %cst_23 = arith.constant 5.000000e-01 : f32
    %27 = vector.broadcast %cst_23 : f32 to vector<8x256xf32>
    %28 = arith.mulf %27, %26 : vector<8x256xf32>
    %cst_24 = arith.constant 5.000000e-01 : f32
    %29 = vector.broadcast %cst_24 : f32 to vector<8x256xf32>
    %30 = arith.addf %28, %29 : vector<8x256xf32>
    %31 = vector.extract_strided_slice %22 {offsets = [0, 256], sizes = [8, 256], strides = [1, 1]} : vector<8x1024xf32> to vector<8x256xf32>
    %cst_25 = arith.constant 5.000000e-01 : f32
    %32 = vector.broadcast %cst_25 : f32 to vector<8x256xf32>
    %33 = arith.mulf %32, %31 : vector<8x256xf32>
    %34 = math.tanh %33 : vector<8x256xf32>
    %cst_26 = arith.constant 5.000000e-01 : f32
    %35 = vector.broadcast %cst_26 : f32 to vector<8x256xf32>
    %36 = arith.mulf %35, %34 : vector<8x256xf32>
    %cst_27 = arith.constant 5.000000e-01 : f32
    %37 = vector.broadcast %cst_27 : f32 to vector<8x256xf32>
    %38 = arith.addf %36, %37 : vector<8x256xf32>
    %39 = vector.extract_strided_slice %22 {offsets = [0, 512], sizes = [8, 256], strides = [1, 1]} : vector<8x1024xf32> to vector<8x256xf32>
    %40 = math.tanh %39 : vector<8x256xf32>
    %41 = vector.extract_strided_slice %22 {offsets = [0, 768], sizes = [8, 256], strides = [1, 1]} : vector<8x1024xf32> to vector<8x256xf32>
    %cst_28 = arith.constant 5.000000e-01 : f32
    %42 = vector.broadcast %cst_28 : f32 to vector<8x256xf32>
    %43 = arith.mulf %42, %41 : vector<8x256xf32>
    %44 = math.tanh %43 : vector<8x256xf32>
    %cst_29 = arith.constant 5.000000e-01 : f32
    %45 = vector.broadcast %cst_29 : f32 to vector<8x256xf32>
    %46 = arith.mulf %45, %44 : vector<8x256xf32>
    %cst_30 = arith.constant 5.000000e-01 : f32
    %47 = vector.broadcast %cst_30 : f32 to vector<8x256xf32>
    %48 = arith.addf %46, %47 : vector<8x256xf32>
    %49 = arith.mulf %38, %6 : vector<8x256xf32>
    %50 = arith.mulf %30, %40 : vector<8x256xf32>
    %51 = arith.addf %49, %50 : vector<8x256xf32>
    %52 = math.tanh %51 : vector<8x256xf32>
    %53 = arith.mulf %48, %52 : vector<8x256xf32>
    %54 = arith.truncf %8 : vector<8x256xf32> to vector<8x256xbf16>
    %cst_31 = arith.constant dense<0.000000e+00> : vector<8x1024xf32>
    %55 = tpu.matmul %54, %13, %cst_31 {dimension_numbers = #tpu.dot_dimension_numbers<[1], [0], [0], [1], [0, 0, 1, 1], [], []>} : vector<8x256xbf16>, vector<256x1024xbf16>, vector<8x1024xf32> -> vector<8x1024xf32>
    %56 = arith.truncf %53 : vector<8x256xf32> to vector<8x256xbf16>
    %cst_32 = arith.constant dense<0.000000e+00> : vector<8x1024xf32>
    %57 = tpu.matmul %56, %12, %cst_32 {dimension_numbers = #tpu.dot_dimension_numbers<[1], [0], [0], [1], [0, 0, 1, 1], [], []>} : vector<8x256xbf16>, vector<256x1024xbf16>, vector<8x1024xf32> -> vector<8x1024xf32>
    %58 = arith.addf %55, %57 : vector<8x1024xf32>
    %59 = arith.addf %58, %16 : vector<8x1024xf32>
    %60 = vector.extract_strided_slice %59 {offsets = [0, 0], sizes = [8, 256], strides = [1, 1]} : vector<8x1024xf32> to vector<8x256xf32>
    %cst_33 = arith.constant 5.000000e-01 : f32
    %61 = vector.broadcast %cst_33 : f32 to vector<8x256xf32>
    %62 = arith.mulf %61, %60 : vector<8x256xf32>
    %63 = math.tanh %62 : vector<8x256xf32>
    %cst_34 = arith.constant 5.000000e-01 : f32
    %64 = vector.broadcast %cst_34 : f32 to vector<8x256xf32>
    %65 = arith.mulf %64, %63 : vector<8x256xf32>
    %cst_35 = arith.constant 5.000000e-01 : f32
    %66 = vector.broadcast %cst_35 : f32 to vector<8x256xf32>
    %67 = arith.addf %65, %66 : vector<8x256xf32>
    %68 = vector.extract_strided_slice %59 {offsets = [0, 256], sizes = [8, 256], strides = [1, 1]} : vector<8x1024xf32> to vector<8x256xf32>
    %cst_36 = arith.constant 5.000000e-01 : f32
    %69 = vector.broadcast %cst_36 : f32 to vector<8x256xf32>
    %70 = arith.mulf %69, %68 : vector<8x256xf32>
    %71 = math.tanh %70 : vector<8x256xf32>
    %cst_37 = arith.constant 5.000000e-01 : f32
    %72 = vector.broadcast %cst_37 : f32 to vector<8x256xf32>
    %73 = arith.mulf %72, %71 : vector<8x256xf32>
    %cst_38 = arith.constant 5.000000e-01 : f32
    %74 = vector.broadcast %cst_38 : f32 to vector<8x256xf32>
    %75 = arith.addf %73, %74 : vector<8x256xf32>
    %76 = vector.extract_strided_slice %59 {offsets = [0, 512], sizes = [8, 256], strides = [1, 1]} : vector<8x1024xf32> to vector<8x256xf32>
    %77 = math.tanh %76 : vector<8x256xf32>
    %78 = vector.extract_strided_slice %59 {offsets = [0, 768], sizes = [8, 256], strides = [1, 1]} : vector<8x1024xf32> to vector<8x256xf32>
    %cst_39 = arith.constant 5.000000e-01 : f32
    %79 = vector.broadcast %cst_39 : f32 to vector<8x256xf32>
    %80 = arith.mulf %79, %78 : vector<8x256xf32>
    %81 = math.tanh %80 : vector<8x256xf32>
    %cst_40 = arith.constant 5.000000e-01 : f32
    %82 = vector.broadcast %cst_40 : f32 to vector<8x256xf32>
    %83 = arith.mulf %82, %81 : vector<8x256xf32>
    %cst_41 = arith.constant 5.000000e-01 : f32
    %84 = vector.broadcast %cst_41 : f32 to vector<8x256xf32>
    %85 = arith.addf %83, %84 : vector<8x256xf32>
    %86 = arith.mulf %75, %10 : vector<8x256xf32>
    %87 = arith.mulf %67, %77 : vector<8x256xf32>
    %88 = arith.addf %86, %87 : vector<8x256xf32>
    %89 = math.tanh %88 : vector<8x256xf32>
    %90 = arith.mulf %85, %89 : vector<8x256xf32>
    %91 = arith.index_cast %c0_i32_19 : i32 to index
    %c0_42 = arith.constant 0 : index
    %c0_43 = arith.constant 0 : index
    %92 = vector.load %arg6[%91, %c0_42, %c0_43] : memref<8x8x256xf32, #tpu.memory_space<vmem>>, vector<1x8x256xf32>
    %93 = vector.shape_cast %92 : vector<1x8x256xf32> to vector<8x256xf32>
    %94 = vector.shape_cast %90 : vector<8x256xf32> to vector<1x8x256xf32>
    tpu.vector_store %arg6[%91, %c0_42, %c0_43], %94 {strides = array<i32>} : memref<8x8x256xf32, #tpu.memory_space<vmem>>, vector<1x8x256xf32>,
    %c1_i32 = arith.constant 1 : i32
    %95 = arith.index_cast %c1_i32 : i32 to index
    %c0_44 = arith.constant 0 : index
    %c0_45 = arith.constant 0 : index
    %96 = vector.load %arg1[%95, %c0_44, %c0_45] : memref<8x8x1024xf32, #tpu.memory_space<vmem>>, vector<1x8x1024xf32>
    %97 = vector.shape_cast %96 : vector<1x8x1024xf32> to vector<8x1024xf32>
    %98 = arith.truncf %53 : vector<8x256xf32> to vector<8x256xbf16>
    %cst_46 = arith.constant dense<0.000000e+00> : vector<8x1024xf32>
    %99 = tpu.matmul %98, %11, %cst_46 {dimension_numbers = #tpu.dot_dimension_numbers<[1], [0], [0], [1], [0, 0, 1, 1], [], []>} : vector<8x256xbf16>, vector<256x1024xbf16>, vector<8x1024xf32> -> vector<8x1024xf32>
    %100 = arith.addf %97, %99 : vector<8x1024xf32>
    %101 = vector.extract_strided_slice %100 {offsets = [0, 0], sizes = [8, 256], strides = [1, 1]} : vector<8x1024xf32> to vector<8x256xf32>
    %cst_47 = arith.constant 5.000000e-01 : f32
    %102 = vector.broadcast %cst_47 : f32 to vector<8x256xf32>
    %103 = arith.mulf %102, %101 : vector<8x256xf32>
    %104 = math.tanh %103 : vector<8x256xf32>
    %cst_48 = arith.constant 5.000000e-01 : f32
    %105 = vector.broadcast %cst_48 : f32 to vector<8x256xf32>
    %106 = arith.mulf %105, %104 : vector<8x256xf32>
    %cst_49 = arith.constant 5.000000e-01 : f32
    %107 = vector.broadcast %cst_49 : f32 to vector<8x256xf32>
    %108 = arith.addf %106, %107 : vector<8x256xf32>
    %109 = vector.extract_strided_slice %100 {offsets = [0, 256], sizes = [8, 256], strides = [1, 1]} : vector<8x1024xf32> to vector<8x256xf32>
    %cst_50 = arith.constant 5.000000e-01 : f32
    %110 = vector.broadcast %cst_50 : f32 to vector<8x256xf32>
    %111 = arith.mulf %110, %109 : vector<8x256xf32>
    %112 = math.tanh %111 : vector<8x256xf32>
    %cst_51 = arith.constant 5.000000e-01 : f32
    %113 = vector.broadcast %cst_51 : f32 to vector<8x256xf32>
    %114 = arith.mulf %113, %112 : vector<8x256xf32>
    %cst_52 = arith.constant 5.000000e-01 : f32
    %115 = vector.broadcast %cst_52 : f32 to vector<8x256xf32>
    %116 = arith.addf %114, %115 : vector<8x256xf32>
    %117 = vector.extract_strided_slice %100 {offsets = [0, 512], sizes = [8, 256], strides = [1, 1]} : vector<8x1024xf32> to vector<8x256xf32>
    %118 = math.tanh %117 : vector<8x256xf32>
    %119 = vector.extract_strided_slice %100 {offsets = [0, 768], sizes = [8, 256], strides = [1, 1]} : vector<8x1024xf32> to vector<8x256xf32>
    %cst_53 = arith.constant 5.000000e-01 : f32
    %120 = vector.broadcast %cst_53 : f32 to vector<8x256xf32>
    %121 = arith.mulf %120, %119 : vector<8x256xf32>
    %122 = math.tanh %121 : vector<8x256xf32>
    %cst_54 = arith.constant 5.000000e-01 : f32
    %123 = vector.broadcast %cst_54 : f32 to vector<8x256xf32>
    %124 = arith.mulf %123, %122 : vector<8x256xf32>
    %cst_55 = arith.constant 5.000000e-01 : f32
    %125 = vector.broadcast %cst_55 : f32 to vector<8x256xf32>
    %126 = arith.addf %124, %125 : vector<8x256xf32>
    %127 = arith.mulf %116, %51 : vector<8x256xf32>
    %128 = arith.mulf %108, %118 : vector<8x256xf32>
    %129 = arith.addf %127, %128 : vector<8x256xf32>
    %130 = math.tanh %129 : vector<8x256xf32>
    %131 = arith.mulf %126, %130 : vector<8x256xf32>
    %132 = arith.truncf %90 : vector<8x256xf32> to vector<8x256xbf16>
    %cst_56 = arith.constant dense<0.000000e+00> : vector<8x1024xf32>
    %133 = tpu.matmul %132, %13, %cst_56 {dimension_numbers = #tpu.dot_dimension_numbers<[1], [0], [0], [1], [0, 0, 1, 1], [], []>} : vector<8x256xbf16>, vector<256x1024xbf16>, vector<8x1024xf32> -> vector<8x1024xf32>
    %134 = arith.truncf %131 : vector<8x256xf32> to vector<8x256xbf16>
    %cst_57 = arith.constant dense<0.000000e+00> : vector<8x1024xf32>
    %135 = tpu.matmul %134, %12, %cst_57 {dimension_numbers = #tpu.dot_dimension_numbers<[1], [0], [0], [1], [0, 0, 1, 1], [], []>} : vector<8x256xbf16>, vector<256x1024xbf16>, vector<8x1024xf32> -> vector<8x1024xf32>
    %136 = arith.addf %133, %135 : vector<8x1024xf32>
    %137 = arith.addf %136, %16 : vector<8x1024xf32>
    %138 = vector.extract_strided_slice %137 {offsets = [0, 0], sizes = [8, 256], strides = [1, 1]} : vector<8x1024xf32> to vector<8x256xf32>
    %cst_58 = arith.constant 5.000000e-01 : f32
    %139 = vector.broadcast %cst_58 : f32 to vector<8x256xf32>
    %140 = arith.mulf %139, %138 : vector<8x256xf32>
    %141 = math.tanh %140 : vector<8x256xf32>
    %cst_59 = arith.constant 5.000000e-01 : f32
    %142 = vector.broadcast %cst_59 : f32 to vector<8x256xf32>
    %143 = arith.mulf %142, %141 : vector<8x256xf32>
    %cst_60 = arith.constant 5.000000e-01 : f32
    %144 = vector.broadcast %cst_60 : f32 to vector<8x256xf32>
    %145 = arith.addf %143, %144 : vector<8x256xf32>
    %146 = vector.extract_strided_slice %137 {offsets = [0, 256], sizes = [8, 256], strides = [1, 1]} : vector<8x1024xf32> to vector<8x256xf32>
    %cst_61 = arith.constant 5.000000e-01 : f32
    %147 = vector.broadcast %cst_61 : f32 to vector<8x256xf32>
    %148 = arith.mulf %147, %146 : vector<8x256xf32>
    %149 = math.tanh %148 : vector<8x256xf32>
    %cst_62 = arith.constant 5.000000e-01 : f32
    %150 = vector.broadcast %cst_62 : f32 to vector<8x256xf32>
    %151 = arith.mulf %150, %149 : vector<8x256xf32>
    %cst_63 = arith.constant 5.000000e-01 : f32
    %152 = vector.broadcast %cst_63 : f32 to vector<8x256xf32>
    %153 = arith.addf %151, %152 : vector<8x256xf32>
    %154 = vector.extract_strided_slice %137 {offsets = [0, 512], sizes = [8, 256], strides = [1, 1]} : vector<8x1024xf32> to vector<8x256xf32>
    %155 = math.tanh %154 : vector<8x256xf32>
    %156 = vector.extract_strided_slice %137 {offsets = [0, 768], sizes = [8, 256], strides = [1, 1]} : vector<8x1024xf32> to vector<8x256xf32>
    %cst_64 = arith.constant 5.000000e-01 : f32
    %157 = vector.broadcast %cst_64 : f32 to vector<8x256xf32>
    %158 = arith.mulf %157, %156 : vector<8x256xf32>
    %159 = math.tanh %158 : vector<8x256xf32>
    %cst_65 = arith.constant 5.000000e-01 : f32
    %160 = vector.broadcast %cst_65 : f32 to vector<8x256xf32>
    %161 = arith.mulf %160, %159 : vector<8x256xf32>
    %cst_66 = arith.constant 5.000000e-01 : f32
    %162 = vector.broadcast %cst_66 : f32 to vector<8x256xf32>
    %163 = arith.addf %161, %162 : vector<8x256xf32>
    %164 = arith.mulf %153, %88 : vector<8x256xf32>
    %165 = arith.mulf %145, %155 : vector<8x256xf32>
    %166 = arith.addf %164, %165 : vector<8x256xf32>
    %167 = math.tanh %166 : vector<8x256xf32>
    %168 = arith.mulf %163, %167 : vector<8x256xf32>
    %169 = arith.index_cast %c1_i32 : i32 to index
    %c0_67 = arith.constant 0 : index
    %c0_68 = arith.constant 0 : index
    %170 = vector.load %arg6[%169, %c0_67, %c0_68] : memref<8x8x256xf32, #tpu.memory_space<vmem>>, vector<1x8x256xf32>
    %171 = vector.shape_cast %170 : vector<1x8x256xf32> to vector<8x256xf32>
    %172 = vector.shape_cast %168 : vector<8x256xf32> to vector<1x8x256xf32>
    tpu.vector_store %arg6[%169, %c0_67, %c0_68], %172 {strides = array<i32>} : memref<8x8x256xf32, #tpu.memory_space<vmem>>, vector<1x8x256xf32>,
    %c2_i32 = arith.constant 2 : i32
    %173 = arith.index_cast %c2_i32 : i32 to index
    %c0_69 = arith.constant 0 : index
    %c0_70 = arith.constant 0 : index
    %174 = vector.load %arg1[%173, %c0_69, %c0_70] : memref<8x8x1024xf32, #tpu.memory_space<vmem>>, vector<1x8x1024xf32>
    %175 = vector.shape_cast %174 : vector<1x8x1024xf32> to vector<8x1024xf32>
    %176 = arith.truncf %131 : vector<8x256xf32> to vector<8x256xbf16>
    %cst_71 = arith.constant dense<0.000000e+00> : vector<8x1024xf32>
    %177 = tpu.matmul %176, %11, %cst_71 {dimension_numbers = #tpu.dot_dimension_numbers<[1], [0], [0], [1], [0, 0, 1, 1], [], []>} : vector<8x256xbf16>, vector<256x1024xbf16>, vector<8x1024xf32> -> vector<8x1024xf32>
    %178 = arith.addf %175, %177 : vector<8x1024xf32>
    %179 = vector.extract_strided_slice %178 {offsets = [0, 0], sizes = [8, 256], strides = [1, 1]} : vector<8x1024xf32> to vector<8x256xf32>
    %cst_72 = arith.constant 5.000000e-01 : f32
    %180 = vector.broadcast %cst_72 : f32 to vector<8x256xf32>
    %181 = arith.mulf %180, %179 : vector<8x256xf32>
    %182 = math.tanh %181 : vector<8x256xf32>
    %cst_73 = arith.constant 5.000000e-01 : f32
    %183 = vector.broadcast %cst_73 : f32 to vector<8x256xf32>
    %184 = arith.mulf %183, %182 : vector<8x256xf32>
    %cst_74 = arith.constant 5.000000e-01 : f32
    %185 = vector.broadcast %cst_74 : f32 to vector<8x256xf32>
    %186 = arith.addf %184, %185 : vector<8x256xf32>
    %187 = vector.extract_strided_slice %178 {offsets = [0, 256], sizes = [8, 256], strides = [1, 1]} : vector<8x1024xf32> to vector<8x256xf32>
    %cst_75 = arith.constant 5.000000e-01 : f32
    %188 = vector.broadcast %cst_75 : f32 to vector<8x256xf32>
    %189 = arith.mulf %188, %187 : vector<8x256xf32>
    %190 = math.tanh %189 : vector<8x256xf32>
    %cst_76 = arith.constant 5.000000e-01 : f32
    %191 = vector.broadcast %cst_76 : f32 to vector<8x256xf32>
    %192 = arith.mulf %191, %190 : vector<8x256xf32>
    %cst_77 = arith.constant 5.000000e-01 : f32
    %193 = vector.broadcast %cst_77 : f32 to vector<8x256xf32>
    %194 = arith.addf %192, %193 : vector<8x256xf32>
    %195 = vector.extract_strided_slice %178 {offsets = [0, 512], sizes = [8, 256], strides = [1, 1]} : vector<8x1024xf32> to vector<8x256xf32>
    %196 = math.tanh %195 : vector<8x256xf32>
    %197 = vector.extract_strided_slice %178 {offsets = [0, 768], sizes = [8, 256], strides = [1, 1]} : vector<8x1024xf32> to vector<8x256xf32>
    %cst_78 = arith.constant 5.000000e-01 : f32
    %198 = vector.broadcast %cst_78 : f32 to vector<8x256xf32>
    %199 = arith.mulf %198, %197 : vector<8x256xf32>
    %200 = math.tanh %199 : vector<8x256xf32>
    %cst_79 = arith.constant 5.000000e-01 : f32
    %201 = vector.broadcast %cst_79 : f32 to vector<8x256xf32>
    %202 = arith.mulf %201, %200 : vector<8x256xf32>
    %cst_80 = arith.constant 5.000000e-01 : f32
    %203 = vector.broadcast %cst_80 : f32 to vector<8x256xf32>
    %204 = arith.addf %202, %203 : vector<8x256xf32>
    %205 = arith.mulf %194, %129 : vector<8x256xf32>
    %206 = arith.mulf %186, %196 : vector<8x256xf32>
    %207 = arith.addf %205, %206 : vector<8x256xf32>
    %208 = math.tanh %207 : vector<8x256xf32>
    %209 = arith.mulf %204, %208 : vector<8x256xf32>
    %210 = arith.truncf %168 : vector<8x256xf32> to vector<8x256xbf16>
    %cst_81 = arith.constant dense<0.000000e+00> : vector<8x1024xf32>
    %211 = tpu.matmul %210, %13, %cst_81 {dimension_numbers = #tpu.dot_dimension_numbers<[1], [0], [0], [1], [0, 0, 1, 1], [], []>} : vector<8x256xbf16>, vector<256x1024xbf16>, vector<8x1024xf32> -> vector<8x1024xf32>
    %212 = arith.truncf %209 : vector<8x256xf32> to vector<8x256xbf16>
    %cst_82 = arith.constant dense<0.000000e+00> : vector<8x1024xf32>
    %213 = tpu.matmul %212, %12, %cst_82 {dimension_numbers = #tpu.dot_dimension_numbers<[1], [0], [0], [1], [0, 0, 1, 1], [], []>} : vector<8x256xbf16>, vector<256x1024xbf16>, vector<8x1024xf32> -> vector<8x1024xf32>
    %214 = arith.addf %211, %213 : vector<8x1024xf32>
    %215 = arith.addf %214, %16 : vector<8x1024xf32>
    %216 = vector.extract_strided_slice %215 {offsets = [0, 0], sizes = [8, 256], strides = [1, 1]} : vector<8x1024xf32> to vector<8x256xf32>
    %cst_83 = arith.constant 5.000000e-01 : f32
    %217 = vector.broadcast %cst_83 : f32 to vector<8x256xf32>
    %218 = arith.mulf %217, %216 : vector<8x256xf32>
    %219 = math.tanh %218 : vector<8x256xf32>
    %cst_84 = arith.constant 5.000000e-01 : f32
    %220 = vector.broadcast %cst_84 : f32 to vector<8x256xf32>
    %221 = arith.mulf %220, %219 : vector<8x256xf32>
    %cst_85 = arith.constant 5.000000e-01 : f32
    %222 = vector.broadcast %cst_85 : f32 to vector<8x256xf32>
    %223 = arith.addf %221, %222 : vector<8x256xf32>
    %224 = vector.extract_strided_slice %215 {offsets = [0, 256], sizes = [8, 256], strides = [1, 1]} : vector<8x1024xf32> to vector<8x256xf32>
    %cst_86 = arith.constant 5.000000e-01 : f32
    %225 = vector.broadcast %cst_86 : f32 to vector<8x256xf32>
    %226 = arith.mulf %225, %224 : vector<8x256xf32>
    %227 = math.tanh %226 : vector<8x256xf32>
    %cst_87 = arith.constant 5.000000e-01 : f32
    %228 = vector.broadcast %cst_87 : f32 to vector<8x256xf32>
    %229 = arith.mulf %228, %227 : vector<8x256xf32>
    %cst_88 = arith.constant 5.000000e-01 : f32
    %230 = vector.broadcast %cst_88 : f32 to vector<8x256xf32>
    %231 = arith.addf %229, %230 : vector<8x256xf32>
    %232 = vector.extract_strided_slice %215 {offsets = [0, 512], sizes = [8, 256], strides = [1, 1]} : vector<8x1024xf32> to vector<8x256xf32>
    %233 = math.tanh %232 : vector<8x256xf32>
    %234 = vector.extract_strided_slice %215 {offsets = [0, 768], sizes = [8, 256], strides = [1, 1]} : vector<8x1024xf32> to vector<8x256xf32>
    %cst_89 = arith.constant 5.000000e-01 : f32
    %235 = vector.broadcast %cst_89 : f32 to vector<8x256xf32>
    %236 = arith.mulf %235, %234 : vector<8x256xf32>
    %237 = math.tanh %236 : vector<8x256xf32>
    %cst_90 = arith.constant 5.000000e-01 : f32
    %238 = vector.broadcast %cst_90 : f32 to vector<8x256xf32>
    %239 = arith.mulf %238, %237 : vector<8x256xf32>
    %cst_91 = arith.constant 5.000000e-01 : f32
    %240 = vector.broadcast %cst_91 : f32 to vector<8x256xf32>
    %241 = arith.addf %239, %240 : vector<8x256xf32>
    %242 = arith.mulf %231, %166 : vector<8x256xf32>
    %243 = arith.mulf %223, %233 : vector<8x256xf32>
    %244 = arith.addf %242, %243 : vector<8x256xf32>
    %245 = math.tanh %244 : vector<8x256xf32>
    %246 = arith.mulf %241, %245 : vector<8x256xf32>
    %247 = arith.index_cast %c2_i32 : i32 to index
    %c0_92 = arith.constant 0 : index
    %c0_93 = arith.constant 0 : index
    %248 = vector.load %arg6[%247, %c0_92, %c0_93] : memref<8x8x256xf32, #tpu.memory_space<vmem>>, vector<1x8x256xf32>
    %249 = vector.shape_cast %248 : vector<1x8x256xf32> to vector<8x256xf32>
    %250 = vector.shape_cast %246 : vector<8x256xf32> to vector<1x8x256xf32>
    tpu.vector_store %arg6[%247, %c0_92, %c0_93], %250 {strides = array<i32>} : memref<8x8x256xf32, #tpu.memory_space<vmem>>, vector<1x8x256xf32>,
    %c3_i32 = arith.constant 3 : i32
    %251 = arith.index_cast %c3_i32 : i32 to index
    %c0_94 = arith.constant 0 : index
    %c0_95 = arith.constant 0 : index
    %252 = vector.load %arg1[%251, %c0_94, %c0_95] : memref<8x8x1024xf32, #tpu.memory_space<vmem>>, vector<1x8x1024xf32>
    %253 = vector.shape_cast %252 : vector<1x8x1024xf32> to vector<8x1024xf32>
    %254 = arith.truncf %209 : vector<8x256xf32> to vector<8x256xbf16>
    %cst_96 = arith.constant dense<0.000000e+00> : vector<8x1024xf32>
    %255 = tpu.matmul %254, %11, %cst_96 {dimension_numbers = #tpu.dot_dimension_numbers<[1], [0], [0], [1], [0, 0, 1, 1], [], []>} : vector<8x256xbf16>, vector<256x1024xbf16>, vector<8x1024xf32> -> vector<8x1024xf32>
    %256 = arith.addf %253, %255 : vector<8x1024xf32>
    %257 = vector.extract_strided_slice %256 {offsets = [0, 0], sizes = [8, 256], strides = [1, 1]} : vector<8x1024xf32> to vector<8x256xf32>
    %cst_97 = arith.constant 5.000000e-01 : f32
    %258 = vector.broadcast %cst_97 : f32 to vector<8x256xf32>
    %259 = arith.mulf %258, %257 : vector<8x256xf32>
    %260 = math.tanh %259 : vector<8x256xf32>
    %cst_98 = arith.constant 5.000000e-01 : f32
    %261 = vector.broadcast %cst_98 : f32 to vector<8x256xf32>
    %262 = arith.mulf %261, %260 : vector<8x256xf32>
    %cst_99 = arith.constant 5.000000e-01 : f32
    %263 = vector.broadcast %cst_99 : f32 to vector<8x256xf32>
    %264 = arith.addf %262, %263 : vector<8x256xf32>
    %265 = vector.extract_strided_slice %256 {offsets = [0, 256], sizes = [8, 256], strides = [1, 1]} : vector<8x1024xf32> to vector<8x256xf32>
    %cst_100 = arith.constant 5.000000e-01 : f32
    %266 = vector.broadcast %cst_100 : f32 to vector<8x256xf32>
    %267 = arith.mulf %266, %265 : vector<8x256xf32>
    %268 = math.tanh %267 : vector<8x256xf32>
    %cst_101 = arith.constant 5.000000e-01 : f32
    %269 = vector.broadcast %cst_101 : f32 to vector<8x256xf32>
    %270 = arith.mulf %269, %268 : vector<8x256xf32>
    %cst_102 = arith.constant 5.000000e-01 : f32
    %271 = vector.broadcast %cst_102 : f32 to vector<8x256xf32>
    %272 = arith.addf %270, %271 : vector<8x256xf32>
    %273 = vector.extract_strided_slice %256 {offsets = [0, 512], sizes = [8, 256], strides = [1, 1]} : vector<8x1024xf32> to vector<8x256xf32>
    %274 = math.tanh %273 : vector<8x256xf32>
    %275 = vector.extract_strided_slice %256 {offsets = [0, 768], sizes = [8, 256], strides = [1, 1]} : vector<8x1024xf32> to vector<8x256xf32>
    %cst_103 = arith.constant 5.000000e-01 : f32
    %276 = vector.broadcast %cst_103 : f32 to vector<8x256xf32>
    %277 = arith.mulf %276, %275 : vector<8x256xf32>
    %278 = math.tanh %277 : vector<8x256xf32>
    %cst_104 = arith.constant 5.000000e-01 : f32
    %279 = vector.broadcast %cst_104 : f32 to vector<8x256xf32>
    %280 = arith.mulf %279, %278 : vector<8x256xf32>
    %cst_105 = arith.constant 5.000000e-01 : f32
    %281 = vector.broadcast %cst_105 : f32 to vector<8x256xf32>
    %282 = arith.addf %280, %281 : vector<8x256xf32>
    %283 = arith.mulf %272, %207 : vector<8x256xf32>
    %284 = arith.mulf %264, %274 : vector<8x256xf32>
    %285 = arith.addf %283, %284 : vector<8x256xf32>
    %286 = math.tanh %285 : vector<8x256xf32>
    %287 = arith.mulf %282, %286 : vector<8x256xf32>
    %288 = arith.truncf %246 : vector<8x256xf32> to vector<8x256xbf16>
    %cst_106 = arith.constant dense<0.000000e+00> : vector<8x1024xf32>
    %289 = tpu.matmul %288, %13, %cst_106 {dimension_numbers = #tpu.dot_dimension_numbers<[1], [0], [0], [1], [0, 0, 1, 1], [], []>} : vector<8x256xbf16>, vector<256x1024xbf16>, vector<8x1024xf32> -> vector<8x1024xf32>
    %290 = arith.truncf %287 : vector<8x256xf32> to vector<8x256xbf16>
    %cst_107 = arith.constant dense<0.000000e+00> : vector<8x1024xf32>
    %291 = tpu.matmul %290, %12, %cst_107 {dimension_numbers = #tpu.dot_dimension_numbers<[1], [0], [0], [1], [0, 0, 1, 1], [], []>} : vector<8x256xbf16>, vector<256x1024xbf16>, vector<8x1024xf32> -> vector<8x1024xf32>
    %292 = arith.addf %289, %291 : vector<8x1024xf32>
    %293 = arith.addf %292, %16 : vector<8x1024xf32>
    %294 = vector.extract_strided_slice %293 {offsets = [0, 0], sizes = [8, 256], strides = [1, 1]} : vector<8x1024xf32> to vector<8x256xf32>
    %cst_108 = arith.constant 5.000000e-01 : f32
    %295 = vector.broadcast %cst_108 : f32 to vector<8x256xf32>
    %296 = arith.mulf %295, %294 : vector<8x256xf32>
    %297 = math.tanh %296 : vector<8x256xf32>
    %cst_109 = arith.constant 5.000000e-01 : f32
    %298 = vector.broadcast %cst_109 : f32 to vector<8x256xf32>
    %299 = arith.mulf %298, %297 : vector<8x256xf32>
    %cst_110 = arith.constant 5.000000e-01 : f32
    %300 = vector.broadcast %cst_110 : f32 to vector<8x256xf32>
    %301 = arith.addf %299, %300 : vector<8x256xf32>
    %302 = vector.extract_strided_slice %293 {offsets = [0, 256], sizes = [8, 256], strides = [1, 1]} : vector<8x1024xf32> to vector<8x256xf32>
    %cst_111 = arith.constant 5.000000e-01 : f32
    %303 = vector.broadcast %cst_111 : f32 to vector<8x256xf32>
    %304 = arith.mulf %303, %302 : vector<8x256xf32>
    %305 = math.tanh %304 : vector<8x256xf32>
    %cst_112 = arith.constant 5.000000e-01 : f32
    %306 = vector.broadcast %cst_112 : f32 to vector<8x256xf32>
    %307 = arith.mulf %306, %305 : vector<8x256xf32>
    %cst_113 = arith.constant 5.000000e-01 : f32
    %308 = vector.broadcast %cst_113 : f32 to vector<8x256xf32>
    %309 = arith.addf %307, %308 : vector<8x256xf32>
    %310 = vector.extract_strided_slice %293 {offsets = [0, 512], sizes = [8, 256], strides = [1, 1]} : vector<8x1024xf32> to vector<8x256xf32>
    %311 = math.tanh %310 : vector<8x256xf32>
    %312 = vector.extract_strided_slice %293 {offsets = [0, 768], sizes = [8, 256], strides = [1, 1]} : vector<8x1024xf32> to vector<8x256xf32>
    %cst_114 = arith.constant 5.000000e-01 : f32
    %313 = vector.broadcast %cst_114 : f32 to vector<8x256xf32>
    %314 = arith.mulf %313, %312 : vector<8x256xf32>
    %315 = math.tanh %314 : vector<8x256xf32>
    %cst_115 = arith.constant 5.000000e-01 : f32
    %316 = vector.broadcast %cst_115 : f32 to vector<8x256xf32>
    %317 = arith.mulf %316, %315 : vector<8x256xf32>
    %cst_116 = arith.constant 5.000000e-01 : f32
    %318 = vector.broadcast %cst_116 : f32 to vector<8x256xf32>
    %319 = arith.addf %317, %318 : vector<8x256xf32>
    %320 = arith.mulf %309, %244 : vector<8x256xf32>
    %321 = arith.mulf %301, %311 : vector<8x256xf32>
    %322 = arith.addf %320, %321 : vector<8x256xf32>
    %323 = math.tanh %322 : vector<8x256xf32>
    %324 = arith.mulf %319, %323 : vector<8x256xf32>
    %325 = arith.index_cast %c3_i32 : i32 to index
    %c0_117 = arith.constant 0 : index
    %c0_118 = arith.constant 0 : index
    %326 = vector.load %arg6[%325, %c0_117, %c0_118] : memref<8x8x256xf32, #tpu.memory_space<vmem>>, vector<1x8x256xf32>
    %327 = vector.shape_cast %326 : vector<1x8x256xf32> to vector<8x256xf32>
    %328 = vector.shape_cast %324 : vector<8x256xf32> to vector<1x8x256xf32>
    tpu.vector_store %arg6[%325, %c0_117, %c0_118], %328 {strides = array<i32>} : memref<8x8x256xf32, #tpu.memory_space<vmem>>, vector<1x8x256xf32>,
    %c4_i32 = arith.constant 4 : i32
    %329 = arith.index_cast %c4_i32 : i32 to index
    %c0_119 = arith.constant 0 : index
    %c0_120 = arith.constant 0 : index
    %330 = vector.load %arg1[%329, %c0_119, %c0_120] : memref<8x8x1024xf32, #tpu.memory_space<vmem>>, vector<1x8x1024xf32>
    %331 = vector.shape_cast %330 : vector<1x8x1024xf32> to vector<8x1024xf32>
    %332 = arith.truncf %287 : vector<8x256xf32> to vector<8x256xbf16>
    %cst_121 = arith.constant dense<0.000000e+00> : vector<8x1024xf32>
    %333 = tpu.matmul %332, %11, %cst_121 {dimension_numbers = #tpu.dot_dimension_numbers<[1], [0], [0], [1], [0, 0, 1, 1], [], []>} : vector<8x256xbf16>, vector<256x1024xbf16>, vector<8x1024xf32> -> vector<8x1024xf32>
    %334 = arith.addf %331, %333 : vector<8x1024xf32>
    %335 = vector.extract_strided_slice %334 {offsets = [0, 0], sizes = [8, 256], strides = [1, 1]} : vector<8x1024xf32> to vector<8x256xf32>
    %cst_122 = arith.constant 5.000000e-01 : f32
    %336 = vector.broadcast %cst_122 : f32 to vector<8x256xf32>
    %337 = arith.mulf %336, %335 : vector<8x256xf32>
    %338 = math.tanh %337 : vector<8x256xf32>
    %cst_123 = arith.constant 5.000000e-01 : f32
    %339 = vector.broadcast %cst_123 : f32 to vector<8x256xf32>
    %340 = arith.mulf %339, %338 : vector<8x256xf32>
    %cst_124 = arith.constant 5.000000e-01 : f32
    %341 = vector.broadcast %cst_124 : f32 to vector<8x256xf32>
    %342 = arith.addf %340, %341 : vector<8x256xf32>
    %343 = vector.extract_strided_slice %334 {offsets = [0, 256], sizes = [8, 256], strides = [1, 1]} : vector<8x1024xf32> to vector<8x256xf32>
    %cst_125 = arith.constant 5.000000e-01 : f32
    %344 = vector.broadcast %cst_125 : f32 to vector<8x256xf32>
    %345 = arith.mulf %344, %343 : vector<8x256xf32>
    %346 = math.tanh %345 : vector<8x256xf32>
    %cst_126 = arith.constant 5.000000e-01 : f32
    %347 = vector.broadcast %cst_126 : f32 to vector<8x256xf32>
    %348 = arith.mulf %347, %346 : vector<8x256xf32>
    %cst_127 = arith.constant 5.000000e-01 : f32
    %349 = vector.broadcast %cst_127 : f32 to vector<8x256xf32>
    %350 = arith.addf %348, %349 : vector<8x256xf32>
    %351 = vector.extract_strided_slice %334 {offsets = [0, 512], sizes = [8, 256], strides = [1, 1]} : vector<8x1024xf32> to vector<8x256xf32>
    %352 = math.tanh %351 : vector<8x256xf32>
    %353 = vector.extract_strided_slice %334 {offsets = [0, 768], sizes = [8, 256], strides = [1, 1]} : vector<8x1024xf32> to vector<8x256xf32>
    %cst_128 = arith.constant 5.000000e-01 : f32
    %354 = vector.broadcast %cst_128 : f32 to vector<8x256xf32>
    %355 = arith.mulf %354, %353 : vector<8x256xf32>
    %356 = math.tanh %355 : vector<8x256xf32>
    %cst_129 = arith.constant 5.000000e-01 : f32
    %357 = vector.broadcast %cst_129 : f32 to vector<8x256xf32>
    %358 = arith.mulf %357, %356 : vector<8x256xf32>
    %cst_130 = arith.constant 5.000000e-01 : f32
    %359 = vector.broadcast %cst_130 : f32 to vector<8x256xf32>
    %360 = arith.addf %358, %359 : vector<8x256xf32>
    %361 = arith.mulf %350, %285 : vector<8x256xf32>
    %362 = arith.mulf %342, %352 : vector<8x256xf32>
    %363 = arith.addf %361, %362 : vector<8x256xf32>
    %364 = math.tanh %363 : vector<8x256xf32>
    %365 = arith.mulf %360, %364 : vector<8x256xf32>
    %366 = arith.truncf %324 : vector<8x256xf32> to vector<8x256xbf16>
    %cst_131 = arith.constant dense<0.000000e+00> : vector<8x1024xf32>
    %367 = tpu.matmul %366, %13, %cst_131 {dimension_numbers = #tpu.dot_dimension_numbers<[1], [0], [0], [1], [0, 0, 1, 1], [], []>} : vector<8x256xbf16>, vector<256x1024xbf16>, vector<8x1024xf32> -> vector<8x1024xf32>
    %368 = arith.truncf %365 : vector<8x256xf32> to vector<8x256xbf16>
    %cst_132 = arith.constant dense<0.000000e+00> : vector<8x1024xf32>
    %369 = tpu.matmul %368, %12, %cst_132 {dimension_numbers = #tpu.dot_dimension_numbers<[1], [0], [0], [1], [0, 0, 1, 1], [], []>} : vector<8x256xbf16>, vector<256x1024xbf16>, vector<8x1024xf32> -> vector<8x1024xf32>
    %370 = arith.addf %367, %369 : vector<8x1024xf32>
    %371 = arith.addf %370, %16 : vector<8x1024xf32>
    %372 = vector.extract_strided_slice %371 {offsets = [0, 0], sizes = [8, 256], strides = [1, 1]} : vector<8x1024xf32> to vector<8x256xf32>
    %cst_133 = arith.constant 5.000000e-01 : f32
    %373 = vector.broadcast %cst_133 : f32 to vector<8x256xf32>
    %374 = arith.mulf %373, %372 : vector<8x256xf32>
    %375 = math.tanh %374 : vector<8x256xf32>
    %cst_134 = arith.constant 5.000000e-01 : f32
    %376 = vector.broadcast %cst_134 : f32 to vector<8x256xf32>
    %377 = arith.mulf %376, %375 : vector<8x256xf32>
    %cst_135 = arith.constant 5.000000e-01 : f32
    %378 = vector.broadcast %cst_135 : f32 to vector<8x256xf32>
    %379 = arith.addf %377, %378 : vector<8x256xf32>
    %380 = vector.extract_strided_slice %371 {offsets = [0, 256], sizes = [8, 256], strides = [1, 1]} : vector<8x1024xf32> to vector<8x256xf32>
    %cst_136 = arith.constant 5.000000e-01 : f32
    %381 = vector.broadcast %cst_136 : f32 to vector<8x256xf32>
    %382 = arith.mulf %381, %380 : vector<8x256xf32>
    %383 = math.tanh %382 : vector<8x256xf32>
    %cst_137 = arith.constant 5.000000e-01 : f32
    %384 = vector.broadcast %cst_137 : f32 to vector<8x256xf32>
    %385 = arith.mulf %384, %383 : vector<8x256xf32>
    %cst_138 = arith.constant 5.000000e-01 : f32
    %386 = vector.broadcast %cst_138 : f32 to vector<8x256xf32>
    %387 = arith.addf %385, %386 : vector<8x256xf32>
    %388 = vector.extract_strided_slice %371 {offsets = [0, 512], sizes = [8, 256], strides = [1, 1]} : vector<8x1024xf32> to vector<8x256xf32>
    %389 = math.tanh %388 : vector<8x256xf32>
    %390 = vector.extract_strided_slice %371 {offsets = [0, 768], sizes = [8, 256], strides = [1, 1]} : vector<8x1024xf32> to vector<8x256xf32>
    %cst_139 = arith.constant 5.000000e-01 : f32
    %391 = vector.broadcast %cst_139 : f32 to vector<8x256xf32>
    %392 = arith.mulf %391, %390 : vector<8x256xf32>
    %393 = math.tanh %392 : vector<8x256xf32>
    %cst_140 = arith.constant 5.000000e-01 : f32
    %394 = vector.broadcast %cst_140 : f32 to vector<8x256xf32>
    %395 = arith.mulf %394, %393 : vector<8x256xf32>
    %cst_141 = arith.constant 5.000000e-01 : f32
    %396 = vector.broadcast %cst_141 : f32 to vector<8x256xf32>
    %397 = arith.addf %395, %396 : vector<8x256xf32>
    %398 = arith.mulf %387, %322 : vector<8x256xf32>
    %399 = arith.mulf %379, %389 : vector<8x256xf32>
    %400 = arith.addf %398, %399 : vector<8x256xf32>
    %401 = math.tanh %400 : vector<8x256xf32>
    %402 = arith.mulf %397, %401 : vector<8x256xf32>
    %403 = arith.index_cast %c4_i32 : i32 to index
    %c0_142 = arith.constant 0 : index
    %c0_143 = arith.constant 0 : index
    %404 = vector.load %arg6[%403, %c0_142, %c0_143] : memref<8x8x256xf32, #tpu.memory_space<vmem>>, vector<1x8x256xf32>
    %405 = vector.shape_cast %404 : vector<1x8x256xf32> to vector<8x256xf32>
    %406 = vector.shape_cast %402 : vector<8x256xf32> to vector<1x8x256xf32>
    tpu.vector_store %arg6[%403, %c0_142, %c0_143], %406 {strides = array<i32>} : memref<8x8x256xf32, #tpu.memory_space<vmem>>, vector<1x8x256xf32>,
    %c5_i32 = arith.constant 5 : i32
    %407 = arith.index_cast %c5_i32 : i32 to index
    %c0_144 = arith.constant 0 : index
    %c0_145 = arith.constant 0 : index
    %408 = vector.load %arg1[%407, %c0_144, %c0_145] : memref<8x8x1024xf32, #tpu.memory_space<vmem>>, vector<1x8x1024xf32>
    %409 = vector.shape_cast %408 : vector<1x8x1024xf32> to vector<8x1024xf32>
    %410 = arith.truncf %365 : vector<8x256xf32> to vector<8x256xbf16>
    %cst_146 = arith.constant dense<0.000000e+00> : vector<8x1024xf32>
    %411 = tpu.matmul %410, %11, %cst_146 {dimension_numbers = #tpu.dot_dimension_numbers<[1], [0], [0], [1], [0, 0, 1, 1], [], []>} : vector<8x256xbf16>, vector<256x1024xbf16>, vector<8x1024xf32> -> vector<8x1024xf32>
    %412 = arith.addf %409, %411 : vector<8x1024xf32>
    %413 = vector.extract_strided_slice %412 {offsets = [0, 0], sizes = [8, 256], strides = [1, 1]} : vector<8x1024xf32> to vector<8x256xf32>
    %cst_147 = arith.constant 5.000000e-01 : f32
    %414 = vector.broadcast %cst_147 : f32 to vector<8x256xf32>
    %415 = arith.mulf %414, %413 : vector<8x256xf32>
    %416 = math.tanh %415 : vector<8x256xf32>
    %cst_148 = arith.constant 5.000000e-01 : f32
    %417 = vector.broadcast %cst_148 : f32 to vector<8x256xf32>
    %418 = arith.mulf %417, %416 : vector<8x256xf32>
    %cst_149 = arith.constant 5.000000e-01 : f32
    %419 = vector.broadcast %cst_149 : f32 to vector<8x256xf32>
    %420 = arith.addf %418, %419 : vector<8x256xf32>
    %421 = vector.extract_strided_slice %412 {offsets = [0, 256], sizes = [8, 256], strides = [1, 1]} : vector<8x1024xf32> to vector<8x256xf32>
    %cst_150 = arith.constant 5.000000e-01 : f32
    %422 = vector.broadcast %cst_150 : f32 to vector<8x256xf32>
    %423 = arith.mulf %422, %421 : vector<8x256xf32>
    %424 = math.tanh %423 : vector<8x256xf32>
    %cst_151 = arith.constant 5.000000e-01 : f32
    %425 = vector.broadcast %cst_151 : f32 to vector<8x256xf32>
    %426 = arith.mulf %425, %424 : vector<8x256xf32>
    %cst_152 = arith.constant 5.000000e-01 : f32
    %427 = vector.broadcast %cst_152 : f32 to vector<8x256xf32>
    %428 = arith.addf %426, %427 : vector<8x256xf32>
    %429 = vector.extract_strided_slice %412 {offsets = [0, 512], sizes = [8, 256], strides = [1, 1]} : vector<8x1024xf32> to vector<8x256xf32>
    %430 = math.tanh %429 : vector<8x256xf32>
    %431 = vector.extract_strided_slice %412 {offsets = [0, 768], sizes = [8, 256], strides = [1, 1]} : vector<8x1024xf32> to vector<8x256xf32>
    %cst_153 = arith.constant 5.000000e-01 : f32
    %432 = vector.broadcast %cst_153 : f32 to vector<8x256xf32>
    %433 = arith.mulf %432, %431 : vector<8x256xf32>
    %434 = math.tanh %433 : vector<8x256xf32>
    %cst_154 = arith.constant 5.000000e-01 : f32
    %435 = vector.broadcast %cst_154 : f32 to vector<8x256xf32>
    %436 = arith.mulf %435, %434 : vector<8x256xf32>
    %cst_155 = arith.constant 5.000000e-01 : f32
    %437 = vector.broadcast %cst_155 : f32 to vector<8x256xf32>
    %438 = arith.addf %436, %437 : vector<8x256xf32>
    %439 = arith.mulf %428, %363 : vector<8x256xf32>
    %440 = arith.mulf %420, %430 : vector<8x256xf32>
    %441 = arith.addf %439, %440 : vector<8x256xf32>
    %442 = math.tanh %441 : vector<8x256xf32>
    %443 = arith.mulf %438, %442 : vector<8x256xf32>
    %444 = arith.truncf %402 : vector<8x256xf32> to vector<8x256xbf16>
    %cst_156 = arith.constant dense<0.000000e+00> : vector<8x1024xf32>
    %445 = tpu.matmul %444, %13, %cst_156 {dimension_numbers = #tpu.dot_dimension_numbers<[1], [0], [0], [1], [0, 0, 1, 1], [], []>} : vector<8x256xbf16>, vector<256x1024xbf16>, vector<8x1024xf32> -> vector<8x1024xf32>
    %446 = arith.truncf %443 : vector<8x256xf32> to vector<8x256xbf16>
    %cst_157 = arith.constant dense<0.000000e+00> : vector<8x1024xf32>
    %447 = tpu.matmul %446, %12, %cst_157 {dimension_numbers = #tpu.dot_dimension_numbers<[1], [0], [0], [1], [0, 0, 1, 1], [], []>} : vector<8x256xbf16>, vector<256x1024xbf16>, vector<8x1024xf32> -> vector<8x1024xf32>
    %448 = arith.addf %445, %447 : vector<8x1024xf32>
    %449 = arith.addf %448, %16 : vector<8x1024xf32>
    %450 = vector.extract_strided_slice %449 {offsets = [0, 0], sizes = [8, 256], strides = [1, 1]} : vector<8x1024xf32> to vector<8x256xf32>
    %cst_158 = arith.constant 5.000000e-01 : f32
    %451 = vector.broadcast %cst_158 : f32 to vector<8x256xf32>
    %452 = arith.mulf %451, %450 : vector<8x256xf32>
    %453 = math.tanh %452 : vector<8x256xf32>
    %cst_159 = arith.constant 5.000000e-01 : f32
    %454 = vector.broadcast %cst_159 : f32 to vector<8x256xf32>
    %455 = arith.mulf %454, %453 : vector<8x256xf32>
    %cst_160 = arith.constant 5.000000e-01 : f32
    %456 = vector.broadcast %cst_160 : f32 to vector<8x256xf32>
    %457 = arith.addf %455, %456 : vector<8x256xf32>
    %458 = vector.extract_strided_slice %449 {offsets = [0, 256], sizes = [8, 256], strides = [1, 1]} : vector<8x1024xf32> to vector<8x256xf32>
    %cst_161 = arith.constant 5.000000e-01 : f32
    %459 = vector.broadcast %cst_161 : f32 to vector<8x256xf32>
    %460 = arith.mulf %459, %458 : vector<8x256xf32>
    %461 = math.tanh %460 : vector<8x256xf32>
    %cst_162 = arith.constant 5.000000e-01 : f32
    %462 = vector.broadcast %cst_162 : f32 to vector<8x256xf32>
    %463 = arith.mulf %462, %461 : vector<8x256xf32>
    %cst_163 = arith.constant 5.000000e-01 : f32
    %464 = vector.broadcast %cst_163 : f32 to vector<8x256xf32>
    %465 = arith.addf %463, %464 : vector<8x256xf32>
    %466 = vector.extract_strided_slice %449 {offsets = [0, 512], sizes = [8, 256], strides = [1, 1]} : vector<8x1024xf32> to vector<8x256xf32>
    %467 = math.tanh %466 : vector<8x256xf32>
    %468 = vector.extract_strided_slice %449 {offsets = [0, 768], sizes = [8, 256], strides = [1, 1]} : vector<8x1024xf32> to vector<8x256xf32>
    %cst_164 = arith.constant 5.000000e-01 : f32
    %469 = vector.broadcast %cst_164 : f32 to vector<8x256xf32>
    %470 = arith.mulf %469, %468 : vector<8x256xf32>
    %471 = math.tanh %470 : vector<8x256xf32>
    %cst_165 = arith.constant 5.000000e-01 : f32
    %472 = vector.broadcast %cst_165 : f32 to vector<8x256xf32>
    %473 = arith.mulf %472, %471 : vector<8x256xf32>
    %cst_166 = arith.constant 5.000000e-01 : f32
    %474 = vector.broadcast %cst_166 : f32 to vector<8x256xf32>
    %475 = arith.addf %473, %474 : vector<8x256xf32>
    %476 = arith.mulf %465, %400 : vector<8x256xf32>
    %477 = arith.mulf %457, %467 : vector<8x256xf32>
    %478 = arith.addf %476, %477 : vector<8x256xf32>
    %479 = math.tanh %478 : vector<8x256xf32>
    %480 = arith.mulf %475, %479 : vector<8x256xf32>
    %481 = arith.index_cast %c5_i32 : i32 to index
    %c0_167 = arith.constant 0 : index
    %c0_168 = arith.constant 0 : index
    %482 = vector.load %arg6[%481, %c0_167, %c0_168] : memref<8x8x256xf32, #tpu.memory_space<vmem>>, vector<1x8x256xf32>
    %483 = vector.shape_cast %482 : vector<1x8x256xf32> to vector<8x256xf32>
    %484 = vector.shape_cast %480 : vector<8x256xf32> to vector<1x8x256xf32>
    tpu.vector_store %arg6[%481, %c0_167, %c0_168], %484 {strides = array<i32>} : memref<8x8x256xf32, #tpu.memory_space<vmem>>, vector<1x8x256xf32>,
    %c6_i32 = arith.constant 6 : i32
    %485 = arith.index_cast %c6_i32 : i32 to index
    %c0_169 = arith.constant 0 : index
    %c0_170 = arith.constant 0 : index
    %486 = vector.load %arg1[%485, %c0_169, %c0_170] : memref<8x8x1024xf32, #tpu.memory_space<vmem>>, vector<1x8x1024xf32>
    %487 = vector.shape_cast %486 : vector<1x8x1024xf32> to vector<8x1024xf32>
    %488 = arith.truncf %443 : vector<8x256xf32> to vector<8x256xbf16>
    %cst_171 = arith.constant dense<0.000000e+00> : vector<8x1024xf32>
    %489 = tpu.matmul %488, %11, %cst_171 {dimension_numbers = #tpu.dot_dimension_numbers<[1], [0], [0], [1], [0, 0, 1, 1], [], []>} : vector<8x256xbf16>, vector<256x1024xbf16>, vector<8x1024xf32> -> vector<8x1024xf32>
    %490 = arith.addf %487, %489 : vector<8x1024xf32>
    %491 = vector.extract_strided_slice %490 {offsets = [0, 0], sizes = [8, 256], strides = [1, 1]} : vector<8x1024xf32> to vector<8x256xf32>
    %cst_172 = arith.constant 5.000000e-01 : f32
    %492 = vector.broadcast %cst_172 : f32 to vector<8x256xf32>
    %493 = arith.mulf %492, %491 : vector<8x256xf32>
    %494 = math.tanh %493 : vector<8x256xf32>
    %cst_173 = arith.constant 5.000000e-01 : f32
    %495 = vector.broadcast %cst_173 : f32 to vector<8x256xf32>
    %496 = arith.mulf %495, %494 : vector<8x256xf32>
    %cst_174 = arith.constant 5.000000e-01 : f32
    %497 = vector.broadcast %cst_174 : f32 to vector<8x256xf32>
    %498 = arith.addf %496, %497 : vector<8x256xf32>
    %499 = vector.extract_strided_slice %490 {offsets = [0, 256], sizes = [8, 256], strides = [1, 1]} : vector<8x1024xf32> to vector<8x256xf32>
    %cst_175 = arith.constant 5.000000e-01 : f32
    %500 = vector.broadcast %cst_175 : f32 to vector<8x256xf32>
    %501 = arith.mulf %500, %499 : vector<8x256xf32>
    %502 = math.tanh %501 : vector<8x256xf32>
    %cst_176 = arith.constant 5.000000e-01 : f32
    %503 = vector.broadcast %cst_176 : f32 to vector<8x256xf32>
    %504 = arith.mulf %503, %502 : vector<8x256xf32>
    %cst_177 = arith.constant 5.000000e-01 : f32
    %505 = vector.broadcast %cst_177 : f32 to vector<8x256xf32>
    %506 = arith.addf %504, %505 : vector<8x256xf32>
    %507 = vector.extract_strided_slice %490 {offsets = [0, 512], sizes = [8, 256], strides = [1, 1]} : vector<8x1024xf32> to vector<8x256xf32>
    %508 = math.tanh %507 : vector<8x256xf32>
    %509 = vector.extract_strided_slice %490 {offsets = [0, 768], sizes = [8, 256], strides = [1, 1]} : vector<8x1024xf32> to vector<8x256xf32>
    %cst_178 = arith.constant 5.000000e-01 : f32
    %510 = vector.broadcast %cst_178 : f32 to vector<8x256xf32>
    %511 = arith.mulf %510, %509 : vector<8x256xf32>
    %512 = math.tanh %511 : vector<8x256xf32>
    %cst_179 = arith.constant 5.000000e-01 : f32
    %513 = vector.broadcast %cst_179 : f32 to vector<8x256xf32>
    %514 = arith.mulf %513, %512 : vector<8x256xf32>
    %cst_180 = arith.constant 5.000000e-01 : f32
    %515 = vector.broadcast %cst_180 : f32 to vector<8x256xf32>
    %516 = arith.addf %514, %515 : vector<8x256xf32>
    %517 = arith.mulf %506, %441 : vector<8x256xf32>
    %518 = arith.mulf %498, %508 : vector<8x256xf32>
    %519 = arith.addf %517, %518 : vector<8x256xf32>
    %520 = math.tanh %519 : vector<8x256xf32>
    %521 = arith.mulf %516, %520 : vector<8x256xf32>
    %522 = arith.truncf %480 : vector<8x256xf32> to vector<8x256xbf16>
    %cst_181 = arith.constant dense<0.000000e+00> : vector<8x1024xf32>
    %523 = tpu.matmul %522, %13, %cst_181 {dimension_numbers = #tpu.dot_dimension_numbers<[1], [0], [0], [1], [0, 0, 1, 1], [], []>} : vector<8x256xbf16>, vector<256x1024xbf16>, vector<8x1024xf32> -> vector<8x1024xf32>
    %524 = arith.truncf %521 : vector<8x256xf32> to vector<8x256xbf16>
    %cst_182 = arith.constant dense<0.000000e+00> : vector<8x1024xf32>
    %525 = tpu.matmul %524, %12, %cst_182 {dimension_numbers = #tpu.dot_dimension_numbers<[1], [0], [0], [1], [0, 0, 1, 1], [], []>} : vector<8x256xbf16>, vector<256x1024xbf16>, vector<8x1024xf32> -> vector<8x1024xf32>
    %526 = arith.addf %523, %525 : vector<8x1024xf32>
    %527 = arith.addf %526, %16 : vector<8x1024xf32>
    %528 = vector.extract_strided_slice %527 {offsets = [0, 0], sizes = [8, 256], strides = [1, 1]} : vector<8x1024xf32> to vector<8x256xf32>
    %cst_183 = arith.constant 5.000000e-01 : f32
    %529 = vector.broadcast %cst_183 : f32 to vector<8x256xf32>
    %530 = arith.mulf %529, %528 : vector<8x256xf32>
    %531 = math.tanh %530 : vector<8x256xf32>
    %cst_184 = arith.constant 5.000000e-01 : f32
    %532 = vector.broadcast %cst_184 : f32 to vector<8x256xf32>
    %533 = arith.mulf %532, %531 : vector<8x256xf32>
    %cst_185 = arith.constant 5.000000e-01 : f32
    %534 = vector.broadcast %cst_185 : f32 to vector<8x256xf32>
    %535 = arith.addf %533, %534 : vector<8x256xf32>
    %536 = vector.extract_strided_slice %527 {offsets = [0, 256], sizes = [8, 256], strides = [1, 1]} : vector<8x1024xf32> to vector<8x256xf32>
    %cst_186 = arith.constant 5.000000e-01 : f32
    %537 = vector.broadcast %cst_186 : f32 to vector<8x256xf32>
    %538 = arith.mulf %537, %536 : vector<8x256xf32>
    %539 = math.tanh %538 : vector<8x256xf32>
    %cst_187 = arith.constant 5.000000e-01 : f32
    %540 = vector.broadcast %cst_187 : f32 to vector<8x256xf32>
    %541 = arith.mulf %540, %539 : vector<8x256xf32>
    %cst_188 = arith.constant 5.000000e-01 : f32
    %542 = vector.broadcast %cst_188 : f32 to vector<8x256xf32>
    %543 = arith.addf %541, %542 : vector<8x256xf32>
    %544 = vector.extract_strided_slice %527 {offsets = [0, 512], sizes = [8, 256], strides = [1, 1]} : vector<8x1024xf32> to vector<8x256xf32>
    %545 = math.tanh %544 : vector<8x256xf32>
    %546 = vector.extract_strided_slice %527 {offsets = [0, 768], sizes = [8, 256], strides = [1, 1]} : vector<8x1024xf32> to vector<8x256xf32>
    %cst_189 = arith.constant 5.000000e-01 : f32
    %547 = vector.broadcast %cst_189 : f32 to vector<8x256xf32>
    %548 = arith.mulf %547, %546 : vector<8x256xf32>
    %549 = math.tanh %548 : vector<8x256xf32>
    %cst_190 = arith.constant 5.000000e-01 : f32
    %550 = vector.broadcast %cst_190 : f32 to vector<8x256xf32>
    %551 = arith.mulf %550, %549 : vector<8x256xf32>
    %cst_191 = arith.constant 5.000000e-01 : f32
    %552 = vector.broadcast %cst_191 : f32 to vector<8x256xf32>
    %553 = arith.addf %551, %552 : vector<8x256xf32>
    %554 = arith.mulf %543, %478 : vector<8x256xf32>
    %555 = arith.mulf %535, %545 : vector<8x256xf32>
    %556 = arith.addf %554, %555 : vector<8x256xf32>
    %557 = math.tanh %556 : vector<8x256xf32>
    %558 = arith.mulf %553, %557 : vector<8x256xf32>
    %559 = arith.index_cast %c6_i32 : i32 to index
    %c0_192 = arith.constant 0 : index
    %c0_193 = arith.constant 0 : index
    %560 = vector.load %arg6[%559, %c0_192, %c0_193] : memref<8x8x256xf32, #tpu.memory_space<vmem>>, vector<1x8x256xf32>
    %561 = vector.shape_cast %560 : vector<1x8x256xf32> to vector<8x256xf32>
    %562 = vector.shape_cast %558 : vector<8x256xf32> to vector<1x8x256xf32>
    tpu.vector_store %arg6[%559, %c0_192, %c0_193], %562 {strides = array<i32>} : memref<8x8x256xf32, #tpu.memory_space<vmem>>, vector<1x8x256xf32>,
    %c7_i32 = arith.constant 7 : i32
    %563 = arith.index_cast %c7_i32 : i32 to index
    %c0_194 = arith.constant 0 : index
    %c0_195 = arith.constant 0 : index
    %564 = vector.load %arg1[%563, %c0_194, %c0_195] : memref<8x8x1024xf32, #tpu.memory_space<vmem>>, vector<1x8x1024xf32>
    %565 = vector.shape_cast %564 : vector<1x8x1024xf32> to vector<8x1024xf32>
    %566 = arith.truncf %521 : vector<8x256xf32> to vector<8x256xbf16>
    %cst_196 = arith.constant dense<0.000000e+00> : vector<8x1024xf32>
    %567 = tpu.matmul %566, %11, %cst_196 {dimension_numbers = #tpu.dot_dimension_numbers<[1], [0], [0], [1], [0, 0, 1, 1], [], []>} : vector<8x256xbf16>, vector<256x1024xbf16>, vector<8x1024xf32> -> vector<8x1024xf32>
    %568 = arith.addf %565, %567 : vector<8x1024xf32>
    %569 = vector.extract_strided_slice %568 {offsets = [0, 0], sizes = [8, 256], strides = [1, 1]} : vector<8x1024xf32> to vector<8x256xf32>
    %cst_197 = arith.constant 5.000000e-01 : f32
    %570 = vector.broadcast %cst_197 : f32 to vector<8x256xf32>
    %571 = arith.mulf %570, %569 : vector<8x256xf32>
    %572 = math.tanh %571 : vector<8x256xf32>
    %cst_198 = arith.constant 5.000000e-01 : f32
    %573 = vector.broadcast %cst_198 : f32 to vector<8x256xf32>
    %574 = arith.mulf %573, %572 : vector<8x256xf32>
    %cst_199 = arith.constant 5.000000e-01 : f32
    %575 = vector.broadcast %cst_199 : f32 to vector<8x256xf32>
    %576 = arith.addf %574, %575 : vector<8x256xf32>
    %577 = vector.extract_strided_slice %568 {offsets = [0, 256], sizes = [8, 256], strides = [1, 1]} : vector<8x1024xf32> to vector<8x256xf32>
    %cst_200 = arith.constant 5.000000e-01 : f32
    %578 = vector.broadcast %cst_200 : f32 to vector<8x256xf32>
    %579 = arith.mulf %578, %577 : vector<8x256xf32>
    %580 = math.tanh %579 : vector<8x256xf32>
    %cst_201 = arith.constant 5.000000e-01 : f32
    %581 = vector.broadcast %cst_201 : f32 to vector<8x256xf32>
    %582 = arith.mulf %581, %580 : vector<8x256xf32>
    %cst_202 = arith.constant 5.000000e-01 : f32
    %583 = vector.broadcast %cst_202 : f32 to vector<8x256xf32>
    %584 = arith.addf %582, %583 : vector<8x256xf32>
    %585 = vector.extract_strided_slice %568 {offsets = [0, 512], sizes = [8, 256], strides = [1, 1]} : vector<8x1024xf32> to vector<8x256xf32>
    %586 = math.tanh %585 : vector<8x256xf32>
    %587 = vector.extract_strided_slice %568 {offsets = [0, 768], sizes = [8, 256], strides = [1, 1]} : vector<8x1024xf32> to vector<8x256xf32>
    %cst_203 = arith.constant 5.000000e-01 : f32
    %588 = vector.broadcast %cst_203 : f32 to vector<8x256xf32>
    %589 = arith.mulf %588, %587 : vector<8x256xf32>
    %590 = math.tanh %589 : vector<8x256xf32>
    %cst_204 = arith.constant 5.000000e-01 : f32
    %591 = vector.broadcast %cst_204 : f32 to vector<8x256xf32>
    %592 = arith.mulf %591, %590 : vector<8x256xf32>
    %cst_205 = arith.constant 5.000000e-01 : f32
    %593 = vector.broadcast %cst_205 : f32 to vector<8x256xf32>
    %594 = arith.addf %592, %593 : vector<8x256xf32>
    %595 = arith.mulf %584, %519 : vector<8x256xf32>
    %596 = arith.mulf %576, %586 : vector<8x256xf32>
    %597 = arith.addf %595, %596 : vector<8x256xf32>
    %598 = math.tanh %597 : vector<8x256xf32>
    %599 = arith.mulf %594, %598 : vector<8x256xf32>
    %600 = arith.truncf %558 : vector<8x256xf32> to vector<8x256xbf16>
    %cst_206 = arith.constant dense<0.000000e+00> : vector<8x1024xf32>
    %601 = tpu.matmul %600, %13, %cst_206 {dimension_numbers = #tpu.dot_dimension_numbers<[1], [0], [0], [1], [0, 0, 1, 1], [], []>} : vector<8x256xbf16>, vector<256x1024xbf16>, vector<8x1024xf32> -> vector<8x1024xf32>
    %602 = arith.truncf %599 : vector<8x256xf32> to vector<8x256xbf16>
    %cst_207 = arith.constant dense<0.000000e+00> : vector<8x1024xf32>
    %603 = tpu.matmul %602, %12, %cst_207 {dimension_numbers = #tpu.dot_dimension_numbers<[1], [0], [0], [1], [0, 0, 1, 1], [], []>} : vector<8x256xbf16>, vector<256x1024xbf16>, vector<8x1024xf32> -> vector<8x1024xf32>
    %604 = arith.addf %601, %603 : vector<8x1024xf32>
    %605 = arith.addf %604, %16 : vector<8x1024xf32>
    %606 = vector.extract_strided_slice %605 {offsets = [0, 0], sizes = [8, 256], strides = [1, 1]} : vector<8x1024xf32> to vector<8x256xf32>
    %cst_208 = arith.constant 5.000000e-01 : f32
    %607 = vector.broadcast %cst_208 : f32 to vector<8x256xf32>
    %608 = arith.mulf %607, %606 : vector<8x256xf32>
    %609 = math.tanh %608 : vector<8x256xf32>
    %cst_209 = arith.constant 5.000000e-01 : f32
    %610 = vector.broadcast %cst_209 : f32 to vector<8x256xf32>
    %611 = arith.mulf %610, %609 : vector<8x256xf32>
    %cst_210 = arith.constant 5.000000e-01 : f32
    %612 = vector.broadcast %cst_210 : f32 to vector<8x256xf32>
    %613 = arith.addf %611, %612 : vector<8x256xf32>
    %614 = vector.extract_strided_slice %605 {offsets = [0, 256], sizes = [8, 256], strides = [1, 1]} : vector<8x1024xf32> to vector<8x256xf32>
    %cst_211 = arith.constant 5.000000e-01 : f32
    %615 = vector.broadcast %cst_211 : f32 to vector<8x256xf32>
    %616 = arith.mulf %615, %614 : vector<8x256xf32>
    %617 = math.tanh %616 : vector<8x256xf32>
    %cst_212 = arith.constant 5.000000e-01 : f32
    %618 = vector.broadcast %cst_212 : f32 to vector<8x256xf32>
    %619 = arith.mulf %618, %617 : vector<8x256xf32>
    %cst_213 = arith.constant 5.000000e-01 : f32
    %620 = vector.broadcast %cst_213 : f32 to vector<8x256xf32>
    %621 = arith.addf %619, %620 : vector<8x256xf32>
    %622 = vector.extract_strided_slice %605 {offsets = [0, 512], sizes = [8, 256], strides = [1, 1]} : vector<8x1024xf32> to vector<8x256xf32>
    %623 = math.tanh %622 : vector<8x256xf32>
    %624 = vector.extract_strided_slice %605 {offsets = [0, 768], sizes = [8, 256], strides = [1, 1]} : vector<8x1024xf32> to vector<8x256xf32>
    %cst_214 = arith.constant 5.000000e-01 : f32
    %625 = vector.broadcast %cst_214 : f32 to vector<8x256xf32>
    %626 = arith.mulf %625, %624 : vector<8x256xf32>
    %627 = math.tanh %626 : vector<8x256xf32>
    %cst_215 = arith.constant 5.000000e-01 : f32
    %628 = vector.broadcast %cst_215 : f32 to vector<8x256xf32>
    %629 = arith.mulf %628, %627 : vector<8x256xf32>
    %cst_216 = arith.constant 5.000000e-01 : f32
    %630 = vector.broadcast %cst_216 : f32 to vector<8x256xf32>
    %631 = arith.addf %629, %630 : vector<8x256xf32>
    %632 = arith.mulf %621, %556 : vector<8x256xf32>
    %633 = arith.mulf %613, %623 : vector<8x256xf32>
    %634 = arith.addf %632, %633 : vector<8x256xf32>
    %635 = math.tanh %634 : vector<8x256xf32>
    %636 = arith.mulf %631, %635 : vector<8x256xf32>
    %637 = arith.index_cast %c7_i32 : i32 to index
    %c0_217 = arith.constant 0 : index
    %c0_218 = arith.constant 0 : index
    %638 = vector.load %arg6[%637, %c0_217, %c0_218] : memref<8x8x256xf32, #tpu.memory_space<vmem>>, vector<1x8x256xf32>
    %639 = vector.shape_cast %638 : vector<1x8x256xf32> to vector<8x256xf32>
    %640 = vector.shape_cast %636 : vector<8x256xf32> to vector<1x8x256xf32>
    tpu.vector_store %arg6[%637, %c0_217, %c0_218], %640 {strides = array<i32>} : memref<8x8x256xf32, #tpu.memory_space<vmem>>, vector<1x8x256xf32>,
    %c8_i32 = arith.constant 8 : i32
    %c0_219 = arith.constant 0 : index
    %c0_220 = arith.constant 0 : index
    %c0_221 = arith.constant 0 : index
    %641 = vector.load %arg7[%c0_219, %c0_220, %c0_221] : memref<2x8x256xf32, #tpu.memory_space<vmem>>, vector<1x8x256xf32>
    %642 = vector.shape_cast %641 : vector<1x8x256xf32> to vector<8x256xf32>
    %643 = vector.shape_cast %599 : vector<8x256xf32> to vector<1x8x256xf32>
    tpu.vector_store %arg7[%c0_219, %c0_220, %c0_221], %643 {strides = array<i32>} : memref<2x8x256xf32, #tpu.memory_space<vmem>>, vector<1x8x256xf32>,
    %c1_222 = arith.constant 1 : index
    %c0_223 = arith.constant 0 : index
    %c0_224 = arith.constant 0 : index
    %644 = vector.load %arg7[%c1_222, %c0_223, %c0_224] : memref<2x8x256xf32, #tpu.memory_space<vmem>>, vector<1x8x256xf32>
    %645 = vector.shape_cast %644 : vector<1x8x256xf32> to vector<8x256xf32>
    %646 = vector.shape_cast %636 : vector<8x256xf32> to vector<1x8x256xf32>
    tpu.vector_store %arg7[%c1_222, %c0_223, %c0_224], %646 {strides = array<i32>} : memref<2x8x256xf32, #tpu.memory_space<vmem>>, vector<1x8x256xf32>,
    %c0_225 = arith.constant 0 : index
    %c0_226 = arith.constant 0 : index
    %c0_227 = arith.constant 0 : index
    %647 = vector.load %arg8[%c0_225, %c0_226, %c0_227] : memref<2x8x256xf32, #tpu.memory_space<vmem>>, vector<1x8x256xf32>
    %648 = vector.shape_cast %647 : vector<1x8x256xf32> to vector<8x256xf32>
    %649 = vector.shape_cast %597 : vector<8x256xf32> to vector<1x8x256xf32>
    tpu.vector_store %arg8[%c0_225, %c0_226, %c0_227], %649 {strides = array<i32>} : memref<2x8x256xf32, #tpu.memory_space<vmem>>, vector<1x8x256xf32>,
    %c1_228 = arith.constant 1 : index
    %c0_229 = arith.constant 0 : index
    %c0_230 = arith.constant 0 : index
    %650 = vector.load %arg8[%c1_228, %c0_229, %c0_230] : memref<2x8x256xf32, #tpu.memory_space<vmem>>, vector<1x8x256xf32>
    %651 = vector.shape_cast %650 : vector<1x8x256xf32> to vector<8x256xf32>
    %652 = vector.shape_cast %634 : vector<8x256xf32> to vector<1x8x256xf32>
    tpu.vector_store %arg8[%c1_228, %c0_229, %c0_230], %652 {strides = array<i32>} : memref<2x8x256xf32, #tpu.memory_space<vmem>>, vector<1x8x256xf32>,
    return
  }
  func.func @transform_0(%arg0: i32) -> (i32, i32, i32) {
    %c0_i32 = arith.constant 0 : i32
    %c0_i32_0 = arith.constant 0 : i32
    %c0_i32_1 = arith.constant 0 : i32
    return %arg0, %c0_i32, %c0_i32_0 : i32, i32, i32
  }
  func.func @transform_1(%arg0: i32) -> (i32, i32) {
    %c0_i32 = arith.constant 0 : i32
    %c0_i32_0 = arith.constant 0 : i32
    %c0_i32_1 = arith.constant 0 : i32
    return %c0_i32, %c0_i32_0 : i32, i32
  }
  func.func @transform_2(%arg0: i32) -> (i32, i32) {
    %c0_i32 = arith.constant 0 : i32
    %c0_i32_0 = arith.constant 0 : i32
    %c0_i32_1 = arith.constant 0 : i32
    return %c0_i32, %c0_i32_0 : i32, i32
  }
  func.func @transform_3(%arg0: i32) -> (i32, i32) {
    %c0_i32 = arith.constant 0 : i32
    %c0_i32_0 = arith.constant 0 : i32
    %c0_i32_1 = arith.constant 0 : i32
    return %c0_i32, %c0_i32_0 : i32, i32
  }
  func.func @transform_4(%arg0: i32) -> (i32, i32) {
    %c0_i32 = arith.constant 0 : i32
    %c0_i32_0 = arith.constant 0 : i32
    %c0_i32_1 = arith.constant 0 : i32
    return %c0_i32, %c0_i32_0 : i32, i32
  }
  func.func @transform_5(%arg0: i32) -> (i32, i32, i32) {
    %c0_i32 = arith.constant 0 : i32
    %c0_i32_0 = arith.constant 0 : i32
    %c0_i32_1 = arith.constant 0 : i32
    return %arg0, %c0_i32, %c0_i32_0 : i32, i32, i32
  }
  func.func @transform_6(%arg0: i32) -> (i32, i32, i32) {
    %c0_i32 = arith.constant 0 : i32
    %c0_i32_0 = arith.constant 0 : i32
    %c0_i32_1 = arith.constant 0 : i32
    %c0_i32_2 = arith.constant 0 : i32
    return %c0_i32, %c0_i32_0, %c0_i32_1 : i32, i32, i32
  }
  func.func @transform_7(%arg0: i32) -> (i32, i32, i32) {
    %c0_i32 = arith.constant 0 : i32
    %c0_i32_0 = arith.constant 0 : i32
    %c0_i32_1 = arith.constant 0 : i32
    %c0_i32_2 = arith.constant 0 : i32
    return %c0_i32, %c0_i32_0, %c0_i32_1 : i32, i32, i32
  }
}

</mosaic_0001>

<llo_original>
// kernel: audio_classifier_lstm_forward.1
$region0: #{audio_classifier_lstm_forward.1}
  #allocation0 [shape = 'u32[]', space=smem, size = 0x4, offset = 0x4, fixed_abs, tag = 'smem constant byte address 0x4 - core index']
  #allocation1 [shape = 'u32[144,128]{1,0:T(1,128)}', space=vmem, size = 0x12000, scoped, tag = 'internal scratch']
  %s0 = inlined_call_operand.vmem [shape: f32[16,8,1024], index: 0, kind: input, shape index: {}]
  %s1 = inlined_call_operand.vmem [shape: bf16[256,1024], index: 1, kind: input, shape index: {}]
  %s2 = inlined_call_operand.vmem [shape: bf16[256,1024], index: 2, kind: input, shape index: {}]
  %s3 = inlined_call_operand.vmem [shape: bf16[256,1024], index: 3, kind: input, shape index: {}]
  %s4 = inlined_call_operand.vmem [shape: f32[1,1024], index: 4, kind: input, shape index: {}]
  %s5 = inlined_call_operand.vmem [shape: f32[16,8,256], index: 5, kind: output, shape index: {0}]
  %s6 = inlined_call_operand.vmem [shape: f32[2,8,256], index: 6, kind: output, shape index: {1}]
  %s7 = inlined_call_operand.vmem [shape: f32[2,8,256], index: 7, kind: output, shape index: {2}]
  %8 = xla_tuple %s5, %s6, %s7
  %s9 = sld [smem:[#allocation0]]
  $region73: #{audio_classifier_lstm_forward.1} parent=0
    _
  %s11 = ssub.s32 1, %s9
  %s12 = scalar_select 0, %s11, %s9
  loop: start=0, step=1, limit=4
  $region2: #{audio_classifier_lstm_forward.1} parent=0 // loop_pre_header
    _
  $region3: #{audio_classifier_lstm_forward.1} parent=0 // loop_header
    %s14 = sphi 0, %s18
    %p15 = scmp.ge.s32.totalorder %s14, 4
    %s24 = sphi 0, %s26
    %s27 = sphi 0, %s24
    %s28 = sphi 0, %s27
    %s44 = sphi 0, %s28
    %s48 = sphi 0, %s48
    %s50 = sphi 0, %s48
    %s51 = sphi 0, %s50
    %s65 = sphi 0, %s51
    %s69 = sphi 0, %s69
    %s71 = sphi 0, %s69
    %s72 = sphi 0, %s71
    %s86 = sphi 0, %s72
    %s90 = sphi 0, %s90
    %s92 = sphi 0, %s90
    %s93 = sphi 0, %s92
    %s107 = sphi 0, %s93
    %s111 = sphi 0, %s111
    %s113 = sphi 0, %s111
    %s114 = sphi 0, %s113
    %s128 = sphi 0, %s114
    %s134 = sphi 0, %s136
    %s137 = sphi 0, %s134
    %s138 = sphi 0, %s137
    %s154 = sphi 0, %s138
    %s158 = sphi 0, %s158
    %s160 = sphi 0, %s158
    %s161 = sphi 0, %s160
    %s175 = sphi 0, %s161
    %s179 = sphi 0, %s179
    %s181 = sphi 0, %s179
    %s182 = sphi 0, %s181
    %s196 = sphi 0, %s182
  $region4: #{audio_classifier_lstm_forward.1} parent=0 // loop_header_branch
    %17 = sbr.rel (%p15) target = $region8
  $region5: #{audio_classifier_lstm_forward.1} parent=0 // loop_body
    %s19 = ssub.s32 %s14, 1
    %s20 = ssub.s32 %s14, 2
    %s21 = sadd.s32 %s14, 1
    %s22 = ssub.s32 %s14, %s21
    %p23 = scmp.eq.s32.totalorder %s22, 0
    %s25 = sadd.s32 %s24, 1
    %s26 = scalar_select %p23, %s24, %s25
    %p29 = pneg %p23
    %p30 = scmp.eq.s32.totalorder %s14, 1
    %p31 = por %p29, %p30
    %p32 = scmp.ne.s32.totalorder %s24, %s27
    %p33 = scmp.eq.s32.totalorder %s14, 0
    %p34 = por %p32, %p33
    %p35 = scmp.ne.s32.totalorder %s24, %s27
    %p36 = scmp.eq.s32.totalorder %s19, 1
    %p37 = por %p35, %p36
    %p38 = scmp.ne.s32.totalorder %s27, %s28
    %p39 = scmp.eq.s32.totalorder %s19, 0
    %p40 = por %p38, %p39
    %p41 = scmp.ne.s32.totalorder %s27, %s28
    %p42 = scmp.eq.s32.totalorder %s20, 1
    %p43 = por %p41, %p42
    %p45 = scmp.ne.s32.totalorder %s28, %s44
    %p46 = scmp.eq.s32.totalorder %s20, 0
    %p47 = por %p45, %p46
    %s49 = sadd.s32 %s48, 1
    %p52 = scmp.eq.s32.totalorder %s14, 1
    %p53 = scmp.ne.s32.totalorder %s48, %s50
    %p54 = scmp.eq.s32.totalorder %s14, 0
    %p55 = por %p53, %p54
    %p56 = scmp.ne.s32.totalorder %s48, %s50
    %p57 = scmp.eq.s32.totalorder %s19, 1
    %p58 = por %p56, %p57
    %p59 = scmp.ne.s32.totalorder %s50, %s51
    %p60 = scmp.eq.s32.totalorder %s19, 0
    %p61 = por %p59, %p60
    %p62 = scmp.ne.s32.totalorder %s50, %s51
    %p63 = scmp.eq.s32.totalorder %s20, 1
    %p64 = por %p62, %p63
    %p66 = scmp.ne.s32.totalorder %s51, %s65
    %p67 = scmp.eq.s32.totalorder %s20, 0
    %p68 = por %p66, %p67
    %s70 = sadd.s32 %s69, 1
    %p73 = scmp.eq.s32.totalorder %s14, 1
    %p74 = scmp.ne.s32.totalorder %s69, %s71
    %p75 = scmp.eq.s32.totalorder %s14, 0
    %p76 = por %p74, %p75
    %p77 = scmp.ne.s32.totalorder %s69, %s71
    %p78 = scmp.eq.s32.totalorder %s19, 1
    %p79 = por %p77, %p78
    %p80 = scmp.ne.s32.totalorder %s71, %s72
    %p81 = scmp.eq.s32.totalorder %s19, 0
    %p82 = por %p80, %p81
    %p83 = scmp.ne.s32.totalorder %s71, %s72
    %p84 = scmp.eq.s32.totalorder %s20, 1
    %p85 = por %p83, %p84
    %p87 = scmp.ne.s32.totalorder %s72, %s86
    %p88 = scmp.eq.s32.totalorder %s20, 0
    %p89 = por %p87, %p88
    %s91 = sadd.s32 %s90, 1
    %p94 = scmp.eq.s32.totalorder %s14, 1
    %p95 = scmp.ne.s32.totalorder %s90, %s92
    %p96 = scmp.eq.s32.totalorder %s14, 0
    %p97 = por %p95, %p96
    %p98 = scmp.ne.s32.totalorder %s90, %s92
    %p99 = scmp.eq.s32.totalorder %s19, 1
    %p100 = por %p98, %p99
    %p101 = scmp.ne.s32.totalorder %s92, %s93
    %p102 = scmp.eq.s32.totalorder %s19, 0
    %p103 = por %p101, %p102
    %p104 = scmp.ne.s32.totalorder %s92, %s93
    %p105 = scmp.eq.s32.totalorder %s20, 1
    %p106 = por %p104, %p105
    %p108 = scmp.ne.s32.totalorder %s93, %s107
    %p109 = scmp.eq.s32.totalorder %s20, 0
    %p110 = por %p108, %p109
    %s112 = sadd.s32 %s111, 1
    %p115 = scmp.eq.s32.totalorder %s14, 1
    %p116 = scmp.ne.s32.totalorder %s111, %s113
    %p117 = scmp.eq.s32.totalorder %s14, 0
    %p118 = por %p116, %p117
    %p119 = scmp.ne.s32.totalorder %s111, %s113
    %p120 = scmp.eq.s32.totalorder %s19, 1
    %p121 = por %p119, %p120
    %p122 = scmp.ne.s32.totalorder %s113, %s114
    %p123 = scmp.eq.s32.totalorder %s19, 0
    %p124 = por %p122, %p123
    %p125 = scmp.ne.s32.totalorder %s113, %s114
    %p126 = scmp.eq.s32.totalorder %s20, 1
    %p127 = por %p125, %p126
    %p129 = scmp.ne.s32.totalorder %s114, %s128
    %p130 = scmp.eq.s32.totalorder %s20, 0
    %p131 = por %p129, %p130
    %s132 = ssub.s32 %s14, %s21
    %p133 = scmp.eq.s32.totalorder %s132, 0
    %s135 = sadd.s32 %s134, 1
    %s136 = scalar_select %p133, %s134, %s135
    %p139 = pneg %p133
    %p140 = scmp.eq.s32.totalorder %s14, 1
    %p141 = por %p139, %p140
    %p142 = scmp.ne.s32.totalorder %s134, %s137
    %p143 = scmp.eq.s32.totalorder %s14, 0
    %p144 = por %p142, %p143
    %p145 = scmp.ne.s32.totalorder %s134, %s137
    %p146 = scmp.eq.s32.totalorder %s19, 1
    %p147 = por %p145, %p146
    %p148 = scmp.ne.s32.totalorder %s137, %s138
    %p149 = scmp.eq.s32.totalorder %s19, 0
    %p150 = por %p148, %p149
    %p151 = scmp.ne.s32.totalorder %s137, %s138
    %p152 = scmp.eq.s32.totalorder %s20, 1
    %p153 = por %p151, %p152
    %p155 = scmp.ne.s32.totalorder %s138, %s154
    %p156 = scmp.eq.s32.totalorder %s20, 0
    %p157 = por %p155, %p156
    %s159 = sadd.s32 %s158, 1
    %p162 = scmp.eq.s32.totalorder %s14, 1
    %p163 = scmp.ne.s32.totalorder %s158, %s160
    %p164 = scmp.eq.s32.totalorder %s14, 0
    %p165 = por %p163, %p164
    %p166 = scmp.ne.s32.totalorder %s158, %s160
    %p167 = scmp.eq.s32.totalorder %s19, 1
    %p168 = por %p166, %p167
    %p169 = scmp.ne.s32.totalorder %s160, %s161
    %p170 = scmp.eq.s32.totalorder %s19, 0
    %p171 = por %p169, %p170
    %p172 = scmp.ne.s32.totalorder %s160, %s161
    %p173 = scmp.eq.s32.totalorder %s20, 1
    %p174 = por %p172, %p173
    %p176 = scmp.ne.s32.totalorder %s161, %s175
    %p177 = scmp.eq.s32.totalorder %s20, 0
    %p178 = por %p176, %p177
    %s180 = sadd.s32 %s179, 1
    %p183 = scmp.eq.s32.totalorder %s14, 1
    %p184 = scmp.ne.s32.totalorder %s179, %s181
    %p185 = scmp.eq.s32.totalorder %s14, 0
    %p186 = por %p184, %p185
    %p187 = scmp.ne.s32.totalorder %s179, %s181
    %p188 = scmp.eq.s32.totalorder %s19, 1
    %p189 = por %p187, %p188
    %p190 = scmp.ne.s32.totalorder %s181, %s182
    %p191 = scmp.eq.s32.totalorder %s19, 0
    %p192 = por %p190, %p191
    %p193 = scmp.ne.s32.totalorder %s181, %s182
    %p194 = scmp.eq.s32.totalorder %s20, 1
    %p195 = por %p193, %p194
    %p197 = scmp.ne.s32.totalorder %s182, %s196
    %p198 = scmp.eq.s32.totalorder %s20, 0
    %p199 = por %p197, %p198
    %p200 = scmp.le.s32.totalorder 1, %s14
    %p201 = scmp.lt.s32.totalorder %s14, 3
    %p202 = pnand %p200, %p201
    %p203 = pneg %p202
    // Predicated region
    $region9: #{audio_classifier_lstm_forward.1} parent=5 // pred_check
      _
    $region10: #{audio_classifier_lstm_forward.1} parent=5 // pred_check_branch
      %205 = sbr.rel (%p202) target = $region12
    $region11: #{audio_classifier_lstm_forward.1} parent=5 // pred_region
      %s206 = ssub.s32 %s14, 1
      // Predicated region
      $region13: #{audio_classifier_lstm_forward.1} parent=11 // pred_check
        %p207 = pneg %p61
      $region14: #{audio_classifier_lstm_forward.1} parent=11 // pred_check_branch
        %209 = sbr.rel (%p207) target = $region16
      $region15: #{audio_classifier_lstm_forward.1} parent=11 // pred_region
        _
      $region16: #{audio_classifier_lstm_forward.1} parent=11 // pred_fallthru
        _
      // Predicated region
      $region17: #{audio_classifier_lstm_forward.1} parent=11 // pred_check
        %p210 = pneg %p82
      $region18: #{audio_classifier_lstm_forward.1} parent=11 // pred_check_branch
        %212 = sbr.rel (%p210) target = $region20
      $region19: #{audio_classifier_lstm_forward.1} parent=11 // pred_region
        _
      $region20: #{audio_classifier_lstm_forward.1} parent=11 // pred_fallthru
        _
      // Predicated region
      $region21: #{audio_classifier_lstm_forward.1} parent=11 // pred_check
        %p213 = pneg %p103
      $region22: #{audio_classifier_lstm_forward.1} parent=11 // pred_check_branch
        %215 = sbr.rel (%p213) target = $region24
      $region23: #{audio_classifier_lstm_forward.1} parent=11 // pred_region
        _
      $region24: #{audio_classifier_lstm_forward.1} parent=11 // pred_fallthru
        _
      // Predicated region
      $region25: #{audio_classifier_lstm_forward.1} parent=11 // pred_check
        %p216 = pneg %p124
      $region26: #{audio_classifier_lstm_forward.1} parent=11 // pred_check_branch
        %218 = sbr.rel (%p216) target = $region28
      $region27: #{audio_classifier_lstm_forward.1} parent=11 // pred_region
        _
      $region28: #{audio_classifier_lstm_forward.1} parent=11 // pred_fallthru
        _
    $region12: #{audio_classifier_lstm_forward.1} parent=5 // pred_fallthru
      _
    %p219 = scmp.lt.s32.totalorder %s14, 2
    // Predicated region
    $region29: #{audio_classifier_lstm_forward.1} parent=5 // pred_check
      %p220 = pneg %p219
    $region30: #{audio_classifier_lstm_forward.1} parent=5 // pred_check_branch
      %222 = sbr.rel (%p220) target = $region32
    $region31: #{audio_classifier_lstm_forward.1} parent=5 // pred_region
      // Predicated region
      $region33: #{audio_classifier_lstm_forward.1} parent=31 // pred_check
        %p223 = pneg %p34
      $region34: #{audio_classifier_lstm_forward.1} parent=31 // pred_check_branch
        %225 = sbr.rel (%p223) target = $region36
      $region35: #{audio_classifier_lstm_forward.1} parent=31 // pred_region
        %s226 = smul.u32 8, %s14
        %p227 = scmp.lt.s32.totalorder %s226, 15
        %s228 = scalar_select %p227, %s226, 15
        %s229 = smul.addr %s228, 8
        %s230 = smul.addr %s229, 8
        %s231 = scalar_lea.vmem %s0, %s230
        %s232 = smul.u32 8, %s14
      $region36: #{audio_classifier_lstm_forward.1} parent=31 // pred_fallthru
        _
    $region32: #{audio_classifier_lstm_forward.1} parent=5 // pred_fallthru
      _
    %p233 = scmp.le.s32.totalorder 1, %s14
    %p234 = scmp.lt.s32.totalorder %s14, 3
    %p235 = pnand %p233, %p234
    %p236 = pneg %p235
    // Predicated region
    $region37: #{audio_classifier_lstm_forward.1} parent=5 // pred_check
      _
    $region38: #{audio_classifier_lstm_forward.1} parent=5 // pred_check_branch
      %238 = sbr.rel (%p235) target = $region40
    $region39: #{audio_classifier_lstm_forward.1} parent=5 // pred_region
      %s239 = ssub.s32 %s14, 1
      %s240 = smul.u32 8, %s19
      %p241 = scmp.lt.s32.totalorder %s240, 15
      %s242 = scalar_select %p241, %s240, 15
      %s243 = smul.addr %s242, 8
      %s244 = smul.addr %s243, 8
      %s245 = scalar_lea.vmem %s0, %s244
      %p246 = pneg %p40
      %p247 = pneg %p37
      %p248 = pneg %p61
      %p249 = pneg %p58
      %p250 = pneg %p82
      %p251 = pneg %p79
      %p252 = pneg %p103
      %p253 = pneg %p100
      %p254 = pneg %p124
      %p255 = pneg %p121
      %p256 = pneg %p150
      %p257 = pneg %p147
      %s258 = smul.u32 8, %s19
      %p259 = scmp.lt.s32.totalorder %s258, 15
      %s260 = scalar_select %p259, %s258, 15
      %s261 = smul.addr %s260, 2
      %s262 = smul.addr %s261, 8
      %s263 = scalar_lea.vmem %s5, %s262
      %p264 = pneg %p171
      %p265 = pneg %p168
      %p266 = pneg %p192
      %p267 = pneg %p189
      %s268 = smul.u32 8, %s19
      %p269 = scmp.lt.s32.totalorder %s268, 15
      %s270 = scalar_select %p269, %s268, 15
      %s271 = smul.addr %s270, 8
      %s272 = smul.addr %s271, 8
      %s273 = scalar_lea.vmem %s0, %s272
      %s274 = smul.u32 8, %s19
      %s275 = smul.u32 8, %s19
      %p276 = scmp.lt.s32.totalorder %s275, 15
      %s277 = scalar_select %p276, %s275, 15
      %s278 = smul.addr %s277, 2
      %s279 = smul.addr %s278, 8
      %s280 = scalar_lea.vmem %s5, %s279
      %s281 = smul.u32 8, %s19
      %p282 = scmp.eq.s32.totalorder %s19, 0
      // Predicated region
      $region41: #{audio_classifier_lstm_forward.1} parent=39 // pred_check
        %p283 = pneg %p282
      $region42: #{audio_classifier_lstm_forward.1} parent=39 // pred_check_branch
        %285 = sbr.rel (%p283) target = $region44
      $region43: #{audio_classifier_lstm_forward.1} parent=39 // pred_region
        %286 = vst [vmem:[%s6] sm:$0xff] 0.0
        %287 = vst [vmem:[%s6 + $0x8] sm:$0xff] 0.0
        %288 = vst [vmem:[%s6 + $0x10] sm:$0xff] 0.0
        %289 = vst [vmem:[%s6 + $0x18] sm:$0xff] 0.0
        %290 = vst [vmem:[%s7] sm:$0xff] 0.0
        %291 = vst [vmem:[%s7 + $0x8] sm:$0xff] 0.0
        %292 = vst [vmem:[%s7 + $0x10] sm:$0xff] 0.0
        %293 = vst [vmem:[%s7 + $0x18] sm:$0xff] 0.0
      $region44: #{audio_classifier_lstm_forward.1} parent=39 // pred_fallthru
        _
      %v294 = vld [vmem:[%s6] sm:$0xff]
      %v295 = vld [vmem:[%s6 + $0x8] sm:$0xff]
      %v296 = vld [vmem:[%s7] sm:$0xff]
      %v297 = vld [vmem:[%s7 + $0x8] sm:$0xff]
      %s298 = scalar_lea.vmem %s6, 16
      %v299 = vld [vmem:[%s298] sm:$0xff]
      %v300 = vld [vmem:[%s298 + $0x8] sm:$0xff]
      %s301 = scalar_lea.vmem %s7, 16
      %v302 = vld [vmem:[%s301] sm:$0xff]
      %v303 = vld [vmem:[%s301 + $0x8] sm:$0xff]
      %v304 = vld [vmem:[%s1] sm:$0xff]
      %v305 = vld [vmem:[%s1 + $0x8] sm:$0xff]
      %v306 = vld [vmem:[%s1 + $0x10] sm:$0xff]
      %v307 = vld [vmem:[%s1 + $0x18] sm:$0xff]
      %v308 = vld [vmem:[%s1 + $0x20] sm:$0xff]
      %v309 = vld [vmem:[%s1 + $0x28] sm:$0xff]
      %v310 = vld [vmem:[%s1 + $0x30] sm:$0xff]
      %v311 = vld [vmem:[%s1 + $0x38] sm:$0xff]
      %v312 = vld [vmem:[%s1 + $0x40] sm:$0xff]
      %v313 = vld [vmem:[%s1 + $0x48] sm:$0xff]
      %v314 = vld [vmem:[%s1 + $0x50] sm:$0xff]
      %v315 = vld [vmem:[%s1 + $0x58] sm:$0xff]
      %v316 = vld [vmem:[%s1 + $0x60] sm:$0xff]
      %v317 = vld [vmem:[%s1 + $0x68] sm:$0xff]
      %v318 = vld [vmem:[%s1 + $0x70] sm:$0xff]
      %v319 = vld [vmem:[%s1 + $0x78] sm:$0xff]
      %v320 = vld [vmem:[%s1 + $0x80] sm:$0xff]
      %v321 = vld [vmem:[%s1 + $0x88] sm:$0xff]
      %v322 = vld [vmem:[%s1 + $0x90] sm:$0xff]
      %v323 = vld [vmem:[%s1 + $0x98] sm:$0xff]
      %v324 = vld [vmem:[%s1 + $0xa0] sm:$0xff]
      %v325 = vld [vmem:[%s1 + $0xa8] sm:$0xff]
      %v326 = vld [vmem:[%s1 + $0xb0] sm:$0xff]
      %v327 = vld [vmem:[%s1 + $0xb8] sm:$0xff]
      %v328 = vld [vmem:[%s1 + $0xc0] sm:$0xff]
      %v329 = vld [vmem:[%s1 + $0xc8] sm:$0xff]
      %v330 = vld [vmem:[%s1 + $0xd0] sm:$0xff]
      %v331 = vld [vmem:[%s1 + $0xd8] sm:$0xff]
      %v332 = vld [vmem:[%s1 + $0xe0] sm:$0xff]
      %v333 = vld [vmem:[%s1 + $0xe8] sm:$0xff]
      %v334 = vld [vmem:[%s1 + $0xf0] sm:$0xff]
      %v335 = vld [vmem:[%s1 + $0xf8] sm:$0xff]
      %v336 = vld [vmem:[%s1 + $0x100] sm:$0xff]
      %v337 = vld [vmem:[%s1 + $0x108] sm:$0xff]
      %v338 = vld [vmem:[%s1 + $0x110] sm:$0xff]
      %v339 = vld [vmem:[%s1 + $0x118] sm:$0xff]
      %v340 = vld [vmem:[%s1 + $0x120] sm:$0xff]
      %v341 = vld [vmem:[%s1 + $0x128] sm:$0xff]
      %v342 = vld [vmem:[%s1 + $0x130] sm:$0xff]
      %v343 = vld [vmem:[%s1 + $0x138] sm:$0xff]
      %v344 = vld [vmem:[%s1 + $0x140] sm:$0xff]
      %v345 = vld [vmem:[%s1 + $0x148] sm:$0xff]
      %v346 = vld [vmem:[%s1 + $0x150] sm:$0xff]
      %v347 = vld [vmem:[%s1 + $0x158] sm:$0xff]
      %v348 = vld [vmem:[%s1 + $0x160] sm:$0xff]
      %v349 = vld [vmem:[%s1 + $0x168] sm:$0xff]
      %v350 = vld [vmem:[%s1 + $0x170] sm:$0xff]
      %v351 = vld [vmem:[%s1 + $0x178] sm:$0xff]
      %v352 = vld [vmem:[%s1 + $0x180] sm:$0xff]
      %v353 = vld [vmem:[%s1 + $0x188] sm:$0xff]
      %v354 = vld [vmem:[%s1 + $0x190] sm:$0xff]
      %v355 = vld [vmem:[%s1 + $0x198] sm:$0xff]
      %v356 = vld [vmem:[%s1 + $0x1a0] sm:$0xff]
      %v357 = vld [vmem:[%s1 + $0x1a8] sm:$0xff]
      %v358 = vld [vmem:[%s1 + $0x1b0] sm:$0xff]
      %v359 = vld [vmem:[%s1 + $0x1b8] sm:$0xff]
      %v360 = vld [vmem:[%s1 + $0x1c0] sm:$0xff]
      %v361 = vld [vmem:[%s1 + $0x1c8] sm:$0xff]
      %v362 = vld [vmem:[%s1 + $0x1d0] sm:$0xff]
      %v363 = vld [vmem:[%s1 + $0x1d8] sm:$0xff]
      %v364 = vld [vmem:[%s1 + $0x1e0] sm:$0xff]
      %v365 = vld [vmem:[%s1 + $0x1e8] sm:$0xff]
      %v366 = vld [vmem:[%s1 + $0x1f0] sm:$0xff]
      %v367 = vld [vmem:[%s1 + $0x1f8] sm:$0xff]
      %v368 = vld [vmem:[%s1 + $0x200] sm:$0xff]
      %v369 = vld [vmem:[%s1 + $0x208] sm:$0xff]
      %v370 = vld [vmem:[%s1 + $0x210] sm:$0xff]
      %v371 = vld [vmem:[%s1 + $0x218] sm:$0xff]
      %v372 = vld [vmem:[%s1 + $0x220] sm:$0xff]
      %v373 = vld [vmem:[%s1 + $0x228] sm:$0xff]
      %v374 = vld [vmem:[%s1 + $0x230] sm:$0xff]
      %v375 = vld [vmem:[%s1 + $0x238] sm:$0xff]
      %v376 = vld [vmem:[%s1 + $0x240] sm:$0xff]
      %v377 = vld [vmem:[%s1 + $0x248] sm:$0xff]
      %v378 = vld [vmem:[%s1 + $0x250] sm:$0xff]
      %v379 = vld [vmem:[%s1 + $0x258] sm:$0xff]
      %v380 = vld [vmem:[%s1 + $0x260] sm:$0xff]
      %v381 = vld [vmem:[%s1 + $0x268] sm:$0xff]
      %v382 = vld [vmem:[%s1 + $0x270] sm:$0xff]
      %v383 = vld [vmem:[%s1 + $0x278] sm:$0xff]
      %v384 = vld [vmem:[%s1 + $0x280] sm:$0xff]
      %v385 = vld [vmem:[%s1 + $0x288] sm:$0xff]
      %v386 = vld [vmem:[%s1 + $0x290] sm:$0xff]
      %v387 = vld [vmem:[%s1 + $0x298] sm:$0xff]
      %v388 = vld [vmem:[%s1 + $0x2a0] sm:$0xff]
      %v389 = vld [vmem:[%s1 + $0x2a8] sm:$0xff]
      %v390 = vld [vmem:[%s1 + $0x2b0] sm:$0xff]
      %v391 = vld [vmem:[%s1 + $0x2b8] sm:$0xff]
      %v392 = vld [vmem:[%s1 + $0x2c0] sm:$0xff]
      %v393 = vld [vmem:[%s1 + $0x2c8] sm:$0xff]
      %v394 = vld [vmem:[%s1 + $0x2d0] sm:$0xff]
      %v395 = vld [vmem:[%s1 + $0x2d8] sm:$0xff]
      %v396 = vld [vmem:[%s1 + $0x2e0] sm:$0xff]
      %v397 = vld [vmem:[%s1 + $0x2e8] sm:$0xff]
      %v398 = vld [vmem:[%s1 + $0x2f0] sm:$0xff]
      %v399 = vld [vmem:[%s1 + $0x2f8] sm:$0xff]
      %v400 = vld [vmem:[%s1 + $0x300] sm:$0xff]
      %v401 = vld [vmem:[%s1 + $0x308] sm:$0xff]
      %v402 = vld [vmem:[%s1 + $0x310] sm:$0xff]
      %v403 = vld [vmem:[%s1 + $0x318] sm:$0xff]
      %v404 = vld [vmem:[%s1 + $0x320] sm:$0xff]
      %v405 = vld [vmem:[%s1 + $0x328] sm:$0xff]
      %v406 = vld [vmem:[%s1 + $0x330] sm:$0xff]
      %v407 = vld [vmem:[%s1 + $0x338] sm:$0xff]
      %v408 = vld [vmem:[%s1 + $0x340] sm:$0xff]
      %v409 = vld [vmem:[%s1 + $0x348] sm:$0xff]
      %v410 = vld [vmem:[%s1 + $0x350] sm:$0xff]
      %v411 = vld [vmem:[%s1 + $0x358] sm:$0xff]
      %v412 = vld [vmem:[%s1 + $0x360] sm:$0xff]
      %v413 = vld [vmem:[%s1 + $0x368] sm:$0xff]
      %v414 = vld [vmem:[%s1 + $0x370] sm:$0xff]
      %v415 = vld [vmem:[%s1 + $0x378] sm:$0xff]
      %v416 = vld [vmem:[%s1 + $0x380] sm:$0xff]
      %v417 = vld [vmem:[%s1 + $0x388] sm:$0xff]
      %v418 = vld [vmem:[%s1 + $0x390] sm:$0xff]
      %v419 = vld [vmem:[%s1 + $0x398] sm:$0xff]
      %v420 = vld [vmem:[%s1 + $0x3a0] sm:$0xff]
      %v421 = vld [vmem:[%s1 + $0x3a8] sm:$0xff]
      %v422 = vld [vmem:[%s1 + $0x3b0] sm:$0xff]
      %v423 = vld [vmem:[%s1 + $0x3b8] sm:$0xff]
      %v424 = vld [vmem:[%s1 + $0x3c0] sm:$0xff]
      %v425 = vld [vmem:[%s1 + $0x3c8] sm:$0xff]
      %v426 = vld [vmem:[%s1 + $0x3d0] sm:$0xff]
      %v427 = vld [vmem:[%s1 + $0x3d8] sm:$0xff]
      %v428 = vld [vmem:[%s1 + $0x3e0] sm:$0xff]
      %v429 = vld [vmem:[%s1 + $0x3e8] sm:$0xff]
      %v430 = vld [vmem:[%s1 + $0x3f0] sm:$0xff]
      %v431 = vld [vmem:[%s1 + $0x3f8] sm:$0xff]
      %v432 = vld [vmem:[%s2] sm:$0xff]
      %v433 = vld [vmem:[%s2 + $0x8] sm:$0xff]
      %v434 = vld [vmem:[%s2 + $0x10] sm:$0xff]
      %v435 = vld [vmem:[%s2 + $0x18] sm:$0xff]
      %v436 = vld [vmem:[%s2 + $0x20] sm:$0xff]
      %v437 = vld [vmem:[%s2 + $0x28] sm:$0xff]
      %v438 = vld [vmem:[%s2 + $0x30] sm:$0xff]
      %v439 = vld [vmem:[%s2 + $0x38] sm:$0xff]
      %v440 = vld [vmem:[%s2 + $0x40] sm:$0xff]
      %v441 = vld [vmem:[%s2 + $0x48] sm:$0xff]
      %v442 = vld [vmem:[%s2 + $0x50] sm:$0xff]
      %v443 = vld [vmem:[%s2 + $0x58] sm:$0xff]
      %v444 = vld [vmem:[%s2 + $0x60] sm:$0xff]
      %v445 = vld [vmem:[%s2 + $0x68] sm:$0xff]
      %v446 = vld [vmem:[%s2 + $0x70] sm:$0xff]
      %v447 = vld [vmem:[%s2 + $0x78] sm:$0xff]
      %v448 = vld [vmem:[%s2 + $0x80] sm:$0xff]
      %v449 = vld [vmem:[%s2 + $0x88] sm:$0xff]
      %v450 = vld [vmem:[%s2 + $0x90] sm:$0xff]
      %v451 = vld [vmem:[%s2 + $0x98] sm:$0xff]
      %v452 = vld [vmem:[%s2 + $0xa0] sm:$0xff]
      %v453 = vld [vmem:[%s2 + $0xa8] sm:$0xff]
      %v454 = vld [vmem:[%s2 + $0xb0] sm:$0xff]
      %v455 = vld [vmem:[%s2 + $0xb8] sm:$0xff]
      %v456 = vld [vmem:[%s2 + $0xc0] sm:$0xff]
      %v457 = vld [vmem:[%s2 + $0xc8] sm:$0xff]
      %v458 = vld [vmem:[%s2 + $0xd0] sm:$0xff]
      %v459 = vld [vmem:[%s2 + $0xd8] sm:$0xff]
      %v460 = vld [vmem:[%s2 + $0xe0] sm:$0xff]
      %v461 = vld [vmem:[%s2 + $0xe8] sm:$0xff]
      %v462 = vld [vmem:[%s2 + $0xf0] sm:$0xff]
      %v463 = vld [vmem:[%s2 + $0xf8] sm:$0xff]
      %v464 = vld [vmem:[%s2 + $0x100] sm:$0xff]
      %v465 = vld [vmem:[%s2 + $0x108] sm:$0xff]
      %v466 = vld [vmem:[%s2 + $0x110] sm:$0xff]
      %v467 = vld [vmem:[%s2 + $0x118] sm:$0xff]
      %v468 = vld [vmem:[%s2 + $0x120] sm:$0xff]
      %v469 = vld [vmem:[%s2 + $0x128] sm:$0xff]
      %v470 = vld [vmem:[%s2 + $0x130] sm:$0xff]
      %v471 = vld [vmem:[%s2 + $0x138] sm:$0xff]
      %v472 = vld [vmem:[%s2 + $0x140] sm:$0xff]
      %v473 = vld [vmem:[%s2 + $0x148] sm:$0xff]
      %v474 = vld [vmem:[%s2 + $0x150] sm:$0xff]
      %v475 = vld [vmem:[%s2 + $0x158] sm:$0xff]
      %v476 = vld [vmem:[%s2 + $0x160] sm:$0xff]
      %v477 = vld [vmem:[%s2 + $0x168] sm:$0xff]
      %v478 = vld [vmem:[%s2 + $0x170] sm:$0xff]
      %v479 = vld [vmem:[%s2 + $0x178] sm:$0xff]
      %v480 = vld [vmem:[%s2 + $0x180] sm:$0xff]
      %v481 = vld [vmem:[%s2 + $0x188] sm:$0xff]
      %v482 = vld [vmem:[%s2 + $0x190] sm:$0xff]
      %v483 = vld [vmem:[%s2 + $0x198] sm:$0xff]
      %v484 = vld [vmem:[%s2 + $0x1a0] sm:$0xff]
      %v485 = vld [vmem:[%s2 + $0x1a8] sm:$0xff]
      %v486 = vld [vmem:[%s2 + $0x1b0] sm:$0xff]
      %v487 = vld [vmem:[%s2 + $0x1b8] sm:$0xff]
      %v488 = vld [vmem:[%s2 + $0x1c0] sm:$0xff]
      %v489 = vld [vmem:[%s2 + $0x1c8] sm:$0xff]
      %v490 = vld [vmem:[%s2 + $0x1d0] sm:$0xff]
      %v491 = vld [vmem:[%s2 + $0x1d8] sm:$0xff]
      %v492 = vld [vmem:[%s2 + $0x1e0] sm:$0xff]
      %v493 = vld [vmem:[%s2 + $0x1e8] sm:$0xff]
      %v494 = vld [vmem:[%s2 + $0x1f0] sm:$0xff]
      %v495 = vld [vmem:[%s2 + $0x1f8] sm:$0xff]
      %v496 = vld [vmem:[%s2 + $0x200] sm:$0xff]
      %v497 = vld [vmem:[%s2 + $0x208] sm:$0xff]
      %v498 = vld [vmem:[%s2 + $0x210] sm:$0xff]
      %v499 = vld [vmem:[%s2 + $0x218] sm:$0xff]
      %v500 = vld [vmem:[%s2 + $0x220] sm:$0xff]
      %v501 = vld [vmem:[%s2 + $0x228] sm:$0xff]
      %v502 = vld [vmem:[%s2 + $0x230] sm:$0xff]
      %v503 = vld [vmem:[%s2 + $0x238] sm:$0xff]
      %v504 = vld [vmem:[%s2 + $0x240] sm:$0xff]
      %v505 = vld [vmem:[%s2 + $0x248] sm:$0xff]
      %v506 = vld [vmem:[%s2 + $0x250] sm:$0xff]
      %v507 = vld [vmem:[%s2 + $0x258] sm:$0xff]
      %v508 = vld [vmem:[%s2 + $0x260] sm:$0xff]
      %v509 = vld [vmem:[%s2 + $0x268] sm:$0xff]
      %v510 = vld [vmem:[%s2 + $0x270] sm:$0xff]
      %v511 = vld [vmem:[%s2 + $0x278] sm:$0xff]
      %v512 = vld [vmem:[%s2 + $0x280] sm:$0xff]
      %v513 = vld [vmem:[%s2 + $0x288] sm:$0xff]
      %v514 = vld [vmem:[%s2 + $0x290] sm:$0xff]
      %v515 = vld [vmem:[%s2 + $0x298] sm:$0xff]
      %v516 = vld [vmem:[%s2 + $0x2a0] sm:$0xff]
      %v517 = vld [vmem:[%s2 + $0x2a8] sm:$0xff]
      %v518 = vld [vmem:[%s2 + $0x2b0] sm:$0xff]
      %v519 = vld [vmem:[%s2 + $0x2b8] sm:$0xff]
      %v520 = vld [vmem:[%s2 + $0x2c0] sm:$0xff]
      %v521 = vld [vmem:[%s2 + $0x2c8] sm:$0xff]
      %v522 = vld [vmem:[%s2 + $0x2d0] sm:$0xff]
      %v523 = vld [vmem:[%s2 + $0x2d8] sm:$0xff]
      %v524 = vld [vmem:[%s2 + $0x2e0] sm:$0xff]
      %v525 = vld [vmem:[%s2 + $0x2e8] sm:$0xff]
      %v526 = vld [vmem:[%s2 + $0x2f0] sm:$0xff]
      %v527 = vld [vmem:[%s2 + $0x2f8] sm:$0xff]
      %v528 = vld [vmem:[%s2 + $0x300] sm:$0xff]
      %v529 = vld [vmem:[%s2 + $0x308] sm:$0xff]
      %v530 = vld [vmem:[%s2 + $0x310] sm:$0xff]
      %v531 = vld [vmem:[%s2 + $0x318] sm:$0xff]
      %v532 = vld [vmem:[%s2 + $0x320] sm:$0xff]
      %v533 = vld [vmem:[%s2 + $0x328] sm:$0xff]
      %v534 = vld [vmem:[%s2 + $0x330] sm:$0xff]
      %v535 = vld [vmem:[%s2 + $0x338] sm:$0xff]
      %v536 = vld [vmem:[%s2 + $0x340] sm:$0xff]
      %v537 = vld [vmem:[%s2 + $0x348] sm:$0xff]
      %v538 = vld [vmem:[%s2 + $0x350] sm:$0xff]
      %v539 = vld [vmem:[%s2 + $0x358] sm:$0xff]
      %v540 = vld [vmem:[%s2 + $0x360] sm:$0xff]
      %v541 = vld [vmem:[%s2 + $0x368] sm:$0xff]
      %v542 = vld [vmem:[%s2 + $0x370] sm:$0xff]
      %v543 = vld [vmem:[%s2 + $0x378] sm:$0xff]
      %v544 = vld [vmem:[%s2 + $0x380] sm:$0xff]
      %v545 = vld [vmem:[%s2 + $0x388] sm:$0xff]
      %v546 = vld [vmem:[%s2 + $0x390] sm:$0xff]
      %v547 = vld [vmem:[%s2 + $0x398] sm:$0xff]
      %v548 = vld [vmem:[%s2 + $0x3a0] sm:$0xff]
      %v549 = vld [vmem:[%s2 + $0x3a8] sm:$0xff]
      %v550 = vld [vmem:[%s2 + $0x3b0] sm:$0xff]
      %v551 = vld [vmem:[%s2 + $0x3b8] sm:$0xff]
      %v552 = vld [vmem:[%s2 + $0x3c0] sm:$0xff]
      %v553 = vld [vmem:[%s2 + $0x3c8] sm:$0xff]
      %v554 = vld [vmem:[%s2 + $0x3d0] sm:$0xff]
      %v555 = vld [vmem:[%s2 + $0x3d8] sm:$0xff]
      %v556 = vld [vmem:[%s2 + $0x3e0] sm:$0xff]
      %v557 = vld [vmem:[%s2 + $0x3e8] sm:$0xff]
      %v558 = vld [vmem:[%s2 + $0x3f0] sm:$0xff]
      %v559 = vld [vmem:[%s2 + $0x3f8] sm:$0xff]
      %v560 = vld [vmem:[%s3] sm:$0xff]
      %v561 = vld [vmem:[%s3 + $0x8] sm:$0xff]
      %v562 = vld [vmem:[%s3 + $0x10] sm:$0xff]
      %v563 = vld [vmem:[%s3 + $0x18] sm:$0xff]
      %v564 = vld [vmem:[%s3 + $0x20] sm:$0xff]
      %v565 = vld [vmem:[%s3 + $0x28] sm:$0xff]
      %v566 = vld [vmem:[%s3 + $0x30] sm:$0xff]
      %v567 = vld [vmem:[%s3 + $0x38] sm:$0xff]
      %v568 = vld [vmem:[%s3 + $0x40] sm:$0xff]
      %v569 = vld [vmem:[%s3 + $0x48] sm:$0xff]
      %v570 = vld [vmem:[%s3 + $0x50] sm:$0xff]
      %v571 = vld [vmem:[%s3 + $0x58] sm:$0xff]
      %v572 = vld [vmem:[%s3 + $0x60] sm:$0xff]
      %v573 = vld [vmem:[%s3 + $0x68] sm:$0xff]
      %v574 = vld [vmem:[%s3 + $0x70] sm:$0xff]
      %v575 = vld [vmem:[%s3 + $0x78] sm:$0xff]
      %v576 = vld [vmem:[%s3 + $0x80] sm:$0xff]
      %v577 = vld [vmem:[%s3 + $0x88] sm:$0xff]
      %v578 = vld [vmem:[%s3 + $0x90] sm:$0xff]
      %v579 = vld [vmem:[%s3 + $0x98] sm:$0xff]
      %v580 = vld [vmem:[%s3 + $0xa0] sm:$0xff]
      %v581 = vld [vmem:[%s3 + $0xa8] sm:$0xff]
      %v582 = vld [vmem:[%s3 + $0xb0] sm:$0xff]
      %v583 = vld [vmem:[%s3 + $0xb8] sm:$0xff]
      %v584 = vld [vmem:[%s3 + $0xc0] sm:$0xff]
      %v585 = vld [vmem:[%s3 + $0xc8] sm:$0xff]
      %v586 = vld [vmem:[%s3 + $0xd0] sm:$0xff]
      %v587 = vld [vmem:[%s3 + $0xd8] sm:$0xff]
      %v588 = vld [vmem:[%s3 + $0xe0] sm:$0xff]
      %v589 = vld [vmem:[%s3 + $0xe8] sm:$0xff]
      %v590 = vld [vmem:[%s3 + $0xf0] sm:$0xff]
      %v591 = vld [vmem:[%s3 + $0xf8] sm:$0xff]
      %v592 = vld [vmem:[%s3 + $0x100] sm:$0xff]
      %v593 = vld [vmem:[%s3 + $0x108] sm:$0xff]
      %v594 = vld [vmem:[%s3 + $0x110] sm:$0xff]
      %v595 = vld [vmem:[%s3 + $0x118] sm:$0xff]
      %v596 = vld [vmem:[%s3 + $0x120] sm:$0xff]
      %v597 = vld [vmem:[%s3 + $0x128] sm:$0xff]
      %v598 = vld [vmem:[%s3 + $0x130] sm:$0xff]
      %v599 = vld [vmem:[%s3 + $0x138] sm:$0xff]
      %v600 = vld [vmem:[%s3 + $0x140] sm:$0xff]
      %v601 = vld [vmem:[%s3 + $0x148] sm:$0xff]
      %v602 = vld [vmem:[%s3 + $0x150] sm:$0xff]
      %v603 = vld [vmem:[%s3 + $0x158] sm:$0xff]
      %v604 = vld [vmem:[%s3 + $0x160] sm:$0xff]
      %v605 = vld [vmem:[%s3 + $0x168] sm:$0xff]
      %v606 = vld [vmem:[%s3 + $0x170] sm:$0xff]
      %v607 = vld [vmem:[%s3 + $0x178] sm:$0xff]
      %v608 = vld [vmem:[%s3 + $0x180] sm:$0xff]
      %v609 = vld [vmem:[%s3 + $0x188] sm:$0xff]
      %v610 = vld [vmem:[%s3 + $0x190] sm:$0xff]
      %v611 = vld [vmem:[%s3 + $0x198] sm:$0xff]
      %v612 = vld [vmem:[%s3 + $0x1a0] sm:$0xff]
      %v613 = vld [vmem:[%s3 + $0x1a8] sm:$0xff]
      %v614 = vld [vmem:[%s3 + $0x1b0] sm:$0xff]
      %v615 = vld [vmem:[%s3 + $0x1b8] sm:$0xff]
      %v616 = vld [vmem:[%s3 + $0x1c0] sm:$0xff]
      %v617 = vld [vmem:[%s3 + $0x1c8] sm:$0xff]
      %v618 = vld [vmem:[%s3 + $0x1d0] sm:$0xff]
      %v619 = vld [vmem:[%s3 + $0x1d8] sm:$0xff]
      %v620 = vld [vmem:[%s3 + $0x1e0] sm:$0xff]
      %v621 = vld [vmem:[%s3 + $0x1e8] sm:$0xff]
      %v622 = vld [vmem:[%s3 + $0x1f0] sm:$0xff]
      %v623 = vld [vmem:[%s3 + $0x1f8] sm:$0xff]
      %v624 = vld [vmem:[%s3 + $0x200] sm:$0xff]
      %v625 = vld [vmem:[%s3 + $0x208] sm:$0xff]
      %v626 = vld [vmem:[%s3 + $0x210] sm:$0xff]
      %v627 = vld [vmem:[%s3 + $0x218] sm:$0xff]
      %v628 = vld [vmem:[%s3 + $0x220] sm:$0xff]
      %v629 = vld [vmem:[%s3 + $0x228] sm:$0xff]
      %v630 = vld [vmem:[%s3 + $0x230] sm:$0xff]
      %v631 = vld [vmem:[%s3 + $0x238] sm:$0xff]
      %v632 = vld [vmem:[%s3 + $0x240] sm:$0xff]
      %v633 = vld [vmem:[%s3 + $0x248] sm:$0xff]
      %v634 = vld [vmem:[%s3 + $0x250] sm:$0xff]
      %v635 = vld [vmem:[%s3 + $0x258] sm:$0xff]
      %v636 = vld [vmem:[%s3 + $0x260] sm:$0xff]
      %v637 = vld [vmem:[%s3 + $0x268] sm:$0xff]
      %v638 = vld [vmem:[%s3 + $0x270] sm:$0xff]
      %v639 = vld [vmem:[%s3 + $0x278] sm:$0xff]
      %v640 = vld [vmem:[%s3 + $0x280] sm:$0xff]
      %v641 = vld [vmem:[%s3 + $0x288] sm:$0xff]
      %v642 = vld [vmem:[%s3 + $0x290] sm:$0xff]
      %v643 = vld [vmem:[%s3 + $0x298] sm:$0xff]
      %v644 = vld [vmem:[%s3 + $0x2a0] sm:$0xff]
      %v645 = vld [vmem:[%s3 + $0x2a8] sm:$0xff]
      %v646 = vld [vmem:[%s3 + $0x2b0] sm:$0xff]
      %v647 = vld [vmem:[%s3 + $0x2b8] sm:$0xff]
      %v648 = vld [vmem:[%s3 + $0x2c0] sm:$0xff]
      %v649 = vld [vmem:[%s3 + $0x2c8] sm:$0xff]
      %v650 = vld [vmem:[%s3 + $0x2d0] sm:$0xff]
      %v651 = vld [vmem:[%s3 + $0x2d8] sm:$0xff]
      %v652 = vld [vmem:[%s3 + $0x2e0] sm:$0xff]
      %v653 = vld [vmem:[%s3 + $0x2e8] sm:$0xff]
      %v654 = vld [vmem:[%s3 + $0x2f0] sm:$0xff]
      %v655 = vld [vmem:[%s3 + $0x2f8] sm:$0xff]
      %v656 = vld [vmem:[%s3 + $0x300] sm:$0xff]
      %v657 = vld [vmem:[%s3 + $0x308] sm:$0xff]
      %v658 = vld [vmem:[%s3 + $0x310] sm:$0xff]
      %v659 = vld [vmem:[%s3 + $0x318] sm:$0xff]
      %v660 = vld [vmem:[%s3 + $0x320] sm:$0xff]
      %v661 = vld [vmem:[%s3 + $0x328] sm:$0xff]
      %v662 = vld [vmem:[%s3 + $0x330] sm:$0xff]
      %v663 = vld [vmem:[%s3 + $0x338] sm:$0xff]
      %v664 = vld [vmem:[%s3 + $0x340] sm:$0xff]
      %v665 = vld [vmem:[%s3 + $0x348] sm:$0xff]
      %v666 = vld [vmem:[%s3 + $0x350] sm:$0xff]
      %v667 = vld [vmem:[%s3 + $0x358] sm:$0xff]
      %v668 = vld [vmem:[%s3 + $0x360] sm:$0xff]
      %v669 = vld [vmem:[%s3 + $0x368] sm:$0xff]
      %v670 = vld [vmem:[%s3 + $0x370] sm:$0xff]
      %v671 = vld [vmem:[%s3 + $0x378] sm:$0xff]
      %v672 = vld [vmem:[%s3 + $0x380] sm:$0xff]
      %v673 = vld [vmem:[%s3 + $0x388] sm:$0xff]
      %v674 = vld [vmem:[%s3 + $0x390] sm:$0xff]
      %v675 = vld [vmem:[%s3 + $0x398] sm:$0xff]
      %v676 = vld [vmem:[%s3 + $0x3a0] sm:$0xff]
      %v677 = vld [vmem:[%s3 + $0x3a8] sm:$0xff]
      %v678 = vld [vmem:[%s3 + $0x3b0] sm:$0xff]
      %v679 = vld [vmem:[%s3 + $0x3b8] sm:$0xff]
      %v680 = vld [vmem:[%s3 + $0x3c0] sm:$0xff]
      %v681 = vld [vmem:[%s3 + $0x3c8] sm:$0xff]
      %v682 = vld [vmem:[%s3 + $0x3d0] sm:$0xff]
      %v683 = vld [vmem:[%s3 + $0x3d8] sm:$0xff]
      %v684 = vld [vmem:[%s3 + $0x3e0] sm:$0xff]
      %v685 = vld [vmem:[%s3 + $0x3e8] sm:$0xff]
      %v686 = vld [vmem:[%s3 + $0x3f0] sm:$0xff]
      %v687 = vld [vmem:[%s3 + $0x3f8] sm:$0xff]
      %v688 = vld [vmem:[%s4] sm:$0xff]
      %v690 = vlaneseq
      %v691 = vshrl.u32 %v690, 7
      %v692 = vsub.s32 0, %v691
      %v693 = vrot.slane %v688, %v692
      %v694 = vlaneseq
      %v695 = vshrl.u32 %v694, 7
      %v696 = vsub.s32 1, %v695
      %v697 = vrot.slane %v688, %v696
      %v698 = vlaneseq
      %v699 = vshrl.u32 %v698, 7
      %v700 = vsub.s32 2, %v699
      %v701 = vrot.slane %v688, %v700
      %v702 = vlaneseq
      %v703 = vshrl.u32 %v702, 7
      %v704 = vsub.s32 3, %v703
      %v705 = vrot.slane %v688, %v704
      %v706 = vlaneseq
      %v707 = vshrl.u32 %v706, 7
      %v708 = vsub.s32 4, %v707
      %v709 = vrot.slane %v688, %v708
      %v710 = vlaneseq
      %v711 = vshrl.u32 %v710, 7
      %v712 = vsub.s32 5, %v711
      %v713 = vrot.slane %v688, %v712
      %v714 = vlaneseq
      %v715 = vshrl.u32 %v714, 7
      %v716 = vsub.s32 6, %v715
      %v717 = vrot.slane %v688, %v716
      %v718 = vlaneseq
      %v719 = vshrl.u32 %v718, 7
      %v720 = vsub.s32 7, %v719
      %v721 = vrot.slane %v688, %v720
      %v730 = vld [vmem:[%s273] sm:$0xff]
      %v731 = vld [vmem:[%s273 + $0x8] sm:$0xff]
      %v732 = vld [vmem:[%s273 + $0x10] sm:$0xff]
      %v733 = vld [vmem:[%s273 + $0x18] sm:$0xff]
      %v734 = vld [vmem:[%s273 + $0x20] sm:$0xff]
      %v735 = vld [vmem:[%s273 + $0x28] sm:$0xff]
      %v736 = vld [vmem:[%s273 + $0x30] sm:$0xff]
      %v737 = vld [vmem:[%s273 + $0x38] sm:$0xff]
      %v738 = vpack.c.bf16 %v294, %v294
      %v739 = vpack.c.bf16 %v295, %v295
      %v868 = vunpack.c.l.b16 %v304
      %v869 = vunpack.c.h.b16 %v304
      %v870 = vunpack.c.l.b16 %v305
      %v871 = vunpack.c.h.b16 %v305
      %v872 = vunpack.c.l.b16 %v306
      %v873 = vunpack.c.h.b16 %v306
      %v874 = vunpack.c.l.b16 %v307
      %v875 = vunpack.c.h.b16 %v307
      %v876 = vunpack.c.l.b16 %v308
      %v877 = vunpack.c.h.b16 %v308
      %v878 = vunpack.c.l.b16 %v309
      %v879 = vunpack.c.h.b16 %v309
      %v880 = vunpack.c.l.b16 %v310
      %v881 = vunpack.c.h.b16 %v310
      %v882 = vunpack.c.l.b16 %v311
      %v883 = vunpack.c.h.b16 %v311
      %v884 = vunpack.c.l.b16 %v312
      %v885 = vunpack.c.h.b16 %v312
      %v886 = vunpack.c.l.b16 %v313
      %v887 = vunpack.c.h.b16 %v313
      %v888 = vunpack.c.l.b16 %v314
      %v889 = vunpack.c.h.b16 %v314
      %v890 = vunpack.c.l.b16 %v315
      %v891 = vunpack.c.h.b16 %v315
      %v892 = vunpack.c.l.b16 %v316
      %v893 = vunpack.c.h.b16 %v316
      %v894 = vunpack.c.l.b16 %v317
      %v895 = vunpack.c.h.b16 %v317
      %v896 = vunpack.c.l.b16 %v318
      %v897 = vunpack.c.h.b16 %v318
      %v898 = vunpack.c.l.b16 %v319
      %v899 = vunpack.c.h.b16 %v319
      %v900 = vunpack.c.l.b16 %v320
      %v901 = vunpack.c.h.b16 %v320
      %v902 = vunpack.c.l.b16 %v321
      %v903 = vunpack.c.h.b16 %v321
      %v904 = vunpack.c.l.b16 %v322
      %v905 = vunpack.c.h.b16 %v322
      %v906 = vunpack.c.l.b16 %v323
      %v907 = vunpack.c.h.b16 %v323
      %v908 = vunpack.c.l.b16 %v324
      %v909 = vunpack.c.h.b16 %v324
      %v910 = vunpack.c.l.b16 %v325
      %v911 = vunpack.c.h.b16 %v325
      %v912 = vunpack.c.l.b16 %v326
      %v913 = vunpack.c.h.b16 %v326
      %v914 = vunpack.c.l.b16 %v327
      %v915 = vunpack.c.h.b16 %v327
      %v916 = vunpack.c.l.b16 %v328
      %v917 = vunpack.c.h.b16 %v328
      %v918 = vunpack.c.l.b16 %v329
      %v919 = vunpack.c.h.b16 %v329
      %v920 = vunpack.c.l.b16 %v330
      %v921 = vunpack.c.h.b16 %v330
      %v922 = vunpack.c.l.b16 %v331
      %v923 = vunpack.c.h.b16 %v331
      %v924 = vunpack.c.l.b16 %v332
      %v925 = vunpack.c.h.b16 %v332
      %v926 = vunpack.c.l.b16 %v333
      %v927 = vunpack.c.h.b16 %v333
      %v928 = vunpack.c.l.b16 %v334
      %v929 = vunpack.c.h.b16 %v334
      %v930 = vunpack.c.l.b16 %v335
      %v931 = vunpack.c.h.b16 %v335
      %v932 = vunpack.c.l.b16 %v336
      %v933 = vunpack.c.h.b16 %v336
      %v934 = vunpack.c.l.b16 %v337
      %v935 = vunpack.c.h.b16 %v337
      %v936 = vunpack.c.l.b16 %v338
      %v937 = vunpack.c.h.b16 %v338
      %v938 = vunpack.c.l.b16 %v339
      %v939 = vunpack.c.h.b16 %v339
      %v940 = vunpack.c.l.b16 %v340
      %v941 = vunpack.c.h.b16 %v340
      %v942 = vunpack.c.l.b16 %v341
      %v943 = vunpack.c.h.b16 %v341
      %v944 = vunpack.c.l.b16 %v342
      %v945 = vunpack.c.h.b16 %v342
      %v946 = vunpack.c.l.b16 %v343
      %v947 = vunpack.c.h.b16 %v343
      %v948 = vunpack.c.l.b16 %v344
      %v949 = vunpack.c.h.b16 %v344
      %v950 = vunpack.c.l.b16 %v345
      %v951 = vunpack.c.h.b16 %v345
      %v952 = vunpack.c.l.b16 %v346
      %v953 = vunpack.c.h.b16 %v346
      %v954 = vunpack.c.l.b16 %v347
      %v955 = vunpack.c.h.b16 %v347
      %v956 = vunpack.c.l.b16 %v348
      %v957 = vunpack.c.h.b16 %v348
      %v958 = vunpack.c.l.b16 %v349
      %v959 = vunpack.c.h.b16 %v349
      %v960 = vunpack.c.l.b16 %v350
      %v961 = vunpack.c.h.b16 %v350
      %v962 = vunpack.c.l.b16 %v351
      %v963 = vunpack.c.h.b16 %v351
      %v964 = vunpack.c.l.b16 %v352
      %v965 = vunpack.c.h.b16 %v352
      %v966 = vunpack.c.l.b16 %v353
      %v967 = vunpack.c.h.b16 %v353
      %v968 = vunpack.c.l.b16 %v354
      %v969 = vunpack.c.h.b16 %v354
      %v970 = vunpack.c.l.b16 %v355
      %v971 = vunpack.c.h.b16 %v355
      %v972 = vunpack.c.l.b16 %v356
      %v973 = vunpack.c.h.b16 %v356
      %v974 = vunpack.c.l.b16 %v357
      %v975 = vunpack.c.h.b16 %v357
      %v976 = vunpack.c.l.b16 %v358
      %v977 = vunpack.c.h.b16 %v358
      %v978 = vunpack.c.l.b16 %v359
      %v979 = vunpack.c.h.b16 %v359
      %v980 = vunpack.c.l.b16 %v360
      %v981 = vunpack.c.h.b16 %v360
      %v982 = vunpack.c.l.b16 %v361
      %v983 = vunpack.c.h.b16 %v361
      %v984 = vunpack.c.l.b16 %v362
      %v985 = vunpack.c.h.b16 %v362
      %v986 = vunpack.c.l.b16 %v363
      %v987 = vunpack.c.h.b16 %v363
      %v988 = vunpack.c.l.b16 %v364
      %v989 = vunpack.c.h.b16 %v364
      %v990 = vunpack.c.l.b16 %v365
      %v991 = vunpack.c.h.b16 %v365
      %v992 = vunpack.c.l.b16 %v366
      %v993 = vunpack.c.h.b16 %v366
      %v994 = vunpack.c.l.b16 %v367
      %v995 = vunpack.c.h.b16 %v367
      %v996 = vunpack.c.l.b16 %v368
      %v997 = vunpack.c.h.b16 %v368
      %v998 = vunpack.c.l.b16 %v369
      %v999 = vunpack.c.h.b16 %v369
      %v1000 = vunpack.c.l.b16 %v370
      %v1001 = vunpack.c.h.b16 %v370
      %v1002 = vunpack.c.l.b16 %v371
      %v1003 = vunpack.c.h.b16 %v371
      %v1004 = vunpack.c.l.b16 %v372
      %v1005 = vunpack.c.h.b16 %v372
      %v1006 = vunpack.c.l.b16 %v373
      %v1007 = vunpack.c.h.b16 %v373
      %v1008 = vunpack.c.l.b16 %v374
      %v1009 = vunpack.c.h.b16 %v374
      %v1010 = vunpack.c.l.b16 %v375
      %v1011 = vunpack.c.h.b16 %v375
      %v1012 = vunpack.c.l.b16 %v376
      %v1013 = vunpack.c.h.b16 %v376
      %v1014 = vunpack.c.l.b16 %v377
      %v1015 = vunpack.c.h.b16 %v377
      %v1016 = vunpack.c.l.b16 %v378
      %v1017 = vunpack.c.h.b16 %v378
      %v1018 = vunpack.c.l.b16 %v379
      %v1019 = vunpack.c.h.b16 %v379
      %v1020 = vunpack.c.l.b16 %v380
      %v1021 = vunpack.c.h.b16 %v380
      %v1022 = vunpack.c.l.b16 %v381
      %v1023 = vunpack.c.h.b16 %v381
      %v1024 = vunpack.c.l.b16 %v382
      %v1025 = vunpack.c.h.b16 %v382
      %v1026 = vunpack.c.l.b16 %v383
      %v1027 = vunpack.c.h.b16 %v383
      %v1028 = vunpack.c.l.b16 %v384
      %v1029 = vunpack.c.h.b16 %v384
      %v1030 = vunpack.c.l.b16 %v385
      %v1031 = vunpack.c.h.b16 %v385
      %v1032 = vunpack.c.l.b16 %v386
      %v1033 = vunpack.c.h.b16 %v386
      %v1034 = vunpack.c.l.b16 %v387
      %v1035 = vunpack.c.h.b16 %v387
      %v1036 = vunpack.c.l.b16 %v388
      %v1037 = vunpack.c.h.b16 %v388
      %v1038 = vunpack.c.l.b16 %v389
      %v1039 = vunpack.c.h.b16 %v389
      %v1040 = vunpack.c.l.b16 %v390
      %v1041 = vunpack.c.h.b16 %v390
      %v1042 = vunpack.c.l.b16 %v391
      %v1043 = vunpack.c.h.b16 %v391
      %v1044 = vunpack.c.l.b16 %v392
      %v1045 = vunpack.c.h.b16 %v392
      %v1046 = vunpack.c.l.b16 %v393
      %v1047 = vunpack.c.h.b16 %v393
      %v1048 = vunpack.c.l.b16 %v394
      %v1049 = vunpack.c.h.b16 %v394
      %v1050 = vunpack.c.l.b16 %v395
      %v1051 = vunpack.c.h.b16 %v395
      %v1052 = vunpack.c.l.b16 %v396
      %v1053 = vunpack.c.h.b16 %v396
      %v1054 = vunpack.c.l.b16 %v397
      %v1055 = vunpack.c.h.b16 %v397
      %v1056 = vunpack.c.l.b16 %v398
      %v1057 = vunpack.c.h.b16 %v398
      %v1058 = vunpack.c.l.b16 %v399
      %v1059 = vunpack.c.h.b16 %v399
      %v1060 = vunpack.c.l.b16 %v400
      %v1061 = vunpack.c.h.b16 %v400
      %v1062 = vunpack.c.l.b16 %v401
      %v1063 = vunpack.c.h.b16 %v401
      %v1064 = vunpack.c.l.b16 %v402
      %v1065 = vunpack.c.h.b16 %v402
      %v1066 = vunpack.c.l.b16 %v403
      %v1067 = vunpack.c.h.b16 %v403
      %v1068 = vunpack.c.l.b16 %v404
      %v1069 = vunpack.c.h.b16 %v404
      %v1070 = vunpack.c.l.b16 %v405
      %v1071 = vunpack.c.h.b16 %v405
      %v1072 = vunpack.c.l.b16 %v406
      %v1073 = vunpack.c.h.b16 %v406
      %v1074 = vunpack.c.l.b16 %v407
      %v1075 = vunpack.c.h.b16 %v407
      %v1076 = vunpack.c.l.b16 %v408
      %v1077 = vunpack.c.h.b16 %v408
      %v1078 = vunpack.c.l.b16 %v409
      %v1079 = vunpack.c.h.b16 %v409
      %v1080 = vunpack.c.l.b16 %v410
      %v1081 = vunpack.c.h.b16 %v410
      %v1082 = vunpack.c.l.b16 %v411
      %v1083 = vunpack.c.h.b16 %v411
      %v1084 = vunpack.c.l.b16 %v412
      %v1085 = vunpack.c.h.b16 %v412
      %v1086 = vunpack.c.l.b16 %v413
      %v1087 = vunpack.c.h.b16 %v413
      %v1088 = vunpack.c.l.b16 %v414
      %v1089 = vunpack.c.h.b16 %v414
      %v1090 = vunpack.c.l.b16 %v415
      %v1091 = vunpack.c.h.b16 %v415
      %v1092 = vunpack.c.l.b16 %v416
      %v1093 = vunpack.c.h.b16 %v416
      %v1094 = vunpack.c.l.b16 %v417
      %v1095 = vunpack.c.h.b16 %v417
      %v1096 = vunpack.c.l.b16 %v418
      %v1097 = vunpack.c.h.b16 %v418
      %v1098 = vunpack.c.l.b16 %v419
      %v1099 = vunpack.c.h.b16 %v419
      %v1100 = vunpack.c.l.b16 %v420
      %v1101 = vunpack.c.h.b16 %v420
      %v1102 = vunpack.c.l.b16 %v421
      %v1103 = vunpack.c.h.b16 %v421
      %v1104 = vunpack.c.l.b16 %v422
      %v1105 = vunpack.c.h.b16 %v422
      %v1106 = vunpack.c.l.b16 %v423
      %v1107 = vunpack.c.h.b16 %v423
      %v1108 = vunpack.c.l.b16 %v424
      %v1109 = vunpack.c.h.b16 %v424
      %v1110 = vunpack.c.l.b16 %v425
      %v1111 = vunpack.c.h.b16 %v425
      %v1112 = vunpack.c.l.b16 %v426
      %v1113 = vunpack.c.h.b16 %v426
      %v1114 = vunpack.c.l.b16 %v427
      %v1115 = vunpack.c.h.b16 %v427
      %v1116 = vunpack.c.l.b16 %v428
      %v1117 = vunpack.c.h.b16 %v428
      %v1118 = vunpack.c.l.b16 %v429
      %v1119 = vunpack.c.h.b16 %v429
      %v1120 = vunpack.c.l.b16 %v430
      %v1121 = vunpack.c.h.b16 %v430
      %v1122 = vunpack.c.l.b16 %v431
      %v1123 = vunpack.c.h.b16 %v431
      %v1124 = vpack.c.b16 %v876, %v868
      %v1125 = vpack.c.b16 %v877, %v869
      %v1126 = vpack.c.b16 %v878, %v870
      %v1127 = vpack.c.b16 %v879, %v871
      %v1128 = vpack.c.b16 %v880, %v872
      %v1129 = vpack.c.b16 %v881, %v873
      %v1130 = vpack.c.b16 %v882, %v874
      %v1131 = vpack.c.b16 %v883, %v875
      %v1132 = vpack.c.b16 %v892, %v884
      %v1133 = vpack.c.b16 %v893, %v885
      %v1134 = vpack.c.b16 %v894, %v886
      %v1135 = vpack.c.b16 %v895, %v887
      %v1136 = vpack.c.b16 %v896, %v888
      %v1137 = vpack.c.b16 %v897, %v889
      %v1138 = vpack.c.b16 %v898, %v890
      %v1139 = vpack.c.b16 %v899, %v891
      %v1140 = vpack.c.b16 %v908, %v900
      %v1141 = vpack.c.b16 %v909, %v901
      %v1142 = vpack.c.b16 %v910, %v902
      %v1143 = vpack.c.b16 %v911, %v903
      %v1144 = vpack.c.b16 %v912, %v904
      %v1145 = vpack.c.b16 %v913, %v905
      %v1146 = vpack.c.b16 %v914, %v906
      %v1147 = vpack.c.b16 %v915, %v907
      %v1148 = vpack.c.b16 %v924, %v916
      %v1149 = vpack.c.b16 %v925, %v917
      %v1150 = vpack.c.b16 %v926, %v918
      %v1151 = vpack.c.b16 %v927, %v919
      %v1152 = vpack.c.b16 %v928, %v920
      %v1153 = vpack.c.b16 %v929, %v921
      %v1154 = vpack.c.b16 %v930, %v922
      %v1155 = vpack.c.b16 %v931, %v923
      %v1156 = vpack.c.b16 %v940, %v932
      %v1157 = vpack.c.b16 %v941, %v933
      %v1158 = vpack.c.b16 %v942, %v934
      %v1159 = vpack.c.b16 %v943, %v935
      %v1160 = vpack.c.b16 %v944, %v936
      %v1161 = vpack.c.b16 %v945, %v937
      %v1162 = vpack.c.b16 %v946, %v938
      %v1163 = vpack.c.b16 %v947, %v939
      %v1164 = vpack.c.b16 %v956, %v948
      %v1165 = vpack.c.b16 %v957, %v949
      %v1166 = vpack.c.b16 %v958, %v950
      %v1167 = vpack.c.b16 %v959, %v951
      %v1168 = vpack.c.b16 %v960, %v952
      %v1169 = vpack.c.b16 %v961, %v953
      %v1170 = vpack.c.b16 %v962, %v954
      %v1171 = vpack.c.b16 %v963, %v955
      %v1172 = vpack.c.b16 %v972, %v964
      %v1173 = vpack.c.b16 %v973, %v965
      %v1174 = vpack.c.b16 %v974, %v966
      %v1175 = vpack.c.b16 %v975, %v967
      %v1176 = vpack.c.b16 %v976, %v968
      %v1177 = vpack.c.b16 %v977, %v969
      %v1178 = vpack.c.b16 %v978, %v970
      %v1179 = vpack.c.b16 %v979, %v971
      %v1180 = vpack.c.b16 %v988, %v980
      %v1181 = vpack.c.b16 %v989, %v981
      %v1182 = vpack.c.b16 %v990, %v982
      %v1183 = vpack.c.b16 %v991, %v983
      %v1184 = vpack.c.b16 %v992, %v984
      %v1185 = vpack.c.b16 %v993, %v985
      %v1186 = vpack.c.b16 %v994, %v986
      %v1187 = vpack.c.b16 %v995, %v987
      %v1188 = vpack.c.b16 %v1004, %v996
      %v1189 = vpack.c.b16 %v1005, %v997
      %v1190 = vpack.c.b16 %v1006, %v998
      %v1191 = vpack.c.b16 %v1007, %v999
      %v1192 = vpack.c.b16 %v1008, %v1000
      %v1193 = vpack.c.b16 %v1009, %v1001
      %v1194 = vpack.c.b16 %v1010, %v1002
      %v1195 = vpack.c.b16 %v1011, %v1003
      %v1196 = vpack.c.b16 %v1020, %v1012
      %v1197 = vpack.c.b16 %v1021, %v1013
      %v1198 = vpack.c.b16 %v1022, %v1014
      %v1199 = vpack.c.b16 %v1023, %v1015
      %v1200 = vpack.c.b16 %v1024, %v1016
      %v1201 = vpack.c.b16 %v1025, %v1017
      %v1202 = vpack.c.b16 %v1026, %v1018
      %v1203 = vpack.c.b16 %v1027, %v1019
      %v1204 = vpack.c.b16 %v1036, %v1028
      %v1205 = vpack.c.b16 %v1037, %v1029
      %v1206 = vpack.c.b16 %v1038, %v1030
      %v1207 = vpack.c.b16 %v1039, %v1031
      %v1208 = vpack.c.b16 %v1040, %v1032
      %v1209 = vpack.c.b16 %v1041, %v1033
      %v1210 = vpack.c.b16 %v1042, %v1034
      %v1211 = vpack.c.b16 %v1043, %v1035
      %v1212 = vpack.c.b16 %v1052, %v1044
      %v1213 = vpack.c.b16 %v1053, %v1045
      %v1214 = vpack.c.b16 %v1054, %v1046
      %v1215 = vpack.c.b16 %v1055, %v1047
      %v1216 = vpack.c.b16 %v1056, %v1048
      %v1217 = vpack.c.b16 %v1057, %v1049
      %v1218 = vpack.c.b16 %v1058, %v1050
      %v1219 = vpack.c.b16 %v1059, %v1051
      %v1220 = vpack.c.b16 %v1068, %v1060
      %v1221 = vpack.c.b16 %v1069, %v1061
      %v1222 = vpack.c.b16 %v1070, %v1062
      %v1223 = vpack.c.b16 %v1071, %v1063
      %v1224 = vpack.c.b16 %v1072, %v1064
      %v1225 = vpack.c.b16 %v1073, %v1065
      %v1226 = vpack.c.b16 %v1074, %v1066
      %v1227 = vpack.c.b16 %v1075, %v1067
      %v1228 = vpack.c.b16 %v1084, %v1076
      %v1229 = vpack.c.b16 %v1085, %v1077
      %v1230 = vpack.c.b16 %v1086, %v1078
      %v1231 = vpack.c.b16 %v1087, %v1079
      %v1232 = vpack.c.b16 %v1088, %v1080
      %v1233 = vpack.c.b16 %v1089, %v1081
      %v1234 = vpack.c.b16 %v1090, %v1082
      %v1235 = vpack.c.b16 %v1091, %v1083
      %v1236 = vpack.c.b16 %v1100, %v1092
      %v1237 = vpack.c.b16 %v1101, %v1093
      %v1238 = vpack.c.b16 %v1102, %v1094
      %v1239 = vpack.c.b16 %v1103, %v1095
      %v1240 = vpack.c.b16 %v1104, %v1096
      %v1241 = vpack.c.b16 %v1105, %v1097
      %v1242 = vpack.c.b16 %v1106, %v1098
      %v1243 = vpack.c.b16 %v1107, %v1099
      %v1244 = vpack.c.b16 %v1116, %v1108
      %v1245 = vpack.c.b16 %v1117, %v1109
      %v1246 = vpack.c.b16 %v1118, %v1110
      %v1247 = vpack.c.b16 %v1119, %v1111
      %v1248 = vpack.c.b16 %v1120, %v1112
      %v1249 = vpack.c.b16 %v1121, %v1113
      %v1250 = vpack.c.b16 %v1122, %v1114
      %v1251 = vpack.c.b16 %v1123, %v1115
      %1380 = vmatprep.subr.bf16.mxu0 %v1181
      %1381 = vmatpush1.bf16.msra.mxu0 %v1180
      %1382 = vmatprep.subr.bf16.mxu0 %v1173
      %1383 = vmatpush1.bf16.msra.mxu0 %v1172
      %1384 = vmatprep.subr.bf16.mxu0 %v1165
      %1385 = vmatpush1.bf16.msra.mxu0 %v1164
      %1386 = vmatprep.subr.bf16.mxu0 %v1157
      %1387 = vmatpush1.bf16.msra.mxu0 %v1156
      %1388 = vmatprep.subr.bf16.mxu0 %v1149
      %1389 = vmatpush1.bf16.msra.mxu0 %v1148
      %1390 = vmatprep.subr.bf16.mxu0 %v1141
      %1391 = vmatpush1.bf16.msra.mxu0 %v1140
      %1392 = vmatprep.subr.bf16.mxu0 %v1133
      %1393 = vmatpush1.bf16.msra.mxu0 %v1132
      %1394 = vmatprep.subr.bf16.mxu0 %v1125
      %1395 = vmatpush1.bf16.msra.mxu0 %v1124
      %1396 = vmatprep.subr.bf16.mxu0 %v1245
      %1397 = vmatpush2.bf16.msra.mxu0 %v1244
      %1398 = vmatprep.subr.bf16.mxu0 %v1237
      %1399 = vmatpush2.bf16.msra.mxu0 %v1236
      %1400 = vmatprep.subr.bf16.mxu0 %v1229
      %1401 = vmatpush2.bf16.msra.mxu0 %v1228
      %1402 = vmatprep.subr.bf16.mxu0 %v1221
      %1403 = vmatpush2.bf16.msra.mxu0 %v1220
      %1404 = vmatprep.subr.bf16.mxu0 %v1213
      %1405 = vmatpush2.bf16.msra.mxu0 %v1212
      %1406 = vmatprep.subr.bf16.mxu0 %v1205
      %1407 = vmatpush2.bf16.msra.mxu0 %v1204
      %1408 = vmatprep.subr.bf16.mxu0 %v1197
      %1409 = vmatpush2.bf16.msra.mxu0 %v1196
      %1410 = vmatprep.subr.bf16.mxu0 %v1189
      %1411 = vmatpush2.bf16.msra.mxu0 %v1188
      %1412 = vmatprep.mubr.bf16.mxu0 %v739
      %1413 = vmatmul.mubr.bf16.gmra.mxu0 %v738
      %v1414 = vpop.f32.mrf.mxu0
      %v1415 = vadd.f32 0.0, %v1414
      %v1416 = vpop.f32.mrf.mxu0
      %v1417 = vadd.f32 0.0, %v1416
      %v1418 = vpop.f32.mrf.mxu0
      %v1419 = vpop.f32.mrf.mxu0
      %1420 = vdwg.mxu0
      %1421 = vmatprep.subr.bf16.mxu0 %v1183
      %1422 = vmatpush1.bf16.msra.mxu0 %v1182
      %1423 = vmatprep.subr.bf16.mxu0 %v1175
      %1424 = vmatpush1.bf16.msra.mxu0 %v1174
      %1425 = vmatprep.subr.bf16.mxu0 %v1167
      %1426 = vmatpush1.bf16.msra.mxu0 %v1166
      %1427 = vmatprep.subr.bf16.mxu0 %v1159
      %1428 = vmatpush1.bf16.msra.mxu0 %v1158
      %1429 = vmatprep.subr.bf16.mxu0 %v1151
      %1430 = vmatpush1.bf16.msra.mxu0 %v1150
      %1431 = vmatprep.subr.bf16.mxu0 %v1143
      %1432 = vmatpush1.bf16.msra.mxu0 %v1142
      %1433 = vmatprep.subr.bf16.mxu0 %v1135
      %1434 = vmatpush1.bf16.msra.mxu0 %v1134
      %1435 = vmatprep.subr.bf16.mxu0 %v1127
      %1436 = vmatpush1.bf16.msra.mxu0 %v1126
      %1437 = vmatprep.subr.bf16.mxu0 %v1247
      %1438 = vmatpush2.bf16.msra.mxu0 %v1246
      %1439 = vmatprep.subr.bf16.mxu0 %v1239
      %1440 = vmatpush2.bf16.msra.mxu0 %v1238
      %1441 = vmatprep.subr.bf16.mxu0 %v1231
      %1442 = vmatpush2.bf16.msra.mxu0 %v1230
      %1443 = vmatprep.subr.bf16.mxu0 %v1223
      %1444 = vmatpush2.bf16.msra.mxu0 %v1222
      %1445 = vmatprep.subr.bf16.mxu0 %v1215
      %1446 = vmatpush2.bf16.msra.mxu0 %v1214
      %1447 = vmatprep.subr.bf16.mxu0 %v1207
      %1448 = vmatpush2.bf16.msra.mxu0 %v1206
      %1449 = vmatprep.subr.bf16.mxu0 %v1199
      %1450 = vmatpush2.bf16.msra.mxu0 %v1198
      %1451 = vmatprep.subr.bf16.mxu0 %v1191
      %1452 = vmatpush2.bf16.msra.mxu0 %v1190
      %1453 = vmatprep.mubr.bf16.mxu0 %v739
      %1454 = vmatmul.mubr.bf16.gmra.mxu0 %v738
      %v1455 = vpop.f32.mrf.mxu0
      %v1456 = vadd.f32 0.0, %v1455
      %v1457 = vpop.f32.mrf.mxu0
      %v1458 = vadd.f32 0.0, %v1457
      %v1459 = vpop.f32.mrf.mxu0
      %v1460 = vpop.f32.mrf.mxu0
      %1461 = vdwg.mxu0
      %1462 = vmatprep.subr.bf16.mxu0 %v1185
      %1463 = vmatpush1.bf16.msra.mxu0 %v1184
      %1464 = vmatprep.subr.bf16.mxu0 %v1177
      %1465 = vmatpush1.bf16.msra.mxu0 %v1176
      %1466 = vmatprep.subr.bf16.mxu0 %v1169
      %1467 = vmatpush1.bf16.msra.mxu0 %v1168
      %1468 = vmatprep.subr.bf16.mxu0 %v1161
      %1469 = vmatpush1.bf16.msra.mxu0 %v1160
      %1470 = vmatprep.subr.bf16.mxu0 %v1153
      %1471 = vmatpush1.bf16.msra.mxu0 %v1152
      %1472 = vmatprep.subr.bf16.mxu0 %v1145
      %1473 = vmatpush1.bf16.msra.mxu0 %v1144
      %1474 = vmatprep.subr.bf16.mxu0 %v1137
      %1475 = vmatpush1.bf16.msra.mxu0 %v1136
      %1476 = vmatprep.subr.bf16.mxu0 %v1129
      %1477 = vmatpush1.bf16.msra.mxu0 %v1128
      %1478 = vmatprep.subr.bf16.mxu0 %v1249
      %1479 = vmatpush2.bf16.msra.mxu0 %v1248
      %1480 = vmatprep.subr.bf16.mxu0 %v1241
      %1481 = vmatpush2.bf16.msra.mxu0 %v1240
      %1482 = vmatprep.subr.bf16.mxu0 %v1233
      %1483 = vmatpush2.bf16.msra.mxu0 %v1232
      %1484 = vmatprep.subr.bf16.mxu0 %v1225
      %1485 = vmatpush2.bf16.msra.mxu0 %v1224
      %1486 = vmatprep.subr.bf16.mxu0 %v1217
      %1487 = vmatpush2.bf16.msra.mxu0 %v1216
      %1488 = vmatprep.subr.bf16.mxu0 %v1209
      %1489 = vmatpush2.bf16.msra.mxu0 %v1208
      %1490 = vmatprep.subr.bf16.mxu0 %v1201
      %1491 = vmatpush2.bf16.msra.mxu0 %v1200
      %1492 = vmatprep.subr.bf16.mxu0 %v1193
      %1493 = vmatpush2.bf16.msra.mxu0 %v1192
      %1494 = vmatprep.mubr.bf16.mxu0 %v739
      %1495 = vmatmul.mubr.bf16.gmra.mxu0 %v738
      %v1496 = vpop.f32.mrf.mxu0
      %v1497 = vadd.f32 0.0, %v1496
      %v1498 = vpop.f32.mrf.mxu0
      %v1499 = vadd.f32 0.0, %v1498
      %v1500 = vpop.f32.mrf.mxu0
      %v1501 = vpop.f32.mrf.mxu0
      %1502 = vdwg.mxu0
      %1503 = vmatprep.subr.bf16.mxu0 %v1187
      %1504 = vmatpush1.bf16.msra.mxu0 %v1186
      %1505 = vmatprep.subr.bf16.mxu0 %v1179
      %1506 = vmatpush1.bf16.msra.mxu0 %v1178
      %1507 = vmatprep.subr.bf16.mxu0 %v1171
      %1508 = vmatpush1.bf16.msra.mxu0 %v1170
      %1509 = vmatprep.subr.bf16.mxu0 %v1163
      %1510 = vmatpush1.bf16.msra.mxu0 %v1162
      %1511 = vmatprep.subr.bf16.mxu0 %v1155
      %1512 = vmatpush1.bf16.msra.mxu0 %v1154
      %1513 = vmatprep.subr.bf16.mxu0 %v1147
      %1514 = vmatpush1.bf16.msra.mxu0 %v1146
      %1515 = vmatprep.subr.bf16.mxu0 %v1139
      %1516 = vmatpush1.bf16.msra.mxu0 %v1138
      %1517 = vmatprep.subr.bf16.mxu0 %v1131
      %1518 = vmatpush1.bf16.msra.mxu0 %v1130
      %1519 = vmatprep.subr.bf16.mxu0 %v1251
      %1520 = vmatpush2.bf16.msra.mxu0 %v1250
      %1521 = vmatprep.subr.bf16.mxu0 %v1243
      %1522 = vmatpush2.bf16.msra.mxu0 %v1242
      %1523 = vmatprep.subr.bf16.mxu0 %v1235
      %1524 = vmatpush2.bf16.msra.mxu0 %v1234
      %1525 = vmatprep.subr.bf16.mxu0 %v1227
      %1526 = vmatpush2.bf16.msra.mxu0 %v1226
      %1527 = vmatprep.subr.bf16.mxu0 %v1219
      %1528 = vmatpush2.bf16.msra.mxu0 %v1218
      %1529 = vmatprep.subr.bf16.mxu0 %v1211
      %1530 = vmatpush2.bf16.msra.mxu0 %v1210
      %1531 = vmatprep.subr.bf16.mxu0 %v1203
      %1532 = vmatpush2.bf16.msra.mxu0 %v1202
      %1533 = vmatprep.subr.bf16.mxu0 %v1195
      %1534 = vmatpush2.bf16.msra.mxu0 %v1194
      %1535 = vmatprep.mubr.bf16.mxu0 %v739
      %1536 = vmatmul.mubr.bf16.gmra.mxu0 %v738
      %v1537 = vpop.f32.mrf.mxu0
      %v1538 = vadd.f32 0.0, %v1537
      %v1539 = vpop.f32.mrf.mxu0
      %v1540 = vadd.f32 0.0, %v1539
      %v1541 = vpop.f32.mrf.mxu0
      %v1542 = vpop.f32.mrf.mxu0
      %1543 = vdwg.mxu0
      %v1544 = vadd.f32 %v730, %v1415
      %v1545 = vadd.f32 %v731, %v1417
      %v1546 = vadd.f32 %v732, %v1456
      %v1547 = vadd.f32 %v733, %v1458
      %v1548 = vadd.f32 %v734, %v1497
      %v1549 = vadd.f32 %v735, %v1499
      %v1550 = vadd.f32 %v736, %v1538
      %v1551 = vadd.f32 %v737, %v1540
      %v1552 = vmul.f32 %v1544, 0.5
      %v1553 = vmul.f32 %v1545, 0.5
      %v1554 = vtanh.pop %v1552
      %v1555 = vtanh.pop %v1553
      %v1556 = vmul.f32 %v1554, 0.5
      %v1557 = vmul.f32 %v1555, 0.5
      %v1558 = vadd.f32 %v1556, 0.5
      %v1559 = vadd.f32 %v1557, 0.5
      %v1560 = vmul.f32 %v1546, 0.5
      %v1561 = vmul.f32 %v1547, 0.5
      %v1562 = vtanh.pop %v1560
      %v1563 = vtanh.pop %v1561
      %v1564 = vmul.f32 %v1562, 0.5
      %v1565 = vmul.f32 %v1563, 0.5
      %v1566 = vadd.f32 %v1564, 0.5
      %v1567 = vadd.f32 %v1565, 0.5
      %v1568 = vtanh.pop %v1548
      %v1569 = vtanh.pop %v1549
      %v1570 = vmul.f32 %v1550, 0.5
      %v1571 = vmul.f32 %v1551, 0.5
      %v1572 = vtanh.pop %v1570
      %v1573 = vtanh.pop %v1571
      %v1574 = vmul.f32 %v1572, 0.5
      %v1575 = vmul.f32 %v1573, 0.5
      %v1576 = vadd.f32 %v1574, 0.5
      %v1577 = vadd.f32 %v1575, 0.5
      %v1578 = vmul.f32 %v1566, %v296
      %v1579 = vmul.f32 %v1567, %v297
      %v1580 = vmul.f32 %v1558, %v1568
      %v1581 = vmul.f32 %v1559, %v1569
      %v1582 = vadd.f32 %v1578, %v1580
      %v1583 = vadd.f32 %v1579, %v1581
      %v1584 = vtanh.pop %v1582
      %v1585 = vtanh.pop %v1583
      %v1586 = vmul.f32 %v1576, %v1584
      %v1587 = vmul.f32 %v1577, %v1585
      %v1588 = vpack.c.bf16 %v299, %v299
      %v1589 = vpack.c.bf16 %v300, %v300
      %v1590 = vpack.c.bf16 %v1586, %v1586
      %v1591 = vpack.c.bf16 %v1587, %v1587
      %v1720 = vunpack.c.l.b16 %v432
      %v1721 = vunpack.c.h.b16 %v432
      %v1722 = vunpack.c.l.b16 %v433
      %v1723 = vunpack.c.h.b16 %v433
      %v1724 = vunpack.c.l.b16 %v434
      %v1725 = vunpack.c.h.b16 %v434
      %v1726 = vunpack.c.l.b16 %v435
      %v1727 = vunpack.c.h.b16 %v435
      %v1728 = vunpack.c.l.b16 %v436
      %v1729 = vunpack.c.h.b16 %v436
      %v1730 = vunpack.c.l.b16 %v437
      %v1731 = vunpack.c.h.b16 %v437
      %v1732 = vunpack.c.l.b16 %v438
      %v1733 = vunpack.c.h.b16 %v438
      %v1734 = vunpack.c.l.b16 %v439
      %v1735 = vunpack.c.h.b16 %v439
      %v1736 = vunpack.c.l.b16 %v440
      %v1737 = vunpack.c.h.b16 %v440
      %v1738 = vunpack.c.l.b16 %v441
      %v1739 = vunpack.c.h.b16 %v441
      %v1740 = vunpack.c.l.b16 %v442
      %v1741 = vunpack.c.h.b16 %v442
      %v1742 = vunpack.c.l.b16 %v443
      %v1743 = vunpack.c.h.b16 %v443
      %v1744 = vunpack.c.l.b16 %v444
      %v1745 = vunpack.c.h.b16 %v444
      %v1746 = vunpack.c.l.b16 %v445
      %v1747 = vunpack.c.h.b16 %v445
      %v1748 = vunpack.c.l.b16 %v446
      %v1749 = vunpack.c.h.b16 %v446
      %v1750 = vunpack.c.l.b16 %v447
      %v1751 = vunpack.c.h.b16 %v447
      %v1752 = vunpack.c.l.b16 %v448
      %v1753 = vunpack.c.h.b16 %v448
      %v1754 = vunpack.c.l.b16 %v449
      %v1755 = vunpack.c.h.b16 %v449
      %v1756 = vunpack.c.l.b16 %v450
      %v1757 = vunpack.c.h.b16 %v450
      %v1758 = vunpack.c.l.b16 %v451
      %v1759 = vunpack.c.h.b16 %v451
      %v1760 = vunpack.c.l.b16 %v452
      %v1761 = vunpack.c.h.b16 %v452
      %v1762 = vunpack.c.l.b16 %v453
      %v1763 = vunpack.c.h.b16 %v453
      %v1764 = vunpack.c.l.b16 %v454
      %v1765 = vunpack.c.h.b16 %v454
      %v1766 = vunpack.c.l.b16 %v455
      %v1767 = vunpack.c.h.b16 %v455
      %v1768 = vunpack.c.l.b16 %v456
      %v1769 = vunpack.c.h.b16 %v456
      %v1770 = vunpack.c.l.b16 %v457
      %v1771 = vunpack.c.h.b16 %v457
      %v1772 = vunpack.c.l.b16 %v458
      %v1773 = vunpack.c.h.b16 %v458
      %v1774 = vunpack.c.l.b16 %v459
      %v1775 = vunpack.c.h.b16 %v459
      %v1776 = vunpack.c.l.b16 %v460
      %v1777 = vunpack.c.h.b16 %v460
      %v1778 = vunpack.c.l.b16 %v461
      %v1779 = vunpack.c.h.b16 %v461
      %v1780 = vunpack.c.l.b16 %v462
      %v1781 = vunpack.c.h.b16 %v462
      %v1782 = vunpack.c.l.b16 %v463
      %v1783 = vunpack.c.h.b16 %v463
      %v1784 = vunpack.c.l.b16 %v464
      %v1785 = vunpack.c.h.b16 %v464
      %v1786 = vunpack.c.l.b16 %v465
      %v1787 = vunpack.c.h.b16 %v465
      %v1788 = vunpack.c.l.b16 %v466
      %v1789 = vunpack.c.h.b16 %v466
      %v1790 = vunpack.c.l.b16 %v467
      %v1791 = vunpack.c.h.b16 %v467
      %v1792 = vunpack.c.l.b16 %v468
      %v1793 = vunpack.c.h.b16 %v468
      %v1794 = vunpack.c.l.b16 %v469
      %v1795 = vunpack.c.h.b16 %v469
      %v1796 = vunpack.c.l.b16 %v470
      %v1797 = vunpack.c.h.b16 %v470
      %v1798 = vunpack.c.l.b16 %v471
      %v1799 = vunpack.c.h.b16 %v471
      %v1800 = vunpack.c.l.b16 %v472
      %v1801 = vunpack.c.h.b16 %v472
      %v1802 = vunpack.c.l.b16 %v473
      %v1803 = vunpack.c.h.b16 %v473
      %v1804 = vunpack.c.l.b16 %v474
      %v1805 = vunpack.c.h.b16 %v474
      %v1806 = vunpack.c.l.b16 %v475
      %v1807 = vunpack.c.h.b16 %v475
      %v1808 = vunpack.c.l.b16 %v476
      %v1809 = vunpack.c.h.b16 %v476
      %v1810 = vunpack.c.l.b16 %v477
      %v1811 = vunpack.c.h.b16 %v477
      %v1812 = vunpack.c.l.b16 %v478
      %v1813 = vunpack.c.h.b16 %v478
      %v1814 = vunpack.c.l.b16 %v479
      %v1815 = vunpack.c.h.b16 %v479
      %v1816 = vunpack.c.l.b16 %v480
      %v1817 = vunpack.c.h.b16 %v480
      %v1818 = vunpack.c.l.b16 %v481
      %v1819 = vunpack.c.h.b16 %v481
      %v1820 = vunpack.c.l.b16 %v482
      %v1821 = vunpack.c.h.b16 %v482
      %v1822 = vunpack.c.l.b16 %v483
      %v1823 = vunpack.c.h.b16 %v483
      %v1824 = vunpack.c.l.b16 %v484
      %v1825 = vunpack.c.h.b16 %v484
      %v1826 = vunpack.c.l.b16 %v485
      %v1827 = vunpack.c.h.b16 %v485
      %v1828 = vunpack.c.l.b16 %v486
      %v1829 = vunpack.c.h.b16 %v486
      %v1830 = vunpack.c.l.b16 %v487
      %v1831 = vunpack.c.h.b16 %v487
      %v1832 = vunpack.c.l.b16 %v488
      %v1833 = vunpack.c.h.b16 %v488
      %v1834 = vunpack.c.l.b16 %v489
      %v1835 = vunpack.c.h.b16 %v489
      %v1836 = vunpack.c.l.b16 %v490
      %v1837 = vunpack.c.h.b16 %v490
      %v1838 = vunpack.c.l.b16 %v491
      %v1839 = vunpack.c.h.b16 %v491
      %v1840 = vunpack.c.l.b16 %v492
      %v1841 = vunpack.c.h.b16 %v492
      %v1842 = vunpack.c.l.b16 %v493
      %v1843 = vunpack.c.h.b16 %v493
      %v1844 = vunpack.c.l.b16 %v494
      %v1845 = vunpack.c.h.b16 %v494
      %v1846 = vunpack.c.l.b16 %v495
      %v1847 = vunpack.c.h.b16 %v495
      %v1848 = vunpack.c.l.b16 %v496
      %v1849 = vunpack.c.h.b16 %v496
      %v1850 = vunpack.c.l.b16 %v497
      %v1851 = vunpack.c.h.b16 %v497
      %v1852 = vunpack.c.l.b16 %v498
      %v1853 = vunpack.c.h.b16 %v498
      %v1854 = vunpack.c.l.b16 %v499
      %v1855 = vunpack.c.h.b16 %v499
      %v1856 = vunpack.c.l.b16 %v500
      %v1857 = vunpack.c.h.b16 %v500
      %v1858 = vunpack.c.l.b16 %v501
      %v1859 = vunpack.c.h.b16 %v501
      %v1860 = vunpack.c.l.b16 %v502
      %v1861 = vunpack.c.h.b16 %v502
      %v1862 = vunpack.c.l.b16 %v503
      %v1863 = vunpack.c.h.b16 %v503
      %v1864 = vunpack.c.l.b16 %v504
      %v1865 = vunpack.c.h.b16 %v504
      %v1866 = vunpack.c.l.b16 %v505
      %v1867 = vunpack.c.h.b16 %v505
      %v1868 = vunpack.c.l.b16 %v506
      %v1869 = vunpack.c.h.b16 %v506
      %v1870 = vunpack.c.l.b16 %v507
      %v1871 = vunpack.c.h.b16 %v507
      %v1872 = vunpack.c.l.b16 %v508
      %v1873 = vunpack.c.h.b16 %v508
      %v1874 = vunpack.c.l.b16 %v509
      %v1875 = vunpack.c.h.b16 %v509
      %v1876 = vunpack.c.l.b16 %v510
      %v1877 = vunpack.c.h.b16 %v510
      %v1878 = vunpack.c.l.b16 %v511
      %v1879 = vunpack.c.h.b16 %v511
      %v1880 = vunpack.c.l.b16 %v512
      %v1881 = vunpack.c.h.b16 %v512
      %v1882 = vunpack.c.l.b16 %v513
      %v1883 = vunpack.c.h.b16 %v513
      %v1884 = vunpack.c.l.b16 %v514
      %v1885 = vunpack.c.h.b16 %v514
      %v1886 = vunpack.c.l.b16 %v515
      %v1887 = vunpack.c.h.b16 %v515
      %v1888 = vunpack.c.l.b16 %v516
      %v1889 = vunpack.c.h.b16 %v516
      %v1890 = vunpack.c.l.b16 %v517
      %v1891 = vunpack.c.h.b16 %v517
      %v1892 = vunpack.c.l.b16 %v518
      %v1893 = vunpack.c.h.b16 %v518
      %v1894 = vunpack.c.l.b16 %v519
      %v1895 = vunpack.c.h.b16 %v519
      %v1896 = vunpack.c.l.b16 %v520
      %v1897 = vunpack.c.h.b16 %v520
      %v1898 = vunpack.c.l.b16 %v521
      %v1899 = vunpack.c.h.b16 %v521
      %v1900 = vunpack.c.l.b16 %v522
      %v1901 = vunpack.c.h.b16 %v522
      %v1902 = vunpack.c.l.b16 %v523
      %v1903 = vunpack.c.h.b16 %v523
      %v1904 = vunpack.c.l.b16 %v524
      %v1905 = vunpack.c.h.b16 %v524
      %v1906 = vunpack.c.l.b16 %v525
      %v1907 = vunpack.c.h.b16 %v525
      %v1908 = vunpack.c.l.b16 %v526
      %v1909 = vunpack.c.h.b16 %v526
      %v1910 = vunpack.c.l.b16 %v527
      %v1911 = vunpack.c.h.b16 %v527
      %v1912 = vunpack.c.l.b16 %v528
      %v1913 = vunpack.c.h.b16 %v528
      %v1914 = vunpack.c.l.b16 %v529
      %v1915 = vunpack.c.h.b16 %v529
      %v1916 = vunpack.c.l.b16 %v530
      %v1917 = vunpack.c.h.b16 %v530
      %v1918 = vunpack.c.l.b16 %v531
      %v1919 = vunpack.c.h.b16 %v531
      %v1920 = vunpack.c.l.b16 %v532
      %v1921 = vunpack.c.h.b16 %v532
      %v1922 = vunpack.c.l.b16 %v533
      %v1923 = vunpack.c.h.b16 %v533
      %v1924 = vunpack.c.l.b16 %v534
      %v1925 = vunpack.c.h.b16 %v534
      %v1926 = vunpack.c.l.b16 %v535
      %v1927 = vunpack.c.h.b16 %v535
      %v1928 = vunpack.c.l.b16 %v536
      %v1929 = vunpack.c.h.b16 %v536
      %v1930 = vunpack.c.l.b16 %v537
      %v1931 = vunpack.c.h.b16 %v537
      %v1932 = vunpack.c.l.b16 %v538
      %v1933 = vunpack.c.h.b16 %v538
      %v1934 = vunpack.c.l.b16 %v539
      %v1935 = vunpack.c.h.b16 %v539
      %v1936 = vunpack.c.l.b16 %v540
      %v1937 = vunpack.c.h.b16 %v540
      %v1938 = vunpack.c.l.b16 %v541
      %v1939 = vunpack.c.h.b16 %v541
      %v1940 = vunpack.c.l.b16 %v542
      %v1941 = vunpack.c.h.b16 %v542
      %v1942 = vunpack.c.l.b16 %v543
      %v1943 = vunpack.c.h.b16 %v543
      %v1944 = vunpack.c.l.b16 %v544
      %v1945 = vunpack.c.h.b16 %v544
      %v1946 = vunpack.c.l.b16 %v545
      %v1947 = vunpack.c.h.b16 %v545
      %v1948 = vunpack.c.l.b16 %v546
      %v1949 = vunpack.c.h.b16 %v546
      %v1950 = vunpack.c.l.b16 %v547
      %v1951 = vunpack.c.h.b16 %v547
      %v1952 = vunpack.c.l.b16 %v548
      %v1953 = vunpack.c.h.b16 %v548
      %v1954 = vunpack.c.l.b16 %v549
      %v1955 = vunpack.c.h.b16 %v549
      %v1956 = vunpack.c.l.b16 %v550
      %v1957 = vunpack.c.h.b16 %v550
      %v1958 = vunpack.c.l.b16 %v551
      %v1959 = vunpack.c.h.b16 %v551
      %v1960 = vunpack.c.l.b16 %v552
      %v1961 = vunpack.c.h.b16 %v552
      %v1962 = vunpack.c.l.b16 %v553
      %v1963 = vunpack.c.h.b16 %v553
      %v1964 = vunpack.c.l.b16 %v554
      %v1965 = vunpack.c.h.b16 %v554
      %v1966 = vunpack.c.l.b16 %v555
      %v1967 = vunpack.c.h.b16 %v555
      %v1968 = vunpack.c.l.b16 %v556
      %v1969 = vunpack.c.h.b16 %v556
      %v1970 = vunpack.c.l.b16 %v557
      %v1971 = vunpack.c.h.b16 %v557
      %v1972 = vunpack.c.l.b16 %v558
      %v1973 = vunpack.c.h.b16 %v558
      %v1974 = vunpack.c.l.b16 %v559
      %v1975 = vunpack.c.h.b16 %v559
      %v1976 = vpack.c.b16 %v1728, %v1720
      %v1977 = vpack.c.b16 %v1729, %v1721
      %v1978 = vpack.c.b16 %v1730, %v1722
      %v1979 = vpack.c.b16 %v1731, %v1723
      %v1980 = vpack.c.b16 %v1732, %v1724
      %v1981 = vpack.c.b16 %v1733, %v1725
      %v1982 = vpack.c.b16 %v1734, %v1726
      %v1983 = vpack.c.b16 %v1735, %v1727
      %v1984 = vpack.c.b16 %v1744, %v1736
      %v1985 = vpack.c.b16 %v1745, %v1737
      %v1986 = vpack.c.b16 %v1746, %v1738
      %v1987 = vpack.c.b16 %v1747, %v1739
      %v1988 = vpack.c.b16 %v1748, %v1740
      %v1989 = vpack.c.b16 %v1749, %v1741
      %v1990 = vpack.c.b16 %v1750, %v1742
      %v1991 = vpack.c.b16 %v1751, %v1743
      %v1992 = vpack.c.b16 %v1760, %v1752
      %v1993 = vpack.c.b16 %v1761, %v1753
      %v1994 = vpack.c.b16 %v1762, %v1754
      %v1995 = vpack.c.b16 %v1763, %v1755
      %v1996 = vpack.c.b16 %v1764, %v1756
      %v1997 = vpack.c.b16 %v1765, %v1757
      %v1998 = vpack.c.b16 %v1766, %v1758
      %v1999 = vpack.c.b16 %v1767, %v1759
      %v2000 = vpack.c.b16 %v1776, %v1768
      %v2001 = vpack.c.b16 %v1777, %v1769
      %v2002 = vpack.c.b16 %v1778, %v1770
      %v2003 = vpack.c.b16 %v1779, %v1771
      %v2004 = vpack.c.b16 %v1780, %v1772
      %v2005 = vpack.c.b16 %v1781, %v1773
      %v2006 = vpack.c.b16 %v1782, %v1774
      %v2007 = vpack.c.b16 %v1783, %v1775
      %v2008 = vpack.c.b16 %v1792, %v1784
      %v2009 = vpack.c.b16 %v1793, %v1785
      %v2010 = vpack.c.b16 %v1794, %v1786
      %v2011 = vpack.c.b16 %v1795, %v1787
      %v2012 = vpack.c.b16 %v1796, %v1788
      %v2013 = vpack.c.b16 %v1797, %v1789
      %v2014 = vpack.c.b16 %v1798, %v1790
      %v2015 = vpack.c.b16 %v1799, %v1791
      %v2016 = vpack.c.b16 %v1808, %v1800
      %v2017 = vpack.c.b16 %v1809, %v1801
      %v2018 = vpack.c.b16 %v1810, %v1802
      %v2019 = vpack.c.b16 %v1811, %v1803
      %v2020 = vpack.c.b16 %v1812, %v1804
      %v2021 = vpack.c.b16 %v1813, %v1805
      %v2022 = vpack.c.b16 %v1814, %v1806
      %v2023 = vpack.c.b16 %v1815, %v1807
      %v2024 = vpack.c.b16 %v1824, %v1816
      %v2025 = vpack.c.b16 %v1825, %v1817
      %v2026 = vpack.c.b16 %v1826, %v1818
      %v2027 = vpack.c.b16 %v1827, %v1819
      %v2028 = vpack.c.b16 %v1828, %v1820
      %v2029 = vpack.c.b16 %v1829, %v1821
      %v2030 = vpack.c.b16 %v1830, %v1822
      %v2031 = vpack.c.b16 %v1831, %v1823
      %v2032 = vpack.c.b16 %v1840, %v1832
      %v2033 = vpack.c.b16 %v1841, %v1833
      %v2034 = vpack.c.b16 %v1842, %v1834
      %v2035 = vpack.c.b16 %v1843, %v1835
      %v2036 = vpack.c.b16 %v1844, %v1836
      %v2037 = vpack.c.b16 %v1845, %v1837
      %v2038 = vpack.c.b16 %v1846, %v1838
      %v2039 = vpack.c.b16 %v1847, %v1839
      %v2040 = vpack.c.b16 %v1856, %v1848
      %v2041 = vpack.c.b16 %v1857, %v1849
      %v2042 = vpack.c.b16 %v1858, %v1850
      %v2043 = vpack.c.b16 %v1859, %v1851
      %v2044 = vpack.c.b16 %v1860, %v1852
      %v2045 = vpack.c.b16 %v1861, %v1853
      %v2046 = vpack.c.b16 %v1862, %v1854
      %v2047 = vpack.c.b16 %v1863, %v1855
      %v2048 = vpack.c.b16 %v1872, %v1864
      %v2049 = vpack.c.b16 %v1873, %v1865
      %v2050 = vpack.c.b16 %v1874, %v1866
      %v2051 = vpack.c.b16 %v1875, %v1867
      %v2052 = vpack.c.b16 %v1876, %v1868
      %v2053 = vpack.c.b16 %v1877, %v1869
      %v2054 = vpack.c.b16 %v1878, %v1870
      %v2055 = vpack.c.b16 %v1879, %v1871
      %v2056 = vpack.c.b16 %v1888, %v1880
      %v2057 = vpack.c.b16 %v1889, %v1881
      %v2058 = vpack.c.b16 %v1890, %v1882
      %v2059 = vpack.c.b16 %v1891, %v1883
      %v2060 = vpack.c.b16 %v1892, %v1884
      %v2061 = vpack.c.b16 %v1893, %v1885
      %v2062 = vpack.c.b16 %v1894, %v1886
      %v2063 = vpack.c.b16 %v1895, %v1887
      %v2064 = vpack.c.b16 %v1904, %v1896
      %v2065 = vpack.c.b16 %v1905, %v1897
      %v2066 = vpack.c.b16 %v1906, %v1898
      %v2067 = vpack.c.b16 %v1907, %v1899
      %v2068 = vpack.c.b16 %v1908, %v1900
      %v2069 = vpack.c.b16 %v1909, %v1901
      %v2070 = vpack.c.b16 %v1910, %v1902
      %v2071 = vpack.c.b16 %v1911, %v1903
      %v2072 = vpack.c.b16 %v1920, %v1912
      %v2073 = vpack.c.b16 %v1921, %v1913
      %v2074 = vpack.c.b16 %v1922, %v1914
      %v2075 = vpack.c.b16 %v1923, %v1915
      %v2076 = vpack.c.b16 %v1924, %v1916
      %v2077 = vpack.c.b16 %v1925, %v1917
      %v2078 = vpack.c.b16 %v1926, %v1918
      %v2079 = vpack.c.b16 %v1927, %v1919
      %v2080 = vpack.c.b16 %v1936, %v1928
      %v2081 = vpack.c.b16 %v1937, %v1929
      %v2082 = vpack.c.b16 %v1938, %v1930
      %v2083 = vpack.c.b16 %v1939, %v1931
      %v2084 = vpack.c.b16 %v1940, %v1932
      %v2085 = vpack.c.b16 %v1941, %v1933
      %v2086 = vpack.c.b16 %v1942, %v1934
      %v2087 = vpack.c.b16 %v1943, %v1935
      %v2088 = vpack.c.b16 %v1952, %v1944
      %v2089 = vpack.c.b16 %v1953, %v1945
      %v2090 = vpack.c.b16 %v1954, %v1946
      %v2091 = vpack.c.b16 %v1955, %v1947
      %v2092 = vpack.c.b16 %v1956, %v1948
      %v2093 = vpack.c.b16 %v1957, %v1949
      %v2094 = vpack.c.b16 %v1958, %v1950
      %v2095 = vpack.c.b16 %v1959, %v1951
      %v2096 = vpack.c.b16 %v1968, %v1960
      %v2097 = vpack.c.b16 %v1969, %v1961
      %v2098 = vpack.c.b16 %v1970, %v1962
      %v2099 = vpack.c.b16 %v1971, %v1963
      %v2100 = vpack.c.b16 %v1972, %v1964
      %v2101 = vpack.c.b16 %v1973, %v1965
      %v2102 = vpack.c.b16 %v1974, %v1966
      %v2103 = vpack.c.b16 %v1975, %v1967
      %2232 = vmatprep.subr.bf16.mxu0 %v2033
      %2233 = vmatpush1.bf16.msra.mxu0 %v2032
      %2234 = vmatprep.subr.bf16.mxu0 %v2025
      %2235 = vmatpush1.bf16.msra.mxu0 %v2024
      %2236 = vmatprep.subr.bf16.mxu0 %v2017
      %2237 = vmatpush1.bf16.msra.mxu0 %v2016
      %2238 = vmatprep.subr.bf16.mxu0 %v2009
      %2239 = vmatpush1.bf16.msra.mxu0 %v2008
      %2240 = vmatprep.subr.bf16.mxu0 %v2001
      %2241 = vmatpush1.bf16.msra.mxu0 %v2000
      %2242 = vmatprep.subr.bf16.mxu0 %v1993
      %2243 = vmatpush1.bf16.msra.mxu0 %v1992
      %2244 = vmatprep.subr.bf16.mxu0 %v1985
      %2245 = vmatpush1.bf16.msra.mxu0 %v1984
      %2246 = vmatprep.subr.bf16.mxu0 %v1977
      %2247 = vmatpush1.bf16.msra.mxu0 %v1976
      %2248 = vmatprep.subr.bf16.mxu0 %v2097
      %2249 = vmatpush2.bf16.msra.mxu0 %v2096
      %2250 = vmatprep.subr.bf16.mxu0 %v2089
      %2251 = vmatpush2.bf16.msra.mxu0 %v2088
      %2252 = vmatprep.subr.bf16.mxu0 %v2081
      %2253 = vmatpush2.bf16.msra.mxu0 %v2080
      %2254 = vmatprep.subr.bf16.mxu0 %v2073
      %2255 = vmatpush2.bf16.msra.mxu0 %v2072
      %2256 = vmatprep.subr.bf16.mxu0 %v2065
      %2257 = vmatpush2.bf16.msra.mxu0 %v2064
      %2258 = vmatprep.subr.bf16.mxu0 %v2057
      %2259 = vmatpush2.bf16.msra.mxu0 %v2056
      %2260 = vmatprep.subr.bf16.mxu0 %v2049
      %2261 = vmatpush2.bf16.msra.mxu0 %v2048
      %2262 = vmatprep.subr.bf16.mxu0 %v2041
      %2263 = vmatpush2.bf16.msra.mxu0 %v2040
      %2264 = vmatprep.mubr.bf16.mxu0 %v1591
      %2265 = vmatmul.mubr.bf16.gmra.mxu0 %v1590
      %v2266 = vpop.f32.mrf.mxu0
      %v2267 = vadd.f32 0.0, %v2266
      %v2268 = vpop.f32.mrf.mxu0
      %v2269 = vadd.f32 0.0, %v2268
      %v2270 = vpop.f32.mrf.mxu0
      %v2271 = vpop.f32.mrf.mxu0
      %2272 = vdwg.mxu0
      %2273 = vmatprep.subr.bf16.mxu0 %v2035
      %2274 = vmatpush1.bf16.msra.mxu0 %v2034
      %2275 = vmatprep.subr.bf16.mxu0 %v2027
      %2276 = vmatpush1.bf16.msra.mxu0 %v2026
      %2277 = vmatprep.subr.bf16.mxu0 %v2019
      %2278 = vmatpush1.bf16.msra.mxu0 %v2018
      %2279 = vmatprep.subr.bf16.mxu0 %v2011
      %2280 = vmatpush1.bf16.msra.mxu0 %v2010
      %2281 = vmatprep.subr.bf16.mxu0 %v2003
      %2282 = vmatpush1.bf16.msra.mxu0 %v2002
      %2283 = vmatprep.subr.bf16.mxu0 %v1995
      %2284 = vmatpush1.bf16.msra.mxu0 %v1994
      %2285 = vmatprep.subr.bf16.mxu0 %v1987
      %2286 = vmatpush1.bf16.msra.mxu0 %v1986
      %2287 = vmatprep.subr.bf16.mxu0 %v1979
      %2288 = vmatpush1.bf16.msra.mxu0 %v1978
      %2289 = vmatprep.subr.bf16.mxu0 %v2099
      %2290 = vmatpush2.bf16.msra.mxu0 %v2098
      %2291 = vmatprep.subr.bf16.mxu0 %v2091
      %2292 = vmatpush2.bf16.msra.mxu0 %v2090
      %2293 = vmatprep.subr.bf16.mxu0 %v2083
      %2294 = vmatpush2.bf16.msra.mxu0 %v2082
      %2295 = vmatprep.subr.bf16.mxu0 %v2075
      %2296 = vmatpush2.bf16.msra.mxu0 %v2074
      %2297 = vmatprep.subr.bf16.mxu0 %v2067
      %2298 = vmatpush2.bf16.msra.mxu0 %v2066
      %2299 = vmatprep.subr.bf16.mxu0 %v2059
      %2300 = vmatpush2.bf16.msra.mxu0 %v2058
      %2301 = vmatprep.subr.bf16.mxu0 %v2051
      %2302 = vmatpush2.bf16.msra.mxu0 %v2050
      %2303 = vmatprep.subr.bf16.mxu0 %v2043
      %2304 = vmatpush2.bf16.msra.mxu0 %v2042
      %2305 = vmatprep.mubr.bf16.mxu0 %v1591
      %2306 = vmatmul.mubr.bf16.gmra.mxu0 %v1590
      %v2307 = vpop.f32.mrf.mxu0
      %v2308 = vadd.f32 0.0, %v2307
      %v2309 = vpop.f32.mrf.mxu0
      %v2310 = vadd.f32 0.0, %v2309
      %v2311 = vpop.f32.mrf.mxu0
      %v2312 = vpop.f32.mrf.mxu0
      %2313 = vdwg.mxu0
      %2314 = vmatprep.subr.bf16.mxu0 %v2037
      %2315 = vmatpush1.bf16.msra.mxu0 %v2036
      %2316 = vmatprep.subr.bf16.mxu0 %v2029
      %2317 = vmatpush1.bf16.msra.mxu0 %v2028
      %2318 = vmatprep.subr.bf16.mxu0 %v2021
      %2319 = vmatpush1.bf16.msra.mxu0 %v2020
      %2320 = vmatprep.subr.bf16.mxu0 %v2013
      %2321 = vmatpush1.bf16.msra.mxu0 %v2012
      %2322 = vmatprep.subr.bf16.mxu0 %v2005
      %2323 = vmatpush1.bf16.msra.mxu0 %v2004
      %2324 = vmatprep.subr.bf16.mxu0 %v1997
      %2325 = vmatpush1.bf16.msra.mxu0 %v1996
      %2326 = vmatprep.subr.bf16.mxu0 %v1989
      %2327 = vmatpush1.bf16.msra.mxu0 %v1988
      %2328 = vmatprep.subr.bf16.mxu0 %v1981
      %2329 = vmatpush1.bf16.msra.mxu0 %v1980
      %2330 = vmatprep.subr.bf16.mxu0 %v2101
      %2331 = vmatpush2.bf16.msra.mxu0 %v2100
      %2332 = vmatprep.subr.bf16.mxu0 %v2093
      %2333 = vmatpush2.bf16.msra.mxu0 %v2092
      %2334 = vmatprep.subr.bf16.mxu0 %v2085
      %2335 = vmatpush2.bf16.msra.mxu0 %v2084
      %2336 = vmatprep.subr.bf16.mxu0 %v2077
      %2337 = vmatpush2.bf16.msra.mxu0 %v2076
      %2338 = vmatprep.subr.bf16.mxu0 %v2069
      %2339 = vmatpush2.bf16.msra.mxu0 %v2068
      %2340 = vmatprep.subr.bf16.mxu0 %v2061
      %2341 = vmatpush2.bf16.msra.mxu0 %v2060
      %2342 = vmatprep.subr.bf16.mxu0 %v2053
      %2343 = vmatpush2.bf16.msra.mxu0 %v2052
      %2344 = vmatprep.subr.bf16.mxu0 %v2045
      %2345 = vmatpush2.bf16.msra.mxu0 %v2044
      %2346 = vmatprep.mubr.bf16.mxu0 %v1591
      %2347 = vmatmul.mubr.bf16.gmra.mxu0 %v1590
      %v2348 = vpop.f32.mrf.mxu0
      %v2349 = vadd.f32 0.0, %v2348
      %v2350 = vpop.f32.mrf.mxu0
      %v2351 = vadd.f32 0.0, %v2350
      %v2352 = vpop.f32.mrf.mxu0
      %v2353 = vpop.f32.mrf.mxu0
      %2354 = vdwg.mxu0
      %2355 = vmatprep.subr.bf16.mxu0 %v2039
      %2356 = vmatpush1.bf16.msra.mxu0 %v2038
      %2357 = vmatprep.subr.bf16.mxu0 %v2031
      %2358 = vmatpush1.bf16.msra.mxu0 %v2030
      %2359 = vmatprep.subr.bf16.mxu0 %v2023
      %2360 = vmatpush1.bf16.msra.mxu0 %v2022
      %2361 = vmatprep.subr.bf16.mxu0 %v2015
      %2362 = vmatpush1.bf16.msra.mxu0 %v2014
      %2363 = vmatprep.subr.bf16.mxu0 %v2007
      %2364 = vmatpush1.bf16.msra.mxu0 %v2006
      %2365 = vmatprep.subr.bf16.mxu0 %v1999
      %2366 = vmatpush1.bf16.msra.mxu0 %v1998
      %2367 = vmatprep.subr.bf16.mxu0 %v1991
      %2368 = vmatpush1.bf16.msra.mxu0 %v1990
      %2369 = vmatprep.subr.bf16.mxu0 %v1983
      %2370 = vmatpush1.bf16.msra.mxu0 %v1982
      %2371 = vmatprep.subr.bf16.mxu0 %v2103
      %2372 = vmatpush2.bf16.msra.mxu0 %v2102
      %2373 = vmatprep.subr.bf16.mxu0 %v2095
      %2374 = vmatpush2.bf16.msra.mxu0 %v2094
      %2375 = vmatprep.subr.bf16.mxu0 %v2087
      %2376 = vmatpush2.bf16.msra.mxu0 %v2086
      %2377 = vmatprep.subr.bf16.mxu0 %v2079
      %2378 = vmatpush2.bf16.msra.mxu0 %v2078
      %2379 = vmatprep.subr.bf16.mxu0 %v2071
      %2380 = vmatpush2.bf16.msra.mxu0 %v2070
      %2381 = vmatprep.subr.bf16.mxu0 %v2063
      %2382 = vmatpush2.bf16.msra.mxu0 %v2062
      %2383 = vmatprep.subr.bf16.mxu0 %v2055
      %2384 = vmatpush2.bf16.msra.mxu0 %v2054
      %2385 = vmatprep.subr.bf16.mxu0 %v2047
      %2386 = vmatpush2.bf16.msra.mxu0 %v2046
      %2387 = vmatprep.mubr.bf16.mxu0 %v1591
      %2388 = vmatmul.mubr.bf16.gmra.mxu0 %v1590
      %v2389 = vpop.f32.mrf.mxu0
      %v2390 = vadd.f32 0.0, %v2389
      %v2391 = vpop.f32.mrf.mxu0
      %v2392 = vadd.f32 0.0, %v2391
      %v2393 = vpop.f32.mrf.mxu0
      %v2394 = vpop.f32.mrf.mxu0
      %2395 = vdwg.mxu0
      %v2524 = vunpack.c.l.b16 %v560
      %v2525 = vunpack.c.h.b16 %v560
      %v2526 = vunpack.c.l.b16 %v561
      %v2527 = vunpack.c.h.b16 %v561
      %v2528 = vunpack.c.l.b16 %v562
      %v2529 = vunpack.c.h.b16 %v562
      %v2530 = vunpack.c.l.b16 %v563
      %v2531 = vunpack.c.h.b16 %v563
      %v2532 = vunpack.c.l.b16 %v564
      %v2533 = vunpack.c.h.b16 %v564
      %v2534 = vunpack.c.l.b16 %v565
      %v2535 = vunpack.c.h.b16 %v565
      %v2536 = vunpack.c.l.b16 %v566
      %v2537 = vunpack.c.h.b16 %v566
      %v2538 = vunpack.c.l.b16 %v567
      %v2539 = vunpack.c.h.b16 %v567
      %v2540 = vunpack.c.l.b16 %v568
      %v2541 = vunpack.c.h.b16 %v568
      %v2542 = vunpack.c.l.b16 %v569
      %v2543 = vunpack.c.h.b16 %v569
      %v2544 = vunpack.c.l.b16 %v570
      %v2545 = vunpack.c.h.b16 %v570
      %v2546 = vunpack.c.l.b16 %v571
      %v2547 = vunpack.c.h.b16 %v571
      %v2548 = vunpack.c.l.b16 %v572
      %v2549 = vunpack.c.h.b16 %v572
      %v2550 = vunpack.c.l.b16 %v573
      %v2551 = vunpack.c.h.b16 %v573
      %v2552 = vunpack.c.l.b16 %v574
      %v2553 = vunpack.c.h.b16 %v574
      %v2554 = vunpack.c.l.b16 %v575
      %v2555 = vunpack.c.h.b16 %v575
      %v2556 = vunpack.c.l.b16 %v576
      %v2557 = vunpack.c.h.b16 %v576
      %v2558 = vunpack.c.l.b16 %v577
      %v2559 = vunpack.c.h.b16 %v577
      %v2560 = vunpack.c.l.b16 %v578
      %v2561 = vunpack.c.h.b16 %v578
      %v2562 = vunpack.c.l.b16 %v579
      %v2563 = vunpack.c.h.b16 %v579
      %v2564 = vunpack.c.l.b16 %v580
      %v2565 = vunpack.c.h.b16 %v580
      %v2566 = vunpack.c.l.b16 %v581
      %v2567 = vunpack.c.h.b16 %v581
      %v2568 = vunpack.c.l.b16 %v582
      %v2569 = vunpack.c.h.b16 %v582
      %v2570 = vunpack.c.l.b16 %v583
      %v2571 = vunpack.c.h.b16 %v583
      %v2572 = vunpack.c.l.b16 %v584
      %v2573 = vunpack.c.h.b16 %v584
      %v2574 = vunpack.c.l.b16 %v585
      %v2575 = vunpack.c.h.b16 %v585
      %v2576 = vunpack.c.l.b16 %v586
      %v2577 = vunpack.c.h.b16 %v586
      %v2578 = vunpack.c.l.b16 %v587
      %v2579 = vunpack.c.h.b16 %v587
      %v2580 = vunpack.c.l.b16 %v588
      %v2581 = vunpack.c.h.b16 %v588
      %v2582 = vunpack.c.l.b16 %v589
      %v2583 = vunpack.c.h.b16 %v589
      %v2584 = vunpack.c.l.b16 %v590
      %v2585 = vunpack.c.h.b16 %v590
      %v2586 = vunpack.c.l.b16 %v591
      %v2587 = vunpack.c.h.b16 %v591
      %v2588 = vunpack.c.l.b16 %v592
      %v2589 = vunpack.c.h.b16 %v592
      %v2590 = vunpack.c.l.b16 %v593
      %v2591 = vunpack.c.h.b16 %v593
      %v2592 = vunpack.c.l.b16 %v594
      %v2593 = vunpack.c.h.b16 %v594
      %v2594 = vunpack.c.l.b16 %v595
      %v2595 = vunpack.c.h.b16 %v595
      %v2596 = vunpack.c.l.b16 %v596
      %v2597 = vunpack.c.h.b16 %v596
      %v2598 = vunpack.c.l.b16 %v597
      %v2599 = vunpack.c.h.b16 %v597
      %v2600 = vunpack.c.l.b16 %v598
      %v2601 = vunpack.c.h.b16 %v598
      %v2602 = vunpack.c.l.b16 %v599
      %v2603 = vunpack.c.h.b16 %v599
      %v2604 = vunpack.c.l.b16 %v600
      %v2605 = vunpack.c.h.b16 %v600
      %v2606 = vunpack.c.l.b16 %v601
      %v2607 = vunpack.c.h.b16 %v601
      %v2608 = vunpack.c.l.b16 %v602
      %v2609 = vunpack.c.h.b16 %v602
      %v2610 = vunpack.c.l.b16 %v603
      %v2611 = vunpack.c.h.b16 %v603
      %v2612 = vunpack.c.l.b16 %v604
      %v2613 = vunpack.c.h.b16 %v604
      %v2614 = vunpack.c.l.b16 %v605
      %v2615 = vunpack.c.h.b16 %v605
      %v2616 = vunpack.c.l.b16 %v606
      %v2617 = vunpack.c.h.b16 %v606
      %v2618 = vunpack.c.l.b16 %v607
      %v2619 = vunpack.c.h.b16 %v607
      %v2620 = vunpack.c.l.b16 %v608
      %v2621 = vunpack.c.h.b16 %v608
      %v2622 = vunpack.c.l.b16 %v609
      %v2623 = vunpack.c.h.b16 %v609
      %v2624 = vunpack.c.l.b16 %v610
      %v2625 = vunpack.c.h.b16 %v610
      %v2626 = vunpack.c.l.b16 %v611
      %v2627 = vunpack.c.h.b16 %v611
      %v2628 = vunpack.c.l.b16 %v612
      %v2629 = vunpack.c.h.b16 %v612
      %v2630 = vunpack.c.l.b16 %v613
      %v2631 = vunpack.c.h.b16 %v613
      %v2632 = vunpack.c.l.b16 %v614
      %v2633 = vunpack.c.h.b16 %v614
      %v2634 = vunpack.c.l.b16 %v615
      %v2635 = vunpack.c.h.b16 %v615
      %v2636 = vunpack.c.l.b16 %v616
      %v2637 = vunpack.c.h.b16 %v616
      %v2638 = vunpack.c.l.b16 %v617
      %v2639 = vunpack.c.h.b16 %v617
      %v2640 = vunpack.c.l.b16 %v618
      %v2641 = vunpack.c.h.b16 %v618
      %v2642 = vunpack.c.l.b16 %v619
      %v2643 = vunpack.c.h.b16 %v619
      %v2644 = vunpack.c.l.b16 %v620
      %v2645 = vunpack.c.h.b16 %v620
      %v2646 = vunpack.c.l.b16 %v621
      %v2647 = vunpack.c.h.b16 %v621
      %v2648 = vunpack.c.l.b16 %v622
      %v2649 = vunpack.c.h.b16 %v622
      %v2650 = vunpack.c.l.b16 %v623
      %v2651 = vunpack.c.h.b16 %v623
      %v2652 = vunpack.c.l.b16 %v624
      %v2653 = vunpack.c.h.b16 %v624
      %v2654 = vunpack.c.l.b16 %v625
      %v2655 = vunpack.c.h.b16 %v625
      %v2656 = vunpack.c.l.b16 %v626
      %v2657 = vunpack.c.h.b16 %v626
      %v2658 = vunpack.c.l.b16 %v627
      %v2659 = vunpack.c.h.b16 %v627
      %v2660 = vunpack.c.l.b16 %v628
      %v2661 = vunpack.c.h.b16 %v628
      %v2662 = vunpack.c.l.b16 %v629
      %v2663 = vunpack.c.h.b16 %v629
      %v2664 = vunpack.c.l.b16 %v630
      %v2665 = vunpack.c.h.b16 %v630
      %v2666 = vunpack.c.l.b16 %v631
      %v2667 = vunpack.c.h.b16 %v631
      %v2668 = vunpack.c.l.b16 %v632
      %v2669 = vunpack.c.h.b16 %v632
      %v2670 = vunpack.c.l.b16 %v633
      %v2671 = vunpack.c.h.b16 %v633
      %v2672 = vunpack.c.l.b16 %v634
      %v2673 = vunpack.c.h.b16 %v634
      %v2674 = vunpack.c.l.b16 %v635
      %v2675 = vunpack.c.h.b16 %v635
      %v2676 = vunpack.c.l.b16 %v636
      %v2677 = vunpack.c.h.b16 %v636
      %v2678 = vunpack.c.l.b16 %v637
      %v2679 = vunpack.c.h.b16 %v637
      %v2680 = vunpack.c.l.b16 %v638
      %v2681 = vunpack.c.h.b16 %v638
      %v2682 = vunpack.c.l.b16 %v639
      %v2683 = vunpack.c.h.b16 %v639
      %v2684 = vunpack.c.l.b16 %v640
      %v2685 = vunpack.c.h.b16 %v640
      %v2686 = vunpack.c.l.b16 %v641
      %v2687 = vunpack.c.h.b16 %v641
      %v2688 = vunpack.c.l.b16 %v642
      %v2689 = vunpack.c.h.b16 %v642
      %v2690 = vunpack.c.l.b16 %v643
      %v2691 = vunpack.c.h.b16 %v643
      %v2692 = vunpack.c.l.b16 %v644
      %v2693 = vunpack.c.h.b16 %v644
      %v2694 = vunpack.c.l.b16 %v645
      %v2695 = vunpack.c.h.b16 %v645
      %v2696 = vunpack.c.l.b16 %v646
      %v2697 = vunpack.c.h.b16 %v646
      %v2698 = vunpack.c.l.b16 %v647
      %v2699 = vunpack.c.h.b16 %v647
      %v2700 = vunpack.c.l.b16 %v648
      %v2701 = vunpack.c.h.b16 %v648
      %v2702 = vunpack.c.l.b16 %v649
      %v2703 = vunpack.c.h.b16 %v649
      %v2704 = vunpack.c.l.b16 %v650
      %v2705 = vunpack.c.h.b16 %v650
      %v2706 = vunpack.c.l.b16 %v651
      %v2707 = vunpack.c.h.b16 %v651
      %v2708 = vunpack.c.l.b16 %v652
      %v2709 = vunpack.c.h.b16 %v652
      %v2710 = vunpack.c.l.b16 %v653
      %v2711 = vunpack.c.h.b16 %v653
      %v2712 = vunpack.c.l.b16 %v654
      %v2713 = vunpack.c.h.b16 %v654
      %v2714 = vunpack.c.l.b16 %v655
      %v2715 = vunpack.c.h.b16 %v655
      %v2716 = vunpack.c.l.b16 %v656
      %v2717 = vunpack.c.h.b16 %v656
      %v2718 = vunpack.c.l.b16 %v657
      %v2719 = vunpack.c.h.b16 %v657
      %v2720 = vunpack.c.l.b16 %v658
      %v2721 = vunpack.c.h.b16 %v658
      %v2722 = vunpack.c.l.b16 %v659
      %v2723 = vunpack.c.h.b16 %v659
      %v2724 = vunpack.c.l.b16 %v660
      %v2725 = vunpack.c.h.b16 %v660
      %v2726 = vunpack.c.l.b16 %v661
      %v2727 = vunpack.c.h.b16 %v661
      %v2728 = vunpack.c.l.b16 %v662
      %v2729 = vunpack.c.h.b16 %v662
      %v2730 = vunpack.c.l.b16 %v663
      %v2731 = vunpack.c.h.b16 %v663
      %v2732 = vunpack.c.l.b16 %v664
      %v2733 = vunpack.c.h.b16 %v664
      %v2734 = vunpack.c.l.b16 %v665
      %v2735 = vunpack.c.h.b16 %v665
      %v2736 = vunpack.c.l.b16 %v666
      %v2737 = vunpack.c.h.b16 %v666
      %v2738 = vunpack.c.l.b16 %v667
      %v2739 = vunpack.c.h.b16 %v667
      %v2740 = vunpack.c.l.b16 %v668
      %v2741 = vunpack.c.h.b16 %v668
      %v2742 = vunpack.c.l.b16 %v669
      %v2743 = vunpack.c.h.b16 %v669
      %v2744 = vunpack.c.l.b16 %v670
      %v2745 = vunpack.c.h.b16 %v670
      %v2746 = vunpack.c.l.b16 %v671
      %v2747 = vunpack.c.h.b16 %v671
      %v2748 = vunpack.c.l.b16 %v672
      %v2749 = vunpack.c.h.b16 %v672
      %v2750 = vunpack.c.l.b16 %v673
      %v2751 = vunpack.c.h.b16 %v673
      %v2752 = vunpack.c.l.b16 %v674
      %v2753 = vunpack.c.h.b16 %v674
      %v2754 = vunpack.c.l.b16 %v675
      %v2755 = vunpack.c.h.b16 %v675
      %v2756 = vunpack.c.l.b16 %v676
      %v2757 = vunpack.c.h.b16 %v676
      %v2758 = vunpack.c.l.b16 %v677
      %v2759 = vunpack.c.h.b16 %v677
      %v2760 = vunpack.c.l.b16 %v678
      %v2761 = vunpack.c.h.b16 %v678
      %v2762 = vunpack.c.l.b16 %v679
      %v2763 = vunpack.c.h.b16 %v679
      %v2764 = vunpack.c.l.b16 %v680
      %v2765 = vunpack.c.h.b16 %v680
      %v2766 = vunpack.c.l.b16 %v681
      %v2767 = vunpack.c.h.b16 %v681
      %v2768 = vunpack.c.l.b16 %v682
      %v2769 = vunpack.c.h.b16 %v682
      %v2770 = vunpack.c.l.b16 %v683
      %v2771 = vunpack.c.h.b16 %v683
      %v2772 = vunpack.c.l.b16 %v684
      %v2773 = vunpack.c.h.b16 %v684
      %v2774 = vunpack.c.l.b16 %v685
      %v2775 = vunpack.c.h.b16 %v685
      %v2776 = vunpack.c.l.b16 %v686
      %v2777 = vunpack.c.h.b16 %v686
      %v2778 = vunpack.c.l.b16 %v687
      %v2779 = vunpack.c.h.b16 %v687
      %v2780 = vpack.c.b16 %v2532, %v2524
      %v2781 = vpack.c.b16 %v2533, %v2525
      %v2782 = vpack.c.b16 %v2534, %v2526
      %v2783 = vpack.c.b16 %v2535, %v2527
      %v2784 = vpack.c.b16 %v2536, %v2528
      %v2785 = vpack.c.b16 %v2537, %v2529
      %v2786 = vpack.c.b16 %v2538, %v2530
      %v2787 = vpack.c.b16 %v2539, %v2531
      %v2788 = vpack.c.b16 %v2548, %v2540
      %v2789 = vpack.c.b16 %v2549, %v2541
      %v2790 = vpack.c.b16 %v2550, %v2542
      %v2791 = vpack.c.b16 %v2551, %v2543
      %v2792 = vpack.c.b16 %v2552, %v2544
      %v2793 = vpack.c.b16 %v2553, %v2545
      %v2794 = vpack.c.b16 %v2554, %v2546
      %v2795 = vpack.c.b16 %v2555, %v2547
      %v2796 = vpack.c.b16 %v2564, %v2556
      %v2797 = vpack.c.b16 %v2565, %v2557
      %v2798 = vpack.c.b16 %v2566, %v2558
      %v2799 = vpack.c.b16 %v2567, %v2559
      %v2800 = vpack.c.b16 %v2568, %v2560
      %v2801 = vpack.c.b16 %v2569, %v2561
      %v2802 = vpack.c.b16 %v2570, %v2562
      %v2803 = vpack.c.b16 %v2571, %v2563
      %v2804 = vpack.c.b16 %v2580, %v2572
      %v2805 = vpack.c.b16 %v2581, %v2573
      %v2806 = vpack.c.b16 %v2582, %v2574
      %v2807 = vpack.c.b16 %v2583, %v2575
      %v2808 = vpack.c.b16 %v2584, %v2576
      %v2809 = vpack.c.b16 %v2585, %v2577
      %v2810 = vpack.c.b16 %v2586, %v2578
      %v2811 = vpack.c.b16 %v2587, %v2579
      %v2812 = vpack.c.b16 %v2596, %v2588
      %v2813 = vpack.c.b16 %v2597, %v2589
      %v2814 = vpack.c.b16 %v2598, %v2590
      %v2815 = vpack.c.b16 %v2599, %v2591
      %v2816 = vpack.c.b16 %v2600, %v2592
      %v2817 = vpack.c.b16 %v2601, %v2593
      %v2818 = vpack.c.b16 %v2602, %v2594
      %v2819 = vpack.c.b16 %v2603, %v2595
      %v2820 = vpack.c.b16 %v2612, %v2604
      %v2821 = vpack.c.b16 %v2613, %v2605
      %v2822 = vpack.c.b16 %v2614, %v2606
      %v2823 = vpack.c.b16 %v2615, %v2607
      %v2824 = vpack.c.b16 %v2616, %v2608
      %v2825 = vpack.c.b16 %v2617, %v2609
      %v2826 = vpack.c.b16 %v2618, %v2610
      %v2827 = vpack.c.b16 %v2619, %v2611
      %v2828 = vpack.c.b16 %v2628, %v2620
      %v2829 = vpack.c.b16 %v2629, %v2621
      %v2830 = vpack.c.b16 %v2630, %v2622
      %v2831 = vpack.c.b16 %v2631, %v2623
      %v2832 = vpack.c.b16 %v2632, %v2624
      %v2833 = vpack.c.b16 %v2633, %v2625
      %v2834 = vpack.c.b16 %v2634, %v2626
      %v2835 = vpack.c.b16 %v2635, %v2627
      %v2836 = vpack.c.b16 %v2644, %v2636
      %v2837 = vpack.c.b16 %v2645, %v2637
      %v2838 = vpack.c.b16 %v2646, %v2638
      %v2839 = vpack.c.b16 %v2647, %v2639
      %v2840 = vpack.c.b16 %v2648, %v2640
      %v2841 = vpack.c.b16 %v2649, %v2641
      %v2842 = vpack.c.b16 %v2650, %v2642
      %v2843 = vpack.c.b16 %v2651, %v2643
      %v2844 = vpack.c.b16 %v2660, %v2652
      %v2845 = vpack.c.b16 %v2661, %v2653
      %v2846 = vpack.c.b16 %v2662, %v2654
      %v2847 = vpack.c.b16 %v2663, %v2655
      %v2848 = vpack.c.b16 %v2664, %v2656
      %v2849 = vpack.c.b16 %v2665, %v2657
      %v2850 = vpack.c.b16 %v2666, %v2658
      %v2851 = vpack.c.b16 %v2667, %v2659
      %v2852 = vpack.c.b16 %v2676, %v2668
      %v2853 = vpack.c.b16 %v2677, %v2669
      %v2854 = vpack.c.b16 %v2678, %v2670
      %v2855 = vpack.c.b16 %v2679, %v2671
      %v2856 = vpack.c.b16 %v2680, %v2672
      %v2857 = vpack.c.b16 %v2681, %v2673
      %v2858 = vpack.c.b16 %v2682, %v2674
      %v2859 = vpack.c.b16 %v2683, %v2675
      %v2860 = vpack.c.b16 %v2692, %v2684
      %v2861 = vpack.c.b16 %v2693, %v2685
      %v2862 = vpack.c.b16 %v2694, %v2686
      %v2863 = vpack.c.b16 %v2695, %v2687
      %v2864 = vpack.c.b16 %v2696, %v2688
      %v2865 = vpack.c.b16 %v2697, %v2689
      %v2866 = vpack.c.b16 %v2698, %v2690
      %v2867 = vpack.c.b16 %v2699, %v2691
      %v2868 = vpack.c.b16 %v2708, %v2700
      %v2869 = vpack.c.b16 %v2709, %v2701
      %v2870 = vpack.c.b16 %v2710, %v2702
      %v2871 = vpack.c.b16 %v2711, %v2703
      %v2872 = vpack.c.b16 %v2712, %v2704
      %v2873 = vpack.c.b16 %v2713, %v2705
      %v2874 = vpack.c.b16 %v2714, %v2706
      %v2875 = vpack.c.b16 %v2715, %v2707
      %v2876 = vpack.c.b16 %v2724, %v2716
      %v2877 = vpack.c.b16 %v2725, %v2717
      %v2878 = vpack.c.b16 %v2726, %v2718
      %v2879 = vpack.c.b16 %v2727, %v2719
      %v2880 = vpack.c.b16 %v2728, %v2720
      %v2881 = vpack.c.b16 %v2729, %v2721
      %v2882 = vpack.c.b16 %v2730, %v2722
      %v2883 = vpack.c.b16 %v2731, %v2723
      %v2884 = vpack.c.b16 %v2740, %v2732
      %v2885 = vpack.c.b16 %v2741, %v2733
      %v2886 = vpack.c.b16 %v2742, %v2734
      %v2887 = vpack.c.b16 %v2743, %v2735
      %v2888 = vpack.c.b16 %v2744, %v2736
      %v2889 = vpack.c.b16 %v2745, %v2737
      %v2890 = vpack.c.b16 %v2746, %v2738
      %v2891 = vpack.c.b16 %v2747, %v2739
      %v2892 = vpack.c.b16 %v2756, %v2748
      %v2893 = vpack.c.b16 %v2757, %v2749
      %v2894 = vpack.c.b16 %v2758, %v2750
      %v2895 = vpack.c.b16 %v2759, %v2751
      %v2896 = vpack.c.b16 %v2760, %v2752
      %v2897 = vpack.c.b16 %v2761, %v2753
      %v2898 = vpack.c.b16 %v2762, %v2754
      %v2899 = vpack.c.b16 %v2763, %v2755
      %v2900 = vpack.c.b16 %v2772, %v2764
      %v2901 = vpack.c.b16 %v2773, %v2765
      %v2902 = vpack.c.b16 %v2774, %v2766
      %v2903 = vpack.c.b16 %v2775, %v2767
      %v2904 = vpack.c.b16 %v2776, %v2768
      %v2905 = vpack.c.b16 %v2777, %v2769
      %v2906 = vpack.c.b16 %v2778, %v2770
      %v2907 = vpack.c.b16 %v2779, %v2771
      %3036 = vmatprep.subr.bf16.mxu0 %v2837
      %3037 = vmatpush1.bf16.msra.mxu0 %v2836
      %3038 = vmatprep.subr.bf16.mxu0 %v2829
      %3039 = vmatpush1.bf16.msra.mxu0 %v2828
      %3040 = vmatprep.subr.bf16.mxu0 %v2821
      %3041 = vmatpush1.bf16.msra.mxu0 %v2820
      %3042 = vmatprep.subr.bf16.mxu0 %v2813
      %3043 = vmatpush1.bf16.msra.mxu0 %v2812
      %3044 = vmatprep.subr.bf16.mxu0 %v2805
      %3045 = vmatpush1.bf16.msra.mxu0 %v2804
      %3046 = vmatprep.subr.bf16.mxu0 %v2797
      %3047 = vmatpush1.bf16.msra.mxu0 %v2796
      %3048 = vmatprep.subr.bf16.mxu0 %v2789
      %3049 = vmatpush1.bf16.msra.mxu0 %v2788
      %3050 = vmatprep.subr.bf16.mxu0 %v2781
      %3051 = vmatpush1.bf16.msra.mxu0 %v2780
      %3052 = vmatprep.subr.bf16.mxu0 %v2901
      %3053 = vmatpush2.bf16.msra.mxu0 %v2900
      %3054 = vmatprep.subr.bf16.mxu0 %v2893
      %3055 = vmatpush2.bf16.msra.mxu0 %v2892
      %3056 = vmatprep.subr.bf16.mxu0 %v2885
      %3057 = vmatpush2.bf16.msra.mxu0 %v2884
      %3058 = vmatprep.subr.bf16.mxu0 %v2877
      %3059 = vmatpush2.bf16.msra.mxu0 %v2876
      %3060 = vmatprep.subr.bf16.mxu0 %v2869
      %3061 = vmatpush2.bf16.msra.mxu0 %v2868
      %3062 = vmatprep.subr.bf16.mxu0 %v2861
      %3063 = vmatpush2.bf16.msra.mxu0 %v2860
      %3064 = vmatprep.subr.bf16.mxu0 %v2853
      %3065 = vmatpush2.bf16.msra.mxu0 %v2852
      %3066 = vmatprep.subr.bf16.mxu0 %v2845
      %3067 = vmatpush2.bf16.msra.mxu0 %v2844
      %3068 = vmatprep.mubr.bf16.mxu0 %v1589
      %3069 = vmatmul.mubr.bf16.gmra.mxu0 %v1588
      %v3070 = vpop.f32.mrf.mxu0
      %v3071 = vadd.f32 %v2267, %v3070
      %v3072 = vpop.f32.mrf.mxu0
      %v3073 = vadd.f32 %v2269, %v3072
      %v3074 = vpop.f32.mrf.mxu0
      %v3075 = vpop.f32.mrf.mxu0
      %3076 = vdwg.mxu0
      %3077 = vmatprep.subr.bf16.mxu0 %v2839
      %3078 = vmatpush1.bf16.msra.mxu0 %v2838
      %3079 = vmatprep.subr.bf16.mxu0 %v2831
      %3080 = vmatpush1.bf16.msra.mxu0 %v2830
      %3081 = vmatprep.subr.bf16.mxu0 %v2823
      %3082 = vmatpush1.bf16.msra.mxu0 %v2822
      %3083 = vmatprep.subr.bf16.mxu0 %v2815
      %3084 = vmatpush1.bf16.msra.mxu0 %v2814
      %3085 = vmatprep.subr.bf16.mxu0 %v2807
      %3086 = vmatpush1.bf16.msra.mxu0 %v2806
      %3087 = vmatprep.subr.bf16.mxu0 %v2799
      %3088 = vmatpush1.bf16.msra.mxu0 %v2798
      %3089 = vmatprep.subr.bf16.mxu0 %v2791
      %3090 = vmatpush1.bf16.msra.mxu0 %v2790
      %3091 = vmatprep.subr.bf16.mxu0 %v2783
      %3092 = vmatpush1.bf16.msra.mxu0 %v2782
      %3093 = vmatprep.subr.bf16.mxu0 %v2903
      %3094 = vmatpush2.bf16.msra.mxu0 %v2902
      %3095 = vmatprep.subr.bf16.mxu0 %v2895
      %3096 = vmatpush2.bf16.msra.mxu0 %v2894
      %3097 = vmatprep.subr.bf16.mxu0 %v2887
      %3098 = vmatpush2.bf16.msra.mxu0 %v2886
      %3099 = vmatprep.subr.bf16.mxu0 %v2879
      %3100 = vmatpush2.bf16.msra.mxu0 %v2878
      %3101 = vmatprep.subr.bf16.mxu0 %v2871
      %3102 = vmatpush2.bf16.msra.mxu0 %v2870
      %3103 = vmatprep.subr.bf16.mxu0 %v2863
      %3104 = vmatpush2.bf16.msra.mxu0 %v2862
      %3105 = vmatprep.subr.bf16.mxu0 %v2855
      %3106 = vmatpush2.bf16.msra.mxu0 %v2854
      %3107 = vmatprep.subr.bf16.mxu0 %v2847
      %3108 = vmatpush2.bf16.msra.mxu0 %v2846
      %3109 = vmatprep.mubr.bf16.mxu0 %v1589
      %3110 = vmatmul.mubr.bf16.gmra.mxu0 %v1588
      %v3111 = vpop.f32.mrf.mxu0
      %v3112 = vadd.f32 %v2308, %v3111
      %v3113 = vpop.f32.mrf.mxu0
      %v3114 = vadd.f32 %v2310, %v3113
      %v3115 = vpop.f32.mrf.mxu0
      %v3116 = vpop.f32.mrf.mxu0
      %3117 = vdwg.mxu0
      %3118 = vmatprep.subr.bf16.mxu0 %v2841
      %3119 = vmatpush1.bf16.msra.mxu0 %v2840
      %3120 = vmatprep.subr.bf16.mxu0 %v2833
      %3121 = vmatpush1.bf16.msra.mxu0 %v2832
      %3122 = vmatprep.subr.bf16.mxu0 %v2825
      %3123 = vmatpush1.bf16.msra.mxu0 %v2824
      %3124 = vmatprep.subr.bf16.mxu0 %v2817
      %3125 = vmatpush1.bf16.msra.mxu0 %v2816
      %3126 = vmatprep.subr.bf16.mxu0 %v2809
      %3127 = vmatpush1.bf16.msra.mxu0 %v2808
      %3128 = vmatprep.subr.bf16.mxu0 %v2801
      %3129 = vmatpush1.bf16.msra.mxu0 %v2800
      %3130 = vmatprep.subr.bf16.mxu0 %v2793
      %3131 = vmatpush1.bf16.msra.mxu0 %v2792
      %3132 = vmatprep.subr.bf16.mxu0 %v2785
      %3133 = vmatpush1.bf16.msra.mxu0 %v2784
      %3134 = vmatprep.subr.bf16.mxu0 %v2905
      %3135 = vmatpush2.bf16.msra.mxu0 %v2904
      %3136 = vmatprep.subr.bf16.mxu0 %v2897
      %3137 = vmatpush2.bf16.msra.mxu0 %v2896
      %3138 = vmatprep.subr.bf16.mxu0 %v2889
      %3139 = vmatpush2.bf16.msra.mxu0 %v2888
      %3140 = vmatprep.subr.bf16.mxu0 %v2881
      %3141 = vmatpush2.bf16.msra.mxu0 %v2880
      %3142 = vmatprep.subr.bf16.mxu0 %v2873
      %3143 = vmatpush2.bf16.msra.mxu0 %v2872
      %3144 = vmatprep.subr.bf16.mxu0 %v2865
      %3145 = vmatpush2.bf16.msra.mxu0 %v2864
      %3146 = vmatprep.subr.bf16.mxu0 %v2857
      %3147 = vmatpush2.bf16.msra.mxu0 %v2856
      %3148 = vmatprep.subr.bf16.mxu0 %v2849
      %3149 = vmatpush2.bf16.msra.mxu0 %v2848
      %3150 = vmatprep.mubr.bf16.mxu0 %v1589
      %3151 = vmatmul.mubr.bf16.gmra.mxu0 %v1588
      %v3152 = vpop.f32.mrf.mxu0
      %v3153 = vadd.f32 %v2349, %v3152
      %v3154 = vpop.f32.mrf.mxu0
      %v3155 = vadd.f32 %v2351, %v3154
      %v3156 = vpop.f32.mrf.mxu0
      %v3157 = vpop.f32.mrf.mxu0
      %3158 = vdwg.mxu0
      %3159 = vmatprep.subr.bf16.mxu0 %v2843
      %3160 = vmatpush1.bf16.msra.mxu0 %v2842
      %3161 = vmatprep.subr.bf16.mxu0 %v2835
      %3162 = vmatpush1.bf16.msra.mxu0 %v2834
      %3163 = vmatprep.subr.bf16.mxu0 %v2827
      %3164 = vmatpush1.bf16.msra.mxu0 %v2826
      %3165 = vmatprep.subr.bf16.mxu0 %v2819
      %3166 = vmatpush1.bf16.msra.mxu0 %v2818
      %3167 = vmatprep.subr.bf16.mxu0 %v2811
      %3168 = vmatpush1.bf16.msra.mxu0 %v2810
      %3169 = vmatprep.subr.bf16.mxu0 %v2803
      %3170 = vmatpush1.bf16.msra.mxu0 %v2802
      %3171 = vmatprep.subr.bf16.mxu0 %v2795
      %3172 = vmatpush1.bf16.msra.mxu0 %v2794
      %3173 = vmatprep.subr.bf16.mxu0 %v2787
      %3174 = vmatpush1.bf16.msra.mxu0 %v2786
      %3175 = vmatprep.subr.bf16.mxu0 %v2907
      %3176 = vmatpush2.bf16.msra.mxu0 %v2906
      %3177 = vmatprep.subr.bf16.mxu0 %v2899
      %3178 = vmatpush2.bf16.msra.mxu0 %v2898
      %3179 = vmatprep.subr.bf16.mxu0 %v2891
      %3180 = vmatpush2.bf16.msra.mxu0 %v2890
      %3181 = vmatprep.subr.bf16.mxu0 %v2883
      %3182 = vmatpush2.bf16.msra.mxu0 %v2882
      %3183 = vmatprep.subr.bf16.mxu0 %v2875
      %3184 = vmatpush2.bf16.msra.mxu0 %v2874
      %3185 = vmatprep.subr.bf16.mxu0 %v2867
      %3186 = vmatpush2.bf16.msra.mxu0 %v2866
      %3187 = vmatprep.subr.bf16.mxu0 %v2859
      %3188 = vmatpush2.bf16.msra.mxu0 %v2858
      %3189 = vmatprep.subr.bf16.mxu0 %v2851
      %3190 = vmatpush2.bf16.msra.mxu0 %v2850
      %3191 = vmatprep.mubr.bf16.mxu0 %v1589
      %3192 = vmatmul.mubr.bf16.gmra.mxu0 %v1588
      %v3193 = vpop.f32.mrf.mxu0
      %v3194 = vadd.f32 %v2390, %v3193
      %v3195 = vpop.f32.mrf.mxu0
      %v3196 = vadd.f32 %v2392, %v3195
      %v3197 = vpop.f32.mrf.mxu0
      %v3198 = vpop.f32.mrf.mxu0
      %3199 = vdwg.mxu0
      %v3200 = vadd.f32 %v3071, %v693
      %v3201 = vadd.f32 %v3073, %v697
      %v3202 = vadd.f32 %v3112, %v701
      %v3203 = vadd.f32 %v3114, %v705
      %v3204 = vadd.f32 %v3153, %v709
      %v3205 = vadd.f32 %v3155, %v713
      %v3206 = vadd.f32 %v3194, %v717
      %v3207 = vadd.f32 %v3196, %v721
      %v3208 = vmul.f32 %v3200, 0.5
      %v3209 = vmul.f32 %v3201, 0.5
      %v3210 = vtanh.pop %v3208
      %v3211 = vtanh.pop %v3209
      %v3212 = vmul.f32 %v3210, 0.5
      %v3213 = vmul.f32 %v3211, 0.5
      %v3214 = vadd.f32 %v3212, 0.5
      %v3215 = vadd.f32 %v3213, 0.5
      %v3216 = vmul.f32 %v3202, 0.5
      %v3217 = vmul.f32 %v3203, 0.5
      %v3218 = vtanh.pop %v3216
      %v3219 = vtanh.pop %v3217
      %v3220 = vmul.f32 %v3218, 0.5
      %v3221 = vmul.f32 %v3219, 0.5
      %v3222 = vadd.f32 %v3220, 0.5
      %v3223 = vadd.f32 %v3221, 0.5
      %v3224 = vtanh.pop %v3204
      %v3225 = vtanh.pop %v3205
      %v3226 = vmul.f32 %v3206, 0.5
      %v3227 = vmul.f32 %v3207, 0.5
      %v3228 = vtanh.pop %v3226
      %v3229 = vtanh.pop %v3227
      %v3230 = vmul.f32 %v3228, 0.5
      %v3231 = vmul.f32 %v3229, 0.5
      %v3232 = vadd.f32 %v3230, 0.5
      %v3233 = vadd.f32 %v3231, 0.5
      %v3234 = vmul.f32 %v3222, %v302
      %v3235 = vmul.f32 %v3223, %v303
      %v3236 = vmul.f32 %v3214, %v3224
      %v3237 = vmul.f32 %v3215, %v3225
      %v3238 = vadd.f32 %v3234, %v3236
      %v3239 = vadd.f32 %v3235, %v3237
      %v3240 = vtanh.pop %v3238
      %v3241 = vtanh.pop %v3239
      %v3242 = vmul.f32 %v3232, %v3240
      %v3243 = vmul.f32 %v3233, %v3241
      %3244 = vst [vmem:[%s280] sm:$0xff] %v3242
      %3245 = vst [vmem:[%s280 + $0x8] sm:$0xff] %v3243
      %s3246 = scalar_lea.vmem %s273, 64
      %v3247 = vld [vmem:[%s3246] sm:$0xff]
      %v3248 = vld [vmem:[%s3246 + $0x8] sm:$0xff]
      %v3249 = vld [vmem:[%s3246 + $0x10] sm:$0xff]
      %v3250 = vld [vmem:[%s3246 + $0x18] sm:$0xff]
      %v3251 = vld [vmem:[%s3246 + $0x20] sm:$0xff]
      %v3252 = vld [vmem:[%s3246 + $0x28] sm:$0xff]
      %v3253 = vld [vmem:[%s3246 + $0x30] sm:$0xff]
      %v3254 = vld [vmem:[%s3246 + $0x38] sm:$0xff]
      %3255 = vmatprep.subr.bf16.mxu0 %v1181
      %3256 = vmatpush1.bf16.msra.mxu0 %v1180
      %3257 = vmatprep.subr.bf16.mxu0 %v1173
      %3258 = vmatpush1.bf16.msra.mxu0 %v1172
      %3259 = vmatprep.subr.bf16.mxu0 %v1165
      %3260 = vmatpush1.bf16.msra.mxu0 %v1164
      %3261 = vmatprep.subr.bf16.mxu0 %v1157
      %3262 = vmatpush1.bf16.msra.mxu0 %v1156
      %3263 = vmatprep.subr.bf16.mxu0 %v1149
      %3264 = vmatpush1.bf16.msra.mxu0 %v1148
      %3265 = vmatprep.subr.bf16.mxu0 %v1141
      %3266 = vmatpush1.bf16.msra.mxu0 %v1140
      %3267 = vmatprep.subr.bf16.mxu0 %v1133
      %3268 = vmatpush1.bf16.msra.mxu0 %v1132
      %3269 = vmatprep.subr.bf16.mxu0 %v1125
      %3270 = vmatpush1.bf16.msra.mxu0 %v1124
      %3271 = vmatprep.subr.bf16.mxu0 %v1245
      %3272 = vmatpush2.bf16.msra.mxu0 %v1244
      %3273 = vmatprep.subr.bf16.mxu0 %v1237
      %3274 = vmatpush2.bf16.msra.mxu0 %v1236
      %3275 = vmatprep.subr.bf16.mxu0 %v1229
      %3276 = vmatpush2.bf16.msra.mxu0 %v1228
      %3277 = vmatprep.subr.bf16.mxu0 %v1221
      %3278 = vmatpush2.bf16.msra.mxu0 %v1220
      %3279 = vmatprep.subr.bf16.mxu0 %v1213
      %3280 = vmatpush2.bf16.msra.mxu0 %v1212
      %3281 = vmatprep.subr.bf16.mxu0 %v1205
      %3282 = vmatpush2.bf16.msra.mxu0 %v1204
      %3283 = vmatprep.subr.bf16.mxu0 %v1197
      %3284 = vmatpush2.bf16.msra.mxu0 %v1196
      %3285 = vmatprep.subr.bf16.mxu0 %v1189
      %3286 = vmatpush2.bf16.msra.mxu0 %v1188
      %3287 = vmatprep.mubr.bf16.mxu0 %v1591
      %3288 = vmatmul.mubr.bf16.gmra.mxu0 %v1590
      %v3289 = vpop.f32.mrf.mxu0
      %v3290 = vadd.f32 0.0, %v3289
      %v3291 = vpop.f32.mrf.mxu0
      %v3292 = vadd.f32 0.0, %v3291
      %v3293 = vpop.f32.mrf.mxu0
      %v3294 = vpop.f32.mrf.mxu0
      %3295 = vdwg.mxu0
      %3296 = vmatprep.subr.bf16.mxu0 %v1183
      %3297 = vmatpush1.bf16.msra.mxu0 %v1182
      %3298 = vmatprep.subr.bf16.mxu0 %v1175
      %3299 = vmatpush1.bf16.msra.mxu0 %v1174
      %3300 = vmatprep.subr.bf16.mxu0 %v1167
      %3301 = vmatpush1.bf16.msra.mxu0 %v1166
      %3302 = vmatprep.subr.bf16.mxu0 %v1159
      %3303 = vmatpush1.bf16.msra.mxu0 %v1158
      %3304 = vmatprep.subr.bf16.mxu0 %v1151
      %3305 = vmatpush1.bf16.msra.mxu0 %v1150
      %3306 = vmatprep.subr.bf16.mxu0 %v1143
      %3307 = vmatpush1.bf16.msra.mxu0 %v1142
      %3308 = vmatprep.subr.bf16.mxu0 %v1135
      %3309 = vmatpush1.bf16.msra.mxu0 %v1134
      %3310 = vmatprep.subr.bf16.mxu0 %v1127
      %3311 = vmatpush1.bf16.msra.mxu0 %v1126
      %3312 = vmatprep.subr.bf16.mxu0 %v1247
      %3313 = vmatpush2.bf16.msra.mxu0 %v1246
      %3314 = vmatprep.subr.bf16.mxu0 %v1239
      %3315 = vmatpush2.bf16.msra.mxu0 %v1238
      %3316 = vmatprep.subr.bf16.mxu0 %v1231
      %3317 = vmatpush2.bf16.msra.mxu0 %v1230
      %3318 = vmatprep.subr.bf16.mxu0 %v1223
      %3319 = vmatpush2.bf16.msra.mxu0 %v1222
      %3320 = vmatprep.subr.bf16.mxu0 %v1215
      %3321 = vmatpush2.bf16.msra.mxu0 %v1214
      %3322 = vmatprep.subr.bf16.mxu0 %v1207
      %3323 = vmatpush2.bf16.msra.mxu0 %v1206
      %3324 = vmatprep.subr.bf16.mxu0 %v1199
      %3325 = vmatpush2.bf16.msra.mxu0 %v1198
      %3326 = vmatprep.subr.bf16.mxu0 %v1191
      %3327 = vmatpush2.bf16.msra.mxu0 %v1190
      %3328 = vmatprep.mubr.bf16.mxu0 %v1591
      %3329 = vmatmul.mubr.bf16.gmra.mxu0 %v1590
      %v3330 = vpop.f32.mrf.mxu0
      %v3331 = vadd.f32 0.0, %v3330
      %v3332 = vpop.f32.mrf.mxu0
      %v3333 = vadd.f32 0.0, %v3332
      %v3334 = vpop.f32.mrf.mxu0
      %v3335 = vpop.f32.mrf.mxu0
      %3336 = vdwg.mxu0
      %3337 = vmatprep.subr.bf16.mxu0 %v1185
      %3338 = vmatpush1.bf16.msra.mxu0 %v1184
      %3339 = vmatprep.subr.bf16.mxu0 %v1177
      %3340 = vmatpush1.bf16.msra.mxu0 %v1176
      %3341 = vmatprep.subr.bf16.mxu0 %v1169
      %3342 = vmatpush1.bf16.msra.mxu0 %v1168
      %3343 = vmatprep.subr.bf16.mxu0 %v1161
      %3344 = vmatpush1.bf16.msra.mxu0 %v1160
      %3345 = vmatprep.subr.bf16.mxu0 %v1153
      %3346 = vmatpush1.bf16.msra.mxu0 %v1152
      %3347 = vmatprep.subr.bf16.mxu0 %v1145
      %3348 = vmatpush1.bf16.msra.mxu0 %v1144
      %3349 = vmatprep.subr.bf16.mxu0 %v1137
      %3350 = vmatpush1.bf16.msra.mxu0 %v1136
      %3351 = vmatprep.subr.bf16.mxu0 %v1129
      %3352 = vmatpush1.bf16.msra.mxu0 %v1128
      %3353 = vmatprep.subr.bf16.mxu0 %v1249
      %3354 = vmatpush2.bf16.msra.mxu0 %v1248
      %3355 = vmatprep.subr.bf16.mxu0 %v1241
      %3356 = vmatpush2.bf16.msra.mxu0 %v1240
      %3357 = vmatprep.subr.bf16.mxu0 %v1233
      %3358 = vmatpush2.bf16.msra.mxu0 %v1232
      %3359 = vmatprep.subr.bf16.mxu0 %v1225
      %3360 = vmatpush2.bf16.msra.mxu0 %v1224
      %3361 = vmatprep.subr.bf16.mxu0 %v1217
      %3362 = vmatpush2.bf16.msra.mxu0 %v1216
      %3363 = vmatprep.subr.bf16.mxu0 %v1209
      %3364 = vmatpush2.bf16.msra.mxu0 %v1208
      %3365 = vmatprep.subr.bf16.mxu0 %v1201
      %3366 = vmatpush2.bf16.msra.mxu0 %v1200
      %3367 = vmatprep.subr.bf16.mxu0 %v1193
      %3368 = vmatpush2.bf16.msra.mxu0 %v1192
      %3369 = vmatprep.mubr.bf16.mxu0 %v1591
      %3370 = vmatmul.mubr.bf16.gmra.mxu0 %v1590
      %v3371 = vpop.f32.mrf.mxu0
      %v3372 = vadd.f32 0.0, %v3371
      %v3373 = vpop.f32.mrf.mxu0
      %v3374 = vadd.f32 0.0, %v3373
      %v3375 = vpop.f32.mrf.mxu0
      %v3376 = vpop.f32.mrf.mxu0
      %3377 = vdwg.mxu0
      %3378 = vmatprep.subr.bf16.mxu0 %v1187
      %3379 = vmatpush1.bf16.msra.mxu0 %v1186
      %3380 = vmatprep.subr.bf16.mxu0 %v1179
      %3381 = vmatpush1.bf16.msra.mxu0 %v1178
      %3382 = vmatprep.subr.bf16.mxu0 %v1171
      %3383 = vmatpush1.bf16.msra.mxu0 %v1170
      %3384 = vmatprep.subr.bf16.mxu0 %v1163
      %3385 = vmatpush1.bf16.msra.mxu0 %v1162
      %3386 = vmatprep.subr.bf16.mxu0 %v1155
      %3387 = vmatpush1.bf16.msra.mxu0 %v1154
      %3388 = vmatprep.subr.bf16.mxu0 %v1147
      %3389 = vmatpush1.bf16.msra.mxu0 %v1146
      %3390 = vmatprep.subr.bf16.mxu0 %v1139
      %3391 = vmatpush1.bf16.msra.mxu0 %v1138
      %3392 = vmatprep.subr.bf16.mxu0 %v1131
      %3393 = vmatpush1.bf16.msra.mxu0 %v1130
      %3394 = vmatprep.subr.bf16.mxu0 %v1251
      %3395 = vmatpush2.bf16.msra.mxu0 %v1250
      %3396 = vmatprep.subr.bf16.mxu0 %v1243
      %3397 = vmatpush2.bf16.msra.mxu0 %v1242
      %3398 = vmatprep.subr.bf16.mxu0 %v1235
      %3399 = vmatpush2.bf16.msra.mxu0 %v1234
      %3400 = vmatprep.subr.bf16.mxu0 %v1227
      %3401 = vmatpush2.bf16.msra.mxu0 %v1226
      %3402 = vmatprep.subr.bf16.mxu0 %v1219
      %3403 = vmatpush2.bf16.msra.mxu0 %v1218
      %3404 = vmatprep.subr.bf16.mxu0 %v1211
      %3405 = vmatpush2.bf16.msra.mxu0 %v1210
      %3406 = vmatprep.subr.bf16.mxu0 %v1203
      %3407 = vmatpush2.bf16.msra.mxu0 %v1202
      %3408 = vmatprep.subr.bf16.mxu0 %v1195
      %3409 = vmatpush2.bf16.msra.mxu0 %v1194
      %3410 = vmatprep.mubr.bf16.mxu0 %v1591
      %3411 = vmatmul.mubr.bf16.gmra.mxu0 %v1590
      %v3412 = vpop.f32.mrf.mxu0
      %v3413 = vadd.f32 0.0, %v3412
      %v3414 = vpop.f32.mrf.mxu0
      %v3415 = vadd.f32 0.0, %v3414
      %v3416 = vpop.f32.mrf.mxu0
      %v3417 = vpop.f32.mrf.mxu0
      %3418 = vdwg.mxu0
      %v3419 = vadd.f32 %v3247, %v3290
      %v3420 = vadd.f32 %v3248, %v3292
      %v3421 = vadd.f32 %v3249, %v3331
      %v3422 = vadd.f32 %v3250, %v3333
      %v3423 = vadd.f32 %v3251, %v3372
      %v3424 = vadd.f32 %v3252, %v3374
      %v3425 = vadd.f32 %v3253, %v3413
      %v3426 = vadd.f32 %v3254, %v3415
      %v3427 = vmul.f32 %v3419, 0.5
      %v3428 = vmul.f32 %v3420, 0.5
      %v3429 = vtanh.pop %v3427
      %v3430 = vtanh.pop %v3428
      %v3431 = vmul.f32 %v3429, 0.5
      %v3432 = vmul.f32 %v3430, 0.5
      %v3433 = vadd.f32 %v3431, 0.5
      %v3434 = vadd.f32 %v3432, 0.5
      %v3435 = vmul.f32 %v3421, 0.5
      %v3436 = vmul.f32 %v3422, 0.5
      %v3437 = vtanh.pop %v3435
      %v3438 = vtanh.pop %v3436
      %v3439 = vmul.f32 %v3437, 0.5
      %v3440 = vmul.f32 %v3438, 0.5
      %v3441 = vadd.f32 %v3439, 0.5
      %v3442 = vadd.f32 %v3440, 0.5
      %v3443 = vtanh.pop %v3423
      %v3444 = vtanh.pop %v3424
      %v3445 = vmul.f32 %v3425, 0.5
      %v3446 = vmul.f32 %v3426, 0.5
      %v3447 = vtanh.pop %v3445
      %v3448 = vtanh.pop %v3446
      %v3449 = vmul.f32 %v3447, 0.5
      %v3450 = vmul.f32 %v3448, 0.5
      %v3451 = vadd.f32 %v3449, 0.5
      %v3452 = vadd.f32 %v3450, 0.5
      %v3453 = vmul.f32 %v3441, %v1582
      %v3454 = vmul.f32 %v3442, %v1583
      %v3455 = vmul.f32 %v3433, %v3443
      %v3456 = vmul.f32 %v3434, %v3444
      %v3457 = vadd.f32 %v3453, %v3455
      %v3458 = vadd.f32 %v3454, %v3456
      %v3459 = vtanh.pop %v3457
      %v3460 = vtanh.pop %v3458
      %v3461 = vmul.f32 %v3451, %v3459
      %v3462 = vmul.f32 %v3452, %v3460
      %v3463 = vpack.c.bf16 %v3242, %v3242
      %v3464 = vpack.c.bf16 %v3243, %v3243
      %v3465 = vpack.c.bf16 %v3461, %v3461
      %v3466 = vpack.c.bf16 %v3462, %v3462
      %3467 = vmatprep.subr.bf16.mxu0 %v2033
      %3468 = vmatpush1.bf16.msra.mxu0 %v2032
      %3469 = vmatprep.subr.bf16.mxu0 %v2025
      %3470 = vmatpush1.bf16.msra.mxu0 %v2024
      %3471 = vmatprep.subr.bf16.mxu0 %v2017
      %3472 = vmatpush1.bf16.msra.mxu0 %v2016
      %3473 = vmatprep.subr.bf16.mxu0 %v2009
      %3474 = vmatpush1.bf16.msra.mxu0 %v2008
      %3475 = vmatprep.subr.bf16.mxu0 %v2001
      %3476 = vmatpush1.bf16.msra.mxu0 %v2000
      %3477 = vmatprep.subr.bf16.mxu0 %v1993
      %3478 = vmatpush1.bf16.msra.mxu0 %v1992
      %3479 = vmatprep.subr.bf16.mxu0 %v1985
      %3480 = vmatpush1.bf16.msra.mxu0 %v1984
      %3481 = vmatprep.subr.bf16.mxu0 %v1977
      %3482 = vmatpush1.bf16.msra.mxu0 %v1976
      %3483 = vmatprep.subr.bf16.mxu0 %v2097
      %3484 = vmatpush2.bf16.msra.mxu0 %v2096
      %3485 = vmatprep.subr.bf16.mxu0 %v2089
      %3486 = vmatpush2.bf16.msra.mxu0 %v2088
      %3487 = vmatprep.subr.bf16.mxu0 %v2081
      %3488 = vmatpush2.bf16.msra.mxu0 %v2080
      %3489 = vmatprep.subr.bf16.mxu0 %v2073
      %3490 = vmatpush2.bf16.msra.mxu0 %v2072
      %3491 = vmatprep.subr.bf16.mxu0 %v2065
      %3492 = vmatpush2.bf16.msra.mxu0 %v2064
      %3493 = vmatprep.subr.bf16.mxu0 %v2057
      %3494 = vmatpush2.bf16.msra.mxu0 %v2056
      %3495 = vmatprep.subr.bf16.mxu0 %v2049
      %3496 = vmatpush2.bf16.msra.mxu0 %v2048
      %3497 = vmatprep.subr.bf16.mxu0 %v2041
      %3498 = vmatpush2.bf16.msra.mxu0 %v2040
      %3499 = vmatprep.mubr.bf16.mxu0 %v3466
      %3500 = vmatmul.mubr.bf16.gmra.mxu0 %v3465
      %v3501 = vpop.f32.mrf.mxu0
      %v3502 = vadd.f32 0.0, %v3501
      %v3503 = vpop.f32.mrf.mxu0
      %v3504 = vadd.f32 0.0, %v3503
      %v3505 = vpop.f32.mrf.mxu0
      %v3506 = vpop.f32.mrf.mxu0
      %3507 = vdwg.mxu0
      %3508 = vmatprep.subr.bf16.mxu0 %v2035
      %3509 = vmatpush1.bf16.msra.mxu0 %v2034
      %3510 = vmatprep.subr.bf16.mxu0 %v2027
      %3511 = vmatpush1.bf16.msra.mxu0 %v2026
      %3512 = vmatprep.subr.bf16.mxu0 %v2019
      %3513 = vmatpush1.bf16.msra.mxu0 %v2018
      %3514 = vmatprep.subr.bf16.mxu0 %v2011
      %3515 = vmatpush1.bf16.msra.mxu0 %v2010
      %3516 = vmatprep.subr.bf16.mxu0 %v2003
      %3517 = vmatpush1.bf16.msra.mxu0 %v2002
      %3518 = vmatprep.subr.bf16.mxu0 %v1995
      %3519 = vmatpush1.bf16.msra.mxu0 %v1994
      %3520 = vmatprep.subr.bf16.mxu0 %v1987
      %3521 = vmatpush1.bf16.msra.mxu0 %v1986
      %3522 = vmatprep.subr.bf16.mxu0 %v1979
      %3523 = vmatpush1.bf16.msra.mxu0 %v1978
      %3524 = vmatprep.subr.bf16.mxu0 %v2099
      %3525 = vmatpush2.bf16.msra.mxu0 %v2098
      %3526 = vmatprep.subr.bf16.mxu0 %v2091
      %3527 = vmatpush2.bf16.msra.mxu0 %v2090
      %3528 = vmatprep.subr.bf16.mxu0 %v2083
      %3529 = vmatpush2.bf16.msra.mxu0 %v2082
      %3530 = vmatprep.subr.bf16.mxu0 %v2075
      %3531 = vmatpush2.bf16.msra.mxu0 %v2074
      %3532 = vmatprep.subr.bf16.mxu0 %v2067
      %3533 = vmatpush2.bf16.msra.mxu0 %v2066
      %3534 = vmatprep.subr.bf16.mxu0 %v2059
      %3535 = vmatpush2.bf16.msra.mxu0 %v2058
      %3536 = vmatprep.subr.bf16.mxu0 %v2051
      %3537 = vmatpush2.bf16.msra.mxu0 %v2050
      %3538 = vmatprep.subr.bf16.mxu0 %v2043
      %3539 = vmatpush2.bf16.msra.mxu0 %v2042
      %3540 = vmatprep.mubr.bf16.mxu0 %v3466
      %3541 = vmatmul.mubr.bf16.gmra.mxu0 %v3465
      %v3542 = vpop.f32.mrf.mxu0
      %v3543 = vadd.f32 0.0, %v3542
      %v3544 = vpop.f32.mrf.mxu0
      %v3545 = vadd.f32 0.0, %v3544
      %v3546 = vpop.f32.mrf.mxu0
      %v3547 = vpop.f32.mrf.mxu0
      %3548 = vdwg.mxu0
      %3549 = vmatprep.subr.bf16.mxu0 %v2037
      %3550 = vmatpush1.bf16.msra.mxu0 %v2036
      %3551 = vmatprep.subr.bf16.mxu0 %v2029
      %3552 = vmatpush1.bf16.msra.mxu0 %v2028
      %3553 = vmatprep.subr.bf16.mxu0 %v2021
      %3554 = vmatpush1.bf16.msra.mxu0 %v2020
      %3555 = vmatprep.subr.bf16.mxu0 %v2013
      %3556 = vmatpush1.bf16.msra.mxu0 %v2012
      %3557 = vmatprep.subr.bf16.mxu0 %v2005
      %3558 = vmatpush1.bf16.msra.mxu0 %v2004
      %3559 = vmatprep.subr.bf16.mxu0 %v1997
      %3560 = vmatpush1.bf16.msra.mxu0 %v1996
      %3561 = vmatprep.subr.bf16.mxu0 %v1989
      %3562 = vmatpush1.bf16.msra.mxu0 %v1988
      %3563 = vmatprep.subr.bf16.mxu0 %v1981
      %3564 = vmatpush1.bf16.msra.mxu0 %v1980
      %3565 = vmatprep.subr.bf16.mxu0 %v2101
      %3566 = vmatpush2.bf16.msra.mxu0 %v2100
      %3567 = vmatprep.subr.bf16.mxu0 %v2093
      %3568 = vmatpush2.bf16.msra.mxu0 %v2092
      %3569 = vmatprep.subr.bf16.mxu0 %v2085
      %3570 = vmatpush2.bf16.msra.mxu0 %v2084
      %3571 = vmatprep.subr.bf16.mxu0 %v2077
      %3572 = vmatpush2.bf16.msra.mxu0 %v2076
      %3573 = vmatprep.subr.bf16.mxu0 %v2069
      %3574 = vmatpush2.bf16.msra.mxu0 %v2068
      %3575 = vmatprep.subr.bf16.mxu0 %v2061
      %3576 = vmatpush2.bf16.msra.mxu0 %v2060
      %3577 = vmatprep.subr.bf16.mxu0 %v2053
      %3578 = vmatpush2.bf16.msra.mxu0 %v2052
      %3579 = vmatprep.subr.bf16.mxu0 %v2045
      %3580 = vmatpush2.bf16.msra.mxu0 %v2044
      %3581 = vmatprep.mubr.bf16.mxu0 %v3466
      %3582 = vmatmul.mubr.bf16.gmra.mxu0 %v3465
      %v3583 = vpop.f32.mrf.mxu0
      %v3584 = vadd.f32 0.0, %v3583
      %v3585 = vpop.f32.mrf.mxu0
      %v3586 = vadd.f32 0.0, %v3585
      %v3587 = vpop.f32.mrf.mxu0
      %v3588 = vpop.f32.mrf.mxu0
      %3589 = vdwg.mxu0
      %3590 = vmatprep.subr.bf16.mxu0 %v2039
      %3591 = vmatpush1.bf16.msra.mxu0 %v2038
      %3592 = vmatprep.subr.bf16.mxu0 %v2031
      %3593 = vmatpush1.bf16.msra.mxu0 %v2030
      %3594 = vmatprep.subr.bf16.mxu0 %v2023
      %3595 = vmatpush1.bf16.msra.mxu0 %v2022
      %3596 = vmatprep.subr.bf16.mxu0 %v2015
      %3597 = vmatpush1.bf16.msra.mxu0 %v2014
      %3598 = vmatprep.subr.bf16.mxu0 %v2007
      %3599 = vmatpush1.bf16.msra.mxu0 %v2006
      %3600 = vmatprep.subr.bf16.mxu0 %v1999
      %3601 = vmatpush1.bf16.msra.mxu0 %v1998
      %3602 = vmatprep.subr.bf16.mxu0 %v1991
      %3603 = vmatpush1.bf16.msra.mxu0 %v1990
      %3604 = vmatprep.subr.bf16.mxu0 %v1983
      %3605 = vmatpush1.bf16.msra.mxu0 %v1982
      %3606 = vmatprep.subr.bf16.mxu0 %v2103
      %3607 = vmatpush2.bf16.msra.mxu0 %v2102
      %3608 = vmatprep.subr.bf16.mxu0 %v2095
      %3609 = vmatpush2.bf16.msra.mxu0 %v2094
      %3610 = vmatprep.subr.bf16.mxu0 %v2087
      %3611 = vmatpush2.bf16.msra.mxu0 %v2086
      %3612 = vmatprep.subr.bf16.mxu0 %v2079
      %3613 = vmatpush2.bf16.msra.mxu0 %v2078
      %3614 = vmatprep.subr.bf16.mxu0 %v2071
      %3615 = vmatpush2.bf16.msra.mxu0 %v2070
      %3616 = vmatprep.subr.bf16.mxu0 %v2063
      %3617 = vmatpush2.bf16.msra.mxu0 %v2062
      %3618 = vmatprep.subr.bf16.mxu0 %v2055
      %3619 = vmatpush2.bf16.msra.mxu0 %v2054
      %3620 = vmatprep.subr.bf16.mxu0 %v2047
      %3621 = vmatpush2.bf16.msra.mxu0 %v2046
      %3622 = vmatprep.mubr.bf16.mxu0 %v3466
      %3623 = vmatmul.mubr.bf16.gmra.mxu0 %v3465
      %v3624 = vpop.f32.mrf.mxu0
      %v3625 = vadd.f32 0.0, %v3624
      %v3626 = vpop.f32.mrf.mxu0
      %v3627 = vadd.f32 0.0, %v3626
      %v3628 = vpop.f32.mrf.mxu0
      %v3629 = vpop.f32.mrf.mxu0
      %3630 = vdwg.mxu0
      %3631 = vmatprep.subr.bf16.mxu0 %v2837
      %3632 = vmatpush1.bf16.msra.mxu0 %v2836
      %3633 = vmatprep.subr.bf16.mxu0 %v2829
      %3634 = vmatpush1.bf16.msra.mxu0 %v2828
      %3635 = vmatprep.subr.bf16.mxu0 %v2821
      %3636 = vmatpush1.bf16.msra.mxu0 %v2820
      %3637 = vmatprep.subr.bf16.mxu0 %v2813
      %3638 = vmatpush1.bf16.msra.mxu0 %v2812
      %3639 = vmatprep.subr.bf16.mxu0 %v2805
      %3640 = vmatpush1.bf16.msra.mxu0 %v2804
      %3641 = vmatprep.subr.bf16.mxu0 %v2797
      %3642 = vmatpush1.bf16.msra.mxu0 %v2796
      %3643 = vmatprep.subr.bf16.mxu0 %v2789
      %3644 = vmatpush1.bf16.msra.mxu0 %v2788
      %3645 = vmatprep.subr.bf16.mxu0 %v2781
      %3646 = vmatpush1.bf16.msra.mxu0 %v2780
      %3647 = vmatprep.subr.bf16.mxu0 %v2901
      %3648 = vmatpush2.bf16.msra.mxu0 %v2900
      %3649 = vmatprep.subr.bf16.mxu0 %v2893
      %3650 = vmatpush2.bf16.msra.mxu0 %v2892
      %3651 = vmatprep.subr.bf16.mxu0 %v2885
      %3652 = vmatpush2.bf16.msra.mxu0 %v2884
      %3653 = vmatprep.subr.bf16.mxu0 %v2877
      %3654 = vmatpush2.bf16.msra.mxu0 %v2876
      %3655 = vmatprep.subr.bf16.mxu0 %v2869
      %3656 = vmatpush2.bf16.msra.mxu0 %v2868
      %3657 = vmatprep.subr.bf16.mxu0 %v2861
      %3658 = vmatpush2.bf16.msra.mxu0 %v2860
      %3659 = vmatprep.subr.bf16.mxu0 %v2853
      %3660 = vmatpush2.bf16.msra.mxu0 %v2852
      %3661 = vmatprep.subr.bf16.mxu0 %v2845
      %3662 = vmatpush2.bf16.msra.mxu0 %v2844
      %3663 = vmatprep.mubr.bf16.mxu0 %v3464
      %3664 = vmatmul.mubr.bf16.gmra.mxu0 %v3463
      %v3665 = vpop.f32.mrf.mxu0
      %v3666 = vadd.f32 %v3502, %v3665
      %v3667 = vpop.f32.mrf.mxu0
      %v3668 = vadd.f32 %v3504, %v3667
      %v3669 = vpop.f32.mrf.mxu0
      %v3670 = vpop.f32.mrf.mxu0
      %3671 = vdwg.mxu0
      %3672 = vmatprep.subr.bf16.mxu0 %v2839
      %3673 = vmatpush1.bf16.msra.mxu0 %v2838
      %3674 = vmatprep.subr.bf16.mxu0 %v2831
      %3675 = vmatpush1.bf16.msra.mxu0 %v2830
      %3676 = vmatprep.subr.bf16.mxu0 %v2823
      %3677 = vmatpush1.bf16.msra.mxu0 %v2822
      %3678 = vmatprep.subr.bf16.mxu0 %v2815
      %3679 = vmatpush1.bf16.msra.mxu0 %v2814
      %3680 = vmatprep.subr.bf16.mxu0 %v2807
      %3681 = vmatpush1.bf16.msra.mxu0 %v2806
      %3682 = vmatprep.subr.bf16.mxu0 %v2799
      %3683 = vmatpush1.bf16.msra.mxu0 %v2798
      %3684 = vmatprep.subr.bf16.mxu0 %v2791
      %3685 = vmatpush1.bf16.msra.mxu0 %v2790
      %3686 = vmatprep.subr.bf16.mxu0 %v2783
      %3687 = vmatpush1.bf16.msra.mxu0 %v2782
      %3688 = vmatprep.subr.bf16.mxu0 %v2903
      %3689 = vmatpush2.bf16.msra.mxu0 %v2902
      %3690 = vmatprep.subr.bf16.mxu0 %v2895
      %3691 = vmatpush2.bf16.msra.mxu0 %v2894
      %3692 = vmatprep.subr.bf16.mxu0 %v2887
      %3693 = vmatpush2.bf16.msra.mxu0 %v2886
      %3694 = vmatprep.subr.bf16.mxu0 %v2879
      %3695 = vmatpush2.bf16.msra.mxu0 %v2878
      %3696 = vmatprep.subr.bf16.mxu0 %v2871
      %3697 = vmatpush2.bf16.msra.mxu0 %v2870
      %3698 = vmatprep.subr.bf16.mxu0 %v2863
      %3699 = vmatpush2.bf16.msra.mxu0 %v2862
      %3700 = vmatprep.subr.bf16.mxu0 %v2855
      %3701 = vmatpush2.bf16.msra.mxu0 %v2854
      %3702 = vmatprep.subr.bf16.mxu0 %v2847
      %3703 = vmatpush2.bf16.msra.mxu0 %v2846
      %3704 = vmatprep.mubr.bf16.mxu0 %v3464
      %3705 = vmatmul.mubr.bf16.gmra.mxu0 %v3463
      %v3706 = vpop.f32.mrf.mxu0
      %v3707 = vadd.f32 %v3543, %v3706
      %v3708 = vpop.f32.mrf.mxu0
      %v3709 = vadd.f32 %v3545, %v3708
      %v3710 = vpop.f32.mrf.mxu0
      %v3711 = vpop.f32.mrf.mxu0
      %3712 = vdwg.mxu0
      %3713 = vmatprep.subr.bf16.mxu0 %v2841
      %3714 = vmatpush1.bf16.msra.mxu0 %v2840
      %3715 = vmatprep.subr.bf16.mxu0 %v2833
      %3716 = vmatpush1.bf16.msra.mxu0 %v2832
      %3717 = vmatprep.subr.bf16.mxu0 %v2825
      %3718 = vmatpush1.bf16.msra.mxu0 %v2824
      %3719 = vmatprep.subr.bf16.mxu0 %v2817
      %3720 = vmatpush1.bf16.msra.mxu0 %v2816
      %3721 = vmatprep.subr.bf16.mxu0 %v2809
      %3722 = vmatpush1.bf16.msra.mxu0 %v2808
      %3723 = vmatprep.subr.bf16.mxu0 %v2801
      %3724 = vmatpush1.bf16.msra.mxu0 %v2800
      %3725 = vmatprep.subr.bf16.mxu0 %v2793
      %3726 = vmatpush1.bf16.msra.mxu0 %v2792
      %3727 = vmatprep.subr.bf16.mxu0 %v2785
      %3728 = vmatpush1.bf16.msra.mxu0 %v2784
      %3729 = vmatprep.subr.bf16.mxu0 %v2905
      %3730 = vmatpush2.bf16.msra.mxu0 %v2904
      %3731 = vmatprep.subr.bf16.mxu0 %v2897
      %3732 = vmatpush2.bf16.msra.mxu0 %v2896
      %3733 = vmatprep.subr.bf16.mxu0 %v2889
      %3734 = vmatpush2.bf16.msra.mxu0 %v2888
      %3735 = vmatprep.subr.bf16.mxu0 %v2881
      %3736 = vmatpush2.bf16.msra.mxu0 %v2880
      %3737 = vmatprep.subr.bf16.mxu0 %v2873
      %3738 = vmatpush2.bf16.msra.mxu0 %v2872
      %3739 = vmatprep.subr.bf16.mxu0 %v2865
      %3740 = vmatpush2.bf16.msra.mxu0 %v2864
      %3741 = vmatprep.subr.bf16.mxu0 %v2857
      %3742 = vmatpush2.bf16.msra.mxu0 %v2856
      %3743 = vmatprep.subr.bf16.mxu0 %v2849
      %3744 = vmatpush2.bf16.msra.mxu0 %v2848
      %3745 = vmatprep.mubr.bf16.mxu0 %v3464
      %3746 = vmatmul.mubr.bf16.gmra.mxu0 %v3463
      %v3747 = vpop.f32.mrf.mxu0
      %v3748 = vadd.f32 %v3584, %v3747
      %v3749 = vpop.f32.mrf.mxu0
      %v3750 = vadd.f32 %v3586, %v3749
      %v3751 = vpop.f32.mrf.mxu0
      %v3752 = vpop.f32.mrf.mxu0
      %3753 = vdwg.mxu0
      %3754 = vmatprep.subr.bf16.mxu0 %v2843
      %3755 = vmatpush1.bf16.msra.mxu0 %v2842
      %3756 = vmatprep.subr.bf16.mxu0 %v2835
      %3757 = vmatpush1.bf16.msra.mxu0 %v2834
      %3758 = vmatprep.subr.bf16.mxu0 %v2827
      %3759 = vmatpush1.bf16.msra.mxu0 %v2826
      %3760 = vmatprep.subr.bf16.mxu0 %v2819
      %3761 = vmatpush1.bf16.msra.mxu0 %v2818
      %3762 = vmatprep.subr.bf16.mxu0 %v2811
      %3763 = vmatpush1.bf16.msra.mxu0 %v2810
      %3764 = vmatprep.subr.bf16.mxu0 %v2803
      %3765 = vmatpush1.bf16.msra.mxu0 %v2802
      %3766 = vmatprep.subr.bf16.mxu0 %v2795
      %3767 = vmatpush1.bf16.msra.mxu0 %v2794
      %3768 = vmatprep.subr.bf16.mxu0 %v2787
      %3769 = vmatpush1.bf16.msra.mxu0 %v2786
      %3770 = vmatprep.subr.bf16.mxu0 %v2907
      %3771 = vmatpush2.bf16.msra.mxu0 %v2906
      %3772 = vmatprep.subr.bf16.mxu0 %v2899
      %3773 = vmatpush2.bf16.msra.mxu0 %v2898
      %3774 = vmatprep.subr.bf16.mxu0 %v2891
      %3775 = vmatpush2.bf16.msra.mxu0 %v2890
      %3776 = vmatprep.subr.bf16.mxu0 %v2883
      %3777 = vmatpush2.bf16.msra.mxu0 %v2882
      %3778 = vmatprep.subr.bf16.mxu0 %v2875
      %3779 = vmatpush2.bf16.msra.mxu0 %v2874
      %3780 = vmatprep.subr.bf16.mxu0 %v2867
      %3781 = vmatpush2.bf16.msra.mxu0 %v2866
      %3782 = vmatprep.subr.bf16.mxu0 %v2859
      %3783 = vmatpush2.bf16.msra.mxu0 %v2858
      %3784 = vmatprep.subr.bf16.mxu0 %v2851
      %3785 = vmatpush2.bf16.msra.mxu0 %v2850
      %3786 = vmatprep.mubr.bf16.mxu0 %v3464
      %3787 = vmatmul.mubr.bf16.gmra.mxu0 %v3463
      %v3788 = vpop.f32.mrf.mxu0
      %v3789 = vadd.f32 %v3625, %v3788
      %v3790 = vpop.f32.mrf.mxu0
      %v3791 = vadd.f32 %v3627, %v3790
      %v3792 = vpop.f32.mrf.mxu0
      %v3793 = vpop.f32.mrf.mxu0
      %3794 = vdwg.mxu0
      %v3795 = vadd.f32 %v3666, %v693
      %v3796 = vadd.f32 %v3668, %v697
      %v3797 = vadd.f32 %v3707, %v701
      %v3798 = vadd.f32 %v3709, %v705
      %v3799 = vadd.f32 %v3748, %v709
      %v3800 = vadd.f32 %v3750, %v713
      %v3801 = vadd.f32 %v3789, %v717
      %v3802 = vadd.f32 %v3791, %v721
      %v3803 = vmul.f32 %v3795, 0.5
      %v3804 = vmul.f32 %v3796, 0.5
      %v3805 = vtanh.pop %v3803
      %v3806 = vtanh.pop %v3804
      %v3807 = vmul.f32 %v3805, 0.5
      %v3808 = vmul.f32 %v3806, 0.5
      %v3809 = vadd.f32 %v3807, 0.5
      %v3810 = vadd.f32 %v3808, 0.5
      %v3811 = vmul.f32 %v3797, 0.5
      %v3812 = vmul.f32 %v3798, 0.5
      %v3813 = vtanh.pop %v3811
      %v3814 = vtanh.pop %v3812
      %v3815 = vmul.f32 %v3813, 0.5
      %v3816 = vmul.f32 %v3814, 0.5
      %v3817 = vadd.f32 %v3815, 0.5
      %v3818 = vadd.f32 %v3816, 0.5
      %v3819 = vtanh.pop %v3799
      %v3820 = vtanh.pop %v3800
      %v3821 = vmul.f32 %v3801, 0.5
      %v3822 = vmul.f32 %v3802, 0.5
      %v3823 = vtanh.pop %v3821
      %v3824 = vtanh.pop %v3822
      %v3825 = vmul.f32 %v3823, 0.5
      %v3826 = vmul.f32 %v3824, 0.5
      %v3827 = vadd.f32 %v3825, 0.5
      %v3828 = vadd.f32 %v3826, 0.5
      %v3829 = vmul.f32 %v3817, %v3238
      %v3830 = vmul.f32 %v3818, %v3239
      %v3831 = vmul.f32 %v3809, %v3819
      %v3832 = vmul.f32 %v3810, %v3820
      %v3833 = vadd.f32 %v3829, %v3831
      %v3834 = vadd.f32 %v3830, %v3832
      %v3835 = vtanh.pop %v3833
      %v3836 = vtanh.pop %v3834
      %v3837 = vmul.f32 %v3827, %v3835
      %v3838 = vmul.f32 %v3828, %v3836
      %s3839 = scalar_lea.vmem %s280, 16
      %3840 = vst [vmem:[%s3839] sm:$0xff] %v3837
      %3841 = vst [vmem:[%s3839 + $0x8] sm:$0xff] %v3838
      %s3842 = scalar_lea.vmem %s273, 128
      %v3843 = vld [vmem:[%s3842] sm:$0xff]
      %v3844 = vld [vmem:[%s3842 + $0x8] sm:$0xff]
      %v3845 = vld [vmem:[%s3842 + $0x10] sm:$0xff]
      %v3846 = vld [vmem:[%s3842 + $0x18] sm:$0xff]
      %v3847 = vld [vmem:[%s3842 + $0x20] sm:$0xff]
      %v3848 = vld [vmem:[%s3842 + $0x28] sm:$0xff]
      %v3849 = vld [vmem:[%s3842 + $0x30] sm:$0xff]
      %v3850 = vld [vmem:[%s3842 + $0x38] sm:$0xff]
      %3851 = vmatprep.subr.bf16.mxu0 %v1181
      %3852 = vmatpush1.bf16.msra.mxu0 %v1180
      %3853 = vmatprep.subr.bf16.mxu0 %v1173
      %3854 = vmatpush1.bf16.msra.mxu0 %v1172
      %3855 = vmatprep.subr.bf16.mxu0 %v1165
      %3856 = vmatpush1.bf16.msra.mxu0 %v1164
      %3857 = vmatprep.subr.bf16.mxu0 %v1157
      %3858 = vmatpush1.bf16.msra.mxu0 %v1156
      %3859 = vmatprep.subr.bf16.mxu0 %v1149
      %3860 = vmatpush1.bf16.msra.mxu0 %v1148
      %3861 = vmatprep.subr.bf16.mxu0 %v1141
      %3862 = vmatpush1.bf16.msra.mxu0 %v1140
      %3863 = vmatprep.subr.bf16.mxu0 %v1133
      %3864 = vmatpush1.bf16.msra.mxu0 %v1132
      %3865 = vmatprep.subr.bf16.mxu0 %v1125
      %3866 = vmatpush1.bf16.msra.mxu0 %v1124
      %3867 = vmatprep.subr.bf16.mxu0 %v1245
      %3868 = vmatpush2.bf16.msra.mxu0 %v1244
      %3869 = vmatprep.subr.bf16.mxu0 %v1237
      %3870 = vmatpush2.bf16.msra.mxu0 %v1236
      %3871 = vmatprep.subr.bf16.mxu0 %v1229
      %3872 = vmatpush2.bf16.msra.mxu0 %v1228
      %3873 = vmatprep.subr.bf16.mxu0 %v1221
      %3874 = vmatpush2.bf16.msra.mxu0 %v1220
      %3875 = vmatprep.subr.bf16.mxu0 %v1213
      %3876 = vmatpush2.bf16.msra.mxu0 %v1212
      %3877 = vmatprep.subr.bf16.mxu0 %v1205
      %3878 = vmatpush2.bf16.msra.mxu0 %v1204
      %3879 = vmatprep.subr.bf16.mxu0 %v1197
      %3880 = vmatpush2.bf16.msra.mxu0 %v1196
      %3881 = vmatprep.subr.bf16.mxu0 %v1189
      %3882 = vmatpush2.bf16.msra.mxu0 %v1188
      %3883 = vmatprep.mubr.bf16.mxu0 %v3466
      %3884 = vmatmul.mubr.bf16.gmra.mxu0 %v3465
      %v3885 = vpop.f32.mrf.mxu0
      %v3886 = vadd.f32 0.0, %v3885
      %v3887 = vpop.f32.mrf.mxu0
      %v3888 = vadd.f32 0.0, %v3887
      %v3889 = vpop.f32.mrf.mxu0
      %v3890 = vpop.f32.mrf.mxu0
      %3891 = vdwg.mxu0
      %3892 = vmatprep.subr.bf16.mxu0 %v1183
      %3893 = vmatpush1.bf16.msra.mxu0 %v1182
      %3894 = vmatprep.subr.bf16.mxu0 %v1175
      %3895 = vmatpush1.bf16.msra.mxu0 %v1174
      %3896 = vmatprep.subr.bf16.mxu0 %v1167
      %3897 = vmatpush1.bf16.msra.mxu0 %v1166
      %3898 = vmatprep.subr.bf16.mxu0 %v1159
      %3899 = vmatpush1.bf16.msra.mxu0 %v1158
      %3900 = vmatprep.subr.bf16.mxu0 %v1151
      %3901 = vmatpush1.bf16.msra.mxu0 %v1150
      %3902 = vmatprep.subr.bf16.mxu0 %v1143
      %3903 = vmatpush1.bf16.msra.mxu0 %v1142
      %3904 = vmatprep.subr.bf16.mxu0 %v1135
      %3905 = vmatpush1.bf16.msra.mxu0 %v1134
      %3906 = vmatprep.subr.bf16.mxu0 %v1127
      %3907 = vmatpush1.bf16.msra.mxu0 %v1126
      %3908 = vmatprep.subr.bf16.mxu0 %v1247
      %3909 = vmatpush2.bf16.msra.mxu0 %v1246
      %3910 = vmatprep.subr.bf16.mxu0 %v1239
      %3911 = vmatpush2.bf16.msra.mxu0 %v1238
      %3912 = vmatprep.subr.bf16.mxu0 %v1231
      %3913 = vmatpush2.bf16.msra.mxu0 %v1230
      %3914 = vmatprep.subr.bf16.mxu0 %v1223
      %3915 = vmatpush2.bf16.msra.mxu0 %v1222
      %3916 = vmatprep.subr.bf16.mxu0 %v1215
      %3917 = vmatpush2.bf16.msra.mxu0 %v1214
      %3918 = vmatprep.subr.bf16.mxu0 %v1207
      %3919 = vmatpush2.bf16.msra.mxu0 %v1206
      %3920 = vmatprep.subr.bf16.mxu0 %v1199
      %3921 = vmatpush2.bf16.msra.mxu0 %v1198
      %3922 = vmatprep.subr.bf16.mxu0 %v1191
      %3923 = vmatpush2.bf16.msra.mxu0 %v1190
      %3924 = vmatprep.mubr.bf16.mxu0 %v3466
      %3925 = vmatmul.mubr.bf16.gmra.mxu0 %v3465
      %v3926 = vpop.f32.mrf.mxu0
      %v3927 = vadd.f32 0.0, %v3926
      %v3928 = vpop.f32.mrf.mxu0
      %v3929 = vadd.f32 0.0, %v3928
      %v3930 = vpop.f32.mrf.mxu0
      %v3931 = vpop.f32.mrf.mxu0
      %3932 = vdwg.mxu0
      %3933 = vmatprep.subr.bf16.mxu0 %v1185
      %3934 = vmatpush1.bf16.msra.mxu0 %v1184
      %3935 = vmatprep.subr.bf16.mxu0 %v1177
      %3936 = vmatpush1.bf16.msra.mxu0 %v1176
      %3937 = vmatprep.subr.bf16.mxu0 %v1169
      %3938 = vmatpush1.bf16.msra.mxu0 %v1168
      %3939 = vmatprep.subr.bf16.mxu0 %v1161
      %3940 = vmatpush1.bf16.msra.mxu0 %v1160
      %3941 = vmatprep.subr.bf16.mxu0 %v1153
      %3942 = vmatpush1.bf16.msra.mxu0 %v1152
      %3943 = vmatprep.subr.bf16.mxu0 %v1145
      %3944 = vmatpush1.bf16.msra.mxu0 %v1144
      %3945 = vmatprep.subr.bf16.mxu0 %v1137
      %3946 = vmatpush1.bf16.msra.mxu0 %v1136
      %3947 = vmatprep.subr.bf16.mxu0 %v1129
      %3948 = vmatpush1.bf16.msra.mxu0 %v1128
      %3949 = vmatprep.subr.bf16.mxu0 %v1249
      %3950 = vmatpush2.bf16.msra.mxu0 %v1248
      %3951 = vmatprep.subr.bf16.mxu0 %v1241
      %3952 = vmatpush2.bf16.msra.mxu0 %v1240
      %3953 = vmatprep.subr.bf16.mxu0 %v1233
      %3954 = vmatpush2.bf16.msra.mxu0 %v1232
      %3955 = vmatprep.subr.bf16.mxu0 %v1225
      %3956 = vmatpush2.bf16.msra.mxu0 %v1224
      %3957 = vmatprep.subr.bf16.mxu0 %v1217
      %3958 = vmatpush2.bf16.msra.mxu0 %v1216
      %3959 = vmatprep.subr.bf16.mxu0 %v1209
      %3960 = vmatpush2.bf16.msra.mxu0 %v1208
      %3961 = vmatprep.subr.bf16.mxu0 %v1201
      %3962 = vmatpush2.bf16.msra.mxu0 %v1200
      %3963 = vmatprep.subr.bf16.mxu0 %v1193
      %3964 = vmatpush2.bf16.msra.mxu0 %v1192
      %3965 = vmatprep.mubr.bf16.mxu0 %v3466
      %3966 = vmatmul.mubr.bf16.gmra.mxu0 %v3465
      %v3967 = vpop.f32.mrf.mxu0
      %v3968 = vadd.f32 0.0, %v3967
      %v3969 = vpop.f32.mrf.mxu0
      %v3970 = vadd.f32 0.0, %v3969
      %v3971 = vpop.f32.mrf.mxu0
      %v3972 = vpop.f32.mrf.mxu0
      %3973 = vdwg.mxu0
      %3974 = vmatprep.subr.bf16.mxu0 %v1187
      %3975 = vmatpush1.bf16.msra.mxu0 %v1186
      %3976 = vmatprep.subr.bf16.mxu0 %v1179
      %3977 = vmatpush1.bf16.msra.mxu0 %v1178
      %3978 = vmatprep.subr.bf16.mxu0 %v1171
      %3979 = vmatpush1.bf16.msra.mxu0 %v1170
      %3980 = vmatprep.subr.bf16.mxu0 %v1163
      %3981 = vmatpush1.bf16.msra.mxu0 %v1162
      %3982 = vmatprep.subr.bf16.mxu0 %v1155
      %3983 = vmatpush1.bf16.msra.mxu0 %v1154
      %3984 = vmatprep.subr.bf16.mxu0 %v1147
      %3985 = vmatpush1.bf16.msra.mxu0 %v1146
      %3986 = vmatprep.subr.bf16.mxu0 %v1139
      %3987 = vmatpush1.bf16.msra.mxu0 %v1138
      %3988 = vmatprep.subr.bf16.mxu0 %v1131
      %3989 = vmatpush1.bf16.msra.mxu0 %v1130
      %3990 = vmatprep.subr.bf16.mxu0 %v1251
      %3991 = vmatpush2.bf16.msra.mxu0 %v1250
      %3992 = vmatprep.subr.bf16.mxu0 %v1243
      %3993 = vmatpush2.bf16.msra.mxu0 %v1242
      %3994 = vmatprep.subr.bf16.mxu0 %v1235
      %3995 = vmatpush2.bf16.msra.mxu0 %v1234
      %3996 = vmatprep.subr.bf16.mxu0 %v1227
      %3997 = vmatpush2.bf16.msra.mxu0 %v1226
      %3998 = vmatprep.subr.bf16.mxu0 %v1219
      %3999 = vmatpush2.bf16.msra.mxu0 %v1218
      %4000 = vmatprep.subr.bf16.mxu0 %v1211
      %4001 = vmatpush2.bf16.msra.mxu0 %v1210
      %4002 = vmatprep.subr.bf16.mxu0 %v1203
      %4003 = vmatpush2.bf16.msra.mxu0 %v1202
      %4004 = vmatprep.subr.bf16.mxu0 %v1195
      %4005 = vmatpush2.bf16.msra.mxu0 %v1194
      %4006 = vmatprep.mubr.bf16.mxu0 %v3466
      %4007 = vmatmul.mubr.bf16.gmra.mxu0 %v3465
      %v4008 = vpop.f32.mrf.mxu0
      %v4009 = vadd.f32 0.0, %v4008
      %v4010 = vpop.f32.mrf.mxu0
      %v4011 = vadd.f32 0.0, %v4010
      %v4012 = vpop.f32.mrf.mxu0
      %v4013 = vpop.f32.mrf.mxu0
      %4014 = vdwg.mxu0
      %v4015 = vadd.f32 %v3843, %v3886
      %v4016 = vadd.f32 %v3844, %v3888
      %v4017 = vadd.f32 %v3845, %v3927
      %v4018 = vadd.f32 %v3846, %v3929
      %v4019 = vadd.f32 %v3847, %v3968
      %v4020 = vadd.f32 %v3848, %v3970
      %v4021 = vadd.f32 %v3849, %v4009
      %v4022 = vadd.f32 %v3850, %v4011
      %v4023 = vmul.f32 %v4015, 0.5
      %v4024 = vmul.f32 %v4016, 0.5
      %v4025 = vtanh.pop %v4023
      %v4026 = vtanh.pop %v4024
      %v4027 = vmul.f32 %v4025, 0.5
      %v4028 = vmul.f32 %v4026, 0.5
      %v4029 = vadd.f32 %v4027, 0.5
      %v4030 = vadd.f32 %v4028, 0.5
      %v4031 = vmul.f32 %v4017, 0.5
      %v4032 = vmul.f32 %v4018, 0.5
      %v4033 = vtanh.pop %v4031
      %v4034 = vtanh.pop %v4032
      %v4035 = vmul.f32 %v4033, 0.5
      %v4036 = vmul.f32 %v4034, 0.5
      %v4037 = vadd.f32 %v4035, 0.5
      %v4038 = vadd.f32 %v4036, 0.5
      %v4039 = vtanh.pop %v4019
      %v4040 = vtanh.pop %v4020
      %v4041 = vmul.f32 %v4021, 0.5
      %v4042 = vmul.f32 %v4022, 0.5
      %v4043 = vtanh.pop %v4041
      %v4044 = vtanh.pop %v4042
      %v4045 = vmul.f32 %v4043, 0.5
      %v4046 = vmul.f32 %v4044, 0.5
      %v4047 = vadd.f32 %v4045, 0.5
      %v4048 = vadd.f32 %v4046, 0.5
      %v4049 = vmul.f32 %v4037, %v3457
      %v4050 = vmul.f32 %v4038, %v3458
      %v4051 = vmul.f32 %v4029, %v4039
      %v4052 = vmul.f32 %v4030, %v4040
      %v4053 = vadd.f32 %v4049, %v4051
      %v4054 = vadd.f32 %v4050, %v4052
      %v4055 = vtanh.pop %v4053
      %v4056 = vtanh.pop %v4054
      %v4057 = vmul.f32 %v4047, %v4055
      %v4058 = vmul.f32 %v4048, %v4056
      %v4059 = vpack.c.bf16 %v3837, %v3837
      %v4060 = vpack.c.bf16 %v3838, %v3838
      %v4061 = vpack.c.bf16 %v4057, %v4057
      %v4062 = vpack.c.bf16 %v4058, %v4058
      %4063 = vmatprep.subr.bf16.mxu0 %v2033
      %4064 = vmatpush1.bf16.msra.mxu0 %v2032
      %4065 = vmatprep.subr.bf16.mxu0 %v2025
      %4066 = vmatpush1.bf16.msra.mxu0 %v2024
      %4067 = vmatprep.subr.bf16.mxu0 %v2017
      %4068 = vmatpush1.bf16.msra.mxu0 %v2016
      %4069 = vmatprep.subr.bf16.mxu0 %v2009
      %4070 = vmatpush1.bf16.msra.mxu0 %v2008
      %4071 = vmatprep.subr.bf16.mxu0 %v2001
      %4072 = vmatpush1.bf16.msra.mxu0 %v2000
      %4073 = vmatprep.subr.bf16.mxu0 %v1993
      %4074 = vmatpush1.bf16.msra.mxu0 %v1992
      %4075 = vmatprep.subr.bf16.mxu0 %v1985
      %4076 = vmatpush1.bf16.msra.mxu0 %v1984
      %4077 = vmatprep.subr.bf16.mxu0 %v1977
      %4078 = vmatpush1.bf16.msra.mxu0 %v1976
      %4079 = vmatprep.subr.bf16.mxu0 %v2097
      %4080 = vmatpush2.bf16.msra.mxu0 %v2096
      %4081 = vmatprep.subr.bf16.mxu0 %v2089
      %4082 = vmatpush2.bf16.msra.mxu0 %v2088
      %4083 = vmatprep.subr.bf16.mxu0 %v2081
      %4084 = vmatpush2.bf16.msra.mxu0 %v2080
      %4085 = vmatprep.subr.bf16.mxu0 %v2073
      %4086 = vmatpush2.bf16.msra.mxu0 %v2072
      %4087 = vmatprep.subr.bf16.mxu0 %v2065
      %4088 = vmatpush2.bf16.msra.mxu0 %v2064
      %4089 = vmatprep.subr.bf16.mxu0 %v2057
      %4090 = vmatpush2.bf16.msra.mxu0 %v2056
      %4091 = vmatprep.subr.bf16.mxu0 %v2049
      %4092 = vmatpush2.bf16.msra.mxu0 %v2048
      %4093 = vmatprep.subr.bf16.mxu0 %v2041
      %4094 = vmatpush2.bf16.msra.mxu0 %v2040
      %4095 = vmatprep.mubr.bf16.mxu0 %v4062
      %4096 = vmatmul.mubr.bf16.gmra.mxu0 %v4061
      %v4097 = vpop.f32.mrf.mxu0
      %v4098 = vadd.f32 0.0, %v4097
      %v4099 = vpop.f32.mrf.mxu0
      %v4100 = vadd.f32 0.0, %v4099
      %v4101 = vpop.f32.mrf.mxu0
      %v4102 = vpop.f32.mrf.mxu0
      %4103 = vdwg.mxu0
      %4104 = vmatprep.subr.bf16.mxu0 %v2035
      %4105 = vmatpush1.bf16.msra.mxu0 %v2034
      %4106 = vmatprep.subr.bf16.mxu0 %v2027
      %4107 = vmatpush1.bf16.msra.mxu0 %v2026
      %4108 = vmatprep.subr.bf16.mxu0 %v2019
      %4109 = vmatpush1.bf16.msra.mxu0 %v2018
      %4110 = vmatprep.subr.bf16.mxu0 %v2011
      %4111 = vmatpush1.bf16.msra.mxu0 %v2010
      %4112 = vmatprep.subr.bf16.mxu0 %v2003
      %4113 = vmatpush1.bf16.msra.mxu0 %v2002
      %4114 = vmatprep.subr.bf16.mxu0 %v1995
      %4115 = vmatpush1.bf16.msra.mxu0 %v1994
      %4116 = vmatprep.subr.bf16.mxu0 %v1987
      %4117 = vmatpush1.bf16.msra.mxu0 %v1986
      %4118 = vmatprep.subr.bf16.mxu0 %v1979
      %4119 = vmatpush1.bf16.msra.mxu0 %v1978
      %4120 = vmatprep.subr.bf16.mxu0 %v2099
      %4121 = vmatpush2.bf16.msra.mxu0 %v2098
      %4122 = vmatprep.subr.bf16.mxu0 %v2091
      %4123 = vmatpush2.bf16.msra.mxu0 %v2090
      %4124 = vmatprep.subr.bf16.mxu0 %v2083
      %4125 = vmatpush2.bf16.msra.mxu0 %v2082
      %4126 = vmatprep.subr.bf16.mxu0 %v2075
      %4127 = vmatpush2.bf16.msra.mxu0 %v2074
      %4128 = vmatprep.subr.bf16.mxu0 %v2067
      %4129 = vmatpush2.bf16.msra.mxu0 %v2066
      %4130 = vmatprep.subr.bf16.mxu0 %v2059
      %4131 = vmatpush2.bf16.msra.mxu0 %v2058
      %4132 = vmatprep.subr.bf16.mxu0 %v2051
      %4133 = vmatpush2.bf16.msra.mxu0 %v2050
      %4134 = vmatprep.subr.bf16.mxu0 %v2043
      %4135 = vmatpush2.bf16.msra.mxu0 %v2042
      %4136 = vmatprep.mubr.bf16.mxu0 %v4062
      %4137 = vmatmul.mubr.bf16.gmra.mxu0 %v4061
      %v4138 = vpop.f32.mrf.mxu0
      %v4139 = vadd.f32 0.0, %v4138
      %v4140 = vpop.f32.mrf.mxu0
      %v4141 = vadd.f32 0.0, %v4140
      %v4142 = vpop.f32.mrf.mxu0
      %v4143 = vpop.f32.mrf.mxu0
      %4144 = vdwg.mxu0
      %4145 = vmatprep.subr.bf16.mxu0 %v2037
      %4146 = vmatpush1.bf16.msra.mxu0 %v2036
      %4147 = vmatprep.subr.bf16.mxu0 %v2029
      %4148 = vmatpush1.bf16.msra.mxu0 %v2028
      %4149 = vmatprep.subr.bf16.mxu0 %v2021
      %4150 = vmatpush1.bf16.msra.mxu0 %v2020
      %4151 = vmatprep.subr.bf16.mxu0 %v2013
      %4152 = vmatpush1.bf16.msra.mxu0 %v2012
      %4153 = vmatprep.subr.bf16.mxu0 %v2005
      %4154 = vmatpush1.bf16.msra.mxu0 %v2004
      %4155 = vmatprep.subr.bf16.mxu0 %v1997
      %4156 = vmatpush1.bf16.msra.mxu0 %v1996
      %4157 = vmatprep.subr.bf16.mxu0 %v1989
      %4158 = vmatpush1.bf16.msra.mxu0 %v1988
      %4159 = vmatprep.subr.bf16.mxu0 %v1981
      %4160 = vmatpush1.bf16.msra.mxu0 %v1980
      %4161 = vmatprep.subr.bf16.mxu0 %v2101
      %4162 = vmatpush2.bf16.msra.mxu0 %v2100
      %4163 = vmatprep.subr.bf16.mxu0 %v2093
      %4164 = vmatpush2.bf16.msra.mxu0 %v2092
      %4165 = vmatprep.subr.bf16.mxu0 %v2085
      %4166 = vmatpush2.bf16.msra.mxu0 %v2084
      %4167 = vmatprep.subr.bf16.mxu0 %v2077
      %4168 = vmatpush2.bf16.msra.mxu0 %v2076
      %4169 = vmatprep.subr.bf16.mxu0 %v2069
      %4170 = vmatpush2.bf16.msra.mxu0 %v2068
      %4171 = vmatprep.subr.bf16.mxu0 %v2061
      %4172 = vmatpush2.bf16.msra.mxu0 %v2060
      %4173 = vmatprep.subr.bf16.mxu0 %v2053
      %4174 = vmatpush2.bf16.msra.mxu0 %v2052
      %4175 = vmatprep.subr.bf16.mxu0 %v2045
      %4176 = vmatpush2.bf16.msra.mxu0 %v2044
      %4177 = vmatprep.mubr.bf16.mxu0 %v4062
      %4178 = vmatmul.mubr.bf16.gmra.mxu0 %v4061
      %v4179 = vpop.f32.mrf.mxu0
      %v4180 = vadd.f32 0.0, %v4179
      %v4181 = vpop.f32.mrf.mxu0
      %v4182 = vadd.f32 0.0, %v4181
      %v4183 = vpop.f32.mrf.mxu0
      %v4184 = vpop.f32.mrf.mxu0
      %4185 = vdwg.mxu0
      %4186 = vmatprep.subr.bf16.mxu0 %v2039
      %4187 = vmatpush1.bf16.msra.mxu0 %v2038
      %4188 = vmatprep.subr.bf16.mxu0 %v2031
      %4189 = vmatpush1.bf16.msra.mxu0 %v2030
      %4190 = vmatprep.subr.bf16.mxu0 %v2023
      %4191 = vmatpush1.bf16.msra.mxu0 %v2022
      %4192 = vmatprep.subr.bf16.mxu0 %v2015
      %4193 = vmatpush1.bf16.msra.mxu0 %v2014
      %4194 = vmatprep.subr.bf16.mxu0 %v2007
      %4195 = vmatpush1.bf16.msra.mxu0 %v2006
      %4196 = vmatprep.subr.bf16.mxu0 %v1999
      %4197 = vmatpush1.bf16.msra.mxu0 %v1998
      %4198 = vmatprep.subr.bf16.mxu0 %v1991
      %4199 = vmatpush1.bf16.msra.mxu0 %v1990
      %4200 = vmatprep.subr.bf16.mxu0 %v1983
      %4201 = vmatpush1.bf16.msra.mxu0 %v1982
      %4202 = vmatprep.subr.bf16.mxu0 %v2103
      %4203 = vmatpush2.bf16.msra.mxu0 %v2102
      %4204 = vmatprep.subr.bf16.mxu0 %v2095
      %4205 = vmatpush2.bf16.msra.mxu0 %v2094
      %4206 = vmatprep.subr.bf16.mxu0 %v2087
      %4207 = vmatpush2.bf16.msra.mxu0 %v2086
      %4208 = vmatprep.subr.bf16.mxu0 %v2079
      %4209 = vmatpush2.bf16.msra.mxu0 %v2078
      %4210 = vmatprep.subr.bf16.mxu0 %v2071
      %4211 = vmatpush2.bf16.msra.mxu0 %v2070
      %4212 = vmatprep.subr.bf16.mxu0 %v2063
      %4213 = vmatpush2.bf16.msra.mxu0 %v2062
      %4214 = vmatprep.subr.bf16.mxu0 %v2055
      %4215 = vmatpush2.bf16.msra.mxu0 %v2054
      %4216 = vmatprep.subr.bf16.mxu0 %v2047
      %4217 = vmatpush2.bf16.msra.mxu0 %v2046
      %4218 = vmatprep.mubr.bf16.mxu0 %v4062
      %4219 = vmatmul.mubr.bf16.gmra.mxu0 %v4061
      %v4220 = vpop.f32.mrf.mxu0
      %v4221 = vadd.f32 0.0, %v4220
      %v4222 = vpop.f32.mrf.mxu0
      %v4223 = vadd.f32 0.0, %v4222
      %v4224 = vpop.f32.mrf.mxu0
      %v4225 = vpop.f32.mrf.mxu0
      %4226 = vdwg.mxu0
      %4227 = vmatprep.subr.bf16.mxu0 %v2837
      %4228 = vmatpush1.bf16.msra.mxu0 %v2836
      %4229 = vmatprep.subr.bf16.mxu0 %v2829
      %4230 = vmatpush1.bf16.msra.mxu0 %v2828
      %4231 = vmatprep.subr.bf16.mxu0 %v2821
      %4232 = vmatpush1.bf16.msra.mxu0 %v2820
      %4233 = vmatprep.subr.bf16.mxu0 %v2813
      %4234 = vmatpush1.bf16.msra.mxu0 %v2812
      %4235 = vmatprep.subr.bf16.mxu0 %v2805
      %4236 = vmatpush1.bf16.msra.mxu0 %v2804
      %4237 = vmatprep.subr.bf16.mxu0 %v2797
      %4238 = vmatpush1.bf16.msra.mxu0 %v2796
      %4239 = vmatprep.subr.bf16.mxu0 %v2789
      %4240 = vmatpush1.bf16.msra.mxu0 %v2788
      %4241 = vmatprep.subr.bf16.mxu0 %v2781
      %4242 = vmatpush1.bf16.msra.mxu0 %v2780
      %4243 = vmatprep.subr.bf16.mxu0 %v2901
      %4244 = vmatpush2.bf16.msra.mxu0 %v2900
      %4245 = vmatprep.subr.bf16.mxu0 %v2893
      %4246 = vmatpush2.bf16.msra.mxu0 %v2892
      %4247 = vmatprep.subr.bf16.mxu0 %v2885
      %4248 = vmatpush2.bf16.msra.mxu0 %v2884
      %4249 = vmatprep.subr.bf16.mxu0 %v2877
      %4250 = vmatpush2.bf16.msra.mxu0 %v2876
      %4251 = vmatprep.subr.bf16.mxu0 %v2869
      %4252 = vmatpush2.bf16.msra.mxu0 %v2868
      %4253 = vmatprep.subr.bf16.mxu0 %v2861
      %4254 = vmatpush2.bf16.msra.mxu0 %v2860
      %4255 = vmatprep.subr.bf16.mxu0 %v2853
      %4256 = vmatpush2.bf16.msra.mxu0 %v2852
      %4257 = vmatprep.subr.bf16.mxu0 %v2845
      %4258 = vmatpush2.bf16.msra.mxu0 %v2844
      %4259 = vmatprep.mubr.bf16.mxu0 %v4060
      %4260 = vmatmul.mubr.bf16.gmra.mxu0 %v4059
      %v4261 = vpop.f32.mrf.mxu0
      %v4262 = vadd.f32 %v4098, %v4261
      %v4263 = vpop.f32.mrf.mxu0
      %v4264 = vadd.f32 %v4100, %v4263
      %v4265 = vpop.f32.mrf.mxu0
      %v4266 = vpop.f32.mrf.mxu0
      %4267 = vdwg.mxu0
      %4268 = vmatprep.subr.bf16.mxu0 %v2839
      %4269 = vmatpush1.bf16.msra.mxu0 %v2838
      %4270 = vmatprep.subr.bf16.mxu0 %v2831
      %4271 = vmatpush1.bf16.msra.mxu0 %v2830
      %4272 = vmatprep.subr.bf16.mxu0 %v2823
      %4273 = vmatpush1.bf16.msra.mxu0 %v2822
      %4274 = vmatprep.subr.bf16.mxu0 %v2815
      %4275 = vmatpush1.bf16.msra.mxu0 %v2814
      %4276 = vmatprep.subr.bf16.mxu0 %v2807
      %4277 = vmatpush1.bf16.msra.mxu0 %v2806
      %4278 = vmatprep.subr.bf16.mxu0 %v2799
      %4279 = vmatpush1.bf16.msra.mxu0 %v2798
      %4280 = vmatprep.subr.bf16.mxu0 %v2791
      %4281 = vmatpush1.bf16.msra.mxu0 %v2790
      %4282 = vmatprep.subr.bf16.mxu0 %v2783
      %4283 = vmatpush1.bf16.msra.mxu0 %v2782
      %4284 = vmatprep.subr.bf16.mxu0 %v2903
      %4285 = vmatpush2.bf16.msra.mxu0 %v2902
      %4286 = vmatprep.subr.bf16.mxu0 %v2895
      %4287 = vmatpush2.bf16.msra.mxu0 %v2894
      %4288 = vmatprep.subr.bf16.mxu0 %v2887
      %4289 = vmatpush2.bf16.msra.mxu0 %v2886
      %4290 = vmatprep.subr.bf16.mxu0 %v2879
      %4291 = vmatpush2.bf16.msra.mxu0 %v2878
      %4292 = vmatprep.subr.bf16.mxu0 %v2871
      %4293 = vmatpush2.bf16.msra.mxu0 %v2870
      %4294 = vmatprep.subr.bf16.mxu0 %v2863
      %4295 = vmatpush2.bf16.msra.mxu0 %v2862
      %4296 = vmatprep.subr.bf16.mxu0 %v2855
      %4297 = vmatpush2.bf16.msra.mxu0 %v2854
      %4298 = vmatprep.subr.bf16.mxu0 %v2847
      %4299 = vmatpush2.bf16.msra.mxu0 %v2846
      %4300 = vmatprep.mubr.bf16.mxu0 %v4060
      %4301 = vmatmul.mubr.bf16.gmra.mxu0 %v4059
      %v4302 = vpop.f32.mrf.mxu0
      %v4303 = vadd.f32 %v4139, %v4302
      %v4304 = vpop.f32.mrf.mxu0
      %v4305 = vadd.f32 %v4141, %v4304
      %v4306 = vpop.f32.mrf.mxu0
      %v4307 = vpop.f32.mrf.mxu0
      %4308 = vdwg.mxu0
      %4309 = vmatprep.subr.bf16.mxu0 %v2841
      %4310 = vmatpush1.bf16.msra.mxu0 %v2840
      %4311 = vmatprep.subr.bf16.mxu0 %v2833
      %4312 = vmatpush1.bf16.msra.mxu0 %v2832
      %4313 = vmatprep.subr.bf16.mxu0 %v2825
      %4314 = vmatpush1.bf16.msra.mxu0 %v2824
      %4315 = vmatprep.subr.bf16.mxu0 %v2817
      %4316 = vmatpush1.bf16.msra.mxu0 %v2816
      %4317 = vmatprep.subr.bf16.mxu0 %v2809
      %4318 = vmatpush1.bf16.msra.mxu0 %v2808
      %4319 = vmatprep.subr.bf16.mxu0 %v2801
      %4320 = vmatpush1.bf16.msra.mxu0 %v2800
      %4321 = vmatprep.subr.bf16.mxu0 %v2793
      %4322 = vmatpush1.bf16.msra.mxu0 %v2792
      %4323 = vmatprep.subr.bf16.mxu0 %v2785
      %4324 = vmatpush1.bf16.msra.mxu0 %v2784
      %4325 = vmatprep.subr.bf16.mxu0 %v2905
      %4326 = vmatpush2.bf16.msra.mxu0 %v2904
      %4327 = vmatprep.subr.bf16.mxu0 %v2897
      %4328 = vmatpush2.bf16.msra.mxu0 %v2896
      %4329 = vmatprep.subr.bf16.mxu0 %v2889
      %4330 = vmatpush2.bf16.msra.mxu0 %v2888
      %4331 = vmatprep.subr.bf16.mxu0 %v2881
      %4332 = vmatpush2.bf16.msra.mxu0 %v2880
      %4333 = vmatprep.subr.bf16.mxu0 %v2873
      %4334 = vmatpush2.bf16.msra.mxu0 %v2872
      %4335 = vmatprep.subr.bf16.mxu0 %v2865
      %4336 = vmatpush2.bf16.msra.mxu0 %v2864
      %4337 = vmatprep.subr.bf16.mxu0 %v2857
      %4338 = vmatpush2.bf16.msra.mxu0 %v2856
      %4339 = vmatprep.subr.bf16.mxu0 %v2849
      %4340 = vmatpush2.bf16.msra.mxu0 %v2848
      %4341 = vmatprep.mubr.bf16.mxu0 %v4060
      %4342 = vmatmul.mubr.bf16.gmra.mxu0 %v4059
      %v4343 = vpop.f32.mrf.mxu0
      %v4344 = vadd.f32 %v4180, %v4343
      %v4345 = vpop.f32.mrf.mxu0
      %v4346 = vadd.f32 %v4182, %v4345
      %v4347 = vpop.f32.mrf.mxu0
      %v4348 = vpop.f32.mrf.mxu0
      %4349 = vdwg.mxu0
      %4350 = vmatprep.subr.bf16.mxu0 %v2843
      %4351 = vmatpush1.bf16.msra.mxu0 %v2842
      %4352 = vmatprep.subr.bf16.mxu0 %v2835
      %4353 = vmatpush1.bf16.msra.mxu0 %v2834
      %4354 = vmatprep.subr.bf16.mxu0 %v2827
      %4355 = vmatpush1.bf16.msra.mxu0 %v2826
      %4356 = vmatprep.subr.bf16.mxu0 %v2819
      %4357 = vmatpush1.bf16.msra.mxu0 %v2818
      %4358 = vmatprep.subr.bf16.mxu0 %v2811
      %4359 = vmatpush1.bf16.msra.mxu0 %v2810
      %4360 = vmatprep.subr.bf16.mxu0 %v2803
      %4361 = vmatpush1.bf16.msra.mxu0 %v2802
      %4362 = vmatprep.subr.bf16.mxu0 %v2795
      %4363 = vmatpush1.bf16.msra.mxu0 %v2794
      %4364 = vmatprep.subr.bf16.mxu0 %v2787
      %4365 = vmatpush1.bf16.msra.mxu0 %v2786
      %4366 = vmatprep.subr.bf16.mxu0 %v2907
      %4367 = vmatpush2.bf16.msra.mxu0 %v2906
      %4368 = vmatprep.subr.bf16.mxu0 %v2899
      %4369 = vmatpush2.bf16.msra.mxu0 %v2898
      %4370 = vmatprep.subr.bf16.mxu0 %v2891
      %4371 = vmatpush2.bf16.msra.mxu0 %v2890
      %4372 = vmatprep.subr.bf16.mxu0 %v2883
      %4373 = vmatpush2.bf16.msra.mxu0 %v2882
      %4374 = vmatprep.subr.bf16.mxu0 %v2875
      %4375 = vmatpush2.bf16.msra.mxu0 %v2874
      %4376 = vmatprep.subr.bf16.mxu0 %v2867
      %4377 = vmatpush2.bf16.msra.mxu0 %v2866
      %4378 = vmatprep.subr.bf16.mxu0 %v2859
      %4379 = vmatpush2.bf16.msra.mxu0 %v2858
      %4380 = vmatprep.subr.bf16.mxu0 %v2851
      %4381 = vmatpush2.bf16.msra.mxu0 %v2850
      %4382 = vmatprep.mubr.bf16.mxu0 %v4060
      %4383 = vmatmul.mubr.bf16.gmra.mxu0 %v4059
      %v4384 = vpop.f32.mrf.mxu0
      %v4385 = vadd.f32 %v4221, %v4384
      %v4386 = vpop.f32.mrf.mxu0
      %v4387 = vadd.f32 %v4223, %v4386
      %v4388 = vpop.f32.mrf.mxu0
      %v4389 = vpop.f32.mrf.mxu0
      %4390 = vdwg.mxu0
      %v4391 = vadd.f32 %v4262, %v693
      %v4392 = vadd.f32 %v4264, %v697
      %v4393 = vadd.f32 %v4303, %v701
      %v4394 = vadd.f32 %v4305, %v705
      %v4395 = vadd.f32 %v4344, %v709
      %v4396 = vadd.f32 %v4346, %v713
      %v4397 = vadd.f32 %v4385, %v717
      %v4398 = vadd.f32 %v4387, %v721
      %v4399 = vmul.f32 %v4391, 0.5
      %v4400 = vmul.f32 %v4392, 0.5
      %v4401 = vtanh.pop %v4399
      %v4402 = vtanh.pop %v4400
      %v4403 = vmul.f32 %v4401, 0.5
      %v4404 = vmul.f32 %v4402, 0.5
      %v4405 = vadd.f32 %v4403, 0.5
      %v4406 = vadd.f32 %v4404, 0.5
      %v4407 = vmul.f32 %v4393, 0.5
      %v4408 = vmul.f32 %v4394, 0.5
      %v4409 = vtanh.pop %v4407
      %v4410 = vtanh.pop %v4408
      %v4411 = vmul.f32 %v4409, 0.5
      %v4412 = vmul.f32 %v4410, 0.5
      %v4413 = vadd.f32 %v4411, 0.5
      %v4414 = vadd.f32 %v4412, 0.5
      %v4415 = vtanh.pop %v4395
      %v4416 = vtanh.pop %v4396
      %v4417 = vmul.f32 %v4397, 0.5
      %v4418 = vmul.f32 %v4398, 0.5
      %v4419 = vtanh.pop %v4417
      %v4420 = vtanh.pop %v4418
      %v4421 = vmul.f32 %v4419, 0.5
      %v4422 = vmul.f32 %v4420, 0.5
      %v4423 = vadd.f32 %v4421, 0.5
      %v4424 = vadd.f32 %v4422, 0.5
      %v4425 = vmul.f32 %v4413, %v3833
      %v4426 = vmul.f32 %v4414, %v3834
      %v4427 = vmul.f32 %v4405, %v4415
      %v4428 = vmul.f32 %v4406, %v4416
      %v4429 = vadd.f32 %v4425, %v4427
      %v4430 = vadd.f32 %v4426, %v4428
      %v4431 = vtanh.pop %v4429
      %v4432 = vtanh.pop %v4430
      %v4433 = vmul.f32 %v4423, %v4431
      %v4434 = vmul.f32 %v4424, %v4432
      %s4435 = scalar_lea.vmem %s280, 32
      %4436 = vst [vmem:[%s4435] sm:$0xff] %v4433
      %4437 = vst [vmem:[%s4435 + $0x8] sm:$0xff] %v4434
      %s4438 = scalar_lea.vmem %s273, 192
      %v4439 = vld [vmem:[%s4438] sm:$0xff]
      %v4440 = vld [vmem:[%s4438 + $0x8] sm:$0xff]
      %v4441 = vld [vmem:[%s4438 + $0x10] sm:$0xff]
      %v4442 = vld [vmem:[%s4438 + $0x18] sm:$0xff]
      %v4443 = vld [vmem:[%s4438 + $0x20] sm:$0xff]
      %v4444 = vld [vmem:[%s4438 + $0x28] sm:$0xff]
      %v4445 = vld [vmem:[%s4438 + $0x30] sm:$0xff]
      %v4446 = vld [vmem:[%s4438 + $0x38] sm:$0xff]
      %4447 = vmatprep.subr.bf16.mxu0 %v1181
      %4448 = vmatpush1.bf16.msra.mxu0 %v1180
      %4449 = vmatprep.subr.bf16.mxu0 %v1173
      %4450 = vmatpush1.bf16.msra.mxu0 %v1172
      %4451 = vmatprep.subr.bf16.mxu0 %v1165
      %4452 = vmatpush1.bf16.msra.mxu0 %v1164
      %4453 = vmatprep.subr.bf16.mxu0 %v1157
      %4454 = vmatpush1.bf16.msra.mxu0 %v1156
      %4455 = vmatprep.subr.bf16.mxu0 %v1149
      %4456 = vmatpush1.bf16.msra.mxu0 %v1148
      %4457 = vmatprep.subr.bf16.mxu0 %v1141
      %4458 = vmatpush1.bf16.msra.mxu0 %v1140
      %4459 = vmatprep.subr.bf16.mxu0 %v1133
      %4460 = vmatpush1.bf16.msra.mxu0 %v1132
      %4461 = vmatprep.subr.bf16.mxu0 %v1125
      %4462 = vmatpush1.bf16.msra.mxu0 %v1124
      %4463 = vmatprep.subr.bf16.mxu0 %v1245
      %4464 = vmatpush2.bf16.msra.mxu0 %v1244
      %4465 = vmatprep.subr.bf16.mxu0 %v1237
      %4466 = vmatpush2.bf16.msra.mxu0 %v1236
      %4467 = vmatprep.subr.bf16.mxu0 %v1229
      %4468 = vmatpush2.bf16.msra.mxu0 %v1228
      %4469 = vmatprep.subr.bf16.mxu0 %v1221
      %4470 = vmatpush2.bf16.msra.mxu0 %v1220
      %4471 = vmatprep.subr.bf16.mxu0 %v1213
      %4472 = vmatpush2.bf16.msra.mxu0 %v1212
      %4473 = vmatprep.subr.bf16.mxu0 %v1205
      %4474 = vmatpush2.bf16.msra.mxu0 %v1204
      %4475 = vmatprep.subr.bf16.mxu0 %v1197
      %4476 = vmatpush2.bf16.msra.mxu0 %v1196
      %4477 = vmatprep.subr.bf16.mxu0 %v1189
      %4478 = vmatpush2.bf16.msra.mxu0 %v1188
      %4479 = vmatprep.mubr.bf16.mxu0 %v4062
      %4480 = vmatmul.mubr.bf16.gmra.mxu0 %v4061
      %v4481 = vpop.f32.mrf.mxu0
      %v4482 = vadd.f32 0.0, %v4481
      %v4483 = vpop.f32.mrf.mxu0
      %v4484 = vadd.f32 0.0, %v4483
      %v4485 = vpop.f32.mrf.mxu0
      %v4486 = vpop.f32.mrf.mxu0
      %4487 = vdwg.mxu0
      %4488 = vmatprep.subr.bf16.mxu0 %v1183
      %4489 = vmatpush1.bf16.msra.mxu0 %v1182
      %4490 = vmatprep.subr.bf16.mxu0 %v1175
      %4491 = vmatpush1.bf16.msra.mxu0 %v1174
      %4492 = vmatprep.subr.bf16.mxu0 %v1167
      %4493 = vmatpush1.bf16.msra.mxu0 %v1166
      %4494 = vmatprep.subr.bf16.mxu0 %v1159
      %4495 = vmatpush1.bf16.msra.mxu0 %v1158
      %4496 = vmatprep.subr.bf16.mxu0 %v1151
      %4497 = vmatpush1.bf16.msra.mxu0 %v1150
      %4498 = vmatprep.subr.bf16.mxu0 %v1143
      %4499 = vmatpush1.bf16.msra.mxu0 %v1142
      %4500 = vmatprep.subr.bf16.mxu0 %v1135
      %4501 = vmatpush1.bf16.msra.mxu0 %v1134
      %4502 = vmatprep.subr.bf16.mxu0 %v1127
      %4503 = vmatpush1.bf16.msra.mxu0 %v1126
      %4504 = vmatprep.subr.bf16.mxu0 %v1247
      %4505 = vmatpush2.bf16.msra.mxu0 %v1246
      %4506 = vmatprep.subr.bf16.mxu0 %v1239
      %4507 = vmatpush2.bf16.msra.mxu0 %v1238
      %4508 = vmatprep.subr.bf16.mxu0 %v1231
      %4509 = vmatpush2.bf16.msra.mxu0 %v1230
      %4510 = vmatprep.subr.bf16.mxu0 %v1223
      %4511 = vmatpush2.bf16.msra.mxu0 %v1222
      %4512 = vmatprep.subr.bf16.mxu0 %v1215
      %4513 = vmatpush2.bf16.msra.mxu0 %v1214
      %4514 = vmatprep.subr.bf16.mxu0 %v1207
      %4515 = vmatpush2.bf16.msra.mxu0 %v1206
      %4516 = vmatprep.subr.bf16.mxu0 %v1199
      %4517 = vmatpush2.bf16.msra.mxu0 %v1198
      %4518 = vmatprep.subr.bf16.mxu0 %v1191
      %4519 = vmatpush2.bf16.msra.mxu0 %v1190
      %4520 = vmatprep.mubr.bf16.mxu0 %v4062
      %4521 = vmatmul.mubr.bf16.gmra.mxu0 %v4061
      %v4522 = vpop.f32.mrf.mxu0
      %v4523 = vadd.f32 0.0, %v4522
      %v4524 = vpop.f32.mrf.mxu0
      %v4525 = vadd.f32 0.0, %v4524
      %v4526 = vpop.f32.mrf.mxu0
      %v4527 = vpop.f32.mrf.mxu0
      %4528 = vdwg.mxu0
      %4529 = vmatprep.subr.bf16.mxu0 %v1185
      %4530 = vmatpush1.bf16.msra.mxu0 %v1184
      %4531 = vmatprep.subr.bf16.mxu0 %v1177
      %4532 = vmatpush1.bf16.msra.mxu0 %v1176
      %4533 = vmatprep.subr.bf16.mxu0 %v1169
      %4534 = vmatpush1.bf16.msra.mxu0 %v1168
      %4535 = vmatprep.subr.bf16.mxu0 %v1161
      %4536 = vmatpush1.bf16.msra.mxu0 %v1160
      %4537 = vmatprep.subr.bf16.mxu0 %v1153
      %4538 = vmatpush1.bf16.msra.mxu0 %v1152
      %4539 = vmatprep.subr.bf16.mxu0 %v1145
      %4540 = vmatpush1.bf16.msra.mxu0 %v1144
      %4541 = vmatprep.subr.bf16.mxu0 %v1137
      %4542 = vmatpush1.bf16.msra.mxu0 %v1136
      %4543 = vmatprep.subr.bf16.mxu0 %v1129
      %4544 = vmatpush1.bf16.msra.mxu0 %v1128
      %4545 = vmatprep.subr.bf16.mxu0 %v1249
      %4546 = vmatpush2.bf16.msra.mxu0 %v1248
      %4547 = vmatprep.subr.bf16.mxu0 %v1241
      %4548 = vmatpush2.bf16.msra.mxu0 %v1240
      %4549 = vmatprep.subr.bf16.mxu0 %v1233
      %4550 = vmatpush2.bf16.msra.mxu0 %v1232
      %4551 = vmatprep.subr.bf16.mxu0 %v1225
      %4552 = vmatpush2.bf16.msra.mxu0 %v1224
      %4553 = vmatprep.subr.bf16.mxu0 %v1217
      %4554 = vmatpush2.bf16.msra.mxu0 %v1216
      %4555 = vmatprep.subr.bf16.mxu0 %v1209
      %4556 = vmatpush2.bf16.msra.mxu0 %v1208
      %4557 = vmatprep.subr.bf16.mxu0 %v1201
      %4558 = vmatpush2.bf16.msra.mxu0 %v1200
      %4559 = vmatprep.subr.bf16.mxu0 %v1193
      %4560 = vmatpush2.bf16.msra.mxu0 %v1192
      %4561 = vmatprep.mubr.bf16.mxu0 %v4062
      %4562 = vmatmul.mubr.bf16.gmra.mxu0 %v4061
      %v4563 = vpop.f32.mrf.mxu0
      %v4564 = vadd.f32 0.0, %v4563
      %v4565 = vpop.f32.mrf.mxu0
      %v4566 = vadd.f32 0.0, %v4565
      %v4567 = vpop.f32.mrf.mxu0
      %v4568 = vpop.f32.mrf.mxu0
      %4569 = vdwg.mxu0
      %4570 = vmatprep.subr.bf16.mxu0 %v1187
      %4571 = vmatpush1.bf16.msra.mxu0 %v1186
      %4572 = vmatprep.subr.bf16.mxu0 %v1179
      %4573 = vmatpush1.bf16.msra.mxu0 %v1178
      %4574 = vmatprep.subr.bf16.mxu0 %v1171
      %4575 = vmatpush1.bf16.msra.mxu0 %v1170
      %4576 = vmatprep.subr.bf16.mxu0 %v1163
      %4577 = vmatpush1.bf16.msra.mxu0 %v1162
      %4578 = vmatprep.subr.bf16.mxu0 %v1155
      %4579 = vmatpush1.bf16.msra.mxu0 %v1154
      %4580 = vmatprep.subr.bf16.mxu0 %v1147
      %4581 = vmatpush1.bf16.msra.mxu0 %v1146
      %4582 = vmatprep.subr.bf16.mxu0 %v1139
      %4583 = vmatpush1.bf16.msra.mxu0 %v1138
      %4584 = vmatprep.subr.bf16.mxu0 %v1131
      %4585 = vmatpush1.bf16.msra.mxu0 %v1130
      %4586 = vmatprep.subr.bf16.mxu0 %v1251
      %4587 = vmatpush2.bf16.msra.mxu0 %v1250
      %4588 = vmatprep.subr.bf16.mxu0 %v1243
      %4589 = vmatpush2.bf16.msra.mxu0 %v1242
      %4590 = vmatprep.subr.bf16.mxu0 %v1235
      %4591 = vmatpush2.bf16.msra.mxu0 %v1234
      %4592 = vmatprep.subr.bf16.mxu0 %v1227
      %4593 = vmatpush2.bf16.msra.mxu0 %v1226
      %4594 = vmatprep.subr.bf16.mxu0 %v1219
      %4595 = vmatpush2.bf16.msra.mxu0 %v1218
      %4596 = vmatprep.subr.bf16.mxu0 %v1211
      %4597 = vmatpush2.bf16.msra.mxu0 %v1210
      %4598 = vmatprep.subr.bf16.mxu0 %v1203
      %4599 = vmatpush2.bf16.msra.mxu0 %v1202
      %4600 = vmatprep.subr.bf16.mxu0 %v1195
      %4601 = vmatpush2.bf16.msra.mxu0 %v1194
      %4602 = vmatprep.mubr.bf16.mxu0 %v4062
      %4603 = vmatmul.mubr.bf16.gmra.mxu0 %v4061
      %v4604 = vpop.f32.mrf.mxu0
      %v4605 = vadd.f32 0.0, %v4604
      %v4606 = vpop.f32.mrf.mxu0
      %v4607 = vadd.f32 0.0, %v4606
      %v4608 = vpop.f32.mrf.mxu0
      %v4609 = vpop.f32.mrf.mxu0
      %4610 = vdwg.mxu0
      %v4611 = vadd.f32 %v4439, %v4482
      %v4612 = vadd.f32 %v4440, %v4484
      %v4613 = vadd.f32 %v4441, %v4523
      %v4614 = vadd.f32 %v4442, %v4525
      %v4615 = vadd.f32 %v4443, %v4564
      %v4616 = vadd.f32 %v4444, %v4566
      %v4617 = vadd.f32 %v4445, %v4605
      %v4618 = vadd.f32 %v4446, %v4607
      %v4619 = vmul.f32 %v4611, 0.5
      %v4620 = vmul.f32 %v4612, 0.5
      %v4621 = vtanh.pop %v4619
      %v4622 = vtanh.pop %v4620
      %v4623 = vmul.f32 %v4621, 0.5
      %v4624 = vmul.f32 %v4622, 0.5
      %v4625 = vadd.f32 %v4623, 0.5
      %v4626 = vadd.f32 %v4624, 0.5
      %v4627 = vmul.f32 %v4613, 0.5
      %v4628 = vmul.f32 %v4614, 0.5
      %v4629 = vtanh.pop %v4627
      %v4630 = vtanh.pop %v4628
      %v4631 = vmul.f32 %v4629, 0.5
      %v4632 = vmul.f32 %v4630, 0.5
      %v4633 = vadd.f32 %v4631, 0.5
      %v4634 = vadd.f32 %v4632, 0.5
      %v4635 = vtanh.pop %v4615
      %v4636 = vtanh.pop %v4616
      %v4637 = vmul.f32 %v4617, 0.5
      %v4638 = vmul.f32 %v4618, 0.5
      %v4639 = vtanh.pop %v4637
      %v4640 = vtanh.pop %v4638
      %v4641 = vmul.f32 %v4639, 0.5
      %v4642 = vmul.f32 %v4640, 0.5
      %v4643 = vadd.f32 %v4641, 0.5
      %v4644 = vadd.f32 %v4642, 0.5
      %v4645 = vmul.f32 %v4633, %v4053
      %v4646 = vmul.f32 %v4634, %v4054
      %v4647 = vmul.f32 %v4625, %v4635
      %v4648 = vmul.f32 %v4626, %v4636
      %v4649 = vadd.f32 %v4645, %v4647
      %v4650 = vadd.f32 %v4646, %v4648
      %v4651 = vtanh.pop %v4649
      %v4652 = vtanh.pop %v4650
      %v4653 = vmul.f32 %v4643, %v4651
      %v4654 = vmul.f32 %v4644, %v4652
      %v4655 = vpack.c.bf16 %v4433, %v4433
      %v4656 = vpack.c.bf16 %v4434, %v4434
      %v4657 = vpack.c.bf16 %v4653, %v4653
      %v4658 = vpack.c.bf16 %v4654, %v4654
      %4659 = vmatprep.subr.bf16.mxu0 %v2033
      %4660 = vmatpush1.bf16.msra.mxu0 %v2032
      %4661 = vmatprep.subr.bf16.mxu0 %v2025
      %4662 = vmatpush1.bf16.msra.mxu0 %v2024
      %4663 = vmatprep.subr.bf16.mxu0 %v2017
      %4664 = vmatpush1.bf16.msra.mxu0 %v2016
      %4665 = vmatprep.subr.bf16.mxu0 %v2009
      %4666 = vmatpush1.bf16.msra.mxu0 %v2008
      %4667 = vmatprep.subr.bf16.mxu0 %v2001
      %4668 = vmatpush1.bf16.msra.mxu0 %v2000
      %4669 = vmatprep.subr.bf16.mxu0 %v1993
      %4670 = vmatpush1.bf16.msra.mxu0 %v1992
      %4671 = vmatprep.subr.bf16.mxu0 %v1985
      %4672 = vmatpush1.bf16.msra.mxu0 %v1984
      %4673 = vmatprep.subr.bf16.mxu0 %v1977
      %4674 = vmatpush1.bf16.msra.mxu0 %v1976
      %4675 = vmatprep.subr.bf16.mxu0 %v2097
      %4676 = vmatpush2.bf16.msra.mxu0 %v2096
      %4677 = vmatprep.subr.bf16.mxu0 %v2089
      %4678 = vmatpush2.bf16.msra.mxu0 %v2088
      %4679 = vmatprep.subr.bf16.mxu0 %v2081
      %4680 = vmatpush2.bf16.msra.mxu0 %v2080
      %4681 = vmatprep.subr.bf16.mxu0 %v2073
      %4682 = vmatpush2.bf16.msra.mxu0 %v2072
      %4683 = vmatprep.subr.bf16.mxu0 %v2065
      %4684 = vmatpush2.bf16.msra.mxu0 %v2064
      %4685 = vmatprep.subr.bf16.mxu0 %v2057
      %4686 = vmatpush2.bf16.msra.mxu0 %v2056
      %4687 = vmatprep.subr.bf16.mxu0 %v2049
      %4688 = vmatpush2.bf16.msra.mxu0 %v2048
      %4689 = vmatprep.subr.bf16.mxu0 %v2041
      %4690 = vmatpush2.bf16.msra.mxu0 %v2040
      %4691 = vmatprep.mubr.bf16.mxu0 %v4658
      %4692 = vmatmul.mubr.bf16.gmra.mxu0 %v4657
      %v4693 = vpop.f32.mrf.mxu0
      %v4694 = vadd.f32 0.0, %v4693
      %v4695 = vpop.f32.mrf.mxu0
      %v4696 = vadd.f32 0.0, %v4695
      %v4697 = vpop.f32.mrf.mxu0
      %v4698 = vpop.f32.mrf.mxu0
      %4699 = vdwg.mxu0
      %4700 = vmatprep.subr.bf16.mxu0 %v2035
      %4701 = vmatpush1.bf16.msra.mxu0 %v2034
      %4702 = vmatprep.subr.bf16.mxu0 %v2027
      %4703 = vmatpush1.bf16.msra.mxu0 %v2026
      %4704 = vmatprep.subr.bf16.mxu0 %v2019
      %4705 = vmatpush1.bf16.msra.mxu0 %v2018
      %4706 = vmatprep.subr.bf16.mxu0 %v2011
      %4707 = vmatpush1.bf16.msra.mxu0 %v2010
      %4708 = vmatprep.subr.bf16.mxu0 %v2003
      %4709 = vmatpush1.bf16.msra.mxu0 %v2002
      %4710 = vmatprep.subr.bf16.mxu0 %v1995
      %4711 = vmatpush1.bf16.msra.mxu0 %v1994
      %4712 = vmatprep.subr.bf16.mxu0 %v1987
      %4713 = vmatpush1.bf16.msra.mxu0 %v1986
      %4714 = vmatprep.subr.bf16.mxu0 %v1979
      %4715 = vmatpush1.bf16.msra.mxu0 %v1978
      %4716 = vmatprep.subr.bf16.mxu0 %v2099
      %4717 = vmatpush2.bf16.msra.mxu0 %v2098
      %4718 = vmatprep.subr.bf16.mxu0 %v2091
      %4719 = vmatpush2.bf16.msra.mxu0 %v2090
      %4720 = vmatprep.subr.bf16.mxu0 %v2083
      %4721 = vmatpush2.bf16.msra.mxu0 %v2082
      %4722 = vmatprep.subr.bf16.mxu0 %v2075
      %4723 = vmatpush2.bf16.msra.mxu0 %v2074
      %4724 = vmatprep.subr.bf16.mxu0 %v2067
      %4725 = vmatpush2.bf16.msra.mxu0 %v2066
      %4726 = vmatprep.subr.bf16.mxu0 %v2059
      %4727 = vmatpush2.bf16.msra.mxu0 %v2058
      %4728 = vmatprep.subr.bf16.mxu0 %v2051
      %4729 = vmatpush2.bf16.msra.mxu0 %v2050
      %4730 = vmatprep.subr.bf16.mxu0 %v2043
      %4731 = vmatpush2.bf16.msra.mxu0 %v2042
      %4732 = vmatprep.mubr.bf16.mxu0 %v4658
      %4733 = vmatmul.mubr.bf16.gmra.mxu0 %v4657
      %v4734 = vpop.f32.mrf.mxu0
      %v4735 = vadd.f32 0.0, %v4734
      %v4736 = vpop.f32.mrf.mxu0
      %v4737 = vadd.f32 0.0, %v4736
      %v4738 = vpop.f32.mrf.mxu0
      %v4739 = vpop.f32.mrf.mxu0
      %4740 = vdwg.mxu0
      %4741 = vmatprep.subr.bf16.mxu0 %v2037
      %4742 = vmatpush1.bf16.msra.mxu0 %v2036
      %4743 = vmatprep.subr.bf16.mxu0 %v2029
      %4744 = vmatpush1.bf16.msra.mxu0 %v2028
      %4745 = vmatprep.subr.bf16.mxu0 %v2021
      %4746 = vmatpush1.bf16.msra.mxu0 %v2020
      %4747 = vmatprep.subr.bf16.mxu0 %v2013
      %4748 = vmatpush1.bf16.msra.mxu0 %v2012
      %4749 = vmatprep.subr.bf16.mxu0 %v2005
      %4750 = vmatpush1.bf16.msra.mxu0 %v2004
      %4751 = vmatprep.subr.bf16.mxu0 %v1997
      %4752 = vmatpush1.bf16.msra.mxu0 %v1996
      %4753 = vmatprep.subr.bf16.mxu0 %v1989
      %4754 = vmatpush1.bf16.msra.mxu0 %v1988
      %4755 = vmatprep.subr.bf16.mxu0 %v1981
      %4756 = vmatpush1.bf16.msra.mxu0 %v1980
      %4757 = vmatprep.subr.bf16.mxu0 %v2101
      %4758 = vmatpush2.bf16.msra.mxu0 %v2100
      %4759 = vmatprep.subr.bf16.mxu0 %v2093
      %4760 = vmatpush2.bf16.msra.mxu0 %v2092
      %4761 = vmatprep.subr.bf16.mxu0 %v2085
      %4762 = vmatpush2.bf16.msra.mxu0 %v2084
      %4763 = vmatprep.subr.bf16.mxu0 %v2077
      %4764 = vmatpush2.bf16.msra.mxu0 %v2076
      %4765 = vmatprep.subr.bf16.mxu0 %v2069
      %4766 = vmatpush2.bf16.msra.mxu0 %v2068
      %4767 = vmatprep.subr.bf16.mxu0 %v2061
      %4768 = vmatpush2.bf16.msra.mxu0 %v2060
      %4769 = vmatprep.subr.bf16.mxu0 %v2053
      %4770 = vmatpush2.bf16.msra.mxu0 %v2052
      %4771 = vmatprep.subr.bf16.mxu0 %v2045
      %4772 = vmatpush2.bf16.msra.mxu0 %v2044
      %4773 = vmatprep.mubr.bf16.mxu0 %v4658
      %4774 = vmatmul.mubr.bf16.gmra.mxu0 %v4657
      %v4775 = vpop.f32.mrf.mxu0
      %v4776 = vadd.f32 0.0, %v4775
      %v4777 = vpop.f32.mrf.mxu0
      %v4778 = vadd.f32 0.0, %v4777
      %v4779 = vpop.f32.mrf.mxu0
      %v4780 = vpop.f32.mrf.mxu0
      %4781 = vdwg.mxu0
      %4782 = vmatprep.subr.bf16.mxu0 %v2039
      %4783 = vmatpush1.bf16.msra.mxu0 %v2038
      %4784 = vmatprep.subr.bf16.mxu0 %v2031
      %4785 = vmatpush1.bf16.msra.mxu0 %v2030
      %4786 = vmatprep.subr.bf16.mxu0 %v2023
      %4787 = vmatpush1.bf16.msra.mxu0 %v2022
      %4788 = vmatprep.subr.bf16.mxu0 %v2015
      %4789 = vmatpush1.bf16.msra.mxu0 %v2014
      %4790 = vmatprep.subr.bf16.mxu0 %v2007
      %4791 = vmatpush1.bf16.msra.mxu0 %v2006
      %4792 = vmatprep.subr.bf16.mxu0 %v1999
      %4793 = vmatpush1.bf16.msra.mxu0 %v1998
      %4794 = vmatprep.subr.bf16.mxu0 %v1991
      %4795 = vmatpush1.bf16.msra.mxu0 %v1990
      %4796 = vmatprep.subr.bf16.mxu0 %v1983
      %4797 = vmatpush1.bf16.msra.mxu0 %v1982
      %4798 = vmatprep.subr.bf16.mxu0 %v2103
      %4799 = vmatpush2.bf16.msra.mxu0 %v2102
      %4800 = vmatprep.subr.bf16.mxu0 %v2095
      %4801 = vmatpush2.bf16.msra.mxu0 %v2094
      %4802 = vmatprep.subr.bf16.mxu0 %v2087
      %4803 = vmatpush2.bf16.msra.mxu0 %v2086
      %4804 = vmatprep.subr.bf16.mxu0 %v2079
      %4805 = vmatpush2.bf16.msra.mxu0 %v2078
      %4806 = vmatprep.subr.bf16.mxu0 %v2071
      %4807 = vmatpush2.bf16.msra.mxu0 %v2070
      %4808 = vmatprep.subr.bf16.mxu0 %v2063
      %4809 = vmatpush2.bf16.msra.mxu0 %v2062
      %4810 = vmatprep.subr.bf16.mxu0 %v2055
      %4811 = vmatpush2.bf16.msra.mxu0 %v2054
      %4812 = vmatprep.subr.bf16.mxu0 %v2047
      %4813 = vmatpush2.bf16.msra.mxu0 %v2046
      %4814 = vmatprep.mubr.bf16.mxu0 %v4658
      %4815 = vmatmul.mubr.bf16.gmra.mxu0 %v4657
      %v4816 = vpop.f32.mrf.mxu0
      %v4817 = vadd.f32 0.0, %v4816
      %v4818 = vpop.f32.mrf.mxu0
      %v4819 = vadd.f32 0.0, %v4818
      %v4820 = vpop.f32.mrf.mxu0
      %v4821 = vpop.f32.mrf.mxu0
      %4822 = vdwg.mxu0
      %4823 = vmatprep.subr.bf16.mxu0 %v2837
      %4824 = vmatpush1.bf16.msra.mxu0 %v2836
      %4825 = vmatprep.subr.bf16.mxu0 %v2829
      %4826 = vmatpush1.bf16.msra.mxu0 %v2828
      %4827 = vmatprep.subr.bf16.mxu0 %v2821
      %4828 = vmatpush1.bf16.msra.mxu0 %v2820
      %4829 = vmatprep.subr.bf16.mxu0 %v2813
      %4830 = vmatpush1.bf16.msra.mxu0 %v2812
      %4831 = vmatprep.subr.bf16.mxu0 %v2805
      %4832 = vmatpush1.bf16.msra.mxu0 %v2804
      %4833 = vmatprep.subr.bf16.mxu0 %v2797
      %4834 = vmatpush1.bf16.msra.mxu0 %v2796
      %4835 = vmatprep.subr.bf16.mxu0 %v2789
      %4836 = vmatpush1.bf16.msra.mxu0 %v2788
      %4837 = vmatprep.subr.bf16.mxu0 %v2781
      %4838 = vmatpush1.bf16.msra.mxu0 %v2780
      %4839 = vmatprep.subr.bf16.mxu0 %v2901
      %4840 = vmatpush2.bf16.msra.mxu0 %v2900
      %4841 = vmatprep.subr.bf16.mxu0 %v2893
      %4842 = vmatpush2.bf16.msra.mxu0 %v2892
      %4843 = vmatprep.subr.bf16.mxu0 %v2885
      %4844 = vmatpush2.bf16.msra.mxu0 %v2884
      %4845 = vmatprep.subr.bf16.mxu0 %v2877
      %4846 = vmatpush2.bf16.msra.mxu0 %v2876
      %4847 = vmatprep.subr.bf16.mxu0 %v2869
      %4848 = vmatpush2.bf16.msra.mxu0 %v2868
      %4849 = vmatprep.subr.bf16.mxu0 %v2861
      %4850 = vmatpush2.bf16.msra.mxu0 %v2860
      %4851 = vmatprep.subr.bf16.mxu0 %v2853
      %4852 = vmatpush2.bf16.msra.mxu0 %v2852
      %4853 = vmatprep.subr.bf16.mxu0 %v2845
      %4854 = vmatpush2.bf16.msra.mxu0 %v2844
      %4855 = vmatprep.mubr.bf16.mxu0 %v4656
      %4856 = vmatmul.mubr.bf16.gmra.mxu0 %v4655
      %v4857 = vpop.f32.mrf.mxu0
      %v4858 = vadd.f32 %v4694, %v4857
      %v4859 = vpop.f32.mrf.mxu0
      %v4860 = vadd.f32 %v4696, %v4859
      %v4861 = vpop.f32.mrf.mxu0
      %v4862 = vpop.f32.mrf.mxu0
      %4863 = vdwg.mxu0
      %4864 = vmatprep.subr.bf16.mxu0 %v2839
      %4865 = vmatpush1.bf16.msra.mxu0 %v2838
      %4866 = vmatprep.subr.bf16.mxu0 %v2831
      %4867 = vmatpush1.bf16.msra.mxu0 %v2830
      %4868 = vmatprep.subr.bf16.mxu0 %v2823
      %4869 = vmatpush1.bf16.msra.mxu0 %v2822
      %4870 = vmatprep.subr.bf16.mxu0 %v2815
      %4871 = vmatpush1.bf16.msra.mxu0 %v2814
      %4872 = vmatprep.subr.bf16.mxu0 %v2807
      %4873 = vmatpush1.bf16.msra.mxu0 %v2806
      %4874 = vmatprep.subr.bf16.mxu0 %v2799
      %4875 = vmatpush1.bf16.msra.mxu0 %v2798
      %4876 = vmatprep.subr.bf16.mxu0 %v2791
      %4877 = vmatpush1.bf16.msra.mxu0 %v2790
      %4878 = vmatprep.subr.bf16.mxu0 %v2783
      %4879 = vmatpush1.bf16.msra.mxu0 %v2782
      %4880 = vmatprep.subr.bf16.mxu0 %v2903
      %4881 = vmatpush2.bf16.msra.mxu0 %v2902
      %4882 = vmatprep.subr.bf16.mxu0 %v2895
      %4883 = vmatpush2.bf16.msra.mxu0 %v2894
      %4884 = vmatprep.subr.bf16.mxu0 %v2887
      %4885 = vmatpush2.bf16.msra.mxu0 %v2886
      %4886 = vmatprep.subr.bf16.mxu0 %v2879
      %4887 = vmatpush2.bf16.msra.mxu0 %v2878
      %4888 = vmatprep.subr.bf16.mxu0 %v2871
      %4889 = vmatpush2.bf16.msra.mxu0 %v2870
      %4890 = vmatprep.subr.bf16.mxu0 %v2863
      %4891 = vmatpush2.bf16.msra.mxu0 %v2862
      %4892 = vmatprep.subr.bf16.mxu0 %v2855
      %4893 = vmatpush2.bf16.msra.mxu0 %v2854
      %4894 = vmatprep.subr.bf16.mxu0 %v2847
      %4895 = vmatpush2.bf16.msra.mxu0 %v2846
      %4896 = vmatprep.mubr.bf16.mxu0 %v4656
      %4897 = vmatmul.mubr.bf16.gmra.mxu0 %v4655
      %v4898 = vpop.f32.mrf.mxu0
      %v4899 = vadd.f32 %v4735, %v4898
      %v4900 = vpop.f32.mrf.mxu0
      %v4901 = vadd.f32 %v4737, %v4900
      %v4902 = vpop.f32.mrf.mxu0
      %v4903 = vpop.f32.mrf.mxu0
      %4904 = vdwg.mxu0
      %4905 = vmatprep.subr.bf16.mxu0 %v2841
      %4906 = vmatpush1.bf16.msra.mxu0 %v2840
      %4907 = vmatprep.subr.bf16.mxu0 %v2833
      %4908 = vmatpush1.bf16.msra.mxu0 %v2832
      %4909 = vmatprep.subr.bf16.mxu0 %v2825
      %4910 = vmatpush1.bf16.msra.mxu0 %v2824
      %4911 = vmatprep.subr.bf16.mxu0 %v2817
      %4912 = vmatpush1.bf16.msra.mxu0 %v2816
      %4913 = vmatprep.subr.bf16.mxu0 %v2809
      %4914 = vmatpush1.bf16.msra.mxu0 %v2808
      %4915 = vmatprep.subr.bf16.mxu0 %v2801
      %4916 = vmatpush1.bf16.msra.mxu0 %v2800
      %4917 = vmatprep.subr.bf16.mxu0 %v2793
      %4918 = vmatpush1.bf16.msra.mxu0 %v2792
      %4919 = vmatprep.subr.bf16.mxu0 %v2785
      %4920 = vmatpush1.bf16.msra.mxu0 %v2784
      %4921 = vmatprep.subr.bf16.mxu0 %v2905
      %4922 = vmatpush2.bf16.msra.mxu0 %v2904
      %4923 = vmatprep.subr.bf16.mxu0 %v2897
      %4924 = vmatpush2.bf16.msra.mxu0 %v2896
      %4925 = vmatprep.subr.bf16.mxu0 %v2889
      %4926 = vmatpush2.bf16.msra.mxu0 %v2888
      %4927 = vmatprep.subr.bf16.mxu0 %v2881
      %4928 = vmatpush2.bf16.msra.mxu0 %v2880
      %4929 = vmatprep.subr.bf16.mxu0 %v2873
      %4930 = vmatpush2.bf16.msra.mxu0 %v2872
      %4931 = vmatprep.subr.bf16.mxu0 %v2865
      %4932 = vmatpush2.bf16.msra.mxu0 %v2864
      %4933 = vmatprep.subr.bf16.mxu0 %v2857
      %4934 = vmatpush2.bf16.msra.mxu0 %v2856
      %4935 = vmatprep.subr.bf16.mxu0 %v2849
      %4936 = vmatpush2.bf16.msra.mxu0 %v2848
      %4937 = vmatprep.mubr.bf16.mxu0 %v4656
      %4938 = vmatmul.mubr.bf16.gmra.mxu0 %v4655
      %v4939 = vpop.f32.mrf.mxu0
      %v4940 = vadd.f32 %v4776, %v4939
      %v4941 = vpop.f32.mrf.mxu0
      %v4942 = vadd.f32 %v4778, %v4941
      %v4943 = vpop.f32.mrf.mxu0
      %v4944 = vpop.f32.mrf.mxu0
      %4945 = vdwg.mxu0
      %4946 = vmatprep.subr.bf16.mxu0 %v2843
      %4947 = vmatpush1.bf16.msra.mxu0 %v2842
      %4948 = vmatprep.subr.bf16.mxu0 %v2835
      %4949 = vmatpush1.bf16.msra.mxu0 %v2834
      %4950 = vmatprep.subr.bf16.mxu0 %v2827
      %4951 = vmatpush1.bf16.msra.mxu0 %v2826
      %4952 = vmatprep.subr.bf16.mxu0 %v2819
      %4953 = vmatpush1.bf16.msra.mxu0 %v2818
      %4954 = vmatprep.subr.bf16.mxu0 %v2811
      %4955 = vmatpush1.bf16.msra.mxu0 %v2810
      %4956 = vmatprep.subr.bf16.mxu0 %v2803
      %4957 = vmatpush1.bf16.msra.mxu0 %v2802
      %4958 = vmatprep.subr.bf16.mxu0 %v2795
      %4959 = vmatpush1.bf16.msra.mxu0 %v2794
      %4960 = vmatprep.subr.bf16.mxu0 %v2787
      %4961 = vmatpush1.bf16.msra.mxu0 %v2786
      %4962 = vmatprep.subr.bf16.mxu0 %v2907
      %4963 = vmatpush2.bf16.msra.mxu0 %v2906
      %4964 = vmatprep.subr.bf16.mxu0 %v2899
      %4965 = vmatpush2.bf16.msra.mxu0 %v2898
      %4966 = vmatprep.subr.bf16.mxu0 %v2891
      %4967 = vmatpush2.bf16.msra.mxu0 %v2890
      %4968 = vmatprep.subr.bf16.mxu0 %v2883
      %4969 = vmatpush2.bf16.msra.mxu0 %v2882
      %4970 = vmatprep.subr.bf16.mxu0 %v2875
      %4971 = vmatpush2.bf16.msra.mxu0 %v2874
      %4972 = vmatprep.subr.bf16.mxu0 %v2867
      %4973 = vmatpush2.bf16.msra.mxu0 %v2866
      %4974 = vmatprep.subr.bf16.mxu0 %v2859
      %4975 = vmatpush2.bf16.msra.mxu0 %v2858
      %4976 = vmatprep.subr.bf16.mxu0 %v2851
      %4977 = vmatpush2.bf16.msra.mxu0 %v2850
      %4978 = vmatprep.mubr.bf16.mxu0 %v4656
      %4979 = vmatmul.mubr.bf16.gmra.mxu0 %v4655
      %v4980 = vpop.f32.mrf.mxu0
      %v4981 = vadd.f32 %v4817, %v4980
      %v4982 = vpop.f32.mrf.mxu0
      %v4983 = vadd.f32 %v4819, %v4982
      %v4984 = vpop.f32.mrf.mxu0
      %v4985 = vpop.f32.mrf.mxu0
      %4986 = vdwg.mxu0
      %v4987 = vadd.f32 %v4858, %v693
      %v4988 = vadd.f32 %v4860, %v697
      %v4989 = vadd.f32 %v4899, %v701
      %v4990 = vadd.f32 %v4901, %v705
      %v4991 = vadd.f32 %v4940, %v709
      %v4992 = vadd.f32 %v4942, %v713
      %v4993 = vadd.f32 %v4981, %v717
      %v4994 = vadd.f32 %v4983, %v721
      %v4995 = vmul.f32 %v4987, 0.5
      %v4996 = vmul.f32 %v4988, 0.5
      %v4997 = vtanh.pop %v4995
      %v4998 = vtanh.pop %v4996
      %v4999 = vmul.f32 %v4997, 0.5
      %v5000 = vmul.f32 %v4998, 0.5
      %v5001 = vadd.f32 %v4999, 0.5
      %v5002 = vadd.f32 %v5000, 0.5
      %v5003 = vmul.f32 %v4989, 0.5
      %v5004 = vmul.f32 %v4990, 0.5
      %v5005 = vtanh.pop %v5003
      %v5006 = vtanh.pop %v5004
      %v5007 = vmul.f32 %v5005, 0.5
      %v5008 = vmul.f32 %v5006, 0.5
      %v5009 = vadd.f32 %v5007, 0.5
      %v5010 = vadd.f32 %v5008, 0.5
      %v5011 = vtanh.pop %v4991
      %v5012 = vtanh.pop %v4992
      %v5013 = vmul.f32 %v4993, 0.5
      %v5014 = vmul.f32 %v4994, 0.5
      %v5015 = vtanh.pop %v5013
      %v5016 = vtanh.pop %v5014
      %v5017 = vmul.f32 %v5015, 0.5
      %v5018 = vmul.f32 %v5016, 0.5
      %v5019 = vadd.f32 %v5017, 0.5
      %v5020 = vadd.f32 %v5018, 0.5
      %v5021 = vmul.f32 %v5009, %v4429
      %v5022 = vmul.f32 %v5010, %v4430
      %v5023 = vmul.f32 %v5001, %v5011
      %v5024 = vmul.f32 %v5002, %v5012
      %v5025 = vadd.f32 %v5021, %v5023
      %v5026 = vadd.f32 %v5022, %v5024
      %v5027 = vtanh.pop %v5025
      %v5028 = vtanh.pop %v5026
      %v5029 = vmul.f32 %v5019, %v5027
      %v5030 = vmul.f32 %v5020, %v5028
      %s5031 = scalar_lea.vmem %s280, 48
      %5032 = vst [vmem:[%s5031] sm:$0xff] %v5029
      %5033 = vst [vmem:[%s5031 + $0x8] sm:$0xff] %v5030
      %s5034 = scalar_lea.vmem %s273, 256
      %v5035 = vld [vmem:[%s5034] sm:$0xff]
      %v5036 = vld [vmem:[%s5034 + $0x8] sm:$0xff]
      %v5037 = vld [vmem:[%s5034 + $0x10] sm:$0xff]
      %v5038 = vld [vmem:[%s5034 + $0x18] sm:$0xff]
      %v5039 = vld [vmem:[%s5034 + $0x20] sm:$0xff]
      %v5040 = vld [vmem:[%s5034 + $0x28] sm:$0xff]
      %v5041 = vld [vmem:[%s5034 + $0x30] sm:$0xff]
      %v5042 = vld [vmem:[%s5034 + $0x38] sm:$0xff]
      %5043 = vmatprep.subr.bf16.mxu0 %v1181
      %5044 = vmatpush1.bf16.msra.mxu0 %v1180
      %5045 = vmatprep.subr.bf16.mxu0 %v1173
      %5046 = vmatpush1.bf16.msra.mxu0 %v1172
      %5047 = vmatprep.subr.bf16.mxu0 %v1165
      %5048 = vmatpush1.bf16.msra.mxu0 %v1164
      %5049 = vmatprep.subr.bf16.mxu0 %v1157
      %5050 = vmatpush1.bf16.msra.mxu0 %v1156
      %5051 = vmatprep.subr.bf16.mxu0 %v1149
      %5052 = vmatpush1.bf16.msra.mxu0 %v1148
      %5053 = vmatprep.subr.bf16.mxu0 %v1141
      %5054 = vmatpush1.bf16.msra.mxu0 %v1140
      %5055 = vmatprep.subr.bf16.mxu0 %v1133
      %5056 = vmatpush1.bf16.msra.mxu0 %v1132
      %5057 = vmatprep.subr.bf16.mxu0 %v1125
      %5058 = vmatpush1.bf16.msra.mxu0 %v1124
      %5059 = vmatprep.subr.bf16.mxu0 %v1245
      %5060 = vmatpush2.bf16.msra.mxu0 %v1244
      %5061 = vmatprep.subr.bf16.mxu0 %v1237
      %5062 = vmatpush2.bf16.msra.mxu0 %v1236
      %5063 = vmatprep.subr.bf16.mxu0 %v1229
      %5064 = vmatpush2.bf16.msra.mxu0 %v1228
      %5065 = vmatprep.subr.bf16.mxu0 %v1221
      %5066 = vmatpush2.bf16.msra.mxu0 %v1220
      %5067 = vmatprep.subr.bf16.mxu0 %v1213
      %5068 = vmatpush2.bf16.msra.mxu0 %v1212
      %5069 = vmatprep.subr.bf16.mxu0 %v1205
      %5070 = vmatpush2.bf16.msra.mxu0 %v1204
      %5071 = vmatprep.subr.bf16.mxu0 %v1197
      %5072 = vmatpush2.bf16.msra.mxu0 %v1196
      %5073 = vmatprep.subr.bf16.mxu0 %v1189
      %5074 = vmatpush2.bf16.msra.mxu0 %v1188
      %5075 = vmatprep.mubr.bf16.mxu0 %v4658
      %5076 = vmatmul.mubr.bf16.gmra.mxu0 %v4657
      %v5077 = vpop.f32.mrf.mxu0
      %v5078 = vadd.f32 0.0, %v5077
      %v5079 = vpop.f32.mrf.mxu0
      %v5080 = vadd.f32 0.0, %v5079
      %v5081 = vpop.f32.mrf.mxu0
      %v5082 = vpop.f32.mrf.mxu0
      %5083 = vdwg.mxu0
      %5084 = vmatprep.subr.bf16.mxu0 %v1183
      %5085 = vmatpush1.bf16.msra.mxu0 %v1182
      %5086 = vmatprep.subr.bf16.mxu0 %v1175
      %5087 = vmatpush1.bf16.msra.mxu0 %v1174
      %5088 = vmatprep.subr.bf16.mxu0 %v1167
      %5089 = vmatpush1.bf16.msra.mxu0 %v1166
      %5090 = vmatprep.subr.bf16.mxu0 %v1159
      %5091 = vmatpush1.bf16.msra.mxu0 %v1158
      %5092 = vmatprep.subr.bf16.mxu0 %v1151
      %5093 = vmatpush1.bf16.msra.mxu0 %v1150
      %5094 = vmatprep.subr.bf16.mxu0 %v1143
      %5095 = vmatpush1.bf16.msra.mxu0 %v1142
      %5096 = vmatprep.subr.bf16.mxu0 %v1135
      %5097 = vmatpush1.bf16.msra.mxu0 %v1134
      %5098 = vmatprep.subr.bf16.mxu0 %v1127
      %5099 = vmatpush1.bf16.msra.mxu0 %v1126
      %5100 = vmatprep.subr.bf16.mxu0 %v1247
      %5101 = vmatpush2.bf16.msra.mxu0 %v1246
      %5102 = vmatprep.subr.bf16.mxu0 %v1239
      %5103 = vmatpush2.bf16.msra.mxu0 %v1238
      %5104 = vmatprep.subr.bf16.mxu0 %v1231
      %5105 = vmatpush2.bf16.msra.mxu0 %v1230
      %5106 = vmatprep.subr.bf16.mxu0 %v1223
      %5107 = vmatpush2.bf16.msra.mxu0 %v1222
      %5108 = vmatprep.subr.bf16.mxu0 %v1215
      %5109 = vmatpush2.bf16.msra.mxu0 %v1214
      %5110 = vmatprep.subr.bf16.mxu0 %v1207
      %5111 = vmatpush2.bf16.msra.mxu0 %v1206
      %5112 = vmatprep.subr.bf16.mxu0 %v1199
      %5113 = vmatpush2.bf16.msra.mxu0 %v1198
      %5114 = vmatprep.subr.bf16.mxu0 %v1191
      %5115 = vmatpush2.bf16.msra.mxu0 %v1190
      %5116 = vmatprep.mubr.bf16.mxu0 %v4658
      %5117 = vmatmul.mubr.bf16.gmra.mxu0 %v4657
      %v5118 = vpop.f32.mrf.mxu0
      %v5119 = vadd.f32 0.0, %v5118
      %v5120 = vpop.f32.mrf.mxu0
      %v5121 = vadd.f32 0.0, %v5120
      %v5122 = vpop.f32.mrf.mxu0
      %v5123 = vpop.f32.mrf.mxu0
      %5124 = vdwg.mxu0
      %5125 = vmatprep.subr.bf16.mxu0 %v1185
      %5126 = vmatpush1.bf16.msra.mxu0 %v1184
      %5127 = vmatprep.subr.bf16.mxu0 %v1177
      %5128 = vmatpush1.bf16.msra.mxu0 %v1176
      %5129 = vmatprep.subr.bf16.mxu0 %v1169
      %5130 = vmatpush1.bf16.msra.mxu0 %v1168
      %5131 = vmatprep.subr.bf16.mxu0 %v1161
      %5132 = vmatpush1.bf16.msra.mxu0 %v1160
      %5133 = vmatprep.subr.bf16.mxu0 %v1153
      %5134 = vmatpush1.bf16.msra.mxu0 %v1152
      %5135 = vmatprep.subr.bf16.mxu0 %v1145
      %5136 = vmatpush1.bf16.msra.mxu0 %v1144
      %5137 = vmatprep.subr.bf16.mxu0 %v1137
      %5138 = vmatpush1.bf16.msra.mxu0 %v1136
      %5139 = vmatprep.subr.bf16.mxu0 %v1129
      %5140 = vmatpush1.bf16.msra.mxu0 %v1128
      %5141 = vmatprep.subr.bf16.mxu0 %v1249
      %5142 = vmatpush2.bf16.msra.mxu0 %v1248
      %5143 = vmatprep.subr.bf16.mxu0 %v1241
      %5144 = vmatpush2.bf16.msra.mxu0 %v1240
      %5145 = vmatprep.subr.bf16.mxu0 %v1233
      %5146 = vmatpush2.bf16.msra.mxu0 %v1232
      %5147 = vmatprep.subr.bf16.mxu0 %v1225
      %5148 = vmatpush2.bf16.msra.mxu0 %v1224
      %5149 = vmatprep.subr.bf16.mxu0 %v1217
      %5150 = vmatpush2.bf16.msra.mxu0 %v1216
      %5151 = vmatprep.subr.bf16.mxu0 %v1209
      %5152 = vmatpush2.bf16.msra.mxu0 %v1208
      %5153 = vmatprep.subr.bf16.mxu0 %v1201
      %5154 = vmatpush2.bf16.msra.mxu0 %v1200
      %5155 = vmatprep.subr.bf16.mxu0 %v1193
      %5156 = vmatpush2.bf16.msra.mxu0 %v1192
      %5157 = vmatprep.mubr.bf16.mxu0 %v4658
      %5158 = vmatmul.mubr.bf16.gmra.mxu0 %v4657
      %v5159 = vpop.f32.mrf.mxu0
      %v5160 = vadd.f32 0.0, %v5159
      %v5161 = vpop.f32.mrf.mxu0
      %v5162 = vadd.f32 0.0, %v5161
      %v5163 = vpop.f32.mrf.mxu0
      %v5164 = vpop.f32.mrf.mxu0
      %5165 = vdwg.mxu0
      %5166 = vmatprep.subr.bf16.mxu0 %v1187
      %5167 = vmatpush1.bf16.msra.mxu0 %v1186
      %5168 = vmatprep.subr.bf16.mxu0 %v1179
      %5169 = vmatpush1.bf16.msra.mxu0 %v1178
      %5170 = vmatprep.subr.bf16.mxu0 %v1171
      %5171 = vmatpush1.bf16.msra.mxu0 %v1170
      %5172 = vmatprep.subr.bf16.mxu0 %v1163
      %5173 = vmatpush1.bf16.msra.mxu0 %v1162
      %5174 = vmatprep.subr.bf16.mxu0 %v1155
      %5175 = vmatpush1.bf16.msra.mxu0 %v1154
      %5176 = vmatprep.subr.bf16.mxu0 %v1147
      %5177 = vmatpush1.bf16.msra.mxu0 %v1146
      %5178 = vmatprep.subr.bf16.mxu0 %v1139
      %5179 = vmatpush1.bf16.msra.mxu0 %v1138
      %5180 = vmatprep.subr.bf16.mxu0 %v1131
      %5181 = vmatpush1.bf16.msra.mxu0 %v1130
      %5182 = vmatprep.subr.bf16.mxu0 %v1251
      %5183 = vmatpush2.bf16.msra.mxu0 %v1250
      %5184 = vmatprep.subr.bf16.mxu0 %v1243
      %5185 = vmatpush2.bf16.msra.mxu0 %v1242
      %5186 = vmatprep.subr.bf16.mxu0 %v1235
      %5187 = vmatpush2.bf16.msra.mxu0 %v1234
      %5188 = vmatprep.subr.bf16.mxu0 %v1227
      %5189 = vmatpush2.bf16.msra.mxu0 %v1226
      %5190 = vmatprep.subr.bf16.mxu0 %v1219
      %5191 = vmatpush2.bf16.msra.mxu0 %v1218
      %5192 = vmatprep.subr.bf16.mxu0 %v1211
      %5193 = vmatpush2.bf16.msra.mxu0 %v1210
      %5194 = vmatprep.subr.bf16.mxu0 %v1203
      %5195 = vmatpush2.bf16.msra.mxu0 %v1202
      %5196 = vmatprep.subr.bf16.mxu0 %v1195
      %5197 = vmatpush2.bf16.msra.mxu0 %v1194
      %5198 = vmatprep.mubr.bf16.mxu0 %v4658
      %5199 = vmatmul.mubr.bf16.gmra.mxu0 %v4657
      %v5200 = vpop.f32.mrf.mxu0
      %v5201 = vadd.f32 0.0, %v5200
      %v5202 = vpop.f32.mrf.mxu0
      %v5203 = vadd.f32 0.0, %v5202
      %v5204 = vpop.f32.mrf.mxu0
      %v5205 = vpop.f32.mrf.mxu0
      %5206 = vdwg.mxu0
      %v5207 = vadd.f32 %v5035, %v5078
      %v5208 = vadd.f32 %v5036, %v5080
      %v5209 = vadd.f32 %v5037, %v5119
      %v5210 = vadd.f32 %v5038, %v5121
      %v5211 = vadd.f32 %v5039, %v5160
      %v5212 = vadd.f32 %v5040, %v5162
      %v5213 = vadd.f32 %v5041, %v5201
      %v5214 = vadd.f32 %v5042, %v5203
      %v5215 = vmul.f32 %v5207, 0.5
      %v5216 = vmul.f32 %v5208, 0.5
      %v5217 = vtanh.pop %v5215
      %v5218 = vtanh.pop %v5216
      %v5219 = vmul.f32 %v5217, 0.5
      %v5220 = vmul.f32 %v5218, 0.5
      %v5221 = vadd.f32 %v5219, 0.5
      %v5222 = vadd.f32 %v5220, 0.5
      %v5223 = vmul.f32 %v5209, 0.5
      %v5224 = vmul.f32 %v5210, 0.5
      %v5225 = vtanh.pop %v5223
      %v5226 = vtanh.pop %v5224
      %v5227 = vmul.f32 %v5225, 0.5
      %v5228 = vmul.f32 %v5226, 0.5
      %v5229 = vadd.f32 %v5227, 0.5
      %v5230 = vadd.f32 %v5228, 0.5
      %v5231 = vtanh.pop %v5211
      %v5232 = vtanh.pop %v5212
      %v5233 = vmul.f32 %v5213, 0.5
      %v5234 = vmul.f32 %v5214, 0.5
      %v5235 = vtanh.pop %v5233
      %v5236 = vtanh.pop %v5234
      %v5237 = vmul.f32 %v5235, 0.5
      %v5238 = vmul.f32 %v5236, 0.5
      %v5239 = vadd.f32 %v5237, 0.5
      %v5240 = vadd.f32 %v5238, 0.5
      %v5241 = vmul.f32 %v5229, %v4649
      %v5242 = vmul.f32 %v5230, %v4650
      %v5243 = vmul.f32 %v5221, %v5231
      %v5244 = vmul.f32 %v5222, %v5232
      %v5245 = vadd.f32 %v5241, %v5243
      %v5246 = vadd.f32 %v5242, %v5244
      %v5247 = vtanh.pop %v5245
      %v5248 = vtanh.pop %v5246
      %v5249 = vmul.f32 %v5239, %v5247
      %v5250 = vmul.f32 %v5240, %v5248
      %v5251 = vpack.c.bf16 %v5029, %v5029
      %v5252 = vpack.c.bf16 %v5030, %v5030
      %v5253 = vpack.c.bf16 %v5249, %v5249
      %v5254 = vpack.c.bf16 %v5250, %v5250
      %5255 = vmatprep.subr.bf16.mxu0 %v2033
      %5256 = vmatpush1.bf16.msra.mxu0 %v2032
      %5257 = vmatprep.subr.bf16.mxu0 %v2025
      %5258 = vmatpush1.bf16.msra.mxu0 %v2024
      %5259 = vmatprep.subr.bf16.mxu0 %v2017
      %5260 = vmatpush1.bf16.msra.mxu0 %v2016
      %5261 = vmatprep.subr.bf16.mxu0 %v2009
      %5262 = vmatpush1.bf16.msra.mxu0 %v2008
      %5263 = vmatprep.subr.bf16.mxu0 %v2001
      %5264 = vmatpush1.bf16.msra.mxu0 %v2000
      %5265 = vmatprep.subr.bf16.mxu0 %v1993
      %5266 = vmatpush1.bf16.msra.mxu0 %v1992
      %5267 = vmatprep.subr.bf16.mxu0 %v1985
      %5268 = vmatpush1.bf16.msra.mxu0 %v1984
      %5269 = vmatprep.subr.bf16.mxu0 %v1977
      %5270 = vmatpush1.bf16.msra.mxu0 %v1976
      %5271 = vmatprep.subr.bf16.mxu0 %v2097
      %5272 = vmatpush2.bf16.msra.mxu0 %v2096
      %5273 = vmatprep.subr.bf16.mxu0 %v2089
      %5274 = vmatpush2.bf16.msra.mxu0 %v2088
      %5275 = vmatprep.subr.bf16.mxu0 %v2081
      %5276 = vmatpush2.bf16.msra.mxu0 %v2080
      %5277 = vmatprep.subr.bf16.mxu0 %v2073
      %5278 = vmatpush2.bf16.msra.mxu0 %v2072
      %5279 = vmatprep.subr.bf16.mxu0 %v2065
      %5280 = vmatpush2.bf16.msra.mxu0 %v2064
      %5281 = vmatprep.subr.bf16.mxu0 %v2057
      %5282 = vmatpush2.bf16.msra.mxu0 %v2056
      %5283 = vmatprep.subr.bf16.mxu0 %v2049
      %5284 = vmatpush2.bf16.msra.mxu0 %v2048
      %5285 = vmatprep.subr.bf16.mxu0 %v2041
      %5286 = vmatpush2.bf16.msra.mxu0 %v2040
      %5287 = vmatprep.mubr.bf16.mxu0 %v5254
      %5288 = vmatmul.mubr.bf16.gmra.mxu0 %v5253
      %v5289 = vpop.f32.mrf.mxu0
      %v5290 = vadd.f32 0.0, %v5289
      %v5291 = vpop.f32.mrf.mxu0
      %v5292 = vadd.f32 0.0, %v5291
      %v5293 = vpop.f32.mrf.mxu0
      %v5294 = vpop.f32.mrf.mxu0
      %5295 = vdwg.mxu0
      %5296 = vmatprep.subr.bf16.mxu0 %v2035
      %5297 = vmatpush1.bf16.msra.mxu0 %v2034
      %5298 = vmatprep.subr.bf16.mxu0 %v2027
      %5299 = vmatpush1.bf16.msra.mxu0 %v2026
      %5300 = vmatprep.subr.bf16.mxu0 %v2019
      %5301 = vmatpush1.bf16.msra.mxu0 %v2018
      %5302 = vmatprep.subr.bf16.mxu0 %v2011
      %5303 = vmatpush1.bf16.msra.mxu0 %v2010
      %5304 = vmatprep.subr.bf16.mxu0 %v2003
      %5305 = vmatpush1.bf16.msra.mxu0 %v2002
      %5306 = vmatprep.subr.bf16.mxu0 %v1995
      %5307 = vmatpush1.bf16.msra.mxu0 %v1994
      %5308 = vmatprep.subr.bf16.mxu0 %v1987
      %5309 = vmatpush1.bf16.msra.mxu0 %v1986
      %5310 = vmatprep.subr.bf16.mxu0 %v1979
      %5311 = vmatpush1.bf16.msra.mxu0 %v1978
      %5312 = vmatprep.subr.bf16.mxu0 %v2099
      %5313 = vmatpush2.bf16.msra.mxu0 %v2098
      %5314 = vmatprep.subr.bf16.mxu0 %v2091
      %5315 = vmatpush2.bf16.msra.mxu0 %v2090
      %5316 = vmatprep.subr.bf16.mxu0 %v2083
      %5317 = vmatpush2.bf16.msra.mxu0 %v2082
      %5318 = vmatprep.subr.bf16.mxu0 %v2075
      %5319 = vmatpush2.bf16.msra.mxu0 %v2074
      %5320 = vmatprep.subr.bf16.mxu0 %v2067
      %5321 = vmatpush2.bf16.msra.mxu0 %v2066
      %5322 = vmatprep.subr.bf16.mxu0 %v2059
      %5323 = vmatpush2.bf16.msra.mxu0 %v2058
      %5324 = vmatprep.subr.bf16.mxu0 %v2051
      %5325 = vmatpush2.bf16.msra.mxu0 %v2050
      %5326 = vmatprep.subr.bf16.mxu0 %v2043
      %5327 = vmatpush2.bf16.msra.mxu0 %v2042
      %5328 = vmatprep.mubr.bf16.mxu0 %v5254
      %5329 = vmatmul.mubr.bf16.gmra.mxu0 %v5253
      %v5330 = vpop.f32.mrf.mxu0
      %v5331 = vadd.f32 0.0, %v5330
      %v5332 = vpop.f32.mrf.mxu0
      %v5333 = vadd.f32 0.0, %v5332
      %v5334 = vpop.f32.mrf.mxu0
      %v5335 = vpop.f32.mrf.mxu0
      %5336 = vdwg.mxu0
      %5337 = vmatprep.subr.bf16.mxu0 %v2037
      %5338 = vmatpush1.bf16.msra.mxu0 %v2036
      %5339 = vmatprep.subr.bf16.mxu0 %v2029
      %5340 = vmatpush1.bf16.msra.mxu0 %v2028
      %5341 = vmatprep.subr.bf16.mxu0 %v2021
      %5342 = vmatpush1.bf16.msra.mxu0 %v2020
      %5343 = vmatprep.subr.bf16.mxu0 %v2013
      %5344 = vmatpush1.bf16.msra.mxu0 %v2012
      %5345 = vmatprep.subr.bf16.mxu0 %v2005
      %5346 = vmatpush1.bf16.msra.mxu0 %v2004
      %5347 = vmatprep.subr.bf16.mxu0 %v1997
      %5348 = vmatpush1.bf16.msra.mxu0 %v1996
      %5349 = vmatprep.subr.bf16.mxu0 %v1989
      %5350 = vmatpush1.bf16.msra.mxu0 %v1988
      %5351 = vmatprep.subr.bf16.mxu0 %v1981
      %5352 = vmatpush1.bf16.msra.mxu0 %v1980
      %5353 = vmatprep.subr.bf16.mxu0 %v2101
      %5354 = vmatpush2.bf16.msra.mxu0 %v2100
      %5355 = vmatprep.subr.bf16.mxu0 %v2093
      %5356 = vmatpush2.bf16.msra.mxu0 %v2092
      %5357 = vmatprep.subr.bf16.mxu0 %v2085
      %5358 = vmatpush2.bf16.msra.mxu0 %v2084
      %5359 = vmatprep.subr.bf16.mxu0 %v2077
      %5360 = vmatpush2.bf16.msra.mxu0 %v2076
      %5361 = vmatprep.subr.bf16.mxu0 %v2069
      %5362 = vmatpush2.bf16.msra.mxu0 %v2068
      %5363 = vmatprep.subr.bf16.mxu0 %v2061
      %5364 = vmatpush2.bf16.msra.mxu0 %v2060
      %5365 = vmatprep.subr.bf16.mxu0 %v2053
      %5366 = vmatpush2.bf16.msra.mxu0 %v2052
      %5367 = vmatprep.subr.bf16.mxu0 %v2045
      %5368 = vmatpush2.bf16.msra.mxu0 %v2044
      %5369 = vmatprep.mubr.bf16.mxu0 %v5254
      %5370 = vmatmul.mubr.bf16.gmra.mxu0 %v5253
      %v5371 = vpop.f32.mrf.mxu0
      %v5372 = vadd.f32 0.0, %v5371
      %v5373 = vpop.f32.mrf.mxu0
      %v5374 = vadd.f32 0.0, %v5373
      %v5375 = vpop.f32.mrf.mxu0
      %v5376 = vpop.f32.mrf.mxu0
      %5377 = vdwg.mxu0
      %5378 = vmatprep.subr.bf16.mxu0 %v2039
      %5379 = vmatpush1.bf16.msra.mxu0 %v2038
      %5380 = vmatprep.subr.bf16.mxu0 %v2031
      %5381 = vmatpush1.bf16.msra.mxu0 %v2030
      %5382 = vmatprep.subr.bf16.mxu0 %v2023
      %5383 = vmatpush1.bf16.msra.mxu0 %v2022
      %5384 = vmatprep.subr.bf16.mxu0 %v2015
      %5385 = vmatpush1.bf16.msra.mxu0 %v2014
      %5386 = vmatprep.subr.bf16.mxu0 %v2007
      %5387 = vmatpush1.bf16.msra.mxu0 %v2006
      %5388 = vmatprep.subr.bf16.mxu0 %v1999
      %5389 = vmatpush1.bf16.msra.mxu0 %v1998
      %5390 = vmatprep.subr.bf16.mxu0 %v1991
      %5391 = vmatpush1.bf16.msra.mxu0 %v1990
      %5392 = vmatprep.subr.bf16.mxu0 %v1983
      %5393 = vmatpush1.bf16.msra.mxu0 %v1982
      %5394 = vmatprep.subr.bf16.mxu0 %v2103
      %5395 = vmatpush2.bf16.msra.mxu0 %v2102
      %5396 = vmatprep.subr.bf16.mxu0 %v2095
      %5397 = vmatpush2.bf16.msra.mxu0 %v2094
      %5398 = vmatprep.subr.bf16.mxu0 %v2087
      %5399 = vmatpush2.bf16.msra.mxu0 %v2086
      %5400 = vmatprep.subr.bf16.mxu0 %v2079
      %5401 = vmatpush2.bf16.msra.mxu0 %v2078
      %5402 = vmatprep.subr.bf16.mxu0 %v2071
      %5403 = vmatpush2.bf16.msra.mxu0 %v2070
      %5404 = vmatprep.subr.bf16.mxu0 %v2063
      %5405 = vmatpush2.bf16.msra.mxu0 %v2062
      %5406 = vmatprep.subr.bf16.mxu0 %v2055
      %5407 = vmatpush2.bf16.msra.mxu0 %v2054
      %5408 = vmatprep.subr.bf16.mxu0 %v2047
      %5409 = vmatpush2.bf16.msra.mxu0 %v2046
      %5410 = vmatprep.mubr.bf16.mxu0 %v5254
      %5411 = vmatmul.mubr.bf16.gmra.mxu0 %v5253
      %v5412 = vpop.f32.mrf.mxu0
      %v5413 = vadd.f32 0.0, %v5412
      %v5414 = vpop.f32.mrf.mxu0
      %v5415 = vadd.f32 0.0, %v5414
      %v5416 = vpop.f32.mrf.mxu0
      %v5417 = vpop.f32.mrf.mxu0
      %5418 = vdwg.mxu0
      %5419 = vmatprep.subr.bf16.mxu0 %v2837
      %5420 = vmatpush1.bf16.msra.mxu0 %v2836
      %5421 = vmatprep.subr.bf16.mxu0 %v2829
      %5422 = vmatpush1.bf16.msra.mxu0 %v2828
      %5423 = vmatprep.subr.bf16.mxu0 %v2821
      %5424 = vmatpush1.bf16.msra.mxu0 %v2820
      %5425 = vmatprep.subr.bf16.mxu0 %v2813
      %5426 = vmatpush1.bf16.msra.mxu0 %v2812
      %5427 = vmatprep.subr.bf16.mxu0 %v2805
      %5428 = vmatpush1.bf16.msra.mxu0 %v2804
      %5429 = vmatprep.subr.bf16.mxu0 %v2797
      %5430 = vmatpush1.bf16.msra.mxu0 %v2796
      %5431 = vmatprep.subr.bf16.mxu0 %v2789
      %5432 = vmatpush1.bf16.msra.mxu0 %v2788
      %5433 = vmatprep.subr.bf16.mxu0 %v2781
      %5434 = vmatpush1.bf16.msra.mxu0 %v2780
      %5435 = vmatprep.subr.bf16.mxu0 %v2901
      %5436 = vmatpush2.bf16.msra.mxu0 %v2900
      %5437 = vmatprep.subr.bf16.mxu0 %v2893
      %5438 = vmatpush2.bf16.msra.mxu0 %v2892
      %5439 = vmatprep.subr.bf16.mxu0 %v2885
      %5440 = vmatpush2.bf16.msra.mxu0 %v2884
      %5441 = vmatprep.subr.bf16.mxu0 %v2877
      %5442 = vmatpush2.bf16.msra.mxu0 %v2876
      %5443 = vmatprep.subr.bf16.mxu0 %v2869
      %5444 = vmatpush2.bf16.msra.mxu0 %v2868
      %5445 = vmatprep.subr.bf16.mxu0 %v2861
      %5446 = vmatpush2.bf16.msra.mxu0 %v2860
      %5447 = vmatprep.subr.bf16.mxu0 %v2853
      %5448 = vmatpush2.bf16.msra.mxu0 %v2852
      %5449 = vmatprep.subr.bf16.mxu0 %v2845
      %5450 = vmatpush2.bf16.msra.mxu0 %v2844
      %5451 = vmatprep.mubr.bf16.mxu0 %v5252
      %5452 = vmatmul.mubr.bf16.gmra.mxu0 %v5251
      %v5453 = vpop.f32.mrf.mxu0
      %v5454 = vadd.f32 %v5290, %v5453
      %v5455 = vpop.f32.mrf.mxu0
      %v5456 = vadd.f32 %v5292, %v5455
      %v5457 = vpop.f32.mrf.mxu0
      %v5458 = vpop.f32.mrf.mxu0
      %5459 = vdwg.mxu0
      %5460 = vmatprep.subr.bf16.mxu0 %v2839
      %5461 = vmatpush1.bf16.msra.mxu0 %v2838
      %5462 = vmatprep.subr.bf16.mxu0 %v2831
      %5463 = vmatpush1.bf16.msra.mxu0 %v2830
      %5464 = vmatprep.subr.bf16.mxu0 %v2823
      %5465 = vmatpush1.bf16.msra.mxu0 %v2822
      %5466 = vmatprep.subr.bf16.mxu0 %v2815
      %5467 = vmatpush1.bf16.msra.mxu0 %v2814
      %5468 = vmatprep.subr.bf16.mxu0 %v2807
      %5469 = vmatpush1.bf16.msra.mxu0 %v2806
      %5470 = vmatprep.subr.bf16.mxu0 %v2799
      %5471 = vmatpush1.bf16.msra.mxu0 %v2798
      %5472 = vmatprep.subr.bf16.mxu0 %v2791
      %5473 = vmatpush1.bf16.msra.mxu0 %v2790
      %5474 = vmatprep.subr.bf16.mxu0 %v2783
      %5475 = vmatpush1.bf16.msra.mxu0 %v2782
      %5476 = vmatprep.subr.bf16.mxu0 %v2903
      %5477 = vmatpush2.bf16.msra.mxu0 %v2902
      %5478 = vmatprep.subr.bf16.mxu0 %v2895
      %5479 = vmatpush2.bf16.msra.mxu0 %v2894
      %5480 = vmatprep.subr.bf16.mxu0 %v2887
      %5481 = vmatpush2.bf16.msra.mxu0 %v2886
      %5482 = vmatprep.subr.bf16.mxu0 %v2879
      %5483 = vmatpush2.bf16.msra.mxu0 %v2878
      %5484 = vmatprep.subr.bf16.mxu0 %v2871
      %5485 = vmatpush2.bf16.msra.mxu0 %v2870
      %5486 = vmatprep.subr.bf16.mxu0 %v2863
      %5487 = vmatpush2.bf16.msra.mxu0 %v2862
      %5488 = vmatprep.subr.bf16.mxu0 %v2855
      %5489 = vmatpush2.bf16.msra.mxu0 %v2854
      %5490 = vmatprep.subr.bf16.mxu0 %v2847
      %5491 = vmatpush2.bf16.msra.mxu0 %v2846
      %5492 = vmatprep.mubr.bf16.mxu0 %v5252
      %5493 = vmatmul.mubr.bf16.gmra.mxu0 %v5251
      %v5494 = vpop.f32.mrf.mxu0
      %v5495 = vadd.f32 %v5331, %v5494
      %v5496 = vpop.f32.mrf.mxu0
      %v5497 = vadd.f32 %v5333, %v5496
      %v5498 = vpop.f32.mrf.mxu0
      %v5499 = vpop.f32.mrf.mxu0
      %5500 = vdwg.mxu0
      %5501 = vmatprep.subr.bf16.mxu0 %v2841
      %5502 = vmatpush1.bf16.msra.mxu0 %v2840
      %5503 = vmatprep.subr.bf16.mxu0 %v2833
      %5504 = vmatpush1.bf16.msra.mxu0 %v2832
      %5505 = vmatprep.subr.bf16.mxu0 %v2825
      %5506 = vmatpush1.bf16.msra.mxu0 %v2824
      %5507 = vmatprep.subr.bf16.mxu0 %v2817
      %5508 = vmatpush1.bf16.msra.mxu0 %v2816
      %5509 = vmatprep.subr.bf16.mxu0 %v2809
      %5510 = vmatpush1.bf16.msra.mxu0 %v2808
      %5511 = vmatprep.subr.bf16.mxu0 %v2801
      %5512 = vmatpush1.bf16.msra.mxu0 %v2800
      %5513 = vmatprep.subr.bf16.mxu0 %v2793
      %5514 = vmatpush1.bf16.msra.mxu0 %v2792
      %5515 = vmatprep.subr.bf16.mxu0 %v2785
      %5516 = vmatpush1.bf16.msra.mxu0 %v2784
      %5517 = vmatprep.subr.bf16.mxu0 %v2905
      %5518 = vmatpush2.bf16.msra.mxu0 %v2904
      %5519 = vmatprep.subr.bf16.mxu0 %v2897
      %5520 = vmatpush2.bf16.msra.mxu0 %v2896
      %5521 = vmatprep.subr.bf16.mxu0 %v2889
      %5522 = vmatpush2.bf16.msra.mxu0 %v2888
      %5523 = vmatprep.subr.bf16.mxu0 %v2881
      %5524 = vmatpush2.bf16.msra.mxu0 %v2880
      %5525 = vmatprep.subr.bf16.mxu0 %v2873
      %5526 = vmatpush2.bf16.msra.mxu0 %v2872
      %5527 = vmatprep.subr.bf16.mxu0 %v2865
      %5528 = vmatpush2.bf16.msra.mxu0 %v2864
      %5529 = vmatprep.subr.bf16.mxu0 %v2857
      %5530 = vmatpush2.bf16.msra.mxu0 %v2856
      %5531 = vmatprep.subr.bf16.mxu0 %v2849
      %5532 = vmatpush2.bf16.msra.mxu0 %v2848
      %5533 = vmatprep.mubr.bf16.mxu0 %v5252
      %5534 = vmatmul.mubr.bf16.gmra.mxu0 %v5251
      %v5535 = vpop.f32.mrf.mxu0
      %v5536 = vadd.f32 %v5372, %v5535
      %v5537 = vpop.f32.mrf.mxu0
      %v5538 = vadd.f32 %v5374, %v5537
      %v5539 = vpop.f32.mrf.mxu0
      %v5540 = vpop.f32.mrf.mxu0
      %5541 = vdwg.mxu0
      %5542 = vmatprep.subr.bf16.mxu0 %v2843
      %5543 = vmatpush1.bf16.msra.mxu0 %v2842
      %5544 = vmatprep.subr.bf16.mxu0 %v2835
      %5545 = vmatpush1.bf16.msra.mxu0 %v2834
      %5546 = vmatprep.subr.bf16.mxu0 %v2827
      %5547 = vmatpush1.bf16.msra.mxu0 %v2826
      %5548 = vmatprep.subr.bf16.mxu0 %v2819
      %5549 = vmatpush1.bf16.msra.mxu0 %v2818
      %5550 = vmatprep.subr.bf16.mxu0 %v2811
      %5551 = vmatpush1.bf16.msra.mxu0 %v2810
      %5552 = vmatprep.subr.bf16.mxu0 %v2803
      %5553 = vmatpush1.bf16.msra.mxu0 %v2802
      %5554 = vmatprep.subr.bf16.mxu0 %v2795
      %5555 = vmatpush1.bf16.msra.mxu0 %v2794
      %5556 = vmatprep.subr.bf16.mxu0 %v2787
      %5557 = vmatpush1.bf16.msra.mxu0 %v2786
      %5558 = vmatprep.subr.bf16.mxu0 %v2907
      %5559 = vmatpush2.bf16.msra.mxu0 %v2906
      %5560 = vmatprep.subr.bf16.mxu0 %v2899
      %5561 = vmatpush2.bf16.msra.mxu0 %v2898
      %5562 = vmatprep.subr.bf16.mxu0 %v2891
      %5563 = vmatpush2.bf16.msra.mxu0 %v2890
      %5564 = vmatprep.subr.bf16.mxu0 %v2883
      %5565 = vmatpush2.bf16.msra.mxu0 %v2882
      %5566 = vmatprep.subr.bf16.mxu0 %v2875
      %5567 = vmatpush2.bf16.msra.mxu0 %v2874
      %5568 = vmatprep.subr.bf16.mxu0 %v2867
      %5569 = vmatpush2.bf16.msra.mxu0 %v2866
      %5570 = vmatprep.subr.bf16.mxu0 %v2859
      %5571 = vmatpush2.bf16.msra.mxu0 %v2858
      %5572 = vmatprep.subr.bf16.mxu0 %v2851
      %5573 = vmatpush2.bf16.msra.mxu0 %v2850
      %5574 = vmatprep.mubr.bf16.mxu0 %v5252
      %5575 = vmatmul.mubr.bf16.gmra.mxu0 %v5251
      %v5576 = vpop.f32.mrf.mxu0
      %v5577 = vadd.f32 %v5413, %v5576
      %v5578 = vpop.f32.mrf.mxu0
      %v5579 = vadd.f32 %v5415, %v5578
      %v5580 = vpop.f32.mrf.mxu0
      %v5581 = vpop.f32.mrf.mxu0
      %5582 = vdwg.mxu0
      %v5583 = vadd.f32 %v5454, %v693
      %v5584 = vadd.f32 %v5456, %v697
      %v5585 = vadd.f32 %v5495, %v701
      %v5586 = vadd.f32 %v5497, %v705
      %v5587 = vadd.f32 %v5536, %v709
      %v5588 = vadd.f32 %v5538, %v713
      %v5589 = vadd.f32 %v5577, %v717
      %v5590 = vadd.f32 %v5579, %v721
      %v5591 = vmul.f32 %v5583, 0.5
      %v5592 = vmul.f32 %v5584, 0.5
      %v5593 = vtanh.pop %v5591
      %v5594 = vtanh.pop %v5592
      %v5595 = vmul.f32 %v5593, 0.5
      %v5596 = vmul.f32 %v5594, 0.5
      %v5597 = vadd.f32 %v5595, 0.5
      %v5598 = vadd.f32 %v5596, 0.5
      %v5599 = vmul.f32 %v5585, 0.5
      %v5600 = vmul.f32 %v5586, 0.5
      %v5601 = vtanh.pop %v5599
      %v5602 = vtanh.pop %v5600
      %v5603 = vmul.f32 %v5601, 0.5
      %v5604 = vmul.f32 %v5602, 0.5
      %v5605 = vadd.f32 %v5603, 0.5
      %v5606 = vadd.f32 %v5604, 0.5
      %v5607 = vtanh.pop %v5587
      %v5608 = vtanh.pop %v5588
      %v5609 = vmul.f32 %v5589, 0.5
      %v5610 = vmul.f32 %v5590, 0.5
      %v5611 = vtanh.pop %v5609
      %v5612 = vtanh.pop %v5610
      %v5613 = vmul.f32 %v5611, 0.5
      %v5614 = vmul.f32 %v5612, 0.5
      %v5615 = vadd.f32 %v5613, 0.5
      %v5616 = vadd.f32 %v5614, 0.5
      %v5617 = vmul.f32 %v5605, %v5025
      %v5618 = vmul.f32 %v5606, %v5026
      %v5619 = vmul.f32 %v5597, %v5607
      %v5620 = vmul.f32 %v5598, %v5608
      %v5621 = vadd.f32 %v5617, %v5619
      %v5622 = vadd.f32 %v5618, %v5620
      %v5623 = vtanh.pop %v5621
      %v5624 = vtanh.pop %v5622
      %v5625 = vmul.f32 %v5615, %v5623
      %v5626 = vmul.f32 %v5616, %v5624
      %s5627 = scalar_lea.vmem %s280, 64
      %5628 = vst [vmem:[%s5627] sm:$0xff] %v5625
      %5629 = vst [vmem:[%s5627 + $0x8] sm:$0xff] %v5626
      %s5630 = scalar_lea.vmem %s273, 320
      %v5631 = vld [vmem:[%s5630] sm:$0xff]
      %v5632 = vld [vmem:[%s5630 + $0x8] sm:$0xff]
      %v5633 = vld [vmem:[%s5630 + $0x10] sm:$0xff]
      %v5634 = vld [vmem:[%s5630 + $0x18] sm:$0xff]
      %v5635 = vld [vmem:[%s5630 + $0x20] sm:$0xff]
      %v5636 = vld [vmem:[%s5630 + $0x28] sm:$0xff]
      %v5637 = vld [vmem:[%s5630 + $0x30] sm:$0xff]
      %v5638 = vld [vmem:[%s5630 + $0x38] sm:$0xff]
      %5639 = vmatprep.subr.bf16.mxu0 %v1181
      %5640 = vmatpush1.bf16.msra.mxu0 %v1180
      %5641 = vmatprep.subr.bf16.mxu0 %v1173
      %5642 = vmatpush1.bf16.msra.mxu0 %v1172
      %5643 = vmatprep.subr.bf16.mxu0 %v1165
      %5644 = vmatpush1.bf16.msra.mxu0 %v1164
      %5645 = vmatprep.subr.bf16.mxu0 %v1157
      %5646 = vmatpush1.bf16.msra.mxu0 %v1156
      %5647 = vmatprep.subr.bf16.mxu0 %v1149
      %5648 = vmatpush1.bf16.msra.mxu0 %v1148
      %5649 = vmatprep.subr.bf16.mxu0 %v1141
      %5650 = vmatpush1.bf16.msra.mxu0 %v1140
      %5651 = vmatprep.subr.bf16.mxu0 %v1133
      %5652 = vmatpush1.bf16.msra.mxu0 %v1132
      %5653 = vmatprep.subr.bf16.mxu0 %v1125
      %5654 = vmatpush1.bf16.msra.mxu0 %v1124
      %5655 = vmatprep.subr.bf16.mxu0 %v1245
      %5656 = vmatpush2.bf16.msra.mxu0 %v1244
      %5657 = vmatprep.subr.bf16.mxu0 %v1237
      %5658 = vmatpush2.bf16.msra.mxu0 %v1236
      %5659 = vmatprep.subr.bf16.mxu0 %v1229
      %5660 = vmatpush2.bf16.msra.mxu0 %v1228
      %5661 = vmatprep.subr.bf16.mxu0 %v1221
      %5662 = vmatpush2.bf16.msra.mxu0 %v1220
      %5663 = vmatprep.subr.bf16.mxu0 %v1213
      %5664 = vmatpush2.bf16.msra.mxu0 %v1212
      %5665 = vmatprep.subr.bf16.mxu0 %v1205
      %5666 = vmatpush2.bf16.msra.mxu0 %v1204
      %5667 = vmatprep.subr.bf16.mxu0 %v1197
      %5668 = vmatpush2.bf16.msra.mxu0 %v1196
      %5669 = vmatprep.subr.bf16.mxu0 %v1189
      %5670 = vmatpush2.bf16.msra.mxu0 %v1188
      %5671 = vmatprep.mubr.bf16.mxu0 %v5254
      %5672 = vmatmul.mubr.bf16.gmra.mxu0 %v5253
      %v5673 = vpop.f32.mrf.mxu0
      %v5674 = vadd.f32 0.0, %v5673
      %v5675 = vpop.f32.mrf.mxu0
      %v5676 = vadd.f32 0.0, %v5675
      %v5677 = vpop.f32.mrf.mxu0
      %v5678 = vpop.f32.mrf.mxu0
      %5679 = vdwg.mxu0
      %5680 = vmatprep.subr.bf16.mxu0 %v1183
      %5681 = vmatpush1.bf16.msra.mxu0 %v1182
      %5682 = vmatprep.subr.bf16.mxu0 %v1175
      %5683 = vmatpush1.bf16.msra.mxu0 %v1174
      %5684 = vmatprep.subr.bf16.mxu0 %v1167
      %5685 = vmatpush1.bf16.msra.mxu0 %v1166
      %5686 = vmatprep.subr.bf16.mxu0 %v1159
      %5687 = vmatpush1.bf16.msra.mxu0 %v1158
      %5688 = vmatprep.subr.bf16.mxu0 %v1151
      %5689 = vmatpush1.bf16.msra.mxu0 %v1150
      %5690 = vmatprep.subr.bf16.mxu0 %v1143
      %5691 = vmatpush1.bf16.msra.mxu0 %v1142
      %5692 = vmatprep.subr.bf16.mxu0 %v1135
      %5693 = vmatpush1.bf16.msra.mxu0 %v1134
      %5694 = vmatprep.subr.bf16.mxu0 %v1127
      %5695 = vmatpush1.bf16.msra.mxu0 %v1126
      %5696 = vmatprep.subr.bf16.mxu0 %v1247
      %5697 = vmatpush2.bf16.msra.mxu0 %v1246
      %5698 = vmatprep.subr.bf16.mxu0 %v1239
      %5699 = vmatpush2.bf16.msra.mxu0 %v1238
      %5700 = vmatprep.subr.bf16.mxu0 %v1231
      %5701 = vmatpush2.bf16.msra.mxu0 %v1230
      %5702 = vmatprep.subr.bf16.mxu0 %v1223
      %5703 = vmatpush2.bf16.msra.mxu0 %v1222
      %5704 = vmatprep.subr.bf16.mxu0 %v1215
      %5705 = vmatpush2.bf16.msra.mxu0 %v1214
      %5706 = vmatprep.subr.bf16.mxu0 %v1207
      %5707 = vmatpush2.bf16.msra.mxu0 %v1206
      %5708 = vmatprep.subr.bf16.mxu0 %v1199
      %5709 = vmatpush2.bf16.msra.mxu0 %v1198
      %5710 = vmatprep.subr.bf16.mxu0 %v1191
      %5711 = vmatpush2.bf16.msra.mxu0 %v1190
      %5712 = vmatprep.mubr.bf16.mxu0 %v5254
      %5713 = vmatmul.mubr.bf16.gmra.mxu0 %v5253
      %v5714 = vpop.f32.mrf.mxu0
      %v5715 = vadd.f32 0.0, %v5714
      %v5716 = vpop.f32.mrf.mxu0
      %v5717 = vadd.f32 0.0, %v5716
      %v5718 = vpop.f32.mrf.mxu0
      %v5719 = vpop.f32.mrf.mxu0
      %5720 = vdwg.mxu0
      %5721 = vmatprep.subr.bf16.mxu0 %v1185
      %5722 = vmatpush1.bf16.msra.mxu0 %v1184
      %5723 = vmatprep.subr.bf16.mxu0 %v1177
      %5724 = vmatpush1.bf16.msra.mxu0 %v1176
      %5725 = vmatprep.subr.bf16.mxu0 %v1169
      %5726 = vmatpush1.bf16.msra.mxu0 %v1168
      %5727 = vmatprep.subr.bf16.mxu0 %v1161
      %5728 = vmatpush1.bf16.msra.mxu0 %v1160
      %5729 = vmatprep.subr.bf16.mxu0 %v1153
      %5730 = vmatpush1.bf16.msra.mxu0 %v1152
      %5731 = vmatprep.subr.bf16.mxu0 %v1145
      %5732 = vmatpush1.bf16.msra.mxu0 %v1144
      %5733 = vmatprep.subr.bf16.mxu0 %v1137
      %5734 = vmatpush1.bf16.msra.mxu0 %v1136
      %5735 = vmatprep.subr.bf16.mxu0 %v1129
      %5736 = vmatpush1.bf16.msra.mxu0 %v1128
      %5737 = vmatprep.subr.bf16.mxu0 %v1249
      %5738 = vmatpush2.bf16.msra.mxu0 %v1248
      %5739 = vmatprep.subr.bf16.mxu0 %v1241
      %5740 = vmatpush2.bf16.msra.mxu0 %v1240
      %5741 = vmatprep.subr.bf16.mxu0 %v1233
      %5742 = vmatpush2.bf16.msra.mxu0 %v1232
      %5743 = vmatprep.subr.bf16.mxu0 %v1225
      %5744 = vmatpush2.bf16.msra.mxu0 %v1224
      %5745 = vmatprep.subr.bf16.mxu0 %v1217
      %5746 = vmatpush2.bf16.msra.mxu0 %v1216
      %5747 = vmatprep.subr.bf16.mxu0 %v1209
      %5748 = vmatpush2.bf16.msra.mxu0 %v1208
      %5749 = vmatprep.subr.bf16.mxu0 %v1201
      %5750 = vmatpush2.bf16.msra.mxu0 %v1200
      %5751 = vmatprep.subr.bf16.mxu0 %v1193
      %5752 = vmatpush2.bf16.msra.mxu0 %v1192
      %5753 = vmatprep.mubr.bf16.mxu0 %v5254
      %5754 = vmatmul.mubr.bf16.gmra.mxu0 %v5253
      %v5755 = vpop.f32.mrf.mxu0
      %v5756 = vadd.f32 0.0, %v5755
      %v5757 = vpop.f32.mrf.mxu0
      %v5758 = vadd.f32 0.0, %v5757
      %v5759 = vpop.f32.mrf.mxu0
      %v5760 = vpop.f32.mrf.mxu0
      %5761 = vdwg.mxu0
      %5762 = vmatprep.subr.bf16.mxu0 %v1187
      %5763 = vmatpush1.bf16.msra.mxu0 %v1186
      %5764 = vmatprep.subr.bf16.mxu0 %v1179
      %5765 = vmatpush1.bf16.msra.mxu0 %v1178
      %5766 = vmatprep.subr.bf16.mxu0 %v1171
      %5767 = vmatpush1.bf16.msra.mxu0 %v1170
      %5768 = vmatprep.subr.bf16.mxu0 %v1163
      %5769 = vmatpush1.bf16.msra.mxu0 %v1162
      %5770 = vmatprep.subr.bf16.mxu0 %v1155
      %5771 = vmatpush1.bf16.msra.mxu0 %v1154
      %5772 = vmatprep.subr.bf16.mxu0 %v1147
      %5773 = vmatpush1.bf16.msra.mxu0 %v1146
      %5774 = vmatprep.subr.bf16.mxu0 %v1139
      %5775 = vmatpush1.bf16.msra.mxu0 %v1138
      %5776 = vmatprep.subr.bf16.mxu0 %v1131
      %5777 = vmatpush1.bf16.msra.mxu0 %v1130
      %5778 = vmatprep.subr.bf16.mxu0 %v1251
      %5779 = vmatpush2.bf16.msra.mxu0 %v1250
      %5780 = vmatprep.subr.bf16.mxu0 %v1243
      %5781 = vmatpush2.bf16.msra.mxu0 %v1242
      %5782 = vmatprep.subr.bf16.mxu0 %v1235
      %5783 = vmatpush2.bf16.msra.mxu0 %v1234
      %5784 = vmatprep.subr.bf16.mxu0 %v1227
      %5785 = vmatpush2.bf16.msra.mxu0 %v1226
      %5786 = vmatprep.subr.bf16.mxu0 %v1219
      %5787 = vmatpush2.bf16.msra.mxu0 %v1218
      %5788 = vmatprep.subr.bf16.mxu0 %v1211
      %5789 = vmatpush2.bf16.msra.mxu0 %v1210
      %5790 = vmatprep.subr.bf16.mxu0 %v1203
      %5791 = vmatpush2.bf16.msra.mxu0 %v1202
      %5792 = vmatprep.subr.bf16.mxu0 %v1195
      %5793 = vmatpush2.bf16.msra.mxu0 %v1194
      %5794 = vmatprep.mubr.bf16.mxu0 %v5254
      %5795 = vmatmul.mubr.bf16.gmra.mxu0 %v5253
      %v5796 = vpop.f32.mrf.mxu0
      %v5797 = vadd.f32 0.0, %v5796
      %v5798 = vpop.f32.mrf.mxu0
      %v5799 = vadd.f32 0.0, %v5798
      %v5800 = vpop.f32.mrf.mxu0
      %v5801 = vpop.f32.mrf.mxu0
      %5802 = vdwg.mxu0
      %v5803 = vadd.f32 %v5631, %v5674
      %v5804 = vadd.f32 %v5632, %v5676
      %v5805 = vadd.f32 %v5633, %v5715
      %v5806 = vadd.f32 %v5634, %v5717
      %v5807 = vadd.f32 %v5635, %v5756
      %v5808 = vadd.f32 %v5636, %v5758
      %v5809 = vadd.f32 %v5637, %v5797
      %v5810 = vadd.f32 %v5638, %v5799
      %v5811 = vmul.f32 %v5803, 0.5
      %v5812 = vmul.f32 %v5804, 0.5
      %v5813 = vtanh.pop %v5811
      %v5814 = vtanh.pop %v5812
      %v5815 = vmul.f32 %v5813, 0.5
      %v5816 = vmul.f32 %v5814, 0.5
      %v5817 = vadd.f32 %v5815, 0.5
      %v5818 = vadd.f32 %v5816, 0.5
      %v5819 = vmul.f32 %v5805, 0.5
      %v5820 = vmul.f32 %v5806, 0.5
      %v5821 = vtanh.pop %v5819
      %v5822 = vtanh.pop %v5820
      %v5823 = vmul.f32 %v5821, 0.5
      %v5824 = vmul.f32 %v5822, 0.5
      %v5825 = vadd.f32 %v5823, 0.5
      %v5826 = vadd.f32 %v5824, 0.5
      %v5827 = vtanh.pop %v5807
      %v5828 = vtanh.pop %v5808
      %v5829 = vmul.f32 %v5809, 0.5
      %v5830 = vmul.f32 %v5810, 0.5
      %v5831 = vtanh.pop %v5829
      %v5832 = vtanh.pop %v5830
      %v5833 = vmul.f32 %v5831, 0.5
      %v5834 = vmul.f32 %v5832, 0.5
      %v5835 = vadd.f32 %v5833, 0.5
      %v5836 = vadd.f32 %v5834, 0.5
      %v5837 = vmul.f32 %v5825, %v5245
      %v5838 = vmul.f32 %v5826, %v5246
      %v5839 = vmul.f32 %v5817, %v5827
      %v5840 = vmul.f32 %v5818, %v5828
      %v5841 = vadd.f32 %v5837, %v5839
      %v5842 = vadd.f32 %v5838, %v5840
      %v5843 = vtanh.pop %v5841
      %v5844 = vtanh.pop %v5842
      %v5845 = vmul.f32 %v5835, %v5843
      %v5846 = vmul.f32 %v5836, %v5844
      %v5847 = vpack.c.bf16 %v5625, %v5625
      %v5848 = vpack.c.bf16 %v5626, %v5626
      %v5849 = vpack.c.bf16 %v5845, %v5845
      %v5850 = vpack.c.bf16 %v5846, %v5846
      %5851 = vmatprep.subr.bf16.mxu0 %v2033
      %5852 = vmatpush1.bf16.msra.mxu0 %v2032
      %5853 = vmatprep.subr.bf16.mxu0 %v2025
      %5854 = vmatpush1.bf16.msra.mxu0 %v2024
      %5855 = vmatprep.subr.bf16.mxu0 %v2017
      %5856 = vmatpush1.bf16.msra.mxu0 %v2016
      %5857 = vmatprep.subr.bf16.mxu0 %v2009
      %5858 = vmatpush1.bf16.msra.mxu0 %v2008
      %5859 = vmatprep.subr.bf16.mxu0 %v2001
      %5860 = vmatpush1.bf16.msra.mxu0 %v2000
      %5861 = vmatprep.subr.bf16.mxu0 %v1993
      %5862 = vmatpush1.bf16.msra.mxu0 %v1992
      %5863 = vmatprep.subr.bf16.mxu0 %v1985
      %5864 = vmatpush1.bf16.msra.mxu0 %v1984
      %5865 = vmatprep.subr.bf16.mxu0 %v1977
      %5866 = vmatpush1.bf16.msra.mxu0 %v1976
      %5867 = vmatprep.subr.bf16.mxu0 %v2097
      %5868 = vmatpush2.bf16.msra.mxu0 %v2096
      %5869 = vmatprep.subr.bf16.mxu0 %v2089
      %5870 = vmatpush2.bf16.msra.mxu0 %v2088
      %5871 = vmatprep.subr.bf16.mxu0 %v2081
      %5872 = vmatpush2.bf16.msra.mxu0 %v2080
      %5873 = vmatprep.subr.bf16.mxu0 %v2073
      %5874 = vmatpush2.bf16.msra.mxu0 %v2072
      %5875 = vmatprep.subr.bf16.mxu0 %v2065
      %5876 = vmatpush2.bf16.msra.mxu0 %v2064
      %5877 = vmatprep.subr.bf16.mxu0 %v2057
      %5878 = vmatpush2.bf16.msra.mxu0 %v2056
      %5879 = vmatprep.subr.bf16.mxu0 %v2049
      %5880 = vmatpush2.bf16.msra.mxu0 %v2048
      %5881 = vmatprep.subr.bf16.mxu0 %v2041
      %5882 = vmatpush2.bf16.msra.mxu0 %v2040
      %5883 = vmatprep.mubr.bf16.mxu0 %v5850
      %5884 = vmatmul.mubr.bf16.gmra.mxu0 %v5849
      %v5885 = vpop.f32.mrf.mxu0
      %v5886 = vadd.f32 0.0, %v5885
      %v5887 = vpop.f32.mrf.mxu0
      %v5888 = vadd.f32 0.0, %v5887
      %v5889 = vpop.f32.mrf.mxu0
      %v5890 = vpop.f32.mrf.mxu0
      %5891 = vdwg.mxu0
      %5892 = vmatprep.subr.bf16.mxu0 %v2035
      %5893 = vmatpush1.bf16.msra.mxu0 %v2034
      %5894 = vmatprep.subr.bf16.mxu0 %v2027
      %5895 = vmatpush1.bf16.msra.mxu0 %v2026
      %5896 = vmatprep.subr.bf16.mxu0 %v2019
      %5897 = vmatpush1.bf16.msra.mxu0 %v2018
      %5898 = vmatprep.subr.bf16.mxu0 %v2011
      %5899 = vmatpush1.bf16.msra.mxu0 %v2010
      %5900 = vmatprep.subr.bf16.mxu0 %v2003
      %5901 = vmatpush1.bf16.msra.mxu0 %v2002
      %5902 = vmatprep.subr.bf16.mxu0 %v1995
      %5903 = vmatpush1.bf16.msra.mxu0 %v1994
      %5904 = vmatprep.subr.bf16.mxu0 %v1987
      %5905 = vmatpush1.bf16.msra.mxu0 %v1986
      %5906 = vmatprep.subr.bf16.mxu0 %v1979
      %5907 = vmatpush1.bf16.msra.mxu0 %v1978
      %5908 = vmatprep.subr.bf16.mxu0 %v2099
      %5909 = vmatpush2.bf16.msra.mxu0 %v2098
      %5910 = vmatprep.subr.bf16.mxu0 %v2091
      %5911 = vmatpush2.bf16.msra.mxu0 %v2090
      %5912 = vmatprep.subr.bf16.mxu0 %v2083
      %5913 = vmatpush2.bf16.msra.mxu0 %v2082
      %5914 = vmatprep.subr.bf16.mxu0 %v2075
      %5915 = vmatpush2.bf16.msra.mxu0 %v2074
      %5916 = vmatprep.subr.bf16.mxu0 %v2067
      %5917 = vmatpush2.bf16.msra.mxu0 %v2066
      %5918 = vmatprep.subr.bf16.mxu0 %v2059
      %5919 = vmatpush2.bf16.msra.mxu0 %v2058
      %5920 = vmatprep.subr.bf16.mxu0 %v2051
      %5921 = vmatpush2.bf16.msra.mxu0 %v2050
      %5922 = vmatprep.subr.bf16.mxu0 %v2043
      %5923 = vmatpush2.bf16.msra.mxu0 %v2042
      %5924 = vmatprep.mubr.bf16.mxu0 %v5850
      %5925 = vmatmul.mubr.bf16.gmra.mxu0 %v5849
      %v5926 = vpop.f32.mrf.mxu0
      %v5927 = vadd.f32 0.0, %v5926
      %v5928 = vpop.f32.mrf.mxu0
      %v5929 = vadd.f32 0.0, %v5928
      %v5930 = vpop.f32.mrf.mxu0
      %v5931 = vpop.f32.mrf.mxu0
      %5932 = vdwg.mxu0
      %5933 = vmatprep.subr.bf16.mxu0 %v2037
      %5934 = vmatpush1.bf16.msra.mxu0 %v2036
      %5935 = vmatprep.subr.bf16.mxu0 %v2029
      %5936 = vmatpush1.bf16.msra.mxu0 %v2028
      %5937 = vmatprep.subr.bf16.mxu0 %v2021
      %5938 = vmatpush1.bf16.msra.mxu0 %v2020
      %5939 = vmatprep.subr.bf16.mxu0 %v2013
      %5940 = vmatpush1.bf16.msra.mxu0 %v2012
      %5941 = vmatprep.subr.bf16.mxu0 %v2005
      %5942 = vmatpush1.bf16.msra.mxu0 %v2004
      %5943 = vmatprep.subr.bf16.mxu0 %v1997
      %5944 = vmatpush1.bf16.msra.mxu0 %v1996
      %5945 = vmatprep.subr.bf16.mxu0 %v1989
      %5946 = vmatpush1.bf16.msra.mxu0 %v1988
      %5947 = vmatprep.subr.bf16.mxu0 %v1981
      %5948 = vmatpush1.bf16.msra.mxu0 %v1980
      %5949 = vmatprep.subr.bf16.mxu0 %v2101
      %5950 = vmatpush2.bf16.msra.mxu0 %v2100
      %5951 = vmatprep.subr.bf16.mxu0 %v2093
      %5952 = vmatpush2.bf16.msra.mxu0 %v2092
      %5953 = vmatprep.subr.bf16.mxu0 %v2085
      %5954 = vmatpush2.bf16.msra.mxu0 %v2084
      %5955 = vmatprep.subr.bf16.mxu0 %v2077
      %5956 = vmatpush2.bf16.msra.mxu0 %v2076
      %5957 = vmatprep.subr.bf16.mxu0 %v2069
      %5958 = vmatpush2.bf16.msra.mxu0 %v2068
      %5959 = vmatprep.subr.bf16.mxu0 %v2061
      %5960 = vmatpush2.bf16.msra.mxu0 %v2060
      %5961 = vmatprep.subr.bf16.mxu0 %v2053
      %5962 = vmatpush2.bf16.msra.mxu0 %v2052
      %5963 = vmatprep.subr.bf16.mxu0 %v2045
      %5964 = vmatpush2.bf16.msra.mxu0 %v2044
      %5965 = vmatprep.mubr.bf16.mxu0 %v5850
      %5966 = vmatmul.mubr.bf16.gmra.mxu0 %v5849
      %v5967 = vpop.f32.mrf.mxu0
      %v5968 = vadd.f32 0.0, %v5967
      %v5969 = vpop.f32.mrf.mxu0
      %v5970 = vadd.f32 0.0, %v5969
      %v5971 = vpop.f32.mrf.mxu0
      %v5972 = vpop.f32.mrf.mxu0
      %5973 = vdwg.mxu0
      %5974 = vmatprep.subr.bf16.mxu0 %v2039
      %5975 = vmatpush1.bf16.msra.mxu0 %v2038
      %5976 = vmatprep.subr.bf16.mxu0 %v2031
      %5977 = vmatpush1.bf16.msra.mxu0 %v2030
      %5978 = vmatprep.subr.bf16.mxu0 %v2023
      %5979 = vmatpush1.bf16.msra.mxu0 %v2022
      %5980 = vmatprep.subr.bf16.mxu0 %v2015
      %5981 = vmatpush1.bf16.msra.mxu0 %v2014
      %5982 = vmatprep.subr.bf16.mxu0 %v2007
      %5983 = vmatpush1.bf16.msra.mxu0 %v2006
      %5984 = vmatprep.subr.bf16.mxu0 %v1999
      %5985 = vmatpush1.bf16.msra.mxu0 %v1998
      %5986 = vmatprep.subr.bf16.mxu0 %v1991
      %5987 = vmatpush1.bf16.msra.mxu0 %v1990
      %5988 = vmatprep.subr.bf16.mxu0 %v1983
      %5989 = vmatpush1.bf16.msra.mxu0 %v1982
      %5990 = vmatprep.subr.bf16.mxu0 %v2103
      %5991 = vmatpush2.bf16.msra.mxu0 %v2102
      %5992 = vmatprep.subr.bf16.mxu0 %v2095
      %5993 = vmatpush2.bf16.msra.mxu0 %v2094
      %5994 = vmatprep.subr.bf16.mxu0 %v2087
      %5995 = vmatpush2.bf16.msra.mxu0 %v2086
      %5996 = vmatprep.subr.bf16.mxu0 %v2079
      %5997 = vmatpush2.bf16.msra.mxu0 %v2078
      %5998 = vmatprep.subr.bf16.mxu0 %v2071
      %5999 = vmatpush2.bf16.msra.mxu0 %v2070
      %6000 = vmatprep.subr.bf16.mxu0 %v2063
      %6001 = vmatpush2.bf16.msra.mxu0 %v2062
      %6002 = vmatprep.subr.bf16.mxu0 %v2055
      %6003 = vmatpush2.bf16.msra.mxu0 %v2054
      %6004 = vmatprep.subr.bf16.mxu0 %v2047
      %6005 = vmatpush2.bf16.msra.mxu0 %v2046
      %6006 = vmatprep.mubr.bf16.mxu0 %v5850
      %6007 = vmatmul.mubr.bf16.gmra.mxu0 %v5849
      %v6008 = vpop.f32.mrf.mxu0
      %v6009 = vadd.f32 0.0, %v6008
      %v6010 = vpop.f32.mrf.mxu0
      %v6011 = vadd.f32 0.0, %v6010
      %v6012 = vpop.f32.mrf.mxu0
      %v6013 = vpop.f32.mrf.mxu0
      %6014 = vdwg.mxu0
      %6015 = vmatprep.subr.bf16.mxu0 %v2837
      %6016 = vmatpush1.bf16.msra.mxu0 %v2836
      %6017 = vmatprep.subr.bf16.mxu0 %v2829
      %6018 = vmatpush1.bf16.msra.mxu0 %v2828
      %6019 = vmatprep.subr.bf16.mxu0 %v2821
      %6020 = vmatpush1.bf16.msra.mxu0 %v2820
      %6021 = vmatprep.subr.bf16.mxu0 %v2813
      %6022 = vmatpush1.bf16.msra.mxu0 %v2812
      %6023 = vmatprep.subr.bf16.mxu0 %v2805
      %6024 = vmatpush1.bf16.msra.mxu0 %v2804
      %6025 = vmatprep.subr.bf16.mxu0 %v2797
      %6026 = vmatpush1.bf16.msra.mxu0 %v2796
      %6027 = vmatprep.subr.bf16.mxu0 %v2789
      %6028 = vmatpush1.bf16.msra.mxu0 %v2788
      %6029 = vmatprep.subr.bf16.mxu0 %v2781
      %6030 = vmatpush1.bf16.msra.mxu0 %v2780
      %6031 = vmatprep.subr.bf16.mxu0 %v2901
      %6032 = vmatpush2.bf16.msra.mxu0 %v2900
      %6033 = vmatprep.subr.bf16.mxu0 %v2893
      %6034 = vmatpush2.bf16.msra.mxu0 %v2892
      %6035 = vmatprep.subr.bf16.mxu0 %v2885
      %6036 = vmatpush2.bf16.msra.mxu0 %v2884
      %6037 = vmatprep.subr.bf16.mxu0 %v2877
      %6038 = vmatpush2.bf16.msra.mxu0 %v2876
      %6039 = vmatprep.subr.bf16.mxu0 %v2869
      %6040 = vmatpush2.bf16.msra.mxu0 %v2868
      %6041 = vmatprep.subr.bf16.mxu0 %v2861
      %6042 = vmatpush2.bf16.msra.mxu0 %v2860
      %6043 = vmatprep.subr.bf16.mxu0 %v2853
      %6044 = vmatpush2.bf16.msra.mxu0 %v2852
      %6045 = vmatprep.subr.bf16.mxu0 %v2845
      %6046 = vmatpush2.bf16.msra.mxu0 %v2844
      %6047 = vmatprep.mubr.bf16.mxu0 %v5848
      %6048 = vmatmul.mubr.bf16.gmra.mxu0 %v5847
      %v6049 = vpop.f32.mrf.mxu0
      %v6050 = vadd.f32 %v5886, %v6049
      %v6051 = vpop.f32.mrf.mxu0
      %v6052 = vadd.f32 %v5888, %v6051
      %v6053 = vpop.f32.mrf.mxu0
      %v6054 = vpop.f32.mrf.mxu0
      %6055 = vdwg.mxu0
      %6056 = vmatprep.subr.bf16.mxu0 %v2839
      %6057 = vmatpush1.bf16.msra.mxu0 %v2838
      %6058 = vmatprep.subr.bf16.mxu0 %v2831
      %6059 = vmatpush1.bf16.msra.mxu0 %v2830
      %6060 = vmatprep.subr.bf16.mxu0 %v2823
      %6061 = vmatpush1.bf16.msra.mxu0 %v2822
      %6062 = vmatprep.subr.bf16.mxu0 %v2815
      %6063 = vmatpush1.bf16.msra.mxu0 %v2814
      %6064 = vmatprep.subr.bf16.mxu0 %v2807
      %6065 = vmatpush1.bf16.msra.mxu0 %v2806
      %6066 = vmatprep.subr.bf16.mxu0 %v2799
      %6067 = vmatpush1.bf16.msra.mxu0 %v2798
      %6068 = vmatprep.subr.bf16.mxu0 %v2791
      %6069 = vmatpush1.bf16.msra.mxu0 %v2790
      %6070 = vmatprep.subr.bf16.mxu0 %v2783
      %6071 = vmatpush1.bf16.msra.mxu0 %v2782
      %6072 = vmatprep.subr.bf16.mxu0 %v2903
      %6073 = vmatpush2.bf16.msra.mxu0 %v2902
      %6074 = vmatprep.subr.bf16.mxu0 %v2895
      %6075 = vmatpush2.bf16.msra.mxu0 %v2894
      %6076 = vmatprep.subr.bf16.mxu0 %v2887
      %6077 = vmatpush2.bf16.msra.mxu0 %v2886
      %6078 = vmatprep.subr.bf16.mxu0 %v2879
      %6079 = vmatpush2.bf16.msra.mxu0 %v2878
      %6080 = vmatprep.subr.bf16.mxu0 %v2871
      %6081 = vmatpush2.bf16.msra.mxu0 %v2870
      %6082 = vmatprep.subr.bf16.mxu0 %v2863
      %6083 = vmatpush2.bf16.msra.mxu0 %v2862
      %6084 = vmatprep.subr.bf16.mxu0 %v2855
      %6085 = vmatpush2.bf16.msra.mxu0 %v2854
      %6086 = vmatprep.subr.bf16.mxu0 %v2847
      %6087 = vmatpush2.bf16.msra.mxu0 %v2846
      %6088 = vmatprep.mubr.bf16.mxu0 %v5848
      %6089 = vmatmul.mubr.bf16.gmra.mxu0 %v5847
      %v6090 = vpop.f32.mrf.mxu0
      %v6091 = vadd.f32 %v5927, %v6090
      %v6092 = vpop.f32.mrf.mxu0
      %v6093 = vadd.f32 %v5929, %v6092
      %v6094 = vpop.f32.mrf.mxu0
      %v6095 = vpop.f32.mrf.mxu0
      %6096 = vdwg.mxu0
      %6097 = vmatprep.subr.bf16.mxu0 %v2841
      %6098 = vmatpush1.bf16.msra.mxu0 %v2840
      %6099 = vmatprep.subr.bf16.mxu0 %v2833
      %6100 = vmatpush1.bf16.msra.mxu0 %v2832
      %6101 = vmatprep.subr.bf16.mxu0 %v2825
      %6102 = vmatpush1.bf16.msra.mxu0 %v2824
      %6103 = vmatprep.subr.bf16.mxu0 %v2817
      %6104 = vmatpush1.bf16.msra.mxu0 %v2816
      %6105 = vmatprep.subr.bf16.mxu0 %v2809
      %6106 = vmatpush1.bf16.msra.mxu0 %v2808
      %6107 = vmatprep.subr.bf16.mxu0 %v2801
      %6108 = vmatpush1.bf16.msra.mxu0 %v2800
      %6109 = vmatprep.subr.bf16.mxu0 %v2793
      %6110 = vmatpush1.bf16.msra.mxu0 %v2792
      %6111 = vmatprep.subr.bf16.mxu0 %v2785
      %6112 = vmatpush1.bf16.msra.mxu0 %v2784
      %6113 = vmatprep.subr.bf16.mxu0 %v2905
      %6114 = vmatpush2.bf16.msra.mxu0 %v2904
      %6115 = vmatprep.subr.bf16.mxu0 %v2897
      %6116 = vmatpush2.bf16.msra.mxu0 %v2896
      %6117 = vmatprep.subr.bf16.mxu0 %v2889
      %6118 = vmatpush2.bf16.msra.mxu0 %v2888
      %6119 = vmatprep.subr.bf16.mxu0 %v2881
      %6120 = vmatpush2.bf16.msra.mxu0 %v2880
      %6121 = vmatprep.subr.bf16.mxu0 %v2873
      %6122 = vmatpush2.bf16.msra.mxu0 %v2872
      %6123 = vmatprep.subr.bf16.mxu0 %v2865
      %6124 = vmatpush2.bf16.msra.mxu0 %v2864
      %6125 = vmatprep.subr.bf16.mxu0 %v2857
      %6126 = vmatpush2.bf16.msra.mxu0 %v2856
      %6127 = vmatprep.subr.bf16.mxu0 %v2849
      %6128 = vmatpush2.bf16.msra.mxu0 %v2848
      %6129 = vmatprep.mubr.bf16.mxu0 %v5848
      %6130 = vmatmul.mubr.bf16.gmra.mxu0 %v5847
      %v6131 = vpop.f32.mrf.mxu0
      %v6132 = vadd.f32 %v5968, %v6131
      %v6133 = vpop.f32.mrf.mxu0
      %v6134 = vadd.f32 %v5970, %v6133
      %v6135 = vpop.f32.mrf.mxu0
      %v6136 = vpop.f32.mrf.mxu0
      %6137 = vdwg.mxu0
      %6138 = vmatprep.subr.bf16.mxu0 %v2843
      %6139 = vmatpush1.bf16.msra.mxu0 %v2842
      %6140 = vmatprep.subr.bf16.mxu0 %v2835
      %6141 = vmatpush1.bf16.msra.mxu0 %v2834
      %6142 = vmatprep.subr.bf16.mxu0 %v2827
      %6143 = vmatpush1.bf16.msra.mxu0 %v2826
      %6144 = vmatprep.subr.bf16.mxu0 %v2819
      %6145 = vmatpush1.bf16.msra.mxu0 %v2818
      %6146 = vmatprep.subr.bf16.mxu0 %v2811
      %6147 = vmatpush1.bf16.msra.mxu0 %v2810
      %6148 = vmatprep.subr.bf16.mxu0 %v2803
      %6149 = vmatpush1.bf16.msra.mxu0 %v2802
      %6150 = vmatprep.subr.bf16.mxu0 %v2795
      %6151 = vmatpush1.bf16.msra.mxu0 %v2794
      %6152 = vmatprep.subr.bf16.mxu0 %v2787
      %6153 = vmatpush1.bf16.msra.mxu0 %v2786
      %6154 = vmatprep.subr.bf16.mxu0 %v2907
      %6155 = vmatpush2.bf16.msra.mxu0 %v2906
      %6156 = vmatprep.subr.bf16.mxu0 %v2899
      %6157 = vmatpush2.bf16.msra.mxu0 %v2898
      %6158 = vmatprep.subr.bf16.mxu0 %v2891
      %6159 = vmatpush2.bf16.msra.mxu0 %v2890
      %6160 = vmatprep.subr.bf16.mxu0 %v2883
      %6161 = vmatpush2.bf16.msra.mxu0 %v2882
      %6162 = vmatprep.subr.bf16.mxu0 %v2875
      %6163 = vmatpush2.bf16.msra.mxu0 %v2874
      %6164 = vmatprep.subr.bf16.mxu0 %v2867
      %6165 = vmatpush2.bf16.msra.mxu0 %v2866
      %6166 = vmatprep.subr.bf16.mxu0 %v2859
      %6167 = vmatpush2.bf16.msra.mxu0 %v2858
      %6168 = vmatprep.subr.bf16.mxu0 %v2851
      %6169 = vmatpush2.bf16.msra.mxu0 %v2850
      %6170 = vmatprep.mubr.bf16.mxu0 %v5848
      %6171 = vmatmul.mubr.bf16.gmra.mxu0 %v5847
      %v6172 = vpop.f32.mrf.mxu0
      %v6173 = vadd.f32 %v6009, %v6172
      %v6174 = vpop.f32.mrf.mxu0
      %v6175 = vadd.f32 %v6011, %v6174
      %v6176 = vpop.f32.mrf.mxu0
      %v6177 = vpop.f32.mrf.mxu0
      %6178 = vdwg.mxu0
      %v6179 = vadd.f32 %v6050, %v693
      %v6180 = vadd.f32 %v6052, %v697
      %v6181 = vadd.f32 %v6091, %v701
      %v6182 = vadd.f32 %v6093, %v705
      %v6183 = vadd.f32 %v6132, %v709
      %v6184 = vadd.f32 %v6134, %v713
      %v6185 = vadd.f32 %v6173, %v717
      %v6186 = vadd.f32 %v6175, %v721
      %v6187 = vmul.f32 %v6179, 0.5
      %v6188 = vmul.f32 %v6180, 0.5
      %v6189 = vtanh.pop %v6187
      %v6190 = vtanh.pop %v6188
      %v6191 = vmul.f32 %v6189, 0.5
      %v6192 = vmul.f32 %v6190, 0.5
      %v6193 = vadd.f32 %v6191, 0.5
      %v6194 = vadd.f32 %v6192, 0.5
      %v6195 = vmul.f32 %v6181, 0.5
      %v6196 = vmul.f32 %v6182, 0.5
      %v6197 = vtanh.pop %v6195
      %v6198 = vtanh.pop %v6196
      %v6199 = vmul.f32 %v6197, 0.5
      %v6200 = vmul.f32 %v6198, 0.5
      %v6201 = vadd.f32 %v6199, 0.5
      %v6202 = vadd.f32 %v6200, 0.5
      %v6203 = vtanh.pop %v6183
      %v6204 = vtanh.pop %v6184
      %v6205 = vmul.f32 %v6185, 0.5
      %v6206 = vmul.f32 %v6186, 0.5
      %v6207 = vtanh.pop %v6205
      %v6208 = vtanh.pop %v6206
      %v6209 = vmul.f32 %v6207, 0.5
      %v6210 = vmul.f32 %v6208, 0.5
      %v6211 = vadd.f32 %v6209, 0.5
      %v6212 = vadd.f32 %v6210, 0.5
      %v6213 = vmul.f32 %v6201, %v5621
      %v6214 = vmul.f32 %v6202, %v5622
      %v6215 = vmul.f32 %v6193, %v6203
      %v6216 = vmul.f32 %v6194, %v6204
      %v6217 = vadd.f32 %v6213, %v6215
      %v6218 = vadd.f32 %v6214, %v6216
      %v6219 = vtanh.pop %v6217
      %v6220 = vtanh.pop %v6218
      %v6221 = vmul.f32 %v6211, %v6219
      %v6222 = vmul.f32 %v6212, %v6220
      %s6223 = scalar_lea.vmem %s280, 80
      %6224 = vst [vmem:[%s6223] sm:$0xff] %v6221
      %6225 = vst [vmem:[%s6223 + $0x8] sm:$0xff] %v6222
      %s6226 = scalar_lea.vmem %s273, 384
      %v6227 = vld [vmem:[%s6226] sm:$0xff]
      %v6228 = vld [vmem:[%s6226 + $0x8] sm:$0xff]
      %v6229 = vld [vmem:[%s6226 + $0x10] sm:$0xff]
      %v6230 = vld [vmem:[%s6226 + $0x18] sm:$0xff]
      %v6231 = vld [vmem:[%s6226 + $0x20] sm:$0xff]
      %v6232 = vld [vmem:[%s6226 + $0x28] sm:$0xff]
      %v6233 = vld [vmem:[%s6226 + $0x30] sm:$0xff]
      %v6234 = vld [vmem:[%s6226 + $0x38] sm:$0xff]
      %6235 = vmatprep.subr.bf16.mxu0 %v1181
      %6236 = vmatpush1.bf16.msra.mxu0 %v1180
      %6237 = vmatprep.subr.bf16.mxu0 %v1173
      %6238 = vmatpush1.bf16.msra.mxu0 %v1172
      %6239 = vmatprep.subr.bf16.mxu0 %v1165
      %6240 = vmatpush1.bf16.msra.mxu0 %v1164
      %6241 = vmatprep.subr.bf16.mxu0 %v1157
      %6242 = vmatpush1.bf16.msra.mxu0 %v1156
      %6243 = vmatprep.subr.bf16.mxu0 %v1149
      %6244 = vmatpush1.bf16.msra.mxu0 %v1148
      %6245 = vmatprep.subr.bf16.mxu0 %v1141
      %6246 = vmatpush1.bf16.msra.mxu0 %v1140
      %6247 = vmatprep.subr.bf16.mxu0 %v1133
      %6248 = vmatpush1.bf16.msra.mxu0 %v1132
      %6249 = vmatprep.subr.bf16.mxu0 %v1125
      %6250 = vmatpush1.bf16.msra.mxu0 %v1124
      %6251 = vmatprep.subr.bf16.mxu0 %v1245
      %6252 = vmatpush2.bf16.msra.mxu0 %v1244
      %6253 = vmatprep.subr.bf16.mxu0 %v1237
      %6254 = vmatpush2.bf16.msra.mxu0 %v1236
      %6255 = vmatprep.subr.bf16.mxu0 %v1229
      %6256 = vmatpush2.bf16.msra.mxu0 %v1228
      %6257 = vmatprep.subr.bf16.mxu0 %v1221
      %6258 = vmatpush2.bf16.msra.mxu0 %v1220
      %6259 = vmatprep.subr.bf16.mxu0 %v1213
      %6260 = vmatpush2.bf16.msra.mxu0 %v1212
      %6261 = vmatprep.subr.bf16.mxu0 %v1205
      %6262 = vmatpush2.bf16.msra.mxu0 %v1204
      %6263 = vmatprep.subr.bf16.mxu0 %v1197
      %6264 = vmatpush2.bf16.msra.mxu0 %v1196
      %6265 = vmatprep.subr.bf16.mxu0 %v1189
      %6266 = vmatpush2.bf16.msra.mxu0 %v1188
      %6267 = vmatprep.mubr.bf16.mxu0 %v5850
      %6268 = vmatmul.mubr.bf16.gmra.mxu0 %v5849
      %v6269 = vpop.f32.mrf.mxu0
      %v6270 = vadd.f32 0.0, %v6269
      %v6271 = vpop.f32.mrf.mxu0
      %v6272 = vadd.f32 0.0, %v6271
      %v6273 = vpop.f32.mrf.mxu0
      %v6274 = vpop.f32.mrf.mxu0
      %6275 = vdwg.mxu0
      %6276 = vmatprep.subr.bf16.mxu0 %v1183
      %6277 = vmatpush1.bf16.msra.mxu0 %v1182
      %6278 = vmatprep.subr.bf16.mxu0 %v1175
      %6279 = vmatpush1.bf16.msra.mxu0 %v1174
      %6280 = vmatprep.subr.bf16.mxu0 %v1167
      %6281 = vmatpush1.bf16.msra.mxu0 %v1166
      %6282 = vmatprep.subr.bf16.mxu0 %v1159
      %6283 = vmatpush1.bf16.msra.mxu0 %v1158
      %6284 = vmatprep.subr.bf16.mxu0 %v1151
      %6285 = vmatpush1.bf16.msra.mxu0 %v1150
      %6286 = vmatprep.subr.bf16.mxu0 %v1143
      %6287 = vmatpush1.bf16.msra.mxu0 %v1142
      %6288 = vmatprep.subr.bf16.mxu0 %v1135
      %6289 = vmatpush1.bf16.msra.mxu0 %v1134
      %6290 = vmatprep.subr.bf16.mxu0 %v1127
      %6291 = vmatpush1.bf16.msra.mxu0 %v1126
      %6292 = vmatprep.subr.bf16.mxu0 %v1247
      %6293 = vmatpush2.bf16.msra.mxu0 %v1246
      %6294 = vmatprep.subr.bf16.mxu0 %v1239
      %6295 = vmatpush2.bf16.msra.mxu0 %v1238
      %6296 = vmatprep.subr.bf16.mxu0 %v1231
      %6297 = vmatpush2.bf16.msra.mxu0 %v1230
      %6298 = vmatprep.subr.bf16.mxu0 %v1223
      %6299 = vmatpush2.bf16.msra.mxu0 %v1222
      %6300 = vmatprep.subr.bf16.mxu0 %v1215
      %6301 = vmatpush2.bf16.msra.mxu0 %v1214
      %6302 = vmatprep.subr.bf16.mxu0 %v1207
      %6303 = vmatpush2.bf16.msra.mxu0 %v1206
      %6304 = vmatprep.subr.bf16.mxu0 %v1199
      %6305 = vmatpush2.bf16.msra.mxu0 %v1198
      %6306 = vmatprep.subr.bf16.mxu0 %v1191
      %6307 = vmatpush2.bf16.msra.mxu0 %v1190
      %6308 = vmatprep.mubr.bf16.mxu0 %v5850
      %6309 = vmatmul.mubr.bf16.gmra.mxu0 %v5849
      %v6310 = vpop.f32.mrf.mxu0
      %v6311 = vadd.f32 0.0, %v6310
      %v6312 = vpop.f32.mrf.mxu0
      %v6313 = vadd.f32 0.0, %v6312
      %v6314 = vpop.f32.mrf.mxu0
      %v6315 = vpop.f32.mrf.mxu0
      %6316 = vdwg.mxu0
      %6317 = vmatprep.subr.bf16.mxu0 %v1185
      %6318 = vmatpush1.bf16.msra.mxu0 %v1184
      %6319 = vmatprep.subr.bf16.mxu0 %v1177
      %6320 = vmatpush1.bf16.msra.mxu0 %v1176
      %6321 = vmatprep.subr.bf16.mxu0 %v1169
      %6322 = vmatpush1.bf16.msra.mxu0 %v1168
      %6323 = vmatprep.subr.bf16.mxu0 %v1161
      %6324 = vmatpush1.bf16.msra.mxu0 %v1160
      %6325 = vmatprep.subr.bf16.mxu0 %v1153
      %6326 = vmatpush1.bf16.msra.mxu0 %v1152
      %6327 = vmatprep.subr.bf16.mxu0 %v1145
      %6328 = vmatpush1.bf16.msra.mxu0 %v1144
      %6329 = vmatprep.subr.bf16.mxu0 %v1137
      %6330 = vmatpush1.bf16.msra.mxu0 %v1136
      %6331 = vmatprep.subr.bf16.mxu0 %v1129
      %6332 = vmatpush1.bf16.msra.mxu0 %v1128
      %6333 = vmatprep.subr.bf16.mxu0 %v1249
      %6334 = vmatpush2.bf16.msra.mxu0 %v1248
      %6335 = vmatprep.subr.bf16.mxu0 %v1241
      %6336 = vmatpush2.bf16.msra.mxu0 %v1240
      %6337 = vmatprep.subr.bf16.mxu0 %v1233
      %6338 = vmatpush2.bf16.msra.mxu0 %v1232
      %6339 = vmatprep.subr.bf16.mxu0 %v1225
      %6340 = vmatpush2.bf16.msra.mxu0 %v1224
      %6341 = vmatprep.subr.bf16.mxu0 %v1217
      %6342 = vmatpush2.bf16.msra.mxu0 %v1216
      %6343 = vmatprep.subr.bf16.mxu0 %v1209
      %6344 = vmatpush2.bf16.msra.mxu0 %v1208
      %6345 = vmatprep.subr.bf16.mxu0 %v1201
      %6346 = vmatpush2.bf16.msra.mxu0 %v1200
      %6347 = vmatprep.subr.bf16.mxu0 %v1193
      %6348 = vmatpush2.bf16.msra.mxu0 %v1192
      %6349 = vmatprep.mubr.bf16.mxu0 %v5850
      %6350 = vmatmul.mubr.bf16.gmra.mxu0 %v5849
      %v6351 = vpop.f32.mrf.mxu0
      %v6352 = vadd.f32 0.0, %v6351
      %v6353 = vpop.f32.mrf.mxu0
      %v6354 = vadd.f32 0.0, %v6353
      %v6355 = vpop.f32.mrf.mxu0
      %v6356 = vpop.f32.mrf.mxu0
      %6357 = vdwg.mxu0
      %6358 = vmatprep.subr.bf16.mxu0 %v1187
      %6359 = vmatpush1.bf16.msra.mxu0 %v1186
      %6360 = vmatprep.subr.bf16.mxu0 %v1179
      %6361 = vmatpush1.bf16.msra.mxu0 %v1178
      %6362 = vmatprep.subr.bf16.mxu0 %v1171
      %6363 = vmatpush1.bf16.msra.mxu0 %v1170
      %6364 = vmatprep.subr.bf16.mxu0 %v1163
      %6365 = vmatpush1.bf16.msra.mxu0 %v1162
      %6366 = vmatprep.subr.bf16.mxu0 %v1155
      %6367 = vmatpush1.bf16.msra.mxu0 %v1154
      %6368 = vmatprep.subr.bf16.mxu0 %v1147
      %6369 = vmatpush1.bf16.msra.mxu0 %v1146
      %6370 = vmatprep.subr.bf16.mxu0 %v1139
      %6371 = vmatpush1.bf16.msra.mxu0 %v1138
      %6372 = vmatprep.subr.bf16.mxu0 %v1131
      %6373 = vmatpush1.bf16.msra.mxu0 %v1130
      %6374 = vmatprep.subr.bf16.mxu0 %v1251
      %6375 = vmatpush2.bf16.msra.mxu0 %v1250
      %6376 = vmatprep.subr.bf16.mxu0 %v1243
      %6377 = vmatpush2.bf16.msra.mxu0 %v1242
      %6378 = vmatprep.subr.bf16.mxu0 %v1235
      %6379 = vmatpush2.bf16.msra.mxu0 %v1234
      %6380 = vmatprep.subr.bf16.mxu0 %v1227
      %6381 = vmatpush2.bf16.msra.mxu0 %v1226
      %6382 = vmatprep.subr.bf16.mxu0 %v1219
      %6383 = vmatpush2.bf16.msra.mxu0 %v1218
      %6384 = vmatprep.subr.bf16.mxu0 %v1211
      %6385 = vmatpush2.bf16.msra.mxu0 %v1210
      %6386 = vmatprep.subr.bf16.mxu0 %v1203
      %6387 = vmatpush2.bf16.msra.mxu0 %v1202
      %6388 = vmatprep.subr.bf16.mxu0 %v1195
      %6389 = vmatpush2.bf16.msra.mxu0 %v1194
      %6390 = vmatprep.mubr.bf16.mxu0 %v5850
      %6391 = vmatmul.mubr.bf16.gmra.mxu0 %v5849
      %v6392 = vpop.f32.mrf.mxu0
      %v6393 = vadd.f32 0.0, %v6392
      %v6394 = vpop.f32.mrf.mxu0
      %v6395 = vadd.f32 0.0, %v6394
      %v6396 = vpop.f32.mrf.mxu0
      %v6397 = vpop.f32.mrf.mxu0
      %6398 = vdwg.mxu0
      %v6399 = vadd.f32 %v6227, %v6270
      %v6400 = vadd.f32 %v6228, %v6272
      %v6401 = vadd.f32 %v6229, %v6311
      %v6402 = vadd.f32 %v6230, %v6313
      %v6403 = vadd.f32 %v6231, %v6352
      %v6404 = vadd.f32 %v6232, %v6354
      %v6405 = vadd.f32 %v6233, %v6393
      %v6406 = vadd.f32 %v6234, %v6395
      %v6407 = vmul.f32 %v6399, 0.5
      %v6408 = vmul.f32 %v6400, 0.5
      %v6409 = vtanh.pop %v6407
      %v6410 = vtanh.pop %v6408
      %v6411 = vmul.f32 %v6409, 0.5
      %v6412 = vmul.f32 %v6410, 0.5
      %v6413 = vadd.f32 %v6411, 0.5
      %v6414 = vadd.f32 %v6412, 0.5
      %v6415 = vmul.f32 %v6401, 0.5
      %v6416 = vmul.f32 %v6402, 0.5
      %v6417 = vtanh.pop %v6415
      %v6418 = vtanh.pop %v6416
      %v6419 = vmul.f32 %v6417, 0.5
      %v6420 = vmul.f32 %v6418, 0.5
      %v6421 = vadd.f32 %v6419, 0.5
      %v6422 = vadd.f32 %v6420, 0.5
      %v6423 = vtanh.pop %v6403
      %v6424 = vtanh.pop %v6404
      %v6425 = vmul.f32 %v6405, 0.5
      %v6426 = vmul.f32 %v6406, 0.5
      %v6427 = vtanh.pop %v6425
      %v6428 = vtanh.pop %v6426
      %v6429 = vmul.f32 %v6427, 0.5
      %v6430 = vmul.f32 %v6428, 0.5
      %v6431 = vadd.f32 %v6429, 0.5
      %v6432 = vadd.f32 %v6430, 0.5
      %v6433 = vmul.f32 %v6421, %v5841
      %v6434 = vmul.f32 %v6422, %v5842
      %v6435 = vmul.f32 %v6413, %v6423
      %v6436 = vmul.f32 %v6414, %v6424
      %v6437 = vadd.f32 %v6433, %v6435
      %v6438 = vadd.f32 %v6434, %v6436
      %v6439 = vtanh.pop %v6437
      %v6440 = vtanh.pop %v6438
      %v6441 = vmul.f32 %v6431, %v6439
      %v6442 = vmul.f32 %v6432, %v6440
      %v6443 = vpack.c.bf16 %v6221, %v6221
      %v6444 = vpack.c.bf16 %v6222, %v6222
      %v6445 = vpack.c.bf16 %v6441, %v6441
      %v6446 = vpack.c.bf16 %v6442, %v6442
      %6447 = vmatprep.subr.bf16.mxu0 %v2033
      %6448 = vmatpush1.bf16.msra.mxu0 %v2032
      %6449 = vmatprep.subr.bf16.mxu0 %v2025
      %6450 = vmatpush1.bf16.msra.mxu0 %v2024
      %6451 = vmatprep.subr.bf16.mxu0 %v2017
      %6452 = vmatpush1.bf16.msra.mxu0 %v2016
      %6453 = vmatprep.subr.bf16.mxu0 %v2009
      %6454 = vmatpush1.bf16.msra.mxu0 %v2008
      %6455 = vmatprep.subr.bf16.mxu0 %v2001
      %6456 = vmatpush1.bf16.msra.mxu0 %v2000
      %6457 = vmatprep.subr.bf16.mxu0 %v1993
      %6458 = vmatpush1.bf16.msra.mxu0 %v1992
      %6459 = vmatprep.subr.bf16.mxu0 %v1985
      %6460 = vmatpush1.bf16.msra.mxu0 %v1984
      %6461 = vmatprep.subr.bf16.mxu0 %v1977
      %6462 = vmatpush1.bf16.msra.mxu0 %v1976
      %6463 = vmatprep.subr.bf16.mxu0 %v2097
      %6464 = vmatpush2.bf16.msra.mxu0 %v2096
      %6465 = vmatprep.subr.bf16.mxu0 %v2089
      %6466 = vmatpush2.bf16.msra.mxu0 %v2088
      %6467 = vmatprep.subr.bf16.mxu0 %v2081
      %6468 = vmatpush2.bf16.msra.mxu0 %v2080
      %6469 = vmatprep.subr.bf16.mxu0 %v2073
      %6470 = vmatpush2.bf16.msra.mxu0 %v2072
      %6471 = vmatprep.subr.bf16.mxu0 %v2065
      %6472 = vmatpush2.bf16.msra.mxu0 %v2064
      %6473 = vmatprep.subr.bf16.mxu0 %v2057
      %6474 = vmatpush2.bf16.msra.mxu0 %v2056
      %6475 = vmatprep.subr.bf16.mxu0 %v2049
      %6476 = vmatpush2.bf16.msra.mxu0 %v2048
      %6477 = vmatprep.subr.bf16.mxu0 %v2041
      %6478 = vmatpush2.bf16.msra.mxu0 %v2040
      %6479 = vmatprep.mubr.bf16.mxu0 %v6446
      %6480 = vmatmul.mubr.bf16.gmra.mxu0 %v6445
      %v6481 = vpop.f32.mrf.mxu0
      %v6482 = vadd.f32 0.0, %v6481
      %v6483 = vpop.f32.mrf.mxu0
      %v6484 = vadd.f32 0.0, %v6483
      %v6485 = vpop.f32.mrf.mxu0
      %v6486 = vpop.f32.mrf.mxu0
      %6487 = vdwg.mxu0
      %6488 = vmatprep.subr.bf16.mxu0 %v2035
      %6489 = vmatpush1.bf16.msra.mxu0 %v2034
      %6490 = vmatprep.subr.bf16.mxu0 %v2027
      %6491 = vmatpush1.bf16.msra.mxu0 %v2026
      %6492 = vmatprep.subr.bf16.mxu0 %v2019
      %6493 = vmatpush1.bf16.msra.mxu0 %v2018
      %6494 = vmatprep.subr.bf16.mxu0 %v2011
      %6495 = vmatpush1.bf16.msra.mxu0 %v2010
      %6496 = vmatprep.subr.bf16.mxu0 %v2003
      %6497 = vmatpush1.bf16.msra.mxu0 %v2002
      %6498 = vmatprep.subr.bf16.mxu0 %v1995
      %6499 = vmatpush1.bf16.msra.mxu0 %v1994
      %6500 = vmatprep.subr.bf16.mxu0 %v1987
      %6501 = vmatpush1.bf16.msra.mxu0 %v1986
      %6502 = vmatprep.subr.bf16.mxu0 %v1979
      %6503 = vmatpush1.bf16.msra.mxu0 %v1978
      %6504 = vmatprep.subr.bf16.mxu0 %v2099
      %6505 = vmatpush2.bf16.msra.mxu0 %v2098
      %6506 = vmatprep.subr.bf16.mxu0 %v2091
      %6507 = vmatpush2.bf16.msra.mxu0 %v2090
      %6508 = vmatprep.subr.bf16.mxu0 %v2083
      %6509 = vmatpush2.bf16.msra.mxu0 %v2082
      %6510 = vmatprep.subr.bf16.mxu0 %v2075
      %6511 = vmatpush2.bf16.msra.mxu0 %v2074
      %6512 = vmatprep.subr.bf16.mxu0 %v2067
      %6513 = vmatpush2.bf16.msra.mxu0 %v2066
      %6514 = vmatprep.subr.bf16.mxu0 %v2059
      %6515 = vmatpush2.bf16.msra.mxu0 %v2058
      %6516 = vmatprep.subr.bf16.mxu0 %v2051
      %6517 = vmatpush2.bf16.msra.mxu0 %v2050
      %6518 = vmatprep.subr.bf16.mxu0 %v2043
      %6519 = vmatpush2.bf16.msra.mxu0 %v2042
      %6520 = vmatprep.mubr.bf16.mxu0 %v6446
      %6521 = vmatmul.mubr.bf16.gmra.mxu0 %v6445
      %v6522 = vpop.f32.mrf.mxu0
      %v6523 = vadd.f32 0.0, %v6522
      %v6524 = vpop.f32.mrf.mxu0
      %v6525 = vadd.f32 0.0, %v6524
      %v6526 = vpop.f32.mrf.mxu0
      %v6527 = vpop.f32.mrf.mxu0
      %6528 = vdwg.mxu0
      %6529 = vmatprep.subr.bf16.mxu0 %v2037
      %6530 = vmatpush1.bf16.msra.mxu0 %v2036
      %6531 = vmatprep.subr.bf16.mxu0 %v2029
      %6532 = vmatpush1.bf16.msra.mxu0 %v2028
      %6533 = vmatprep.subr.bf16.mxu0 %v2021
      %6534 = vmatpush1.bf16.msra.mxu0 %v2020
      %6535 = vmatprep.subr.bf16.mxu0 %v2013
      %6536 = vmatpush1.bf16.msra.mxu0 %v2012
      %6537 = vmatprep.subr.bf16.mxu0 %v2005
      %6538 = vmatpush1.bf16.msra.mxu0 %v2004
      %6539 = vmatprep.subr.bf16.mxu0 %v1997
      %6540 = vmatpush1.bf16.msra.mxu0 %v1996
      %6541 = vmatprep.subr.bf16.mxu0 %v1989
      %6542 = vmatpush1.bf16.msra.mxu0 %v1988
      %6543 = vmatprep.subr.bf16.mxu0 %v1981
      %6544 = vmatpush1.bf16.msra.mxu0 %v1980
      %6545 = vmatprep.subr.bf16.mxu0 %v2101
      %6546 = vmatpush2.bf16.msra.mxu0 %v2100
      %6547 = vmatprep.subr.bf16.mxu0 %v2093
      %6548 = vmatpush2.bf16.msra.mxu0 %v2092
      %6549 = vmatprep.subr.bf16.mxu0 %v2085
      %6550 = vmatpush2.bf16.msra.mxu0 %v2084
      %6551 = vmatprep.subr.bf16.mxu0 %v2077
      %6552 = vmatpush2.bf16.msra.mxu0 %v2076
      %6553 = vmatprep.subr.bf16.mxu0 %v2069
      %6554 = vmatpush2.bf16.msra.mxu0 %v2068
      %6555 = vmatprep.subr.bf16.mxu0 %v2061
      %6556 = vmatpush2.bf16.msra.mxu0 %v2060
      %6557 = vmatprep.subr.bf16.mxu0 %v2053
      %6558 = vmatpush2.bf16.msra.mxu0 %v2052
      %6559 = vmatprep.subr.bf16.mxu0 %v2045
      %6560 = vmatpush2.bf16.msra.mxu0 %v2044
      %6561 = vmatprep.mubr.bf16.mxu0 %v6446
      %6562 = vmatmul.mubr.bf16.gmra.mxu0 %v6445
      %v6563 = vpop.f32.mrf.mxu0
      %v6564 = vadd.f32 0.0, %v6563
      %v6565 = vpop.f32.mrf.mxu0
      %v6566 = vadd.f32 0.0, %v6565
      %v6567 = vpop.f32.mrf.mxu0
      %v6568 = vpop.f32.mrf.mxu0
      %6569 = vdwg.mxu0
      %6570 = vmatprep.subr.bf16.mxu0 %v2039
      %6571 = vmatpush1.bf16.msra.mxu0 %v2038
      %6572 = vmatprep.subr.bf16.mxu0 %v2031
      %6573 = vmatpush1.bf16.msra.mxu0 %v2030
      %6574 = vmatprep.subr.bf16.mxu0 %v2023
      %6575 = vmatpush1.bf16.msra.mxu0 %v2022
      %6576 = vmatprep.subr.bf16.mxu0 %v2015
      %6577 = vmatpush1.bf16.msra.mxu0 %v2014
      %6578 = vmatprep.subr.bf16.mxu0 %v2007
      %6579 = vmatpush1.bf16.msra.mxu0 %v2006
      %6580 = vmatprep.subr.bf16.mxu0 %v1999
      %6581 = vmatpush1.bf16.msra.mxu0 %v1998
      %6582 = vmatprep.subr.bf16.mxu0 %v1991
      %6583 = vmatpush1.bf16.msra.mxu0 %v1990
      %6584 = vmatprep.subr.bf16.mxu0 %v1983
      %6585 = vmatpush1.bf16.msra.mxu0 %v1982
      %6586 = vmatprep.subr.bf16.mxu0 %v2103
      %6587 = vmatpush2.bf16.msra.mxu0 %v2102
      %6588 = vmatprep.subr.bf16.mxu0 %v2095
      %6589 = vmatpush2.bf16.msra.mxu0 %v2094
      %6590 = vmatprep.subr.bf16.mxu0 %v2087
      %6591 = vmatpush2.bf16.msra.mxu0 %v2086
      %6592 = vmatprep.subr.bf16.mxu0 %v2079
      %6593 = vmatpush2.bf16.msra.mxu0 %v2078
      %6594 = vmatprep.subr.bf16.mxu0 %v2071
      %6595 = vmatpush2.bf16.msra.mxu0 %v2070
      %6596 = vmatprep.subr.bf16.mxu0 %v2063
      %6597 = vmatpush2.bf16.msra.mxu0 %v2062
      %6598 = vmatprep.subr.bf16.mxu0 %v2055
      %6599 = vmatpush2.bf16.msra.mxu0 %v2054
      %6600 = vmatprep.subr.bf16.mxu0 %v2047
      %6601 = vmatpush2.bf16.msra.mxu0 %v2046
      %6602 = vmatprep.mubr.bf16.mxu0 %v6446
      %6603 = vmatmul.mubr.bf16.gmra.mxu0 %v6445
      %v6604 = vpop.f32.mrf.mxu0
      %v6605 = vadd.f32 0.0, %v6604
      %v6606 = vpop.f32.mrf.mxu0
      %v6607 = vadd.f32 0.0, %v6606
      %v6608 = vpop.f32.mrf.mxu0
      %v6609 = vpop.f32.mrf.mxu0
      %6610 = vdwg.mxu0
      %6611 = vmatprep.subr.bf16.mxu0 %v2837
      %6612 = vmatpush1.bf16.msra.mxu0 %v2836
      %6613 = vmatprep.subr.bf16.mxu0 %v2829
      %6614 = vmatpush1.bf16.msra.mxu0 %v2828
      %6615 = vmatprep.subr.bf16.mxu0 %v2821
      %6616 = vmatpush1.bf16.msra.mxu0 %v2820
      %6617 = vmatprep.subr.bf16.mxu0 %v2813
      %6618 = vmatpush1.bf16.msra.mxu0 %v2812
      %6619 = vmatprep.subr.bf16.mxu0 %v2805
      %6620 = vmatpush1.bf16.msra.mxu0 %v2804
      %6621 = vmatprep.subr.bf16.mxu0 %v2797
      %6622 = vmatpush1.bf16.msra.mxu0 %v2796
      %6623 = vmatprep.subr.bf16.mxu0 %v2789
      %6624 = vmatpush1.bf16.msra.mxu0 %v2788
      %6625 = vmatprep.subr.bf16.mxu0 %v2781
      %6626 = vmatpush1.bf16.msra.mxu0 %v2780
      %6627 = vmatprep.subr.bf16.mxu0 %v2901
      %6628 = vmatpush2.bf16.msra.mxu0 %v2900
      %6629 = vmatprep.subr.bf16.mxu0 %v2893
      %6630 = vmatpush2.bf16.msra.mxu0 %v2892
      %6631 = vmatprep.subr.bf16.mxu0 %v2885
      %6632 = vmatpush2.bf16.msra.mxu0 %v2884
      %6633 = vmatprep.subr.bf16.mxu0 %v2877
      %6634 = vmatpush2.bf16.msra.mxu0 %v2876
      %6635 = vmatprep.subr.bf16.mxu0 %v2869
      %6636 = vmatpush2.bf16.msra.mxu0 %v2868
      %6637 = vmatprep.subr.bf16.mxu0 %v2861
      %6638 = vmatpush2.bf16.msra.mxu0 %v2860
      %6639 = vmatprep.subr.bf16.mxu0 %v2853
      %6640 = vmatpush2.bf16.msra.mxu0 %v2852
      %6641 = vmatprep.subr.bf16.mxu0 %v2845
      %6642 = vmatpush2.bf16.msra.mxu0 %v2844
      %6643 = vmatprep.mubr.bf16.mxu0 %v6444
      %6644 = vmatmul.mubr.bf16.gmra.mxu0 %v6443
      %v6645 = vpop.f32.mrf.mxu0
      %v6646 = vadd.f32 %v6482, %v6645
      %v6647 = vpop.f32.mrf.mxu0
      %v6648 = vadd.f32 %v6484, %v6647
      %v6649 = vpop.f32.mrf.mxu0
      %v6650 = vpop.f32.mrf.mxu0
      %6651 = vdwg.mxu0
      %6652 = vmatprep.subr.bf16.mxu0 %v2839
      %6653 = vmatpush1.bf16.msra.mxu0 %v2838
      %6654 = vmatprep.subr.bf16.mxu0 %v2831
      %6655 = vmatpush1.bf16.msra.mxu0 %v2830
      %6656 = vmatprep.subr.bf16.mxu0 %v2823
      %6657 = vmatpush1.bf16.msra.mxu0 %v2822
      %6658 = vmatprep.subr.bf16.mxu0 %v2815
      %6659 = vmatpush1.bf16.msra.mxu0 %v2814
      %6660 = vmatprep.subr.bf16.mxu0 %v2807
      %6661 = vmatpush1.bf16.msra.mxu0 %v2806
      %6662 = vmatprep.subr.bf16.mxu0 %v2799
      %6663 = vmatpush1.bf16.msra.mxu0 %v2798
      %6664 = vmatprep.subr.bf16.mxu0 %v2791
      %6665 = vmatpush1.bf16.msra.mxu0 %v2790
      %6666 = vmatprep.subr.bf16.mxu0 %v2783
      %6667 = vmatpush1.bf16.msra.mxu0 %v2782
      %6668 = vmatprep.subr.bf16.mxu0 %v2903
      %6669 = vmatpush2.bf16.msra.mxu0 %v2902
      %6670 = vmatprep.subr.bf16.mxu0 %v2895
      %6671 = vmatpush2.bf16.msra.mxu0 %v2894
      %6672 = vmatprep.subr.bf16.mxu0 %v2887
      %6673 = vmatpush2.bf16.msra.mxu0 %v2886
      %6674 = vmatprep.subr.bf16.mxu0 %v2879
      %6675 = vmatpush2.bf16.msra.mxu0 %v2878
      %6676 = vmatprep.subr.bf16.mxu0 %v2871
      %6677 = vmatpush2.bf16.msra.mxu0 %v2870
      %6678 = vmatprep.subr.bf16.mxu0 %v2863
      %6679 = vmatpush2.bf16.msra.mxu0 %v2862
      %6680 = vmatprep.subr.bf16.mxu0 %v2855
      %6681 = vmatpush2.bf16.msra.mxu0 %v2854
      %6682 = vmatprep.subr.bf16.mxu0 %v2847
      %6683 = vmatpush2.bf16.msra.mxu0 %v2846
      %6684 = vmatprep.mubr.bf16.mxu0 %v6444
      %6685 = vmatmul.mubr.bf16.gmra.mxu0 %v6443
      %v6686 = vpop.f32.mrf.mxu0
      %v6687 = vadd.f32 %v6523, %v6686
      %v6688 = vpop.f32.mrf.mxu0
      %v6689 = vadd.f32 %v6525, %v6688
      %v6690 = vpop.f32.mrf.mxu0
      %v6691 = vpop.f32.mrf.mxu0
      %6692 = vdwg.mxu0
      %6693 = vmatprep.subr.bf16.mxu0 %v2841
      %6694 = vmatpush1.bf16.msra.mxu0 %v2840
      %6695 = vmatprep.subr.bf16.mxu0 %v2833
      %6696 = vmatpush1.bf16.msra.mxu0 %v2832
      %6697 = vmatprep.subr.bf16.mxu0 %v2825
      %6698 = vmatpush1.bf16.msra.mxu0 %v2824
      %6699 = vmatprep.subr.bf16.mxu0 %v2817
      %6700 = vmatpush1.bf16.msra.mxu0 %v2816
      %6701 = vmatprep.subr.bf16.mxu0 %v2809
      %6702 = vmatpush1.bf16.msra.mxu0 %v2808
      %6703 = vmatprep.subr.bf16.mxu0 %v2801
      %6704 = vmatpush1.bf16.msra.mxu0 %v2800
      %6705 = vmatprep.subr.bf16.mxu0 %v2793
      %6706 = vmatpush1.bf16.msra.mxu0 %v2792
      %6707 = vmatprep.subr.bf16.mxu0 %v2785
      %6708 = vmatpush1.bf16.msra.mxu0 %v2784
      %6709 = vmatprep.subr.bf16.mxu0 %v2905
      %6710 = vmatpush2.bf16.msra.mxu0 %v2904
      %6711 = vmatprep.subr.bf16.mxu0 %v2897
      %6712 = vmatpush2.bf16.msra.mxu0 %v2896
      %6713 = vmatprep.subr.bf16.mxu0 %v2889
      %6714 = vmatpush2.bf16.msra.mxu0 %v2888
      %6715 = vmatprep.subr.bf16.mxu0 %v2881
      %6716 = vmatpush2.bf16.msra.mxu0 %v2880
      %6717 = vmatprep.subr.bf16.mxu0 %v2873
      %6718 = vmatpush2.bf16.msra.mxu0 %v2872
      %6719 = vmatprep.subr.bf16.mxu0 %v2865
      %6720 = vmatpush2.bf16.msra.mxu0 %v2864
      %6721 = vmatprep.subr.bf16.mxu0 %v2857
      %6722 = vmatpush2.bf16.msra.mxu0 %v2856
      %6723 = vmatprep.subr.bf16.mxu0 %v2849
      %6724 = vmatpush2.bf16.msra.mxu0 %v2848
      %6725 = vmatprep.mubr.bf16.mxu0 %v6444
      %6726 = vmatmul.mubr.bf16.gmra.mxu0 %v6443
      %v6727 = vpop.f32.mrf.mxu0
      %v6728 = vadd.f32 %v6564, %v6727
      %v6729 = vpop.f32.mrf.mxu0
      %v6730 = vadd.f32 %v6566, %v6729
      %v6731 = vpop.f32.mrf.mxu0
      %v6732 = vpop.f32.mrf.mxu0
      %6733 = vdwg.mxu0
      %6734 = vmatprep.subr.bf16.mxu0 %v2843
      %6735 = vmatpush1.bf16.msra.mxu0 %v2842
      %6736 = vmatprep.subr.bf16.mxu0 %v2835
      %6737 = vmatpush1.bf16.msra.mxu0 %v2834
      %6738 = vmatprep.subr.bf16.mxu0 %v2827
      %6739 = vmatpush1.bf16.msra.mxu0 %v2826
      %6740 = vmatprep.subr.bf16.mxu0 %v2819
      %6741 = vmatpush1.bf16.msra.mxu0 %v2818
      %6742 = vmatprep.subr.bf16.mxu0 %v2811
      %6743 = vmatpush1.bf16.msra.mxu0 %v2810
      %6744 = vmatprep.subr.bf16.mxu0 %v2803
      %6745 = vmatpush1.bf16.msra.mxu0 %v2802
      %6746 = vmatprep.subr.bf16.mxu0 %v2795
      %6747 = vmatpush1.bf16.msra.mxu0 %v2794
      %6748 = vmatprep.subr.bf16.mxu0 %v2787
      %6749 = vmatpush1.bf16.msra.mxu0 %v2786
      %6750 = vmatprep.subr.bf16.mxu0 %v2907
      %6751 = vmatpush2.bf16.msra.mxu0 %v2906
      %6752 = vmatprep.subr.bf16.mxu0 %v2899
      %6753 = vmatpush2.bf16.msra.mxu0 %v2898
      %6754 = vmatprep.subr.bf16.mxu0 %v2891
      %6755 = vmatpush2.bf16.msra.mxu0 %v2890
      %6756 = vmatprep.subr.bf16.mxu0 %v2883
      %6757 = vmatpush2.bf16.msra.mxu0 %v2882
      %6758 = vmatprep.subr.bf16.mxu0 %v2875
      %6759 = vmatpush2.bf16.msra.mxu0 %v2874
      %6760 = vmatprep.subr.bf16.mxu0 %v2867
      %6761 = vmatpush2.bf16.msra.mxu0 %v2866
      %6762 = vmatprep.subr.bf16.mxu0 %v2859
      %6763 = vmatpush2.bf16.msra.mxu0 %v2858
      %6764 = vmatprep.subr.bf16.mxu0 %v2851
      %6765 = vmatpush2.bf16.msra.mxu0 %v2850
      %6766 = vmatprep.mubr.bf16.mxu0 %v6444
      %6767 = vmatmul.mubr.bf16.gmra.mxu0 %v6443
      %v6768 = vpop.f32.mrf.mxu0
      %v6769 = vadd.f32 %v6605, %v6768
      %v6770 = vpop.f32.mrf.mxu0
      %v6771 = vadd.f32 %v6607, %v6770
      %v6772 = vpop.f32.mrf.mxu0
      %v6773 = vpop.f32.mrf.mxu0
      %6774 = vdwg.mxu0
      %v6775 = vadd.f32 %v6646, %v693
      %v6776 = vadd.f32 %v6648, %v697
      %v6777 = vadd.f32 %v6687, %v701
      %v6778 = vadd.f32 %v6689, %v705
      %v6779 = vadd.f32 %v6728, %v709
      %v6780 = vadd.f32 %v6730, %v713
      %v6781 = vadd.f32 %v6769, %v717
      %v6782 = vadd.f32 %v6771, %v721
      %v6783 = vmul.f32 %v6775, 0.5
      %v6784 = vmul.f32 %v6776, 0.5
      %v6785 = vtanh.pop %v6783
      %v6786 = vtanh.pop %v6784
      %v6787 = vmul.f32 %v6785, 0.5
      %v6788 = vmul.f32 %v6786, 0.5
      %v6789 = vadd.f32 %v6787, 0.5
      %v6790 = vadd.f32 %v6788, 0.5
      %v6791 = vmul.f32 %v6777, 0.5
      %v6792 = vmul.f32 %v6778, 0.5
      %v6793 = vtanh.pop %v6791
      %v6794 = vtanh.pop %v6792
      %v6795 = vmul.f32 %v6793, 0.5
      %v6796 = vmul.f32 %v6794, 0.5
      %v6797 = vadd.f32 %v6795, 0.5
      %v6798 = vadd.f32 %v6796, 0.5
      %v6799 = vtanh.pop %v6779
      %v6800 = vtanh.pop %v6780
      %v6801 = vmul.f32 %v6781, 0.5
      %v6802 = vmul.f32 %v6782, 0.5
      %v6803 = vtanh.pop %v6801
      %v6804 = vtanh.pop %v6802
      %v6805 = vmul.f32 %v6803, 0.5
      %v6806 = vmul.f32 %v6804, 0.5
      %v6807 = vadd.f32 %v6805, 0.5
      %v6808 = vadd.f32 %v6806, 0.5
      %v6809 = vmul.f32 %v6797, %v6217
      %v6810 = vmul.f32 %v6798, %v6218
      %v6811 = vmul.f32 %v6789, %v6799
      %v6812 = vmul.f32 %v6790, %v6800
      %v6813 = vadd.f32 %v6809, %v6811
      %v6814 = vadd.f32 %v6810, %v6812
      %v6815 = vtanh.pop %v6813
      %v6816 = vtanh.pop %v6814
      %v6817 = vmul.f32 %v6807, %v6815
      %v6818 = vmul.f32 %v6808, %v6816
      %s6819 = scalar_lea.vmem %s280, 96
      %6820 = vst [vmem:[%s6819] sm:$0xff] %v6817
      %6821 = vst [vmem:[%s6819 + $0x8] sm:$0xff] %v6818
      %s6822 = scalar_lea.vmem %s273, 448
      %v6823 = vld [vmem:[%s6822] sm:$0xff]
      %v6824 = vld [vmem:[%s6822 + $0x8] sm:$0xff]
      %v6825 = vld [vmem:[%s6822 + $0x10] sm:$0xff]
      %v6826 = vld [vmem:[%s6822 + $0x18] sm:$0xff]
      %v6827 = vld [vmem:[%s6822 + $0x20] sm:$0xff]
      %v6828 = vld [vmem:[%s6822 + $0x28] sm:$0xff]
      %v6829 = vld [vmem:[%s6822 + $0x30] sm:$0xff]
      %v6830 = vld [vmem:[%s6822 + $0x38] sm:$0xff]
      %6831 = vmatprep.subr.bf16.mxu0 %v1181
      %6832 = vmatpush1.bf16.msra.mxu0 %v1180
      %6833 = vmatprep.subr.bf16.mxu0 %v1173
      %6834 = vmatpush1.bf16.msra.mxu0 %v1172
      %6835 = vmatprep.subr.bf16.mxu0 %v1165
      %6836 = vmatpush1.bf16.msra.mxu0 %v1164
      %6837 = vmatprep.subr.bf16.mxu0 %v1157
      %6838 = vmatpush1.bf16.msra.mxu0 %v1156
      %6839 = vmatprep.subr.bf16.mxu0 %v1149
      %6840 = vmatpush1.bf16.msra.mxu0 %v1148
      %6841 = vmatprep.subr.bf16.mxu0 %v1141
      %6842 = vmatpush1.bf16.msra.mxu0 %v1140
      %6843 = vmatprep.subr.bf16.mxu0 %v1133
      %6844 = vmatpush1.bf16.msra.mxu0 %v1132
      %6845 = vmatprep.subr.bf16.mxu0 %v1125
      %6846 = vmatpush1.bf16.msra.mxu0 %v1124
      %6847 = vmatprep.subr.bf16.mxu0 %v1245
      %6848 = vmatpush2.bf16.msra.mxu0 %v1244
      %6849 = vmatprep.subr.bf16.mxu0 %v1237
      %6850 = vmatpush2.bf16.msra.mxu0 %v1236
      %6851 = vmatprep.subr.bf16.mxu0 %v1229
      %6852 = vmatpush2.bf16.msra.mxu0 %v1228
      %6853 = vmatprep.subr.bf16.mxu0 %v1221
      %6854 = vmatpush2.bf16.msra.mxu0 %v1220
      %6855 = vmatprep.subr.bf16.mxu0 %v1213
      %6856 = vmatpush2.bf16.msra.mxu0 %v1212
      %6857 = vmatprep.subr.bf16.mxu0 %v1205
      %6858 = vmatpush2.bf16.msra.mxu0 %v1204
      %6859 = vmatprep.subr.bf16.mxu0 %v1197
      %6860 = vmatpush2.bf16.msra.mxu0 %v1196
      %6861 = vmatprep.subr.bf16.mxu0 %v1189
      %6862 = vmatpush2.bf16.msra.mxu0 %v1188
      %6863 = vmatprep.mubr.bf16.mxu0 %v6446
      %6864 = vmatmul.mubr.bf16.gmra.mxu0 %v6445
      %v6865 = vpop.f32.mrf.mxu0
      %v6866 = vadd.f32 0.0, %v6865
      %v6867 = vpop.f32.mrf.mxu0
      %v6868 = vadd.f32 0.0, %v6867
      %v6869 = vpop.f32.mrf.mxu0
      %v6870 = vpop.f32.mrf.mxu0
      %6871 = vdwg.mxu0
      %6872 = vmatprep.subr.bf16.mxu0 %v1183
      %6873 = vmatpush1.bf16.msra.mxu0 %v1182
      %6874 = vmatprep.subr.bf16.mxu0 %v1175
      %6875 = vmatpush1.bf16.msra.mxu0 %v1174
      %6876 = vmatprep.subr.bf16.mxu0 %v1167
      %6877 = vmatpush1.bf16.msra.mxu0 %v1166
      %6878 = vmatprep.subr.bf16.mxu0 %v1159
      %6879 = vmatpush1.bf16.msra.mxu0 %v1158
      %6880 = vmatprep.subr.bf16.mxu0 %v1151
      %6881 = vmatpush1.bf16.msra.mxu0 %v1150
      %6882 = vmatprep.subr.bf16.mxu0 %v1143
      %6883 = vmatpush1.bf16.msra.mxu0 %v1142
      %6884 = vmatprep.subr.bf16.mxu0 %v1135
      %6885 = vmatpush1.bf16.msra.mxu0 %v1134
      %6886 = vmatprep.subr.bf16.mxu0 %v1127
      %6887 = vmatpush1.bf16.msra.mxu0 %v1126
      %6888 = vmatprep.subr.bf16.mxu0 %v1247
      %6889 = vmatpush2.bf16.msra.mxu0 %v1246
      %6890 = vmatprep.subr.bf16.mxu0 %v1239
      %6891 = vmatpush2.bf16.msra.mxu0 %v1238
      %6892 = vmatprep.subr.bf16.mxu0 %v1231
      %6893 = vmatpush2.bf16.msra.mxu0 %v1230
      %6894 = vmatprep.subr.bf16.mxu0 %v1223
      %6895 = vmatpush2.bf16.msra.mxu0 %v1222
      %6896 = vmatprep.subr.bf16.mxu0 %v1215
      %6897 = vmatpush2.bf16.msra.mxu0 %v1214
      %6898 = vmatprep.subr.bf16.mxu0 %v1207
      %6899 = vmatpush2.bf16.msra.mxu0 %v1206
      %6900 = vmatprep.subr.bf16.mxu0 %v1199
      %6901 = vmatpush2.bf16.msra.mxu0 %v1198
      %6902 = vmatprep.subr.bf16.mxu0 %v1191
      %6903 = vmatpush2.bf16.msra.mxu0 %v1190
      %6904 = vmatprep.mubr.bf16.mxu0 %v6446
      %6905 = vmatmul.mubr.bf16.gmra.mxu0 %v6445
      %v6906 = vpop.f32.mrf.mxu0
      %v6907 = vadd.f32 0.0, %v6906
      %v6908 = vpop.f32.mrf.mxu0
      %v6909 = vadd.f32 0.0, %v6908
      %v6910 = vpop.f32.mrf.mxu0
      %v6911 = vpop.f32.mrf.mxu0
      %6912 = vdwg.mxu0
      %6913 = vmatprep.subr.bf16.mxu0 %v1185
      %6914 = vmatpush1.bf16.msra.mxu0 %v1184
      %6915 = vmatprep.subr.bf16.mxu0 %v1177
      %6916 = vmatpush1.bf16.msra.mxu0 %v1176
      %6917 = vmatprep.subr.bf16.mxu0 %v1169
      %6918 = vmatpush1.bf16.msra.mxu0 %v1168
      %6919 = vmatprep.subr.bf16.mxu0 %v1161
      %6920 = vmatpush1.bf16.msra.mxu0 %v1160
      %6921 = vmatprep.subr.bf16.mxu0 %v1153
      %6922 = vmatpush1.bf16.msra.mxu0 %v1152
      %6923 = vmatprep.subr.bf16.mxu0 %v1145
      %6924 = vmatpush1.bf16.msra.mxu0 %v1144
      %6925 = vmatprep.subr.bf16.mxu0 %v1137
      %6926 = vmatpush1.bf16.msra.mxu0 %v1136
      %6927 = vmatprep.subr.bf16.mxu0 %v1129
      %6928 = vmatpush1.bf16.msra.mxu0 %v1128
      %6929 = vmatprep.subr.bf16.mxu0 %v1249
      %6930 = vmatpush2.bf16.msra.mxu0 %v1248
      %6931 = vmatprep.subr.bf16.mxu0 %v1241
      %6932 = vmatpush2.bf16.msra.mxu0 %v1240
      %6933 = vmatprep.subr.bf16.mxu0 %v1233
      %6934 = vmatpush2.bf16.msra.mxu0 %v1232
      %6935 = vmatprep.subr.bf16.mxu0 %v1225
      %6936 = vmatpush2.bf16.msra.mxu0 %v1224
      %6937 = vmatprep.subr.bf16.mxu0 %v1217
      %6938 = vmatpush2.bf16.msra.mxu0 %v1216
      %6939 = vmatprep.subr.bf16.mxu0 %v1209
      %6940 = vmatpush2.bf16.msra.mxu0 %v1208
      %6941 = vmatprep.subr.bf16.mxu0 %v1201
      %6942 = vmatpush2.bf16.msra.mxu0 %v1200
      %6943 = vmatprep.subr.bf16.mxu0 %v1193
      %6944 = vmatpush2.bf16.msra.mxu0 %v1192
      %6945 = vmatprep.mubr.bf16.mxu0 %v6446
      %6946 = vmatmul.mubr.bf16.gmra.mxu0 %v6445
      %v6947 = vpop.f32.mrf.mxu0
      %v6948 = vadd.f32 0.0, %v6947
      %v6949 = vpop.f32.mrf.mxu0
      %v6950 = vadd.f32 0.0, %v6949
      %v6951 = vpop.f32.mrf.mxu0
      %v6952 = vpop.f32.mrf.mxu0
      %6953 = vdwg.mxu0
      %6954 = vmatprep.subr.bf16.mxu0 %v1187
      %6955 = vmatpush1.bf16.msra.mxu0 %v1186
      %6956 = vmatprep.subr.bf16.mxu0 %v1179
      %6957 = vmatpush1.bf16.msra.mxu0 %v1178
      %6958 = vmatprep.subr.bf16.mxu0 %v1171
      %6959 = vmatpush1.bf16.msra.mxu0 %v1170
      %6960 = vmatprep.subr.bf16.mxu0 %v1163
      %6961 = vmatpush1.bf16.msra.mxu0 %v1162
      %6962 = vmatprep.subr.bf16.mxu0 %v1155
      %6963 = vmatpush1.bf16.msra.mxu0 %v1154
      %6964 = vmatprep.subr.bf16.mxu0 %v1147
      %6965 = vmatpush1.bf16.msra.mxu0 %v1146
      %6966 = vmatprep.subr.bf16.mxu0 %v1139
      %6967 = vmatpush1.bf16.msra.mxu0 %v1138
      %6968 = vmatprep.subr.bf16.mxu0 %v1131
      %6969 = vmatpush1.bf16.msra.mxu0 %v1130
      %6970 = vmatprep.subr.bf16.mxu0 %v1251
      %6971 = vmatpush2.bf16.msra.mxu0 %v1250
      %6972 = vmatprep.subr.bf16.mxu0 %v1243
      %6973 = vmatpush2.bf16.msra.mxu0 %v1242
      %6974 = vmatprep.subr.bf16.mxu0 %v1235
      %6975 = vmatpush2.bf16.msra.mxu0 %v1234
      %6976 = vmatprep.subr.bf16.mxu0 %v1227
      %6977 = vmatpush2.bf16.msra.mxu0 %v1226
      %6978 = vmatprep.subr.bf16.mxu0 %v1219
      %6979 = vmatpush2.bf16.msra.mxu0 %v1218
      %6980 = vmatprep.subr.bf16.mxu0 %v1211
      %6981 = vmatpush2.bf16.msra.mxu0 %v1210
      %6982 = vmatprep.subr.bf16.mxu0 %v1203
      %6983 = vmatpush2.bf16.msra.mxu0 %v1202
      %6984 = vmatprep.subr.bf16.mxu0 %v1195
      %6985 = vmatpush2.bf16.msra.mxu0 %v1194
      %6986 = vmatprep.mubr.bf16.mxu0 %v6446
      %6987 = vmatmul.mubr.bf16.gmra.mxu0 %v6445
      %v6988 = vpop.f32.mrf.mxu0
      %v6989 = vadd.f32 0.0, %v6988
      %v6990 = vpop.f32.mrf.mxu0
      %v6991 = vadd.f32 0.0, %v6990
      %v6992 = vpop.f32.mrf.mxu0
      %v6993 = vpop.f32.mrf.mxu0
      %6994 = vdwg.mxu0
      %v6995 = vadd.f32 %v6823, %v6866
      %v6996 = vadd.f32 %v6824, %v6868
      %v6997 = vadd.f32 %v6825, %v6907
      %v6998 = vadd.f32 %v6826, %v6909
      %v6999 = vadd.f32 %v6827, %v6948
      %v7000 = vadd.f32 %v6828, %v6950
      %v7001 = vadd.f32 %v6829, %v6989
      %v7002 = vadd.f32 %v6830, %v6991
      %v7003 = vmul.f32 %v6995, 0.5
      %v7004 = vmul.f32 %v6996, 0.5
      %v7005 = vtanh.pop %v7003
      %v7006 = vtanh.pop %v7004
      %v7007 = vmul.f32 %v7005, 0.5
      %v7008 = vmul.f32 %v7006, 0.5
      %v7009 = vadd.f32 %v7007, 0.5
      %v7010 = vadd.f32 %v7008, 0.5
      %v7011 = vmul.f32 %v6997, 0.5
      %v7012 = vmul.f32 %v6998, 0.5
      %v7013 = vtanh.pop %v7011
      %v7014 = vtanh.pop %v7012
      %v7015 = vmul.f32 %v7013, 0.5
      %v7016 = vmul.f32 %v7014, 0.5
      %v7017 = vadd.f32 %v7015, 0.5
      %v7018 = vadd.f32 %v7016, 0.5
      %v7019 = vtanh.pop %v6999
      %v7020 = vtanh.pop %v7000
      %v7021 = vmul.f32 %v7001, 0.5
      %v7022 = vmul.f32 %v7002, 0.5
      %v7023 = vtanh.pop %v7021
      %v7024 = vtanh.pop %v7022
      %v7025 = vmul.f32 %v7023, 0.5
      %v7026 = vmul.f32 %v7024, 0.5
      %v7027 = vadd.f32 %v7025, 0.5
      %v7028 = vadd.f32 %v7026, 0.5
      %v7029 = vmul.f32 %v7017, %v6437
      %v7030 = vmul.f32 %v7018, %v6438
      %v7031 = vmul.f32 %v7009, %v7019
      %v7032 = vmul.f32 %v7010, %v7020
      %v7033 = vadd.f32 %v7029, %v7031
      %v7034 = vadd.f32 %v7030, %v7032
      %v7035 = vtanh.pop %v7033
      %v7036 = vtanh.pop %v7034
      %v7037 = vmul.f32 %v7027, %v7035
      %v7038 = vmul.f32 %v7028, %v7036
      %v7039 = vpack.c.bf16 %v6817, %v6817
      %v7040 = vpack.c.bf16 %v6818, %v6818
      %v7041 = vpack.c.bf16 %v7037, %v7037
      %v7042 = vpack.c.bf16 %v7038, %v7038
      %7043 = vmatprep.subr.bf16.mxu0 %v2033
      %7044 = vmatpush1.bf16.msra.mxu0 %v2032
      %7045 = vmatprep.subr.bf16.mxu0 %v2025
      %7046 = vmatpush1.bf16.msra.mxu0 %v2024
      %7047 = vmatprep.subr.bf16.mxu0 %v2017
      %7048 = vmatpush1.bf16.msra.mxu0 %v2016
      %7049 = vmatprep.subr.bf16.mxu0 %v2009
      %7050 = vmatpush1.bf16.msra.mxu0 %v2008
      %7051 = vmatprep.subr.bf16.mxu0 %v2001
      %7052 = vmatpush1.bf16.msra.mxu0 %v2000
      %7053 = vmatprep.subr.bf16.mxu0 %v1993
      %7054 = vmatpush1.bf16.msra.mxu0 %v1992
      %7055 = vmatprep.subr.bf16.mxu0 %v1985
      %7056 = vmatpush1.bf16.msra.mxu0 %v1984
      %7057 = vmatprep.subr.bf16.mxu0 %v1977
      %7058 = vmatpush1.bf16.msra.mxu0 %v1976
      %7059 = vmatprep.subr.bf16.mxu0 %v2097
      %7060 = vmatpush2.bf16.msra.mxu0 %v2096
      %7061 = vmatprep.subr.bf16.mxu0 %v2089
      %7062 = vmatpush2.bf16.msra.mxu0 %v2088
      %7063 = vmatprep.subr.bf16.mxu0 %v2081
      %7064 = vmatpush2.bf16.msra.mxu0 %v2080
      %7065 = vmatprep.subr.bf16.mxu0 %v2073
      %7066 = vmatpush2.bf16.msra.mxu0 %v2072
      %7067 = vmatprep.subr.bf16.mxu0 %v2065
      %7068 = vmatpush2.bf16.msra.mxu0 %v2064
      %7069 = vmatprep.subr.bf16.mxu0 %v2057
      %7070 = vmatpush2.bf16.msra.mxu0 %v2056
      %7071 = vmatprep.subr.bf16.mxu0 %v2049
      %7072 = vmatpush2.bf16.msra.mxu0 %v2048
      %7073 = vmatprep.subr.bf16.mxu0 %v2041
      %7074 = vmatpush2.bf16.msra.mxu0 %v2040
      %7075 = vmatprep.mubr.bf16.mxu0 %v7042
      %7076 = vmatmul.mubr.bf16.gmra.mxu0 %v7041
      %v7077 = vpop.f32.mrf.mxu0
      %v7078 = vadd.f32 0.0, %v7077
      %v7079 = vpop.f32.mrf.mxu0
      %v7080 = vadd.f32 0.0, %v7079
      %v7081 = vpop.f32.mrf.mxu0
      %v7082 = vpop.f32.mrf.mxu0
      %7083 = vdwg.mxu0
      %7084 = vmatprep.subr.bf16.mxu0 %v2035
      %7085 = vmatpush1.bf16.msra.mxu0 %v2034
      %7086 = vmatprep.subr.bf16.mxu0 %v2027
      %7087 = vmatpush1.bf16.msra.mxu0 %v2026
      %7088 = vmatprep.subr.bf16.mxu0 %v2019
      %7089 = vmatpush1.bf16.msra.mxu0 %v2018
      %7090 = vmatprep.subr.bf16.mxu0 %v2011
      %7091 = vmatpush1.bf16.msra.mxu0 %v2010
      %7092 = vmatprep.subr.bf16.mxu0 %v2003
      %7093 = vmatpush1.bf16.msra.mxu0 %v2002
      %7094 = vmatprep.subr.bf16.mxu0 %v1995
      %7095 = vmatpush1.bf16.msra.mxu0 %v1994
      %7096 = vmatprep.subr.bf16.mxu0 %v1987
      %7097 = vmatpush1.bf16.msra.mxu0 %v1986
      %7098 = vmatprep.subr.bf16.mxu0 %v1979
      %7099 = vmatpush1.bf16.msra.mxu0 %v1978
      %7100 = vmatprep.subr.bf16.mxu0 %v2099
      %7101 = vmatpush2.bf16.msra.mxu0 %v2098
      %7102 = vmatprep.subr.bf16.mxu0 %v2091
      %7103 = vmatpush2.bf16.msra.mxu0 %v2090
      %7104 = vmatprep.subr.bf16.mxu0 %v2083
      %7105 = vmatpush2.bf16.msra.mxu0 %v2082
      %7106 = vmatprep.subr.bf16.mxu0 %v2075
      %7107 = vmatpush2.bf16.msra.mxu0 %v2074
      %7108 = vmatprep.subr.bf16.mxu0 %v2067
      %7109 = vmatpush2.bf16.msra.mxu0 %v2066
      %7110 = vmatprep.subr.bf16.mxu0 %v2059
      %7111 = vmatpush2.bf16.msra.mxu0 %v2058
      %7112 = vmatprep.subr.bf16.mxu0 %v2051
      %7113 = vmatpush2.bf16.msra.mxu0 %v2050
      %7114 = vmatprep.subr.bf16.mxu0 %v2043
      %7115 = vmatpush2.bf16.msra.mxu0 %v2042
      %7116 = vmatprep.mubr.bf16.mxu0 %v7042
      %7117 = vmatmul.mubr.bf16.gmra.mxu0 %v7041
      %v7118 = vpop.f32.mrf.mxu0
      %v7119 = vadd.f32 0.0, %v7118
      %v7120 = vpop.f32.mrf.mxu0
      %v7121 = vadd.f32 0.0, %v7120
      %v7122 = vpop.f32.mrf.mxu0
      %v7123 = vpop.f32.mrf.mxu0
      %7124 = vdwg.mxu0
      %7125 = vmatprep.subr.bf16.mxu0 %v2037
      %7126 = vmatpush1.bf16.msra.mxu0 %v2036
      %7127 = vmatprep.subr.bf16.mxu0 %v2029
      %7128 = vmatpush1.bf16.msra.mxu0 %v2028
      %7129 = vmatprep.subr.bf16.mxu0 %v2021
      %7130 = vmatpush1.bf16.msra.mxu0 %v2020
      %7131 = vmatprep.subr.bf16.mxu0 %v2013
      %7132 = vmatpush1.bf16.msra.mxu0 %v2012
      %7133 = vmatprep.subr.bf16.mxu0 %v2005
      %7134 = vmatpush1.bf16.msra.mxu0 %v2004
      %7135 = vmatprep.subr.bf16.mxu0 %v1997
      %7136 = vmatpush1.bf16.msra.mxu0 %v1996
      %7137 = vmatprep.subr.bf16.mxu0 %v1989
      %7138 = vmatpush1.bf16.msra.mxu0 %v1988
      %7139 = vmatprep.subr.bf16.mxu0 %v1981
      %7140 = vmatpush1.bf16.msra.mxu0 %v1980
      %7141 = vmatprep.subr.bf16.mxu0 %v2101
      %7142 = vmatpush2.bf16.msra.mxu0 %v2100
      %7143 = vmatprep.subr.bf16.mxu0 %v2093
      %7144 = vmatpush2.bf16.msra.mxu0 %v2092
      %7145 = vmatprep.subr.bf16.mxu0 %v2085
      %7146 = vmatpush2.bf16.msra.mxu0 %v2084
      %7147 = vmatprep.subr.bf16.mxu0 %v2077
      %7148 = vmatpush2.bf16.msra.mxu0 %v2076
      %7149 = vmatprep.subr.bf16.mxu0 %v2069
      %7150 = vmatpush2.bf16.msra.mxu0 %v2068
      %7151 = vmatprep.subr.bf16.mxu0 %v2061
      %7152 = vmatpush2.bf16.msra.mxu0 %v2060
      %7153 = vmatprep.subr.bf16.mxu0 %v2053
      %7154 = vmatpush2.bf16.msra.mxu0 %v2052
      %7155 = vmatprep.subr.bf16.mxu0 %v2045
      %7156 = vmatpush2.bf16.msra.mxu0 %v2044
      %7157 = vmatprep.mubr.bf16.mxu0 %v7042
      %7158 = vmatmul.mubr.bf16.gmra.mxu0 %v7041
      %v7159 = vpop.f32.mrf.mxu0
      %v7160 = vadd.f32 0.0, %v7159
      %v7161 = vpop.f32.mrf.mxu0
      %v7162 = vadd.f32 0.0, %v7161
      %v7163 = vpop.f32.mrf.mxu0
      %v7164 = vpop.f32.mrf.mxu0
      %7165 = vdwg.mxu0
      %7166 = vmatprep.subr.bf16.mxu0 %v2039
      %7167 = vmatpush1.bf16.msra.mxu0 %v2038
      %7168 = vmatprep.subr.bf16.mxu0 %v2031
      %7169 = vmatpush1.bf16.msra.mxu0 %v2030
      %7170 = vmatprep.subr.bf16.mxu0 %v2023
      %7171 = vmatpush1.bf16.msra.mxu0 %v2022
      %7172 = vmatprep.subr.bf16.mxu0 %v2015
      %7173 = vmatpush1.bf16.msra.mxu0 %v2014
      %7174 = vmatprep.subr.bf16.mxu0 %v2007
      %7175 = vmatpush1.bf16.msra.mxu0 %v2006
      %7176 = vmatprep.subr.bf16.mxu0 %v1999
      %7177 = vmatpush1.bf16.msra.mxu0 %v1998
      %7178 = vmatprep.subr.bf16.mxu0 %v1991
      %7179 = vmatpush1.bf16.msra.mxu0 %v1990
      %7180 = vmatprep.subr.bf16.mxu0 %v1983
      %7181 = vmatpush1.bf16.msra.mxu0 %v1982
      %7182 = vmatprep.subr.bf16.mxu0 %v2103
      %7183 = vmatpush2.bf16.msra.mxu0 %v2102
      %7184 = vmatprep.subr.bf16.mxu0 %v2095
      %7185 = vmatpush2.bf16.msra.mxu0 %v2094
      %7186 = vmatprep.subr.bf16.mxu0 %v2087
      %7187 = vmatpush2.bf16.msra.mxu0 %v2086
      %7188 = vmatprep.subr.bf16.mxu0 %v2079
      %7189 = vmatpush2.bf16.msra.mxu0 %v2078
      %7190 = vmatprep.subr.bf16.mxu0 %v2071
      %7191 = vmatpush2.bf16.msra.mxu0 %v2070
      %7192 = vmatprep.subr.bf16.mxu0 %v2063
      %7193 = vmatpush2.bf16.msra.mxu0 %v2062
      %7194 = vmatprep.subr.bf16.mxu0 %v2055
      %7195 = vmatpush2.bf16.msra.mxu0 %v2054
      %7196 = vmatprep.subr.bf16.mxu0 %v2047
      %7197 = vmatpush2.bf16.msra.mxu0 %v2046
      %7198 = vmatprep.mubr.bf16.mxu0 %v7042
      %7199 = vmatmul.mubr.bf16.gmra.mxu0 %v7041
      %v7200 = vpop.f32.mrf.mxu0
      %v7201 = vadd.f32 0.0, %v7200
      %v7202 = vpop.f32.mrf.mxu0
      %v7203 = vadd.f32 0.0, %v7202
      %v7204 = vpop.f32.mrf.mxu0
      %v7205 = vpop.f32.mrf.mxu0
      %7206 = vdwg.mxu0
      %7207 = vmatprep.subr.bf16.mxu0 %v2837
      %7208 = vmatpush1.bf16.msra.mxu0 %v2836
      %7209 = vmatprep.subr.bf16.mxu0 %v2829
      %7210 = vmatpush1.bf16.msra.mxu0 %v2828
      %7211 = vmatprep.subr.bf16.mxu0 %v2821
      %7212 = vmatpush1.bf16.msra.mxu0 %v2820
      %7213 = vmatprep.subr.bf16.mxu0 %v2813
      %7214 = vmatpush1.bf16.msra.mxu0 %v2812
      %7215 = vmatprep.subr.bf16.mxu0 %v2805
      %7216 = vmatpush1.bf16.msra.mxu0 %v2804
      %7217 = vmatprep.subr.bf16.mxu0 %v2797
      %7218 = vmatpush1.bf16.msra.mxu0 %v2796
      %7219 = vmatprep.subr.bf16.mxu0 %v2789
      %7220 = vmatpush1.bf16.msra.mxu0 %v2788
      %7221 = vmatprep.subr.bf16.mxu0 %v2781
      %7222 = vmatpush1.bf16.msra.mxu0 %v2780
      %7223 = vmatprep.subr.bf16.mxu0 %v2901
      %7224 = vmatpush2.bf16.msra.mxu0 %v2900
      %7225 = vmatprep.subr.bf16.mxu0 %v2893
      %7226 = vmatpush2.bf16.msra.mxu0 %v2892
      %7227 = vmatprep.subr.bf16.mxu0 %v2885
      %7228 = vmatpush2.bf16.msra.mxu0 %v2884
      %7229 = vmatprep.subr.bf16.mxu0 %v2877
      %7230 = vmatpush2.bf16.msra.mxu0 %v2876
      %7231 = vmatprep.subr.bf16.mxu0 %v2869
      %7232 = vmatpush2.bf16.msra.mxu0 %v2868
      %7233 = vmatprep.subr.bf16.mxu0 %v2861
      %7234 = vmatpush2.bf16.msra.mxu0 %v2860
      %7235 = vmatprep.subr.bf16.mxu0 %v2853
      %7236 = vmatpush2.bf16.msra.mxu0 %v2852
      %7237 = vmatprep.subr.bf16.mxu0 %v2845
      %7238 = vmatpush2.bf16.msra.mxu0 %v2844
      %7239 = vmatprep.mubr.bf16.mxu0 %v7040
      %7240 = vmatmul.mubr.bf16.gmra.mxu0 %v7039
      %v7241 = vpop.f32.mrf.mxu0
      %v7242 = vadd.f32 %v7078, %v7241
      %v7243 = vpop.f32.mrf.mxu0
      %v7244 = vadd.f32 %v7080, %v7243
      %v7245 = vpop.f32.mrf.mxu0
      %v7246 = vpop.f32.mrf.mxu0
      %7247 = vdwg.mxu0
      %7248 = vmatprep.subr.bf16.mxu0 %v2839
      %7249 = vmatpush1.bf16.msra.mxu0 %v2838
      %7250 = vmatprep.subr.bf16.mxu0 %v2831
      %7251 = vmatpush1.bf16.msra.mxu0 %v2830
      %7252 = vmatprep.subr.bf16.mxu0 %v2823
      %7253 = vmatpush1.bf16.msra.mxu0 %v2822
      %7254 = vmatprep.subr.bf16.mxu0 %v2815
      %7255 = vmatpush1.bf16.msra.mxu0 %v2814
      %7256 = vmatprep.subr.bf16.mxu0 %v2807
      %7257 = vmatpush1.bf16.msra.mxu0 %v2806
      %7258 = vmatprep.subr.bf16.mxu0 %v2799
      %7259 = vmatpush1.bf16.msra.mxu0 %v2798
      %7260 = vmatprep.subr.bf16.mxu0 %v2791
      %7261 = vmatpush1.bf16.msra.mxu0 %v2790
      %7262 = vmatprep.subr.bf16.mxu0 %v2783
      %7263 = vmatpush1.bf16.msra.mxu0 %v2782
      %7264 = vmatprep.subr.bf16.mxu0 %v2903
      %7265 = vmatpush2.bf16.msra.mxu0 %v2902
      %7266 = vmatprep.subr.bf16.mxu0 %v2895
      %7267 = vmatpush2.bf16.msra.mxu0 %v2894
      %7268 = vmatprep.subr.bf16.mxu0 %v2887
      %7269 = vmatpush2.bf16.msra.mxu0 %v2886
      %7270 = vmatprep.subr.bf16.mxu0 %v2879
      %7271 = vmatpush2.bf16.msra.mxu0 %v2878
      %7272 = vmatprep.subr.bf16.mxu0 %v2871
      %7273 = vmatpush2.bf16.msra.mxu0 %v2870
      %7274 = vmatprep.subr.bf16.mxu0 %v2863
      %7275 = vmatpush2.bf16.msra.mxu0 %v2862
      %7276 = vmatprep.subr.bf16.mxu0 %v2855
      %7277 = vmatpush2.bf16.msra.mxu0 %v2854
      %7278 = vmatprep.subr.bf16.mxu0 %v2847
      %7279 = vmatpush2.bf16.msra.mxu0 %v2846
      %7280 = vmatprep.mubr.bf16.mxu0 %v7040
      %7281 = vmatmul.mubr.bf16.gmra.mxu0 %v7039
      %v7282 = vpop.f32.mrf.mxu0
      %v7283 = vadd.f32 %v7119, %v7282
      %v7284 = vpop.f32.mrf.mxu0
      %v7285 = vadd.f32 %v7121, %v7284
      %v7286 = vpop.f32.mrf.mxu0
      %v7287 = vpop.f32.mrf.mxu0
      %7288 = vdwg.mxu0
      %7289 = vmatprep.subr.bf16.mxu0 %v2841
      %7290 = vmatpush1.bf16.msra.mxu0 %v2840
      %7291 = vmatprep.subr.bf16.mxu0 %v2833
      %7292 = vmatpush1.bf16.msra.mxu0 %v2832
      %7293 = vmatprep.subr.bf16.mxu0 %v2825
      %7294 = vmatpush1.bf16.msra.mxu0 %v2824
      %7295 = vmatprep.subr.bf16.mxu0 %v2817
      %7296 = vmatpush1.bf16.msra.mxu0 %v2816
      %7297 = vmatprep.subr.bf16.mxu0 %v2809
      %7298 = vmatpush1.bf16.msra.mxu0 %v2808
      %7299 = vmatprep.subr.bf16.mxu0 %v2801
      %7300 = vmatpush1.bf16.msra.mxu0 %v2800
      %7301 = vmatprep.subr.bf16.mxu0 %v2793
      %7302 = vmatpush1.bf16.msra.mxu0 %v2792
      %7303 = vmatprep.subr.bf16.mxu0 %v2785
      %7304 = vmatpush1.bf16.msra.mxu0 %v2784
      %7305 = vmatprep.subr.bf16.mxu0 %v2905
      %7306 = vmatpush2.bf16.msra.mxu0 %v2904
      %7307 = vmatprep.subr.bf16.mxu0 %v2897
      %7308 = vmatpush2.bf16.msra.mxu0 %v2896
      %7309 = vmatprep.subr.bf16.mxu0 %v2889
      %7310 = vmatpush2.bf16.msra.mxu0 %v2888
      %7311 = vmatprep.subr.bf16.mxu0 %v2881
      %7312 = vmatpush2.bf16.msra.mxu0 %v2880
      %7313 = vmatprep.subr.bf16.mxu0 %v2873
      %7314 = vmatpush2.bf16.msra.mxu0 %v2872
      %7315 = vmatprep.subr.bf16.mxu0 %v2865
      %7316 = vmatpush2.bf16.msra.mxu0 %v2864
      %7317 = vmatprep.subr.bf16.mxu0 %v2857
      %7318 = vmatpush2.bf16.msra.mxu0 %v2856
      %7319 = vmatprep.subr.bf16.mxu0 %v2849
      %7320 = vmatpush2.bf16.msra.mxu0 %v2848
      %7321 = vmatprep.mubr.bf16.mxu0 %v7040
      %7322 = vmatmul.mubr.bf16.gmra.mxu0 %v7039
      %v7323 = vpop.f32.mrf.mxu0
      %v7324 = vadd.f32 %v7160, %v7323
      %v7325 = vpop.f32.mrf.mxu0
      %v7326 = vadd.f32 %v7162, %v7325
      %v7327 = vpop.f32.mrf.mxu0
      %v7328 = vpop.f32.mrf.mxu0
      %7329 = vdwg.mxu0
      %7330 = vmatprep.subr.bf16.mxu0 %v2843
      %7331 = vmatpush1.bf16.msra.mxu0 %v2842
      %7332 = vmatprep.subr.bf16.mxu0 %v2835
      %7333 = vmatpush1.bf16.msra.mxu0 %v2834
      %7334 = vmatprep.subr.bf16.mxu0 %v2827
      %7335 = vmatpush1.bf16.msra.mxu0 %v2826
      %7336 = vmatprep.subr.bf16.mxu0 %v2819
      %7337 = vmatpush1.bf16.msra.mxu0 %v2818
      %7338 = vmatprep.subr.bf16.mxu0 %v2811
      %7339 = vmatpush1.bf16.msra.mxu0 %v2810
      %7340 = vmatprep.subr.bf16.mxu0 %v2803
      %7341 = vmatpush1.bf16.msra.mxu0 %v2802
      %7342 = vmatprep.subr.bf16.mxu0 %v2795
      %7343 = vmatpush1.bf16.msra.mxu0 %v2794
      %7344 = vmatprep.subr.bf16.mxu0 %v2787
      %7345 = vmatpush1.bf16.msra.mxu0 %v2786
      %7346 = vmatprep.subr.bf16.mxu0 %v2907
      %7347 = vmatpush2.bf16.msra.mxu0 %v2906
      %7348 = vmatprep.subr.bf16.mxu0 %v2899
      %7349 = vmatpush2.bf16.msra.mxu0 %v2898
      %7350 = vmatprep.subr.bf16.mxu0 %v2891
      %7351 = vmatpush2.bf16.msra.mxu0 %v2890
      %7352 = vmatprep.subr.bf16.mxu0 %v2883
      %7353 = vmatpush2.bf16.msra.mxu0 %v2882
      %7354 = vmatprep.subr.bf16.mxu0 %v2875
      %7355 = vmatpush2.bf16.msra.mxu0 %v2874
      %7356 = vmatprep.subr.bf16.mxu0 %v2867
      %7357 = vmatpush2.bf16.msra.mxu0 %v2866
      %7358 = vmatprep.subr.bf16.mxu0 %v2859
      %7359 = vmatpush2.bf16.msra.mxu0 %v2858
      %7360 = vmatprep.subr.bf16.mxu0 %v2851
      %7361 = vmatpush2.bf16.msra.mxu0 %v2850
      %7362 = vmatprep.mubr.bf16.mxu0 %v7040
      %7363 = vmatmul.mubr.bf16.gmra.mxu0 %v7039
      %v7364 = vpop.f32.mrf.mxu0
      %v7365 = vadd.f32 %v7201, %v7364
      %v7366 = vpop.f32.mrf.mxu0
      %v7367 = vadd.f32 %v7203, %v7366
      %v7368 = vpop.f32.mrf.mxu0
      %v7369 = vpop.f32.mrf.mxu0
      %7370 = vdwg.mxu0
      %v7371 = vadd.f32 %v7242, %v693
      %v7372 = vadd.f32 %v7244, %v697
      %v7373 = vadd.f32 %v7283, %v701
      %v7374 = vadd.f32 %v7285, %v705
      %v7375 = vadd.f32 %v7324, %v709
      %v7376 = vadd.f32 %v7326, %v713
      %v7377 = vadd.f32 %v7365, %v717
      %v7378 = vadd.f32 %v7367, %v721
      %v7379 = vmul.f32 %v7371, 0.5
      %v7380 = vmul.f32 %v7372, 0.5
      %v7381 = vtanh.pop %v7379
      %v7382 = vtanh.pop %v7380
      %v7383 = vmul.f32 %v7381, 0.5
      %v7384 = vmul.f32 %v7382, 0.5
      %v7385 = vadd.f32 %v7383, 0.5
      %v7386 = vadd.f32 %v7384, 0.5
      %v7387 = vmul.f32 %v7373, 0.5
      %v7388 = vmul.f32 %v7374, 0.5
      %v7389 = vtanh.pop %v7387
      %v7390 = vtanh.pop %v7388
      %v7391 = vmul.f32 %v7389, 0.5
      %v7392 = vmul.f32 %v7390, 0.5
      %v7393 = vadd.f32 %v7391, 0.5
      %v7394 = vadd.f32 %v7392, 0.5
      %v7395 = vtanh.pop %v7375
      %v7396 = vtanh.pop %v7376
      %v7397 = vmul.f32 %v7377, 0.5
      %v7398 = vmul.f32 %v7378, 0.5
      %v7399 = vtanh.pop %v7397
      %v7400 = vtanh.pop %v7398
      %v7401 = vmul.f32 %v7399, 0.5
      %v7402 = vmul.f32 %v7400, 0.5
      %v7403 = vadd.f32 %v7401, 0.5
      %v7404 = vadd.f32 %v7402, 0.5
      %v7405 = vmul.f32 %v7393, %v6813
      %v7406 = vmul.f32 %v7394, %v6814
      %v7407 = vmul.f32 %v7385, %v7395
      %v7408 = vmul.f32 %v7386, %v7396
      %v7409 = vadd.f32 %v7405, %v7407
      %v7410 = vadd.f32 %v7406, %v7408
      %v7411 = vtanh.pop %v7409
      %v7412 = vtanh.pop %v7410
      %v7413 = vmul.f32 %v7403, %v7411
      %v7414 = vmul.f32 %v7404, %v7412
      %s7415 = scalar_lea.vmem %s280, 112
      %7416 = vst [vmem:[%s7415] sm:$0xff] %v7413
      %7417 = vst [vmem:[%s7415 + $0x8] sm:$0xff] %v7414
      %7418 = vst [vmem:[%s6] sm:$0xff] %v7037
      %7419 = vst [vmem:[%s6 + $0x8] sm:$0xff] %v7038
      %7420 = vst [vmem:[%s298] sm:$0xff] %v7413
      %7421 = vst [vmem:[%s298 + $0x8] sm:$0xff] %v7414
      %7422 = vst [vmem:[%s7] sm:$0xff] %v7033
      %7423 = vst [vmem:[%s7 + $0x8] sm:$0xff] %v7034
      %7424 = vst [vmem:[%s301] sm:$0xff] %v7409
      %7425 = vst [vmem:[%s301 + $0x8] sm:$0xff] %v7410
      %s7426 = smul.u32 8, %s19
      %p7427 = scmp.lt.s32.totalorder %s7426, 15
      %s7428 = scalar_select %p7427, %s7426, 15
      %s7429 = smul.addr %s7428, 2
      %s7430 = smul.addr %s7429, 8
      %s7431 = scalar_lea.vmem %s5, %s7430
      // Predicated region
      $region45: #{audio_classifier_lstm_forward.1} parent=39 // pred_check
        %p7432 = pneg %p147
      $region46: #{audio_classifier_lstm_forward.1} parent=39 // pred_check_branch
        %7434 = sbr.rel (%p7432) target = $region48
      $region47: #{audio_classifier_lstm_forward.1} parent=39 // pred_region
        %s7435 = smul.u32 8, %s19
      $region48: #{audio_classifier_lstm_forward.1} parent=39 // pred_fallthru
        _
      // Predicated region
      $region49: #{audio_classifier_lstm_forward.1} parent=39 // pred_check
        %p7436 = pneg %p168
      $region50: #{audio_classifier_lstm_forward.1} parent=39 // pred_check_branch
        %7438 = sbr.rel (%p7436) target = $region52
      $region51: #{audio_classifier_lstm_forward.1} parent=39 // pred_region
        _
      $region52: #{audio_classifier_lstm_forward.1} parent=39 // pred_fallthru
        _
      // Predicated region
      $region53: #{audio_classifier_lstm_forward.1} parent=39 // pred_check
        %p7439 = pneg %p189
      $region54: #{audio_classifier_lstm_forward.1} parent=39 // pred_check_branch
        %7441 = sbr.rel (%p7439) target = $region56
      $region55: #{audio_classifier_lstm_forward.1} parent=39 // pred_region
        _
      $region56: #{audio_classifier_lstm_forward.1} parent=39 // pred_fallthru
        _
      // Predicated region
      $region57: #{audio_classifier_lstm_forward.1} parent=39 // pred_check
        %p7442 = pneg %p168
      $region58: #{audio_classifier_lstm_forward.1} parent=39 // pred_check_branch
        %7444 = sbr.rel (%p7442) target = $region60
      $region59: #{audio_classifier_lstm_forward.1} parent=39 // pred_region
        _
      $region60: #{audio_classifier_lstm_forward.1} parent=39 // pred_fallthru
        _
      // Predicated region
      $region61: #{audio_classifier_lstm_forward.1} parent=39 // pred_check
        %p7445 = pneg %p189
      $region62: #{audio_classifier_lstm_forward.1} parent=39 // pred_check_branch
        %7447 = sbr.rel (%p7445) target = $region64
      $region63: #{audio_classifier_lstm_forward.1} parent=39 // pred_region
        _
      $region64: #{audio_classifier_lstm_forward.1} parent=39 // pred_fallthru
        _
    $region40: #{audio_classifier_lstm_forward.1} parent=5 // pred_fallthru
      _
    %p7448 = scmp.le.s32.totalorder 2, %s14
    // Predicated region
    $region65: #{audio_classifier_lstm_forward.1} parent=5 // pred_check
      %p7449 = pneg %p7448
    $region66: #{audio_classifier_lstm_forward.1} parent=5 // pred_check_branch
      %7451 = sbr.rel (%p7449) target = $region68
    $region67: #{audio_classifier_lstm_forward.1} parent=5 // pred_region
      %s7452 = ssub.s32 %s14, 2
      // Predicated region
      $region69: #{audio_classifier_lstm_forward.1} parent=67 // pred_check
        %p7453 = pneg %p153
      $region70: #{audio_classifier_lstm_forward.1} parent=67 // pred_check_branch
        %7455 = sbr.rel (%p7453) target = $region72
      $region71: #{audio_classifier_lstm_forward.1} parent=67 // pred_region
        %s7456 = smul.u32 8, %s20
        %p7457 = scmp.lt.s32.totalorder %s7456, 15
        %s7458 = scalar_select %p7457, %s7456, 15
        %s7459 = smul.addr %s7458, 2
        %s7460 = smul.addr %s7459, 8
        %s7461 = scalar_lea.vmem %s5, %s7460
      $region72: #{audio_classifier_lstm_forward.1} parent=67 // pred_fallthru
        _
    $region68: #{audio_classifier_lstm_forward.1} parent=5 // pred_fallthru
      _
  $region6: #{audio_classifier_lstm_forward.1} parent=0 // loop_footer
    %s18 = sadd.s32 1, %s14
  $region7: #{audio_classifier_lstm_forward.1} parent=0 // loop_footer_branch
    %13 = sbr.rel target = $region3
  $region8: #{audio_classifier_lstm_forward.1} parent=0 // loop_exit
    _

</llo_original>
